<compile_context>
chip_gen: v7x
topology: tpu7x:2x2x1
jax: 0.10.0
libtpu: 0.0.40
codegen_flags: <defaults>
</compile_context>

<pallas_src>
import numpy as np
import jax
import jax.numpy as jnp
from jax.experimental import pallas as pl
from jax.experimental.pallas import tpu as pltpu

BN_EPS = 1e-5


def _vmem_spec():
    return pl.BlockSpec(memory_space=pltpu.MemorySpace.VMEM)


# ---------------------------------------------------------------------------
# Fused kernel.  Activations use a "wide" layout (N, P*C): rows = samples,
# columns ordered (spatial position, channel).
# ---------------------------------------------------------------------------
def _fused_forward_kernel(x_ref, m1_ref, cs1_ref, cs1t_ref, g1_ref, b1_ref,
                          m2_ref, cs2_ref, cs2t_ref, g2_ref, b2_ref,
                          wfc_ref, bfc_ref, o_ref):
    n = x_ref.shape[0]

    def conv_bn_relu(x_bf16, m_ref, cs_ref, cst_ref, g_ref, b_ref):
        # conv == one dense matmul on the wide layout (bf16 x bf16 -> f32)
        y = jnp.dot(x_bf16, m_ref[...], preferred_element_type=jnp.float32)
        c = cs_ref.shape[1]
        p = m_ref.shape[1] // c
        inv_m = 1.0 / float(n * p)
        # one-pass batch stats, pooled per channel via a 0/1 matmul
        col_sum = jnp.sum(y, axis=0, keepdims=True)
        col_sqsum = jnp.sum(y * y, axis=0, keepdims=True)
        ch_mean = jnp.dot(col_sum, cs_ref[...],
                          preferred_element_type=jnp.float32) * inv_m
        ch_sqmean = jnp.dot(col_sqsum, cs_ref[...],
                            preferred_element_type=jnp.float32) * inv_m
        ch_var = jnp.maximum(ch_sqmean - ch_mean * ch_mean, 0.0)
        # BatchNorm folded to one scale/shift per channel
        scale = g_ref[...] * jax.lax.rsqrt(ch_var + BN_EPS)
        shift = b_ref[...] - ch_mean * scale
        # broadcast per-channel scale/shift back to wide columns (0/1 matmul)
        scale_w = jnp.dot(scale, cst_ref[...], preferred_element_type=jnp.float32)
        shift_w = jnp.dot(shift, cst_ref[...], preferred_element_type=jnp.float32)
        return jnp.maximum(y * scale_w + shift_w, 0.0)

    x = x_ref[...].astype(jnp.bfloat16)
    y1 = conv_bn_relu(x, m1_ref, cs1_ref, cs1t_ref, g1_ref, b1_ref)
    y2 = conv_bn_relu(y1.astype(jnp.bfloat16), m2_ref, cs2_ref, cs2t_ref,
                      g2_ref, b2_ref)
    logits = jnp.dot(y2.astype(jnp.bfloat16), wfc_ref[...],
                     preferred_element_type=jnp.float32)
    o_ref[...] = jnp.maximum(logits + bfc_ref[...], 0.0)


# ---------------------------------------------------------------------------
# Host-side (one-time, at init) constant builders.
# ---------------------------------------------------------------------------
def _build_conv_matrix(weight, H, W, in_layout):
    """Dense matrix D so that (flattened input) @ D equals the
    Conv2d(k=3, s=2, p=1, bias dropped) output in position-major,
    channel-last wide layout.

    weight: (C_out, C_in, 3, 3) numpy.
    in_layout: 'chw' -> input rows are c*H*W + h*W + w (torch NCHW flatten)
               'hwc' -> input rows are (h*W + w)*C_in + c (our wide layout)
    """
    C_out, C_in, KH, KW = weight.shape
    Ho = (H + 2 - KH) // 2 + 1
    Wo = (W + 2 - KW) // 2 + 1
    D = np.zeros((C_in * H * W, Ho * Wo * C_out), dtype=np.float32)
    for oh in range(Ho):
        for ow in range(Wo):
            col = (oh * Wo + ow) * C_out
            for kh in range(KH):
                ih = 2 * oh + kh - 1
                if not (0 <= ih < H):
                    continue
                for kw in range(KW):
                    iw = 2 * ow + kw - 1
                    if not (0 <= iw < W):
                        continue
                    for ci in range(C_in):
                        if in_layout == "chw":
                            r = ci * H * W + ih * W + iw
                        else:
                            r = (ih * W + iw) * C_in + ci
                        D[r, col:col + C_out] = weight[:, ci, kh, kw]
    return D, Ho, Wo


def _channel_select(p, c):
    """(P*C, C) 0/1 matrix pooling wide columns (pos-major, chan-last) per channel."""
    return np.tile(np.eye(c, dtype=np.float32), (p, 1))


# ---------------------------------------------------------------------------
# Model
# ---------------------------------------------------------------------------
class GameBoyOptimizedCNNPallas:
    def __init__(self, input_shape, output_dim, key):
        C, H, W = input_shape
        keys = jax.random.split(key, 4)

        def conv_weight(k, c_out, c_in):
            bound = 1.0 / float(np.sqrt(c_in * 9.0))
            return jax.random.uniform(k, (c_out, c_in, 3, 3), jnp.float32,
                                      -bound, bound)

        # Conv biases are intentionally omitted: a per-channel constant added
        # before a training-mode BatchNorm is exactly cancelled by the mean
        # subtraction, so the forward output is unchanged.
        w1 = np.asarray(conv_weight(keys[0], 16, C))
        w2 = np.asarray(conv_weight(keys[1], 32, 16))

        m1, h1, w1o = _build_conv_matrix(w1, H, W, in_layout="chw")
        m2, h2, w2o = _build_conv_matrix(w2, h1, w1o, in_layout="hwc")

        p1, c1 = h1 * w1o, 16
        p2, c2 = h2 * w2o, 32
        self.flat_features = p2 * c2      # mirrors the torch __init__ shape probe
        self.output_dim = output_dim

        fbound = 1.0 / float(np.sqrt(self.flat_features))
        wfc = jax.random.uniform(keys[2], (output_dim, self.flat_features),
                                 jnp.float32, -fbound, fbound)
        bfc = jax.random.uniform(keys[3], (output_dim,), jnp.float32,
                                 -fbound, fbound)
        # Permute FC columns once so the channel-last wide layout matches
        # torch's NCHW .view(-1, flat) flatten order (no runtime transpose).
        wfc_k = (np.asarray(wfc).reshape(output_dim, c2, h2, w2o)
                 .transpose(0, 2, 3, 1).reshape(output_dim, -1).T)

        cs1 = _channel_select(p1, c1)
        cs2 = _channel_select(p2, c2)

        self.params = dict(
            m1=jnp.asarray(m1, jnp.bfloat16),
            cs1=jnp.asarray(cs1),
            cs1t=jnp.asarray(cs1.T),
            g1=jnp.ones((1, c1), jnp.float32),
            b1=jnp.zeros((1, c1), jnp.float32),
            m2=jnp.asarray(m2, jnp.bfloat16),
            cs2=jnp.asarray(cs2),
            cs2t=jnp.asarray(cs2.T),
            g2=jnp.ones((1, c2), jnp.float32),
            b2=jnp.zeros((1, c2), jnp.float32),
            wfc=jnp.asarray(wfc_k, jnp.bfloat16),
            bfc=bfc.reshape(1, output_dim).astype(jnp.float32),
        )

    def __call__(self, x):
        # x: (N, C, H, W) float32, NCHW like PyTorch
        n = x.shape[0]
        x_flat = x.reshape(n, -1).astype(jnp.float32)   # NCHW flatten (metadata only)
        p = self.params
        return pl.pallas_call(
            _fused_forward_kernel,
            out_shape=jax.ShapeDtypeStruct((n, self.output_dim), jnp.float32),
            in_specs=[_vmem_spec() for _ in range(13)],
            out_specs=_vmem_spec(),
        )(x_flat,
          p["m1"], p["cs1"], p["cs1t"], p["g1"], p["b1"],
          p["m2"], p["cs2"], p["cs2t"], p["g2"], p["b2"],
          p["wfc"], p["bfc"])


if __name__ == "__main__":
    key = jax.random.PRNGKey(0)
    k_params, k_input = jax.random.split(key)

    input_shape = (4, 16, 16)   # (C, H, W)
    output_dim = 32
    batch = 2

    model = GameBoyOptimizedCNNPallas(input_shape, output_dim, k_params)
    x = jax.random.normal(k_input, (batch, *input_shape), dtype=jnp.float32)

    out = jax.block_until_ready(model(x))
    assert out.shape == (batch, output_dim)
    assert bool(jnp.all(out >= 0.0))   # ReLU output
    print("KERNEL_OK")
</pallas_src>

<mosaic_0001>
module attributes {stable_mosaic.version = 11 : i64} {
  func.func @_fused_forward_kernel(%arg0: memref<2x1024xf32, #tpu.memory_space<vmem>>, %arg1: memref<1024x1024xbf16, #tpu.memory_space<vmem>>, %arg2: memref<1024x16xf32, #tpu.memory_space<vmem>>, %arg3: memref<16x1024xf32, #tpu.memory_space<vmem>>, %arg4: memref<1x16xf32, #tpu.memory_space<vmem>>, %arg5: memref<1x16xf32, #tpu.memory_space<vmem>>, %arg6: memref<1024x512xbf16, #tpu.memory_space<vmem>>, %arg7: memref<512x32xf32, #tpu.memory_space<vmem>>, %arg8: memref<32x512xf32, #tpu.memory_space<vmem>>, %arg9: memref<1x32xf32, #tpu.memory_space<vmem>>, %arg10: memref<1x32xf32, #tpu.memory_space<vmem>>, %arg11: memref<512x32xbf16, #tpu.memory_space<vmem>>, %arg12: memref<1x32xf32, #tpu.memory_space<vmem>>, %arg13: memref<2x32xf32, #tpu.memory_space<vmem>>) attributes {dimension_semantics = [], scalar_prefetch = 0 : i64, scratch_operands = 0 : i64, tpu.core_type = #tpu.core_type<tc>} {
    %c0 = arith.constant 0 : index
    %c0_0 = arith.constant 0 : index
    %0 = vector.load %arg0[%c0, %c0_0] : memref<2x1024xf32, #tpu.memory_space<vmem>>, vector<2x1024xf32>
    %1 = arith.truncf %0 : vector<2x1024xf32> to vector<2x1024xbf16>
    %c0_1 = arith.constant 0 : index
    %c0_2 = arith.constant 0 : index
    %2 = vector.load %arg1[%c0_1, %c0_2] : memref<1024x1024xbf16, #tpu.memory_space<vmem>>, vector<1024x1024xbf16>
    %cst = arith.constant dense<0.000000e+00> : vector<2x1024xf32>
    %3 = tpu.matmul %1, %2, %cst {dimension_numbers = #tpu.dot_dimension_numbers<[1], [0], [0], [1], [0, 0, 1, 1], [], []>} : vector<2x1024xbf16>, vector<1024x1024xbf16>, vector<2x1024xf32> -> vector<2x1024xf32>
    %cst_3 = arith.constant dense<0.000000e+00> : vector<1024xf32>
    %4 = vector.multi_reduction <add>, %3, %cst_3 [0] : vector<2x1024xf32> to vector<1024xf32>
    %5 = vector.shape_cast %4 : vector<1024xf32> to vector<1x1024xf32>
    %6 = arith.mulf %3, %3 : vector<2x1024xf32>
    %cst_4 = arith.constant dense<0.000000e+00> : vector<1024xf32>
    %7 = vector.multi_reduction <add>, %6, %cst_4 [0] : vector<2x1024xf32> to vector<1024xf32>
    %8 = vector.shape_cast %7 : vector<1024xf32> to vector<1x1024xf32>
    %c0_5 = arith.constant 0 : index
    %c0_6 = arith.constant 0 : index
    %9 = vector.load %arg2[%c0_5, %c0_6] : memref<1024x16xf32, #tpu.memory_space<vmem>>, vector<1024x16xf32>
    %cst_7 = arith.constant dense<0.000000e+00> : vector<1x16xf32>
    %10 = tpu.matmul %5, %9, %cst_7 {dimension_numbers = #tpu.dot_dimension_numbers<[1], [0], [0], [1], [0, 0, 1, 1], [], []>} : vector<1x1024xf32>, vector<1024x16xf32>, vector<1x16xf32> -> vector<1x16xf32>
    %cst_8 = arith.constant 7.812500e-03 : f32
    %11 = vector.broadcast %cst_8 : f32 to vector<1x16xf32>
    %12 = arith.mulf %10, %11 : vector<1x16xf32>
    %c0_9 = arith.constant 0 : index
    %c0_10 = arith.constant 0 : index
    %13 = vector.load %arg2[%c0_9, %c0_10] : memref<1024x16xf32, #tpu.memory_space<vmem>>, vector<1024x16xf32>
    %cst_11 = arith.constant dense<0.000000e+00> : vector<1x16xf32>
    %14 = tpu.matmul %8, %13, %cst_11 {dimension_numbers = #tpu.dot_dimension_numbers<[1], [0], [0], [1], [0, 0, 1, 1], [], []>} : vector<1x1024xf32>, vector<1024x16xf32>, vector<1x16xf32> -> vector<1x16xf32>
    %cst_12 = arith.constant 7.812500e-03 : f32
    %15 = vector.broadcast %cst_12 : f32 to vector<1x16xf32>
    %16 = arith.mulf %14, %15 : vector<1x16xf32>
    %17 = arith.mulf %12, %12 : vector<1x16xf32>
    %18 = arith.subf %16, %17 : vector<1x16xf32>
    %cst_13 = arith.constant 0.000000e+00 : f32
    %19 = vector.broadcast %cst_13 : f32 to vector<1x16xf32>
    %20 = arith.maximumf %18, %19 : vector<1x16xf32>
    %c0_14 = arith.constant 0 : index
    %c0_15 = arith.constant 0 : index
    %21 = vector.load %arg4[%c0_14, %c0_15] : memref<1x16xf32, #tpu.memory_space<vmem>>, vector<1x16xf32>
    %cst_16 = arith.constant 9.99999974E-6 : f32
    %22 = vector.broadcast %cst_16 : f32 to vector<1x16xf32>
    %23 = arith.addf %20, %22 : vector<1x16xf32>
    %24 = math.rsqrt %23 : vector<1x16xf32>
    %25 = arith.mulf %21, %24 : vector<1x16xf32>
    %c0_17 = arith.constant 0 : index
    %c0_18 = arith.constant 0 : index
    %26 = vector.load %arg5[%c0_17, %c0_18] : memref<1x16xf32, #tpu.memory_space<vmem>>, vector<1x16xf32>
    %27 = arith.mulf %12, %25 : vector<1x16xf32>
    %28 = arith.subf %26, %27 : vector<1x16xf32>
    %c0_19 = arith.constant 0 : index
    %c0_20 = arith.constant 0 : index
    %29 = vector.load %arg3[%c0_19, %c0_20] : memref<16x1024xf32, #tpu.memory_space<vmem>>, vector<16x1024xf32>
    %cst_21 = arith.constant dense<0.000000e+00> : vector<1x1024xf32>
    %30 = tpu.matmul %25, %29, %cst_21 {dimension_numbers = #tpu.dot_dimension_numbers<[1], [0], [0], [1], [0, 0, 1, 1], [], []>} : vector<1x16xf32>, vector<16x1024xf32>, vector<1x1024xf32> -> vector<1x1024xf32>
    %c0_22 = arith.constant 0 : index
    %c0_23 = arith.constant 0 : index
    %31 = vector.load %arg3[%c0_22, %c0_23] : memref<16x1024xf32, #tpu.memory_space<vmem>>, vector<16x1024xf32>
    %cst_24 = arith.constant dense<0.000000e+00> : vector<1x1024xf32>
    %32 = tpu.matmul %28, %31, %cst_24 {dimension_numbers = #tpu.dot_dimension_numbers<[1], [0], [0], [1], [0, 0, 1, 1], [], []>} : vector<1x16xf32>, vector<16x1024xf32>, vector<1x1024xf32> -> vector<1x1024xf32>
    %33 = vector.broadcast %30 : vector<1x1024xf32> to vector<2x1024xf32>
    %34 = arith.mulf %3, %33 : vector<2x1024xf32>
    %35 = vector.broadcast %32 : vector<1x1024xf32> to vector<2x1024xf32>
    %36 = arith.addf %34, %35 : vector<2x1024xf32>
    %cst_25 = arith.constant 0.000000e+00 : f32
    %37 = vector.broadcast %cst_25 : f32 to vector<2x1024xf32>
    %38 = arith.maximumf %36, %37 : vector<2x1024xf32>
    %39 = arith.truncf %38 : vector<2x1024xf32> to vector<2x1024xbf16>
    %c0_26 = arith.constant 0 : index
    %c0_27 = arith.constant 0 : index
    %40 = vector.load %arg6[%c0_26, %c0_27] : memref<1024x512xbf16, #tpu.memory_space<vmem>>, vector<1024x512xbf16>
    %cst_28 = arith.constant dense<0.000000e+00> : vector<2x512xf32>
    %41 = tpu.matmul %39, %40, %cst_28 {dimension_numbers = #tpu.dot_dimension_numbers<[1], [0], [0], [1], [0, 0, 1, 1], [], []>} : vector<2x1024xbf16>, vector<1024x512xbf16>, vector<2x512xf32> -> vector<2x512xf32>
    %cst_29 = arith.constant dense<0.000000e+00> : vector<512xf32>
    %42 = vector.multi_reduction <add>, %41, %cst_29 [0] : vector<2x512xf32> to vector<512xf32>
    %43 = vector.shape_cast %42 : vector<512xf32> to vector<1x512xf32>
    %44 = arith.mulf %41, %41 : vector<2x512xf32>
    %cst_30 = arith.constant dense<0.000000e+00> : vector<512xf32>
    %45 = vector.multi_reduction <add>, %44, %cst_30 [0] : vector<2x512xf32> to vector<512xf32>
    %46 = vector.shape_cast %45 : vector<512xf32> to vector<1x512xf32>
    %c0_31 = arith.constant 0 : index
    %c0_32 = arith.constant 0 : index
    %47 = vector.load %arg7[%c0_31, %c0_32] : memref<512x32xf32, #tpu.memory_space<vmem>>, vector<512x32xf32>
    %cst_33 = arith.constant dense<0.000000e+00> : vector<1x32xf32>
    %48 = tpu.matmul %43, %47, %cst_33 {dimension_numbers = #tpu.dot_dimension_numbers<[1], [0], [0], [1], [0, 0, 1, 1], [], []>} : vector<1x512xf32>, vector<512x32xf32>, vector<1x32xf32> -> vector<1x32xf32>
    %cst_34 = arith.constant 3.125000e-02 : f32
    %49 = vector.broadcast %cst_34 : f32 to vector<1x32xf32>
    %50 = arith.mulf %48, %49 : vector<1x32xf32>
    %c0_35 = arith.constant 0 : index
    %c0_36 = arith.constant 0 : index
    %51 = vector.load %arg7[%c0_35, %c0_36] : memref<512x32xf32, #tpu.memory_space<vmem>>, vector<512x32xf32>
    %cst_37 = arith.constant dense<0.000000e+00> : vector<1x32xf32>
    %52 = tpu.matmul %46, %51, %cst_37 {dimension_numbers = #tpu.dot_dimension_numbers<[1], [0], [0], [1], [0, 0, 1, 1], [], []>} : vector<1x512xf32>, vector<512x32xf32>, vector<1x32xf32> -> vector<1x32xf32>
    %cst_38 = arith.constant 3.125000e-02 : f32
    %53 = vector.broadcast %cst_38 : f32 to vector<1x32xf32>
    %54 = arith.mulf %52, %53 : vector<1x32xf32>
    %55 = arith.mulf %50, %50 : vector<1x32xf32>
    %56 = arith.subf %54, %55 : vector<1x32xf32>
    %cst_39 = arith.constant 0.000000e+00 : f32
    %57 = vector.broadcast %cst_39 : f32 to vector<1x32xf32>
    %58 = arith.maximumf %56, %57 : vector<1x32xf32>
    %c0_40 = arith.constant 0 : index
    %c0_41 = arith.constant 0 : index
    %59 = vector.load %arg9[%c0_40, %c0_41] : memref<1x32xf32, #tpu.memory_space<vmem>>, vector<1x32xf32>
    %cst_42 = arith.constant 9.99999974E-6 : f32
    %60 = vector.broadcast %cst_42 : f32 to vector<1x32xf32>
    %61 = arith.addf %58, %60 : vector<1x32xf32>
    %62 = math.rsqrt %61 : vector<1x32xf32>
    %63 = arith.mulf %59, %62 : vector<1x32xf32>
    %c0_43 = arith.constant 0 : index
    %c0_44 = arith.constant 0 : index
    %64 = vector.load %arg10[%c0_43, %c0_44] : memref<1x32xf32, #tpu.memory_space<vmem>>, vector<1x32xf32>
    %65 = arith.mulf %50, %63 : vector<1x32xf32>
    %66 = arith.subf %64, %65 : vector<1x32xf32>
    %c0_45 = arith.constant 0 : index
    %c0_46 = arith.constant 0 : index
    %67 = vector.load %arg8[%c0_45, %c0_46] : memref<32x512xf32, #tpu.memory_space<vmem>>, vector<32x512xf32>
    %cst_47 = arith.constant dense<0.000000e+00> : vector<1x512xf32>
    %68 = tpu.matmul %63, %67, %cst_47 {dimension_numbers = #tpu.dot_dimension_numbers<[1], [0], [0], [1], [0, 0, 1, 1], [], []>} : vector<1x32xf32>, vector<32x512xf32>, vector<1x512xf32> -> vector<1x512xf32>
    %c0_48 = arith.constant 0 : index
    %c0_49 = arith.constant 0 : index
    %69 = vector.load %arg8[%c0_48, %c0_49] : memref<32x512xf32, #tpu.memory_space<vmem>>, vector<32x512xf32>
    %cst_50 = arith.constant dense<0.000000e+00> : vector<1x512xf32>
    %70 = tpu.matmul %66, %69, %cst_50 {dimension_numbers = #tpu.dot_dimension_numbers<[1], [0], [0], [1], [0, 0, 1, 1], [], []>} : vector<1x32xf32>, vector<32x512xf32>, vector<1x512xf32> -> vector<1x512xf32>
    %71 = vector.broadcast %68 : vector<1x512xf32> to vector<2x512xf32>
    %72 = arith.mulf %41, %71 : vector<2x512xf32>
    %73 = vector.broadcast %70 : vector<1x512xf32> to vector<2x512xf32>
    %74 = arith.addf %72, %73 : vector<2x512xf32>
    %cst_51 = arith.constant 0.000000e+00 : f32
    %75 = vector.broadcast %cst_51 : f32 to vector<2x512xf32>
    %76 = arith.maximumf %74, %75 : vector<2x512xf32>
    %77 = arith.truncf %76 : vector<2x512xf32> to vector<2x512xbf16>
    %c0_52 = arith.constant 0 : index
    %c0_53 = arith.constant 0 : index
    %78 = vector.load %arg11[%c0_52, %c0_53] : memref<512x32xbf16, #tpu.memory_space<vmem>>, vector<512x32xbf16>
    %cst_54 = arith.constant dense<0.000000e+00> : vector<2x32xf32>
    %79 = tpu.matmul %77, %78, %cst_54 {dimension_numbers = #tpu.dot_dimension_numbers<[1], [0], [0], [1], [0, 0, 1, 1], [], []>} : vector<2x512xbf16>, vector<512x32xbf16>, vector<2x32xf32> -> vector<2x32xf32>
    %c0_55 = arith.constant 0 : index
    %c0_56 = arith.constant 0 : index
    %80 = vector.load %arg12[%c0_55, %c0_56] : memref<1x32xf32, #tpu.memory_space<vmem>>, vector<1x32xf32>
    %81 = vector.broadcast %80 : vector<1x32xf32> to vector<2x32xf32>
    %82 = arith.addf %79, %81 : vector<2x32xf32>
    %cst_57 = arith.constant 0.000000e+00 : f32
    %83 = vector.broadcast %cst_57 : f32 to vector<2x32xf32>
    %84 = arith.maximumf %82, %83 : vector<2x32xf32>
    %c0_58 = arith.constant 0 : index
    %c0_59 = arith.constant 0 : index
    %85 = vector.load %arg13[%c0_58, %c0_59] : memref<2x32xf32, #tpu.memory_space<vmem>>, vector<2x32xf32>
    tpu.vector_store %arg13[%c0_58, %c0_59], %84 {strides = array<i32>} : memref<2x32xf32, #tpu.memory_space<vmem>>, vector<2x32xf32>,
    return
  }
}

</mosaic_0001>

<llo_original>
// kernel: tpu_custom_call.1
$region0: #{tpu_custom_call.1}
  #allocation0 [shape = 'u32[]', space=smem, size = 0x4, offset = 0x4, fixed_abs, tag = 'smem constant byte address 0x4 - core index']
  #allocation1 [shape = 'u32[144,128]{1,0:T(1,128)}', space=vmem, size = 0x12000, scoped, tag = 'internal scratch']
  %s0 = inlined_call_operand.hbm [shape: f32[2,1024], index: 0, kind: input, shape index: {}]
  %s1 = inlined_call_operand.hbm [shape: bf16[1024,1024], index: 1, kind: input, shape index: {}]
  %s2 = inlined_call_operand.vmem [shape: f32[1024,16], index: 2, kind: input, shape index: {}]
  %s3 = inlined_call_operand.hbm [shape: f32[16,1024], index: 3, kind: input, shape index: {}]
  %s4 = inlined_call_operand.hbm [shape: f32[1,16], index: 4, kind: input, shape index: {}]
  %s5 = inlined_call_operand.hbm [shape: f32[1,16], index: 5, kind: input, shape index: {}]
  %s6 = inlined_call_operand.hbm [shape: bf16[1024,512], index: 6, kind: input, shape index: {}]
  %s7 = inlined_call_operand.vmem [shape: f32[512,32], index: 7, kind: input, shape index: {}]
  %s8 = inlined_call_operand.hbm [shape: f32[32,512], index: 8, kind: input, shape index: {}]
  %s9 = inlined_call_operand.hbm [shape: f32[1,32], index: 9, kind: input, shape index: {}]
  %s10 = inlined_call_operand.hbm [shape: f32[1,32], index: 10, kind: input, shape index: {}]
  %s11 = inlined_call_operand.vmem [shape: bf16[512,32], index: 11, kind: input, shape index: {}]
  %s12 = inlined_call_operand.hbm [shape: f32[1,32], index: 12, kind: input, shape index: {}]
  %s13 = inlined_call_operand.hbm [shape: f32[2,32], index: 13, kind: output, shape index: {}]
  %s14 = sld [smem:[#allocation0]]
  $region102: #{tpu_custom_call.1} parent=0
    _
  %s16 = ssub.s32 1, %s14
  %s17 = scalar_select 0, %s16, %s14
  $region1: #{tpu_custom_call.1} parent=0
    #allocation2 [shape = 'u8[8192]{0}', space=vmem, size = 0x2000, scoped, tag = 'input window, operand 0, single buffered']
    #allocation3 [shape = 's32[1]{0}', space=sflag, size = 0x4, scoped, tag = 'scoped memory for tpu_custom_call.1']
    #allocation4 [shape = 's32[1]{0}', space=sflag, size = 0x4, scoped, tag = 'scoped memory for tpu_custom_call.1']
    #allocation5 [shape = 'u8[2097152]{0}', space=vmem, size = 0x200000, scoped, tag = 'input window, operand 1, single buffered']
    #allocation6 [shape = 's32[1]{0}', space=sflag, size = 0x4, scoped, tag = 'scoped memory for tpu_custom_call.1']
    #allocation7 [shape = 'u8[65536]{0}', space=vmem, size = 0x10000, scoped, tag = 'input window, operand 3, single buffered']
    #allocation8 [shape = 'u8[512]{0}', space=vmem, size = 0x400, scoped, tag = 'input window, operand 4, single buffered']
    #allocation9 [shape = 's32[1]{0}', space=sflag, size = 0x4, scoped, tag = 'scoped memory for tpu_custom_call.1']
    #allocation10 [shape = 'u8[512]{0}', space=vmem, size = 0x400, scoped, tag = 'input window, operand 5, single buffered']
    #allocation11 [shape = 'u8[1048576]{0}', space=vmem, size = 0x100000, scoped, tag = 'input window, operand 6, single buffered']
    #allocation12 [shape = 's32[1]{0}', space=sflag, size = 0x4, scoped, tag = 'scoped memory for tpu_custom_call.1']
    #allocation13 [shape = 'u8[65536]{0}', space=vmem, size = 0x10000, scoped, tag = 'input window, operand 8, single buffered']
    #allocation14 [shape = 'u8[512]{0}', space=vmem, size = 0x400, scoped, tag = 'input window, operand 9, single buffered']
    #allocation15 [shape = 's32[1]{0}', space=sflag, size = 0x4, scoped, tag = 'scoped memory for tpu_custom_call.1']
    #allocation16 [shape = 'u8[512]{0}', space=vmem, size = 0x400, scoped, tag = 'input window, operand 10, single buffered']
    #allocation17 [shape = 'u8[512]{0}', space=vmem, size = 0x400, scoped, tag = 'input window, operand 12, single buffered']
    #allocation18 [shape = 's32[1]{0}', space=sflag, size = 0x4, scoped, tag = 'scoped memory for tpu_custom_call.1']
    #allocation19 [shape = 'u8[1024]{0}', space=vmem, size = 0x400, scoped, tag = 'output window, operand 0, single buffered']
    %18 = vsyncpa [#allocation3], 0
    %19 = vsyncpa [#allocation6], 0
    %20 = vsyncpa [#allocation9], 0
    %21 = vsyncpa [#allocation12], 0
    %22 = vsyncpa [#allocation15], 0
    %23 = vsyncpa [#allocation18], 0
    %24 = vsyncpa [#allocation4], 0
    // Predicated region
    $region2: #{tpu_custom_call.1} parent=1 // pred_check
      _
    $region3: #{tpu_custom_call.1} parent=1 // pred_check_branch
      %26 = sbr.rel (0) target = $region5
    $region4: #{tpu_custom_call.1} parent=1 // pred_region
      %s28 = ssub.s32 256, 256
      %29 = vsyncadd [#allocation3], %s28
      %s31 = sshll.u32 [#allocation2], 4
      %s32 = int_to_ptr.vmem [resolvable:$true] %s31
      %34 = dma.hbm_to_vmem [thread:$0]  %s0, 256, %s32, [#allocation3]
    $region5: #{tpu_custom_call.1} parent=1 // pred_fallthru
      _
    // Predicated region
    $region6: #{tpu_custom_call.1} parent=1 // pred_check
      _
    $region7: #{tpu_custom_call.1} parent=1 // pred_check_branch
      %36 = sbr.rel (0) target = $region9
    $region8: #{tpu_custom_call.1} parent=1 // pred_region
      %s38 = ssub.s32 65536, 65536
      %39 = vsyncadd [#allocation6], %s38
      %s40 = sshll.u32 [#allocation5], 4
      %s41 = int_to_ptr.vmem [resolvable:$true] %s40
      %46 = dma.hbm_to_vmem [thread:$0]  %s1, 65536, %s41, [#allocation6], 512, 512, 32
    $region9: #{tpu_custom_call.1} parent=1 // pred_fallthru
      _
    // Predicated region
    $region10: #{tpu_custom_call.1} parent=1 // pred_check
      _
    $region11: #{tpu_custom_call.1} parent=1 // pred_check_branch
      %48 = sbr.rel (0) target = $region13
    $region12: #{tpu_custom_call.1} parent=1 // pred_region
      _
    $region13: #{tpu_custom_call.1} parent=1 // pred_fallthru
      _
    // Predicated region
    $region14: #{tpu_custom_call.1} parent=1 // pred_check
      _
    $region15: #{tpu_custom_call.1} parent=1 // pred_check_branch
      %50 = sbr.rel (0) target = $region17
    $region16: #{tpu_custom_call.1} parent=1 // pred_region
      %s52 = ssub.s32 2048, 2048
      %53 = vsyncadd [#allocation6], %s52
      %s54 = sshll.u32 [#allocation7], 4
      %s55 = int_to_ptr.vmem [resolvable:$true] %s54
      %60 = dma.hbm_to_vmem [thread:$0]  %s3, 2048, %s55, [#allocation6], 1024, 1024, 64
    $region17: #{tpu_custom_call.1} parent=1 // pred_fallthru
      _
    // Predicated region
    $region18: #{tpu_custom_call.1} parent=1 // pred_check
      _
    $region19: #{tpu_custom_call.1} parent=1 // pred_check_branch
      %62 = sbr.rel (0) target = $region21
    $region20: #{tpu_custom_call.1} parent=1 // pred_region
      %s64 = ssub.s32 16, 16
      %65 = vsyncadd [#allocation9], %s64
      %s67 = sshll.u32 [#allocation8], 4
      %s68 = int_to_ptr.vmem [resolvable:$true] %s67
      %70 = dma.hbm_to_vmem [thread:$0]  %s4, 16, %s68, [#allocation9]
    $region21: #{tpu_custom_call.1} parent=1 // pred_fallthru
      _
    // Predicated region
    $region22: #{tpu_custom_call.1} parent=1 // pred_check
      _
    $region23: #{tpu_custom_call.1} parent=1 // pred_check_branch
      %72 = sbr.rel (0) target = $region25
    $region24: #{tpu_custom_call.1} parent=1 // pred_region
      %s74 = ssub.s32 16, 16
      %75 = vsyncadd [#allocation9], %s74
      %s77 = sshll.u32 [#allocation10], 4
      %s78 = int_to_ptr.vmem [resolvable:$true] %s77
      %80 = dma.hbm_to_vmem [thread:$0]  %s5, 16, %s78, [#allocation9]
    $region25: #{tpu_custom_call.1} parent=1 // pred_fallthru
      _
    // Predicated region
    $region26: #{tpu_custom_call.1} parent=1 // pred_check
      _
    $region27: #{tpu_custom_call.1} parent=1 // pred_check_branch
      %82 = sbr.rel (0) target = $region29
    $region28: #{tpu_custom_call.1} parent=1 // pred_region
      %s84 = ssub.s32 32768, 32768
      %85 = vsyncadd [#allocation12], %s84
      %s86 = sshll.u32 [#allocation11], 4
      %s87 = int_to_ptr.vmem [resolvable:$true] %s86
      %92 = dma.hbm_to_vmem [thread:$0]  %s6, 32768, %s87, [#allocation12], 256, 256, 16
    $region29: #{tpu_custom_call.1} parent=1 // pred_fallthru
      _
    // Predicated region
    $region30: #{tpu_custom_call.1} parent=1 // pred_check
      _
    $region31: #{tpu_custom_call.1} parent=1 // pred_check_branch
      %94 = sbr.rel (0) target = $region33
    $region32: #{tpu_custom_call.1} parent=1 // pred_region
      _
    $region33: #{tpu_custom_call.1} parent=1 // pred_fallthru
      _
    // Predicated region
    $region34: #{tpu_custom_call.1} parent=1 // pred_check
      _
    $region35: #{tpu_custom_call.1} parent=1 // pred_check_branch
      %96 = sbr.rel (0) target = $region37
    $region36: #{tpu_custom_call.1} parent=1 // pred_region
      %s98 = ssub.s32 2048, 2048
      %99 = vsyncadd [#allocation12], %s98
      %s100 = sshll.u32 [#allocation13], 4
      %s101 = int_to_ptr.vmem [resolvable:$true] %s100
      %106 = dma.hbm_to_vmem [thread:$0]  %s8, 2048, %s101, [#allocation12], 512, 512, 32
    $region37: #{tpu_custom_call.1} parent=1 // pred_fallthru
      _
    // Predicated region
    $region38: #{tpu_custom_call.1} parent=1 // pred_check
      _
    $region39: #{tpu_custom_call.1} parent=1 // pred_check_branch
      %108 = sbr.rel (0) target = $region41
    $region40: #{tpu_custom_call.1} parent=1 // pred_region
      %s110 = ssub.s32 16, 16
      %111 = vsyncadd [#allocation15], %s110
      %s113 = sshll.u32 [#allocation14], 4
      %s114 = int_to_ptr.vmem [resolvable:$true] %s113
      %116 = dma.hbm_to_vmem [thread:$0]  %s9, 16, %s114, [#allocation15]
    $region41: #{tpu_custom_call.1} parent=1 // pred_fallthru
      _
    // Predicated region
    $region42: #{tpu_custom_call.1} parent=1 // pred_check
      _
    $region43: #{tpu_custom_call.1} parent=1 // pred_check_branch
      %118 = sbr.rel (0) target = $region45
    $region44: #{tpu_custom_call.1} parent=1 // pred_region
      %s120 = ssub.s32 16, 16
      %121 = vsyncadd [#allocation15], %s120
      %s123 = sshll.u32 [#allocation16], 4
      %s124 = int_to_ptr.vmem [resolvable:$true] %s123
      %126 = dma.hbm_to_vmem [thread:$0]  %s10, 16, %s124, [#allocation15]
    $region45: #{tpu_custom_call.1} parent=1 // pred_fallthru
      _
    // Predicated region
    $region46: #{tpu_custom_call.1} parent=1 // pred_check
      _
    $region47: #{tpu_custom_call.1} parent=1 // pred_check_branch
      %128 = sbr.rel (0) target = $region49
    $region48: #{tpu_custom_call.1} parent=1 // pred_region
      _
    $region49: #{tpu_custom_call.1} parent=1 // pred_fallthru
      _
    // Predicated region
    $region50: #{tpu_custom_call.1} parent=1 // pred_check
      _
    $region51: #{tpu_custom_call.1} parent=1 // pred_check_branch
      %130 = sbr.rel (0) target = $region53
    $region52: #{tpu_custom_call.1} parent=1 // pred_region
      %s132 = ssub.s32 16, 16
      %133 = vsyncadd [#allocation18], %s132
      %s135 = sshll.u32 [#allocation17], 4
      %s136 = int_to_ptr.vmem [resolvable:$true] %s135
      %138 = dma.hbm_to_vmem [thread:$0]  %s12, 16, %s136, [#allocation18]
    $region53: #{tpu_custom_call.1} parent=1 // pred_fallthru
      _
    // Predicated region
    $region54: #{tpu_custom_call.1} parent=1 // pred_check
      _
    $region55: #{tpu_custom_call.1} parent=1 // pred_check_branch
      %140 = sbr.rel (0) target = $region57
    $region56: #{tpu_custom_call.1} parent=1 // pred_region
      %141 = dma.done [#allocation3], 256
    $region57: #{tpu_custom_call.1} parent=1 // pred_fallthru
      _
    // Predicated region
    $region58: #{tpu_custom_call.1} parent=1 // pred_check
      _
    $region59: #{tpu_custom_call.1} parent=1 // pred_check_branch
      %143 = sbr.rel (0) target = $region61
    $region60: #{tpu_custom_call.1} parent=1 // pred_region
      %144 = dma.done [#allocation6], 65536
    $region61: #{tpu_custom_call.1} parent=1 // pred_fallthru
      _
    // Predicated region
    $region62: #{tpu_custom_call.1} parent=1 // pred_check
      _
    $region63: #{tpu_custom_call.1} parent=1 // pred_check_branch
      %146 = sbr.rel (0) target = $region65
    $region64: #{tpu_custom_call.1} parent=1 // pred_region
      %147 = dma.done [#allocation6], 2048
    $region65: #{tpu_custom_call.1} parent=1 // pred_fallthru
      _
    // Predicated region
    $region66: #{tpu_custom_call.1} parent=1 // pred_check
      _
    $region67: #{tpu_custom_call.1} parent=1 // pred_check_branch
      %149 = sbr.rel (0) target = $region69
    $region68: #{tpu_custom_call.1} parent=1 // pred_region
      %150 = dma.done [#allocation9], 16
    $region69: #{tpu_custom_call.1} parent=1 // pred_fallthru
      _
    // Predicated region
    $region70: #{tpu_custom_call.1} parent=1 // pred_check
      _
    $region71: #{tpu_custom_call.1} parent=1 // pred_check_branch
      %152 = sbr.rel (0) target = $region73
    $region72: #{tpu_custom_call.1} parent=1 // pred_region
      %153 = dma.done [#allocation9], 16
    $region73: #{tpu_custom_call.1} parent=1 // pred_fallthru
      _
    // Predicated region
    $region74: #{tpu_custom_call.1} parent=1 // pred_check
      _
    $region75: #{tpu_custom_call.1} parent=1 // pred_check_branch
      %155 = sbr.rel (0) target = $region77
    $region76: #{tpu_custom_call.1} parent=1 // pred_region
      %156 = dma.done [#allocation12], 32768
    $region77: #{tpu_custom_call.1} parent=1 // pred_fallthru
      _
    // Predicated region
    $region78: #{tpu_custom_call.1} parent=1 // pred_check
      _
    $region79: #{tpu_custom_call.1} parent=1 // pred_check_branch
      %158 = sbr.rel (0) target = $region81
    $region80: #{tpu_custom_call.1} parent=1 // pred_region
      %159 = dma.done [#allocation12], 2048
    $region81: #{tpu_custom_call.1} parent=1 // pred_fallthru
      _
    // Predicated region
    $region82: #{tpu_custom_call.1} parent=1 // pred_check
      _
    $region83: #{tpu_custom_call.1} parent=1 // pred_check_branch
      %161 = sbr.rel (0) target = $region85
    $region84: #{tpu_custom_call.1} parent=1 // pred_region
      %162 = dma.done [#allocation15], 16
    $region85: #{tpu_custom_call.1} parent=1 // pred_fallthru
      _
    // Predicated region
    $region86: #{tpu_custom_call.1} parent=1 // pred_check
      _
    $region87: #{tpu_custom_call.1} parent=1 // pred_check_branch
      %164 = sbr.rel (0) target = $region89
    $region88: #{tpu_custom_call.1} parent=1 // pred_region
      %165 = dma.done [#allocation15], 16
    $region89: #{tpu_custom_call.1} parent=1 // pred_fallthru
      _
    // Predicated region
    $region90: #{tpu_custom_call.1} parent=1 // pred_check
      _
    $region91: #{tpu_custom_call.1} parent=1 // pred_check_branch
      %167 = sbr.rel (0) target = $region93
    $region92: #{tpu_custom_call.1} parent=1 // pred_region
      %168 = dma.done [#allocation18], 16
    $region93: #{tpu_custom_call.1} parent=1 // pred_fallthru
      _
    %v170 = vld [vmem:[#allocation2] sm:$0xff]
    %v171 = vld [vmem:[#allocation2 + $0x8] sm:$0xff]
    %v174 = vcombine.high %v170, %v170
    %v176 = vunpack.c.l.s4 1983009808
    %v177 = vunpack.c.0.s8 %v176
    %v178 = vlaneseq
    %v179 = vshrl.u32 %v178, 7
    %v180 = vsub.s32 %v177, %v179
    %v181 = vrot.slane %v170, %v180
    %v183 = vunpack.c.l.s4 1983009808
    %v184 = vunpack.c.0.s8 %v183
    %v185 = vlaneseq
    %v186 = vshrl.u32 %v185, 7
    %v187 = vsub.s32 %v184, %v186
    %v188 = vrot.slane %v174, %v187
    %v189 = vcombine.high %v181, %v181
    %v190 = vcombine.high %v188, %v188
    %v191 = vcombine.high %v171, %v171
    %v193 = vunpack.c.l.s4 1983009808
    %v194 = vunpack.c.0.s8 %v193
    %v195 = vlaneseq
    %v196 = vshrl.u32 %v195, 7
    %v197 = vsub.s32 %v194, %v196
    %v198 = vrot.slane %v171, %v197
    %v200 = vunpack.c.l.s4 1983009808
    %v201 = vunpack.c.0.s8 %v200
    %v202 = vlaneseq
    %v203 = vshrl.u32 %v202, 7
    %v204 = vsub.s32 %v201, %v203
    %v205 = vrot.slane %v191, %v204
    %v206 = vcombine.high %v198, %v198
    %v207 = vcombine.high %v205, %v205
    %v216 = vpack.c.bf16 %v181, %v181
    %v217 = vpack.c.bf16 %v189, %v189
    %v218 = vpack.c.bf16 %v188, %v188
    %v219 = vpack.c.bf16 %v190, %v190
    %v220 = vpack.c.bf16 %v198, %v198
    %v221 = vpack.c.bf16 %v206, %v206
    %v222 = vpack.c.bf16 %v205, %v205
    %v223 = vpack.c.bf16 %v207, %v207
    %v224 = vld [vmem:[#allocation5] sm:$0xff]
    %v225 = vld [vmem:[#allocation5 + $0x8] sm:$0xff]
    %v226 = vld [vmem:[#allocation5 + $0x10] sm:$0xff]
    %v227 = vld [vmem:[#allocation5 + $0x18] sm:$0xff]
    %v228 = vld [vmem:[#allocation5 + $0x20] sm:$0xff]
    %v229 = vld [vmem:[#allocation5 + $0x28] sm:$0xff]
    %v230 = vld [vmem:[#allocation5 + $0x30] sm:$0xff]
    %v231 = vld [vmem:[#allocation5 + $0x38] sm:$0xff]
    %v232 = vld [vmem:[#allocation5 + $0x40] sm:$0xff]
    %v233 = vld [vmem:[#allocation5 + $0x48] sm:$0xff]
    %v234 = vld [vmem:[#allocation5 + $0x50] sm:$0xff]
    %v235 = vld [vmem:[#allocation5 + $0x58] sm:$0xff]
    %v236 = vld [vmem:[#allocation5 + $0x60] sm:$0xff]
    %v237 = vld [vmem:[#allocation5 + $0x68] sm:$0xff]
    %v238 = vld [vmem:[#allocation5 + $0x70] sm:$0xff]
    %v239 = vld [vmem:[#allocation5 + $0x78] sm:$0xff]
    %v240 = vld [vmem:[#allocation5 + $0x80] sm:$0xff]
    %v241 = vld [vmem:[#allocation5 + $0x88] sm:$0xff]
    %v242 = vld [vmem:[#allocation5 + $0x90] sm:$0xff]
    %v243 = vld [vmem:[#allocation5 + $0x98] sm:$0xff]
    %v244 = vld [vmem:[#allocation5 + $0xa0] sm:$0xff]
    %v245 = vld [vmem:[#allocation5 + $0xa8] sm:$0xff]
    %v246 = vld [vmem:[#allocation5 + $0xb0] sm:$0xff]
    %v247 = vld [vmem:[#allocation5 + $0xb8] sm:$0xff]
    %v248 = vld [vmem:[#allocation5 + $0xc0] sm:$0xff]
    %v249 = vld [vmem:[#allocation5 + $0xc8] sm:$0xff]
    %v250 = vld [vmem:[#allocation5 + $0xd0] sm:$0xff]
    %v251 = vld [vmem:[#allocation5 + $0xd8] sm:$0xff]
    %v252 = vld [vmem:[#allocation5 + $0xe0] sm:$0xff]
    %v253 = vld [vmem:[#allocation5 + $0xe8] sm:$0xff]
    %v254 = vld [vmem:[#allocation5 + $0xf0] sm:$0xff]
    %v255 = vld [vmem:[#allocation5 + $0xf8] sm:$0xff]
    %v256 = vld [vmem:[#allocation5 + $0x100] sm:$0xff]
    %v257 = vld [vmem:[#allocation5 + $0x108] sm:$0xff]
    %v258 = vld [vmem:[#allocation5 + $0x110] sm:$0xff]
    %v259 = vld [vmem:[#allocation5 + $0x118] sm:$0xff]
    %v260 = vld [vmem:[#allocation5 + $0x120] sm:$0xff]
    %v261 = vld [vmem:[#allocation5 + $0x128] sm:$0xff]
    %v262 = vld [vmem:[#allocation5 + $0x130] sm:$0xff]
    %v263 = vld [vmem:[#allocation5 + $0x138] sm:$0xff]
    %v264 = vld [vmem:[#allocation5 + $0x140] sm:$0xff]
    %v265 = vld [vmem:[#allocation5 + $0x148] sm:$0xff]
    %v266 = vld [vmem:[#allocation5 + $0x150] sm:$0xff]
    %v267 = vld [vmem:[#allocation5 + $0x158] sm:$0xff]
    %v268 = vld [vmem:[#allocation5 + $0x160] sm:$0xff]
    %v269 = vld [vmem:[#allocation5 + $0x168] sm:$0xff]
    %v270 = vld [vmem:[#allocation5 + $0x170] sm:$0xff]
    %v271 = vld [vmem:[#allocation5 + $0x178] sm:$0xff]
    %v272 = vld [vmem:[#allocation5 + $0x180] sm:$0xff]
    %v273 = vld [vmem:[#allocation5 + $0x188] sm:$0xff]
    %v274 = vld [vmem:[#allocation5 + $0x190] sm:$0xff]
    %v275 = vld [vmem:[#allocation5 + $0x198] sm:$0xff]
    %v276 = vld [vmem:[#allocation5 + $0x1a0] sm:$0xff]
    %v277 = vld [vmem:[#allocation5 + $0x1a8] sm:$0xff]
    %v278 = vld [vmem:[#allocation5 + $0x1b0] sm:$0xff]
    %v279 = vld [vmem:[#allocation5 + $0x1b8] sm:$0xff]
    %v280 = vld [vmem:[#allocation5 + $0x1c0] sm:$0xff]
    %v281 = vld [vmem:[#allocation5 + $0x1c8] sm:$0xff]
    %v282 = vld [vmem:[#allocation5 + $0x1d0] sm:$0xff]
    %v283 = vld [vmem:[#allocation5 + $0x1d8] sm:$0xff]
    %v284 = vld [vmem:[#allocation5 + $0x1e0] sm:$0xff]
    %v285 = vld [vmem:[#allocation5 + $0x1e8] sm:$0xff]
    %v286 = vld [vmem:[#allocation5 + $0x1f0] sm:$0xff]
    %v287 = vld [vmem:[#allocation5 + $0x1f8] sm:$0xff]
    %v288 = vld [vmem:[#allocation5 + $0x200] sm:$0xff]
    %v289 = vld [vmem:[#allocation5 + $0x208] sm:$0xff]
    %v290 = vld [vmem:[#allocation5 + $0x210] sm:$0xff]
    %v291 = vld [vmem:[#allocation5 + $0x218] sm:$0xff]
    %v292 = vld [vmem:[#allocation5 + $0x220] sm:$0xff]
    %v293 = vld [vmem:[#allocation5 + $0x228] sm:$0xff]
    %v294 = vld [vmem:[#allocation5 + $0x230] sm:$0xff]
    %v295 = vld [vmem:[#allocation5 + $0x238] sm:$0xff]
    %v296 = vld [vmem:[#allocation5 + $0x240] sm:$0xff]
    %v297 = vld [vmem:[#allocation5 + $0x248] sm:$0xff]
    %v298 = vld [vmem:[#allocation5 + $0x250] sm:$0xff]
    %v299 = vld [vmem:[#allocation5 + $0x258] sm:$0xff]
    %v300 = vld [vmem:[#allocation5 + $0x260] sm:$0xff]
    %v301 = vld [vmem:[#allocation5 + $0x268] sm:$0xff]
    %v302 = vld [vmem:[#allocation5 + $0x270] sm:$0xff]
    %v303 = vld [vmem:[#allocation5 + $0x278] sm:$0xff]
    %v304 = vld [vmem:[#allocation5 + $0x280] sm:$0xff]
    %v305 = vld [vmem:[#allocation5 + $0x288] sm:$0xff]
    %v306 = vld [vmem:[#allocation5 + $0x290] sm:$0xff]
    %v307 = vld [vmem:[#allocation5 + $0x298] sm:$0xff]
    %v308 = vld [vmem:[#allocation5 + $0x2a0] sm:$0xff]
    %v309 = vld [vmem:[#allocation5 + $0x2a8] sm:$0xff]
    %v310 = vld [vmem:[#allocation5 + $0x2b0] sm:$0xff]
    %v311 = vld [vmem:[#allocation5 + $0x2b8] sm:$0xff]
    %v312 = vld [vmem:[#allocation5 + $0x2c0] sm:$0xff]
    %v313 = vld [vmem:[#allocation5 + $0x2c8] sm:$0xff]
    %v314 = vld [vmem:[#allocation5 + $0x2d0] sm:$0xff]
    %v315 = vld [vmem:[#allocation5 + $0x2d8] sm:$0xff]
    %v316 = vld [vmem:[#allocation5 + $0x2e0] sm:$0xff]
    %v317 = vld [vmem:[#allocation5 + $0x2e8] sm:$0xff]
    %v318 = vld [vmem:[#allocation5 + $0x2f0] sm:$0xff]
    %v319 = vld [vmem:[#allocation5 + $0x2f8] sm:$0xff]
    %v320 = vld [vmem:[#allocation5 + $0x300] sm:$0xff]
    %v321 = vld [vmem:[#allocation5 + $0x308] sm:$0xff]
    %v322 = vld [vmem:[#allocation5 + $0x310] sm:$0xff]
    %v323 = vld [vmem:[#allocation5 + $0x318] sm:$0xff]
    %v324 = vld [vmem:[#allocation5 + $0x320] sm:$0xff]
    %v325 = vld [vmem:[#allocation5 + $0x328] sm:$0xff]
    %v326 = vld [vmem:[#allocation5 + $0x330] sm:$0xff]
    %v327 = vld [vmem:[#allocation5 + $0x338] sm:$0xff]
    %v328 = vld [vmem:[#allocation5 + $0x340] sm:$0xff]
    %v329 = vld [vmem:[#allocation5 + $0x348] sm:$0xff]
    %v330 = vld [vmem:[#allocation5 + $0x350] sm:$0xff]
    %v331 = vld [vmem:[#allocation5 + $0x358] sm:$0xff]
    %v332 = vld [vmem:[#allocation5 + $0x360] sm:$0xff]
    %v333 = vld [vmem:[#allocation5 + $0x368] sm:$0xff]
    %v334 = vld [vmem:[#allocation5 + $0x370] sm:$0xff]
    %v335 = vld [vmem:[#allocation5 + $0x378] sm:$0xff]
    %v336 = vld [vmem:[#allocation5 + $0x380] sm:$0xff]
    %v337 = vld [vmem:[#allocation5 + $0x388] sm:$0xff]
    %v338 = vld [vmem:[#allocation5 + $0x390] sm:$0xff]
    %v339 = vld [vmem:[#allocation5 + $0x398] sm:$0xff]
    %v340 = vld [vmem:[#allocation5 + $0x3a0] sm:$0xff]
    %v341 = vld [vmem:[#allocation5 + $0x3a8] sm:$0xff]
    %v342 = vld [vmem:[#allocation5 + $0x3b0] sm:$0xff]
    %v343 = vld [vmem:[#allocation5 + $0x3b8] sm:$0xff]
    %v344 = vld [vmem:[#allocation5 + $0x3c0] sm:$0xff]
    %v345 = vld [vmem:[#allocation5 + $0x3c8] sm:$0xff]
    %v346 = vld [vmem:[#allocation5 + $0x3d0] sm:$0xff]
    %v347 = vld [vmem:[#allocation5 + $0x3d8] sm:$0xff]
    %v348 = vld [vmem:[#allocation5 + $0x3e0] sm:$0xff]
    %v349 = vld [vmem:[#allocation5 + $0x3e8] sm:$0xff]
    %v350 = vld [vmem:[#allocation5 + $0x3f0] sm:$0xff]
    %v351 = vld [vmem:[#allocation5 + $0x3f8] sm:$0xff]
    %v352 = vld [vmem:[#allocation5 + $0x400] sm:$0xff]
    %v353 = vld [vmem:[#allocation5 + $0x408] sm:$0xff]
    %v354 = vld [vmem:[#allocation5 + $0x410] sm:$0xff]
    %v355 = vld [vmem:[#allocation5 + $0x418] sm:$0xff]
    %v356 = vld [vmem:[#allocation5 + $0x420] sm:$0xff]
    %v357 = vld [vmem:[#allocation5 + $0x428] sm:$0xff]
    %v358 = vld [vmem:[#allocation5 + $0x430] sm:$0xff]
    %v359 = vld [vmem:[#allocation5 + $0x438] sm:$0xff]
    %v360 = vld [vmem:[#allocation5 + $0x440] sm:$0xff]
    %v361 = vld [vmem:[#allocation5 + $0x448] sm:$0xff]
    %v362 = vld [vmem:[#allocation5 + $0x450] sm:$0xff]
    %v363 = vld [vmem:[#allocation5 + $0x458] sm:$0xff]
    %v364 = vld [vmem:[#allocation5 + $0x460] sm:$0xff]
    %v365 = vld [vmem:[#allocation5 + $0x468] sm:$0xff]
    %v366 = vld [vmem:[#allocation5 + $0x470] sm:$0xff]
    %v367 = vld [vmem:[#allocation5 + $0x478] sm:$0xff]
    %v368 = vld [vmem:[#allocation5 + $0x480] sm:$0xff]
    %v369 = vld [vmem:[#allocation5 + $0x488] sm:$0xff]
    %v370 = vld [vmem:[#allocation5 + $0x490] sm:$0xff]
    %v371 = vld [vmem:[#allocation5 + $0x498] sm:$0xff]
    %v372 = vld [vmem:[#allocation5 + $0x4a0] sm:$0xff]
    %v373 = vld [vmem:[#allocation5 + $0x4a8] sm:$0xff]
    %v374 = vld [vmem:[#allocation5 + $0x4b0] sm:$0xff]
    %v375 = vld [vmem:[#allocation5 + $0x4b8] sm:$0xff]
    %v376 = vld [vmem:[#allocation5 + $0x4c0] sm:$0xff]
    %v377 = vld [vmem:[#allocation5 + $0x4c8] sm:$0xff]
    %v378 = vld [vmem:[#allocation5 + $0x4d0] sm:$0xff]
    %v379 = vld [vmem:[#allocation5 + $0x4d8] sm:$0xff]
    %v380 = vld [vmem:[#allocation5 + $0x4e0] sm:$0xff]
    %v381 = vld [vmem:[#allocation5 + $0x4e8] sm:$0xff]
    %v382 = vld [vmem:[#allocation5 + $0x4f0] sm:$0xff]
    %v383 = vld [vmem:[#allocation5 + $0x4f8] sm:$0xff]
    %v384 = vld [vmem:[#allocation5 + $0x500] sm:$0xff]
    %v385 = vld [vmem:[#allocation5 + $0x508] sm:$0xff]
    %v386 = vld [vmem:[#allocation5 + $0x510] sm:$0xff]
    %v387 = vld [vmem:[#allocation5 + $0x518] sm:$0xff]
    %v388 = vld [vmem:[#allocation5 + $0x520] sm:$0xff]
    %v389 = vld [vmem:[#allocation5 + $0x528] sm:$0xff]
    %v390 = vld [vmem:[#allocation5 + $0x530] sm:$0xff]
    %v391 = vld [vmem:[#allocation5 + $0x538] sm:$0xff]
    %v392 = vld [vmem:[#allocation5 + $0x540] sm:$0xff]
    %v393 = vld [vmem:[#allocation5 + $0x548] sm:$0xff]
    %v394 = vld [vmem:[#allocation5 + $0x550] sm:$0xff]
    %v395 = vld [vmem:[#allocation5 + $0x558] sm:$0xff]
    %v396 = vld [vmem:[#allocation5 + $0x560] sm:$0xff]
    %v397 = vld [vmem:[#allocation5 + $0x568] sm:$0xff]
    %v398 = vld [vmem:[#allocation5 + $0x570] sm:$0xff]
    %v399 = vld [vmem:[#allocation5 + $0x578] sm:$0xff]
    %v400 = vld [vmem:[#allocation5 + $0x580] sm:$0xff]
    %v401 = vld [vmem:[#allocation5 + $0x588] sm:$0xff]
    %v402 = vld [vmem:[#allocation5 + $0x590] sm:$0xff]
    %v403 = vld [vmem:[#allocation5 + $0x598] sm:$0xff]
    %v404 = vld [vmem:[#allocation5 + $0x5a0] sm:$0xff]
    %v405 = vld [vmem:[#allocation5 + $0x5a8] sm:$0xff]
    %v406 = vld [vmem:[#allocation5 + $0x5b0] sm:$0xff]
    %v407 = vld [vmem:[#allocation5 + $0x5b8] sm:$0xff]
    %v408 = vld [vmem:[#allocation5 + $0x5c0] sm:$0xff]
    %v409 = vld [vmem:[#allocation5 + $0x5c8] sm:$0xff]
    %v410 = vld [vmem:[#allocation5 + $0x5d0] sm:$0xff]
    %v411 = vld [vmem:[#allocation5 + $0x5d8] sm:$0xff]
    %v412 = vld [vmem:[#allocation5 + $0x5e0] sm:$0xff]
    %v413 = vld [vmem:[#allocation5 + $0x5e8] sm:$0xff]
    %v414 = vld [vmem:[#allocation5 + $0x5f0] sm:$0xff]
    %v415 = vld [vmem:[#allocation5 + $0x5f8] sm:$0xff]
    %v416 = vld [vmem:[#allocation5 + $0x600] sm:$0xff]
    %v417 = vld [vmem:[#allocation5 + $0x608] sm:$0xff]
    %v418 = vld [vmem:[#allocation5 + $0x610] sm:$0xff]
    %v419 = vld [vmem:[#allocation5 + $0x618] sm:$0xff]
    %v420 = vld [vmem:[#allocation5 + $0x620] sm:$0xff]
    %v421 = vld [vmem:[#allocation5 + $0x628] sm:$0xff]
    %v422 = vld [vmem:[#allocation5 + $0x630] sm:$0xff]
    %v423 = vld [vmem:[#allocation5 + $0x638] sm:$0xff]
    %v424 = vld [vmem:[#allocation5 + $0x640] sm:$0xff]
    %v425 = vld [vmem:[#allocation5 + $0x648] sm:$0xff]
    %v426 = vld [vmem:[#allocation5 + $0x650] sm:$0xff]
    %v427 = vld [vmem:[#allocation5 + $0x658] sm:$0xff]
    %v428 = vld [vmem:[#allocation5 + $0x660] sm:$0xff]
    %v429 = vld [vmem:[#allocation5 + $0x668] sm:$0xff]
    %v430 = vld [vmem:[#allocation5 + $0x670] sm:$0xff]
    %v431 = vld [vmem:[#allocation5 + $0x678] sm:$0xff]
    %v432 = vld [vmem:[#allocation5 + $0x680] sm:$0xff]
    %v433 = vld [vmem:[#allocation5 + $0x688] sm:$0xff]
    %v434 = vld [vmem:[#allocation5 + $0x690] sm:$0xff]
    %v435 = vld [vmem:[#allocation5 + $0x698] sm:$0xff]
    %v436 = vld [vmem:[#allocation5 + $0x6a0] sm:$0xff]
    %v437 = vld [vmem:[#allocation5 + $0x6a8] sm:$0xff]
    %v438 = vld [vmem:[#allocation5 + $0x6b0] sm:$0xff]
    %v439 = vld [vmem:[#allocation5 + $0x6b8] sm:$0xff]
    %v440 = vld [vmem:[#allocation5 + $0x6c0] sm:$0xff]
    %v441 = vld [vmem:[#allocation5 + $0x6c8] sm:$0xff]
    %v442 = vld [vmem:[#allocation5 + $0x6d0] sm:$0xff]
    %v443 = vld [vmem:[#allocation5 + $0x6d8] sm:$0xff]
    %v444 = vld [vmem:[#allocation5 + $0x6e0] sm:$0xff]
    %v445 = vld [vmem:[#allocation5 + $0x6e8] sm:$0xff]
    %v446 = vld [vmem:[#allocation5 + $0x6f0] sm:$0xff]
    %v447 = vld [vmem:[#allocation5 + $0x6f8] sm:$0xff]
    %v448 = vld [vmem:[#allocation5 + $0x700] sm:$0xff]
    %v449 = vld [vmem:[#allocation5 + $0x708] sm:$0xff]
    %v450 = vld [vmem:[#allocation5 + $0x710] sm:$0xff]
    %v451 = vld [vmem:[#allocation5 + $0x718] sm:$0xff]
    %v452 = vld [vmem:[#allocation5 + $0x720] sm:$0xff]
    %v453 = vld [vmem:[#allocation5 + $0x728] sm:$0xff]
    %v454 = vld [vmem:[#allocation5 + $0x730] sm:$0xff]
    %v455 = vld [vmem:[#allocation5 + $0x738] sm:$0xff]
    %v456 = vld [vmem:[#allocation5 + $0x740] sm:$0xff]
    %v457 = vld [vmem:[#allocation5 + $0x748] sm:$0xff]
    %v458 = vld [vmem:[#allocation5 + $0x750] sm:$0xff]
    %v459 = vld [vmem:[#allocation5 + $0x758] sm:$0xff]
    %v460 = vld [vmem:[#allocation5 + $0x760] sm:$0xff]
    %v461 = vld [vmem:[#allocation5 + $0x768] sm:$0xff]
    %v462 = vld [vmem:[#allocation5 + $0x770] sm:$0xff]
    %v463 = vld [vmem:[#allocation5 + $0x778] sm:$0xff]
    %v464 = vld [vmem:[#allocation5 + $0x780] sm:$0xff]
    %v465 = vld [vmem:[#allocation5 + $0x788] sm:$0xff]
    %v466 = vld [vmem:[#allocation5 + $0x790] sm:$0xff]
    %v467 = vld [vmem:[#allocation5 + $0x798] sm:$0xff]
    %v468 = vld [vmem:[#allocation5 + $0x7a0] sm:$0xff]
    %v469 = vld [vmem:[#allocation5 + $0x7a8] sm:$0xff]
    %v470 = vld [vmem:[#allocation5 + $0x7b0] sm:$0xff]
    %v471 = vld [vmem:[#allocation5 + $0x7b8] sm:$0xff]
    %v472 = vld [vmem:[#allocation5 + $0x7c0] sm:$0xff]
    %v473 = vld [vmem:[#allocation5 + $0x7c8] sm:$0xff]
    %v474 = vld [vmem:[#allocation5 + $0x7d0] sm:$0xff]
    %v475 = vld [vmem:[#allocation5 + $0x7d8] sm:$0xff]
    %v476 = vld [vmem:[#allocation5 + $0x7e0] sm:$0xff]
    %v477 = vld [vmem:[#allocation5 + $0x7e8] sm:$0xff]
    %v478 = vld [vmem:[#allocation5 + $0x7f0] sm:$0xff]
    %v479 = vld [vmem:[#allocation5 + $0x7f8] sm:$0xff]
    %v480 = vld [vmem:[#allocation5 + $0x800] sm:$0xff]
    %v481 = vld [vmem:[#allocation5 + $0x808] sm:$0xff]
    %v482 = vld [vmem:[#allocation5 + $0x810] sm:$0xff]
    %v483 = vld [vmem:[#allocation5 + $0x818] sm:$0xff]
    %v484 = vld [vmem:[#allocation5 + $0x820] sm:$0xff]
    %v485 = vld [vmem:[#allocation5 + $0x828] sm:$0xff]
    %v486 = vld [vmem:[#allocation5 + $0x830] sm:$0xff]
    %v487 = vld [vmem:[#allocation5 + $0x838] sm:$0xff]
    %v488 = vld [vmem:[#allocation5 + $0x840] sm:$0xff]
    %v489 = vld [vmem:[#allocation5 + $0x848] sm:$0xff]
    %v490 = vld [vmem:[#allocation5 + $0x850] sm:$0xff]
    %v491 = vld [vmem:[#allocation5 + $0x858] sm:$0xff]
    %v492 = vld [vmem:[#allocation5 + $0x860] sm:$0xff]
    %v493 = vld [vmem:[#allocation5 + $0x868] sm:$0xff]
    %v494 = vld [vmem:[#allocation5 + $0x870] sm:$0xff]
    %v495 = vld [vmem:[#allocation5 + $0x878] sm:$0xff]
    %v496 = vld [vmem:[#allocation5 + $0x880] sm:$0xff]
    %v497 = vld [vmem:[#allocation5 + $0x888] sm:$0xff]
    %v498 = vld [vmem:[#allocation5 + $0x890] sm:$0xff]
    %v499 = vld [vmem:[#allocation5 + $0x898] sm:$0xff]
    %v500 = vld [vmem:[#allocation5 + $0x8a0] sm:$0xff]
    %v501 = vld [vmem:[#allocation5 + $0x8a8] sm:$0xff]
    %v502 = vld [vmem:[#allocation5 + $0x8b0] sm:$0xff]
    %v503 = vld [vmem:[#allocation5 + $0x8b8] sm:$0xff]
    %v504 = vld [vmem:[#allocation5 + $0x8c0] sm:$0xff]
    %v505 = vld [vmem:[#allocation5 + $0x8c8] sm:$0xff]
    %v506 = vld [vmem:[#allocation5 + $0x8d0] sm:$0xff]
    %v507 = vld [vmem:[#allocation5 + $0x8d8] sm:$0xff]
    %v508 = vld [vmem:[#allocation5 + $0x8e0] sm:$0xff]
    %v509 = vld [vmem:[#allocation5 + $0x8e8] sm:$0xff]
    %v510 = vld [vmem:[#allocation5 + $0x8f0] sm:$0xff]
    %v511 = vld [vmem:[#allocation5 + $0x8f8] sm:$0xff]
    %v512 = vld [vmem:[#allocation5 + $0x900] sm:$0xff]
    %v513 = vld [vmem:[#allocation5 + $0x908] sm:$0xff]
    %v514 = vld [vmem:[#allocation5 + $0x910] sm:$0xff]
    %v515 = vld [vmem:[#allocation5 + $0x918] sm:$0xff]
    %v516 = vld [vmem:[#allocation5 + $0x920] sm:$0xff]
    %v517 = vld [vmem:[#allocation5 + $0x928] sm:$0xff]
    %v518 = vld [vmem:[#allocation5 + $0x930] sm:$0xff]
    %v519 = vld [vmem:[#allocation5 + $0x938] sm:$0xff]
    %v520 = vld [vmem:[#allocation5 + $0x940] sm:$0xff]
    %v521 = vld [vmem:[#allocation5 + $0x948] sm:$0xff]
    %v522 = vld [vmem:[#allocation5 + $0x950] sm:$0xff]
    %v523 = vld [vmem:[#allocation5 + $0x958] sm:$0xff]
    %v524 = vld [vmem:[#allocation5 + $0x960] sm:$0xff]
    %v525 = vld [vmem:[#allocation5 + $0x968] sm:$0xff]
    %v526 = vld [vmem:[#allocation5 + $0x970] sm:$0xff]
    %v527 = vld [vmem:[#allocation5 + $0x978] sm:$0xff]
    %v528 = vld [vmem:[#allocation5 + $0x980] sm:$0xff]
    %v529 = vld [vmem:[#allocation5 + $0x988] sm:$0xff]
    %v530 = vld [vmem:[#allocation5 + $0x990] sm:$0xff]
    %v531 = vld [vmem:[#allocation5 + $0x998] sm:$0xff]
    %v532 = vld [vmem:[#allocation5 + $0x9a0] sm:$0xff]
    %v533 = vld [vmem:[#allocation5 + $0x9a8] sm:$0xff]
    %v534 = vld [vmem:[#allocation5 + $0x9b0] sm:$0xff]
    %v535 = vld [vmem:[#allocation5 + $0x9b8] sm:$0xff]
    %v536 = vld [vmem:[#allocation5 + $0x9c0] sm:$0xff]
    %v537 = vld [vmem:[#allocation5 + $0x9c8] sm:$0xff]
    %v538 = vld [vmem:[#allocation5 + $0x9d0] sm:$0xff]
    %v539 = vld [vmem:[#allocation5 + $0x9d8] sm:$0xff]
    %v540 = vld [vmem:[#allocation5 + $0x9e0] sm:$0xff]
    %v541 = vld [vmem:[#allocation5 + $0x9e8] sm:$0xff]
    %v542 = vld [vmem:[#allocation5 + $0x9f0] sm:$0xff]
    %v543 = vld [vmem:[#allocation5 + $0x9f8] sm:$0xff]
    %v544 = vld [vmem:[#allocation5 + $0xa00] sm:$0xff]
    %v545 = vld [vmem:[#allocation5 + $0xa08] sm:$0xff]
    %v546 = vld [vmem:[#allocation5 + $0xa10] sm:$0xff]
    %v547 = vld [vmem:[#allocation5 + $0xa18] sm:$0xff]
    %v548 = vld [vmem:[#allocation5 + $0xa20] sm:$0xff]
    %v549 = vld [vmem:[#allocation5 + $0xa28] sm:$0xff]
    %v550 = vld [vmem:[#allocation5 + $0xa30] sm:$0xff]
    %v551 = vld [vmem:[#allocation5 + $0xa38] sm:$0xff]
    %v552 = vld [vmem:[#allocation5 + $0xa40] sm:$0xff]
    %v553 = vld [vmem:[#allocation5 + $0xa48] sm:$0xff]
    %v554 = vld [vmem:[#allocation5 + $0xa50] sm:$0xff]
    %v555 = vld [vmem:[#allocation5 + $0xa58] sm:$0xff]
    %v556 = vld [vmem:[#allocation5 + $0xa60] sm:$0xff]
    %v557 = vld [vmem:[#allocation5 + $0xa68] sm:$0xff]
    %v558 = vld [vmem:[#allocation5 + $0xa70] sm:$0xff]
    %v559 = vld [vmem:[#allocation5 + $0xa78] sm:$0xff]
    %v560 = vld [vmem:[#allocation5 + $0xa80] sm:$0xff]
    %v561 = vld [vmem:[#allocation5 + $0xa88] sm:$0xff]
    %v562 = vld [vmem:[#allocation5 + $0xa90] sm:$0xff]
    %v563 = vld [vmem:[#allocation5 + $0xa98] sm:$0xff]
    %v564 = vld [vmem:[#allocation5 + $0xaa0] sm:$0xff]
    %v565 = vld [vmem:[#allocation5 + $0xaa8] sm:$0xff]
    %v566 = vld [vmem:[#allocation5 + $0xab0] sm:$0xff]
    %v567 = vld [vmem:[#allocation5 + $0xab8] sm:$0xff]
    %v568 = vld [vmem:[#allocation5 + $0xac0] sm:$0xff]
    %v569 = vld [vmem:[#allocation5 + $0xac8] sm:$0xff]
    %v570 = vld [vmem:[#allocation5 + $0xad0] sm:$0xff]
    %v571 = vld [vmem:[#allocation5 + $0xad8] sm:$0xff]
    %v572 = vld [vmem:[#allocation5 + $0xae0] sm:$0xff]
    %v573 = vld [vmem:[#allocation5 + $0xae8] sm:$0xff]
    %v574 = vld [vmem:[#allocation5 + $0xaf0] sm:$0xff]
    %v575 = vld [vmem:[#allocation5 + $0xaf8] sm:$0xff]
    %v576 = vld [vmem:[#allocation5 + $0xb00] sm:$0xff]
    %v577 = vld [vmem:[#allocation5 + $0xb08] sm:$0xff]
    %v578 = vld [vmem:[#allocation5 + $0xb10] sm:$0xff]
    %v579 = vld [vmem:[#allocation5 + $0xb18] sm:$0xff]
    %v580 = vld [vmem:[#allocation5 + $0xb20] sm:$0xff]
    %v581 = vld [vmem:[#allocation5 + $0xb28] sm:$0xff]
    %v582 = vld [vmem:[#allocation5 + $0xb30] sm:$0xff]
    %v583 = vld [vmem:[#allocation5 + $0xb38] sm:$0xff]
    %v584 = vld [vmem:[#allocation5 + $0xb40] sm:$0xff]
    %v585 = vld [vmem:[#allocation5 + $0xb48] sm:$0xff]
    %v586 = vld [vmem:[#allocation5 + $0xb50] sm:$0xff]
    %v587 = vld [vmem:[#allocation5 + $0xb58] sm:$0xff]
    %v588 = vld [vmem:[#allocation5 + $0xb60] sm:$0xff]
    %v589 = vld [vmem:[#allocation5 + $0xb68] sm:$0xff]
    %v590 = vld [vmem:[#allocation5 + $0xb70] sm:$0xff]
    %v591 = vld [vmem:[#allocation5 + $0xb78] sm:$0xff]
    %v592 = vld [vmem:[#allocation5 + $0xb80] sm:$0xff]
    %v593 = vld [vmem:[#allocation5 + $0xb88] sm:$0xff]
    %v594 = vld [vmem:[#allocation5 + $0xb90] sm:$0xff]
    %v595 = vld [vmem:[#allocation5 + $0xb98] sm:$0xff]
    %v596 = vld [vmem:[#allocation5 + $0xba0] sm:$0xff]
    %v597 = vld [vmem:[#allocation5 + $0xba8] sm:$0xff]
    %v598 = vld [vmem:[#allocation5 + $0xbb0] sm:$0xff]
    %v599 = vld [vmem:[#allocation5 + $0xbb8] sm:$0xff]
    %v600 = vld [vmem:[#allocation5 + $0xbc0] sm:$0xff]
    %v601 = vld [vmem:[#allocation5 + $0xbc8] sm:$0xff]
    %v602 = vld [vmem:[#allocation5 + $0xbd0] sm:$0xff]
    %v603 = vld [vmem:[#allocation5 + $0xbd8] sm:$0xff]
    %v604 = vld [vmem:[#allocation5 + $0xbe0] sm:$0xff]
    %v605 = vld [vmem:[#allocation5 + $0xbe8] sm:$0xff]
    %v606 = vld [vmem:[#allocation5 + $0xbf0] sm:$0xff]
    %v607 = vld [vmem:[#allocation5 + $0xbf8] sm:$0xff]
    %v608 = vld [vmem:[#allocation5 + $0xc00] sm:$0xff]
    %v609 = vld [vmem:[#allocation5 + $0xc08] sm:$0xff]
    %v610 = vld [vmem:[#allocation5 + $0xc10] sm:$0xff]
    %v611 = vld [vmem:[#allocation5 + $0xc18] sm:$0xff]
    %v612 = vld [vmem:[#allocation5 + $0xc20] sm:$0xff]
    %v613 = vld [vmem:[#allocation5 + $0xc28] sm:$0xff]
    %v614 = vld [vmem:[#allocation5 + $0xc30] sm:$0xff]
    %v615 = vld [vmem:[#allocation5 + $0xc38] sm:$0xff]
    %v616 = vld [vmem:[#allocation5 + $0xc40] sm:$0xff]
    %v617 = vld [vmem:[#allocation5 + $0xc48] sm:$0xff]
    %v618 = vld [vmem:[#allocation5 + $0xc50] sm:$0xff]
    %v619 = vld [vmem:[#allocation5 + $0xc58] sm:$0xff]
    %v620 = vld [vmem:[#allocation5 + $0xc60] sm:$0xff]
    %v621 = vld [vmem:[#allocation5 + $0xc68] sm:$0xff]
    %v622 = vld [vmem:[#allocation5 + $0xc70] sm:$0xff]
    %v623 = vld [vmem:[#allocation5 + $0xc78] sm:$0xff]
    %v624 = vld [vmem:[#allocation5 + $0xc80] sm:$0xff]
    %v625 = vld [vmem:[#allocation5 + $0xc88] sm:$0xff]
    %v626 = vld [vmem:[#allocation5 + $0xc90] sm:$0xff]
    %v627 = vld [vmem:[#allocation5 + $0xc98] sm:$0xff]
    %v628 = vld [vmem:[#allocation5 + $0xca0] sm:$0xff]
    %v629 = vld [vmem:[#allocation5 + $0xca8] sm:$0xff]
    %v630 = vld [vmem:[#allocation5 + $0xcb0] sm:$0xff]
    %v631 = vld [vmem:[#allocation5 + $0xcb8] sm:$0xff]
    %v632 = vld [vmem:[#allocation5 + $0xcc0] sm:$0xff]
    %v633 = vld [vmem:[#allocation5 + $0xcc8] sm:$0xff]
    %v634 = vld [vmem:[#allocation5 + $0xcd0] sm:$0xff]
    %v635 = vld [vmem:[#allocation5 + $0xcd8] sm:$0xff]
    %v636 = vld [vmem:[#allocation5 + $0xce0] sm:$0xff]
    %v637 = vld [vmem:[#allocation5 + $0xce8] sm:$0xff]
    %v638 = vld [vmem:[#allocation5 + $0xcf0] sm:$0xff]
    %v639 = vld [vmem:[#allocation5 + $0xcf8] sm:$0xff]
    %v640 = vld [vmem:[#allocation5 + $0xd00] sm:$0xff]
    %v641 = vld [vmem:[#allocation5 + $0xd08] sm:$0xff]
    %v642 = vld [vmem:[#allocation5 + $0xd10] sm:$0xff]
    %v643 = vld [vmem:[#allocation5 + $0xd18] sm:$0xff]
    %v644 = vld [vmem:[#allocation5 + $0xd20] sm:$0xff]
    %v645 = vld [vmem:[#allocation5 + $0xd28] sm:$0xff]
    %v646 = vld [vmem:[#allocation5 + $0xd30] sm:$0xff]
    %v647 = vld [vmem:[#allocation5 + $0xd38] sm:$0xff]
    %v648 = vld [vmem:[#allocation5 + $0xd40] sm:$0xff]
    %v649 = vld [vmem:[#allocation5 + $0xd48] sm:$0xff]
    %v650 = vld [vmem:[#allocation5 + $0xd50] sm:$0xff]
    %v651 = vld [vmem:[#allocation5 + $0xd58] sm:$0xff]
    %v652 = vld [vmem:[#allocation5 + $0xd60] sm:$0xff]
    %v653 = vld [vmem:[#allocation5 + $0xd68] sm:$0xff]
    %v654 = vld [vmem:[#allocation5 + $0xd70] sm:$0xff]
    %v655 = vld [vmem:[#allocation5 + $0xd78] sm:$0xff]
    %v656 = vld [vmem:[#allocation5 + $0xd80] sm:$0xff]
    %v657 = vld [vmem:[#allocation5 + $0xd88] sm:$0xff]
    %v658 = vld [vmem:[#allocation5 + $0xd90] sm:$0xff]
    %v659 = vld [vmem:[#allocation5 + $0xd98] sm:$0xff]
    %v660 = vld [vmem:[#allocation5 + $0xda0] sm:$0xff]
    %v661 = vld [vmem:[#allocation5 + $0xda8] sm:$0xff]
    %v662 = vld [vmem:[#allocation5 + $0xdb0] sm:$0xff]
    %v663 = vld [vmem:[#allocation5 + $0xdb8] sm:$0xff]
    %v664 = vld [vmem:[#allocation5 + $0xdc0] sm:$0xff]
    %v665 = vld [vmem:[#allocation5 + $0xdc8] sm:$0xff]
    %v666 = vld [vmem:[#allocation5 + $0xdd0] sm:$0xff]
    %v667 = vld [vmem:[#allocation5 + $0xdd8] sm:$0xff]
    %v668 = vld [vmem:[#allocation5 + $0xde0] sm:$0xff]
    %v669 = vld [vmem:[#allocation5 + $0xde8] sm:$0xff]
    %v670 = vld [vmem:[#allocation5 + $0xdf0] sm:$0xff]
    %v671 = vld [vmem:[#allocation5 + $0xdf8] sm:$0xff]
    %v672 = vld [vmem:[#allocation5 + $0xe00] sm:$0xff]
    %v673 = vld [vmem:[#allocation5 + $0xe08] sm:$0xff]
    %v674 = vld [vmem:[#allocation5 + $0xe10] sm:$0xff]
    %v675 = vld [vmem:[#allocation5 + $0xe18] sm:$0xff]
    %v676 = vld [vmem:[#allocation5 + $0xe20] sm:$0xff]
    %v677 = vld [vmem:[#allocation5 + $0xe28] sm:$0xff]
    %v678 = vld [vmem:[#allocation5 + $0xe30] sm:$0xff]
    %v679 = vld [vmem:[#allocation5 + $0xe38] sm:$0xff]
    %v680 = vld [vmem:[#allocation5 + $0xe40] sm:$0xff]
    %v681 = vld [vmem:[#allocation5 + $0xe48] sm:$0xff]
    %v682 = vld [vmem:[#allocation5 + $0xe50] sm:$0xff]
    %v683 = vld [vmem:[#allocation5 + $0xe58] sm:$0xff]
    %v684 = vld [vmem:[#allocation5 + $0xe60] sm:$0xff]
    %v685 = vld [vmem:[#allocation5 + $0xe68] sm:$0xff]
    %v686 = vld [vmem:[#allocation5 + $0xe70] sm:$0xff]
    %v687 = vld [vmem:[#allocation5 + $0xe78] sm:$0xff]
    %v688 = vld [vmem:[#allocation5 + $0xe80] sm:$0xff]
    %v689 = vld [vmem:[#allocation5 + $0xe88] sm:$0xff]
    %v690 = vld [vmem:[#allocation5 + $0xe90] sm:$0xff]
    %v691 = vld [vmem:[#allocation5 + $0xe98] sm:$0xff]
    %v692 = vld [vmem:[#allocation5 + $0xea0] sm:$0xff]
    %v693 = vld [vmem:[#allocation5 + $0xea8] sm:$0xff]
    %v694 = vld [vmem:[#allocation5 + $0xeb0] sm:$0xff]
    %v695 = vld [vmem:[#allocation5 + $0xeb8] sm:$0xff]
    %v696 = vld [vmem:[#allocation5 + $0xec0] sm:$0xff]
    %v697 = vld [vmem:[#allocation5 + $0xec8] sm:$0xff]
    %v698 = vld [vmem:[#allocation5 + $0xed0] sm:$0xff]
    %v699 = vld [vmem:[#allocation5 + $0xed8] sm:$0xff]
    %v700 = vld [vmem:[#allocation5 + $0xee0] sm:$0xff]
    %v701 = vld [vmem:[#allocation5 + $0xee8] sm:$0xff]
    %v702 = vld [vmem:[#allocation5 + $0xef0] sm:$0xff]
    %v703 = vld [vmem:[#allocation5 + $0xef8] sm:$0xff]
    %v704 = vld [vmem:[#allocation5 + $0xf00] sm:$0xff]
    %v705 = vld [vmem:[#allocation5 + $0xf08] sm:$0xff]
    %v706 = vld [vmem:[#allocation5 + $0xf10] sm:$0xff]
    %v707 = vld [vmem:[#allocation5 + $0xf18] sm:$0xff]
    %v708 = vld [vmem:[#allocation5 + $0xf20] sm:$0xff]
    %v709 = vld [vmem:[#allocation5 + $0xf28] sm:$0xff]
    %v710 = vld [vmem:[#allocation5 + $0xf30] sm:$0xff]
    %v711 = vld [vmem:[#allocation5 + $0xf38] sm:$0xff]
    %v712 = vld [vmem:[#allocation5 + $0xf40] sm:$0xff]
    %v713 = vld [vmem:[#allocation5 + $0xf48] sm:$0xff]
    %v714 = vld [vmem:[#allocation5 + $0xf50] sm:$0xff]
    %v715 = vld [vmem:[#allocation5 + $0xf58] sm:$0xff]
    %v716 = vld [vmem:[#allocation5 + $0xf60] sm:$0xff]
    %v717 = vld [vmem:[#allocation5 + $0xf68] sm:$0xff]
    %v718 = vld [vmem:[#allocation5 + $0xf70] sm:$0xff]
    %v719 = vld [vmem:[#allocation5 + $0xf78] sm:$0xff]
    %v720 = vld [vmem:[#allocation5 + $0xf80] sm:$0xff]
    %v721 = vld [vmem:[#allocation5 + $0xf88] sm:$0xff]
    %v722 = vld [vmem:[#allocation5 + $0xf90] sm:$0xff]
    %v723 = vld [vmem:[#allocation5 + $0xf98] sm:$0xff]
    %v724 = vld [vmem:[#allocation5 + $0xfa0] sm:$0xff]
    %v725 = vld [vmem:[#allocation5 + $0xfa8] sm:$0xff]
    %v726 = vld [vmem:[#allocation5 + $0xfb0] sm:$0xff]
    %v727 = vld [vmem:[#allocation5 + $0xfb8] sm:$0xff]
    %v728 = vld [vmem:[#allocation5 + $0xfc0] sm:$0xff]
    %v729 = vld [vmem:[#allocation5 + $0xfc8] sm:$0xff]
    %v730 = vld [vmem:[#allocation5 + $0xfd0] sm:$0xff]
    %v731 = vld [vmem:[#allocation5 + $0xfd8] sm:$0xff]
    %v732 = vld [vmem:[#allocation5 + $0xfe0] sm:$0xff]
    %v733 = vld [vmem:[#allocation5 + $0xfe8] sm:$0xff]
    %v734 = vld [vmem:[#allocation5 + $0xff0] sm:$0xff]
    %v735 = vld [vmem:[#allocation5 + $0xff8] sm:$0xff]
    %v1248 = vunpack.c.l.b16 %v224
    %v1249 = vunpack.c.h.b16 %v224
    %v1250 = vunpack.c.l.b16 %v225
    %v1251 = vunpack.c.h.b16 %v225
    %v1252 = vunpack.c.l.b16 %v226
    %v1253 = vunpack.c.h.b16 %v226
    %v1254 = vunpack.c.l.b16 %v227
    %v1255 = vunpack.c.h.b16 %v227
    %v1256 = vunpack.c.l.b16 %v228
    %v1257 = vunpack.c.h.b16 %v228
    %v1258 = vunpack.c.l.b16 %v229
    %v1259 = vunpack.c.h.b16 %v229
    %v1260 = vunpack.c.l.b16 %v230
    %v1261 = vunpack.c.h.b16 %v230
    %v1262 = vunpack.c.l.b16 %v231
    %v1263 = vunpack.c.h.b16 %v231
    %v1264 = vunpack.c.l.b16 %v232
    %v1265 = vunpack.c.h.b16 %v232
    %v1266 = vunpack.c.l.b16 %v233
    %v1267 = vunpack.c.h.b16 %v233
    %v1268 = vunpack.c.l.b16 %v234
    %v1269 = vunpack.c.h.b16 %v234
    %v1270 = vunpack.c.l.b16 %v235
    %v1271 = vunpack.c.h.b16 %v235
    %v1272 = vunpack.c.l.b16 %v236
    %v1273 = vunpack.c.h.b16 %v236
    %v1274 = vunpack.c.l.b16 %v237
    %v1275 = vunpack.c.h.b16 %v237
    %v1276 = vunpack.c.l.b16 %v238
    %v1277 = vunpack.c.h.b16 %v238
    %v1278 = vunpack.c.l.b16 %v239
    %v1279 = vunpack.c.h.b16 %v239
    %v1280 = vunpack.c.l.b16 %v240
    %v1281 = vunpack.c.h.b16 %v240
    %v1282 = vunpack.c.l.b16 %v241
    %v1283 = vunpack.c.h.b16 %v241
    %v1284 = vunpack.c.l.b16 %v242
    %v1285 = vunpack.c.h.b16 %v242
    %v1286 = vunpack.c.l.b16 %v243
    %v1287 = vunpack.c.h.b16 %v243
    %v1288 = vunpack.c.l.b16 %v244
    %v1289 = vunpack.c.h.b16 %v244
    %v1290 = vunpack.c.l.b16 %v245
    %v1291 = vunpack.c.h.b16 %v245
    %v1292 = vunpack.c.l.b16 %v246
    %v1293 = vunpack.c.h.b16 %v246
    %v1294 = vunpack.c.l.b16 %v247
    %v1295 = vunpack.c.h.b16 %v247
    %v1296 = vunpack.c.l.b16 %v248
    %v1297 = vunpack.c.h.b16 %v248
    %v1298 = vunpack.c.l.b16 %v249
    %v1299 = vunpack.c.h.b16 %v249
    %v1300 = vunpack.c.l.b16 %v250
    %v1301 = vunpack.c.h.b16 %v250
    %v1302 = vunpack.c.l.b16 %v251
    %v1303 = vunpack.c.h.b16 %v251
    %v1304 = vunpack.c.l.b16 %v252
    %v1305 = vunpack.c.h.b16 %v252
    %v1306 = vunpack.c.l.b16 %v253
    %v1307 = vunpack.c.h.b16 %v253
    %v1308 = vunpack.c.l.b16 %v254
    %v1309 = vunpack.c.h.b16 %v254
    %v1310 = vunpack.c.l.b16 %v255
    %v1311 = vunpack.c.h.b16 %v255
    %v1312 = vunpack.c.l.b16 %v256
    %v1313 = vunpack.c.h.b16 %v256
    %v1314 = vunpack.c.l.b16 %v257
    %v1315 = vunpack.c.h.b16 %v257
    %v1316 = vunpack.c.l.b16 %v258
    %v1317 = vunpack.c.h.b16 %v258
    %v1318 = vunpack.c.l.b16 %v259
    %v1319 = vunpack.c.h.b16 %v259
    %v1320 = vunpack.c.l.b16 %v260
    %v1321 = vunpack.c.h.b16 %v260
    %v1322 = vunpack.c.l.b16 %v261
    %v1323 = vunpack.c.h.b16 %v261
    %v1324 = vunpack.c.l.b16 %v262
    %v1325 = vunpack.c.h.b16 %v262
    %v1326 = vunpack.c.l.b16 %v263
    %v1327 = vunpack.c.h.b16 %v263
    %v1328 = vunpack.c.l.b16 %v264
    %v1329 = vunpack.c.h.b16 %v264
    %v1330 = vunpack.c.l.b16 %v265
    %v1331 = vunpack.c.h.b16 %v265
    %v1332 = vunpack.c.l.b16 %v266
    %v1333 = vunpack.c.h.b16 %v266
    %v1334 = vunpack.c.l.b16 %v267
    %v1335 = vunpack.c.h.b16 %v267
    %v1336 = vunpack.c.l.b16 %v268
    %v1337 = vunpack.c.h.b16 %v268
    %v1338 = vunpack.c.l.b16 %v269
    %v1339 = vunpack.c.h.b16 %v269
    %v1340 = vunpack.c.l.b16 %v270
    %v1341 = vunpack.c.h.b16 %v270
    %v1342 = vunpack.c.l.b16 %v271
    %v1343 = vunpack.c.h.b16 %v271
    %v1344 = vunpack.c.l.b16 %v272
    %v1345 = vunpack.c.h.b16 %v272
    %v1346 = vunpack.c.l.b16 %v273
    %v1347 = vunpack.c.h.b16 %v273
    %v1348 = vunpack.c.l.b16 %v274
    %v1349 = vunpack.c.h.b16 %v274
    %v1350 = vunpack.c.l.b16 %v275
    %v1351 = vunpack.c.h.b16 %v275
    %v1352 = vunpack.c.l.b16 %v276
    %v1353 = vunpack.c.h.b16 %v276
    %v1354 = vunpack.c.l.b16 %v277
    %v1355 = vunpack.c.h.b16 %v277
    %v1356 = vunpack.c.l.b16 %v278
    %v1357 = vunpack.c.h.b16 %v278
    %v1358 = vunpack.c.l.b16 %v279
    %v1359 = vunpack.c.h.b16 %v279
    %v1360 = vunpack.c.l.b16 %v280
    %v1361 = vunpack.c.h.b16 %v280
    %v1362 = vunpack.c.l.b16 %v281
    %v1363 = vunpack.c.h.b16 %v281
    %v1364 = vunpack.c.l.b16 %v282
    %v1365 = vunpack.c.h.b16 %v282
    %v1366 = vunpack.c.l.b16 %v283
    %v1367 = vunpack.c.h.b16 %v283
    %v1368 = vunpack.c.l.b16 %v284
    %v1369 = vunpack.c.h.b16 %v284
    %v1370 = vunpack.c.l.b16 %v285
    %v1371 = vunpack.c.h.b16 %v285
    %v1372 = vunpack.c.l.b16 %v286
    %v1373 = vunpack.c.h.b16 %v286
    %v1374 = vunpack.c.l.b16 %v287
    %v1375 = vunpack.c.h.b16 %v287
    %v1376 = vunpack.c.l.b16 %v288
    %v1377 = vunpack.c.h.b16 %v288
    %v1378 = vunpack.c.l.b16 %v289
    %v1379 = vunpack.c.h.b16 %v289
    %v1380 = vunpack.c.l.b16 %v290
    %v1381 = vunpack.c.h.b16 %v290
    %v1382 = vunpack.c.l.b16 %v291
    %v1383 = vunpack.c.h.b16 %v291
    %v1384 = vunpack.c.l.b16 %v292
    %v1385 = vunpack.c.h.b16 %v292
    %v1386 = vunpack.c.l.b16 %v293
    %v1387 = vunpack.c.h.b16 %v293
    %v1388 = vunpack.c.l.b16 %v294
    %v1389 = vunpack.c.h.b16 %v294
    %v1390 = vunpack.c.l.b16 %v295
    %v1391 = vunpack.c.h.b16 %v295
    %v1392 = vunpack.c.l.b16 %v296
    %v1393 = vunpack.c.h.b16 %v296
    %v1394 = vunpack.c.l.b16 %v297
    %v1395 = vunpack.c.h.b16 %v297
    %v1396 = vunpack.c.l.b16 %v298
    %v1397 = vunpack.c.h.b16 %v298
    %v1398 = vunpack.c.l.b16 %v299
    %v1399 = vunpack.c.h.b16 %v299
    %v1400 = vunpack.c.l.b16 %v300
    %v1401 = vunpack.c.h.b16 %v300
    %v1402 = vunpack.c.l.b16 %v301
    %v1403 = vunpack.c.h.b16 %v301
    %v1404 = vunpack.c.l.b16 %v302
    %v1405 = vunpack.c.h.b16 %v302
    %v1406 = vunpack.c.l.b16 %v303
    %v1407 = vunpack.c.h.b16 %v303
    %v1408 = vunpack.c.l.b16 %v304
    %v1409 = vunpack.c.h.b16 %v304
    %v1410 = vunpack.c.l.b16 %v305
    %v1411 = vunpack.c.h.b16 %v305
    %v1412 = vunpack.c.l.b16 %v306
    %v1413 = vunpack.c.h.b16 %v306
    %v1414 = vunpack.c.l.b16 %v307
    %v1415 = vunpack.c.h.b16 %v307
    %v1416 = vunpack.c.l.b16 %v308
    %v1417 = vunpack.c.h.b16 %v308
    %v1418 = vunpack.c.l.b16 %v309
    %v1419 = vunpack.c.h.b16 %v309
    %v1420 = vunpack.c.l.b16 %v310
    %v1421 = vunpack.c.h.b16 %v310
    %v1422 = vunpack.c.l.b16 %v311
    %v1423 = vunpack.c.h.b16 %v311
    %v1424 = vunpack.c.l.b16 %v312
    %v1425 = vunpack.c.h.b16 %v312
    %v1426 = vunpack.c.l.b16 %v313
    %v1427 = vunpack.c.h.b16 %v313
    %v1428 = vunpack.c.l.b16 %v314
    %v1429 = vunpack.c.h.b16 %v314
    %v1430 = vunpack.c.l.b16 %v315
    %v1431 = vunpack.c.h.b16 %v315
    %v1432 = vunpack.c.l.b16 %v316
    %v1433 = vunpack.c.h.b16 %v316
    %v1434 = vunpack.c.l.b16 %v317
    %v1435 = vunpack.c.h.b16 %v317
    %v1436 = vunpack.c.l.b16 %v318
    %v1437 = vunpack.c.h.b16 %v318
    %v1438 = vunpack.c.l.b16 %v319
    %v1439 = vunpack.c.h.b16 %v319
    %v1440 = vunpack.c.l.b16 %v320
    %v1441 = vunpack.c.h.b16 %v320
    %v1442 = vunpack.c.l.b16 %v321
    %v1443 = vunpack.c.h.b16 %v321
    %v1444 = vunpack.c.l.b16 %v322
    %v1445 = vunpack.c.h.b16 %v322
    %v1446 = vunpack.c.l.b16 %v323
    %v1447 = vunpack.c.h.b16 %v323
    %v1448 = vunpack.c.l.b16 %v324
    %v1449 = vunpack.c.h.b16 %v324
    %v1450 = vunpack.c.l.b16 %v325
    %v1451 = vunpack.c.h.b16 %v325
    %v1452 = vunpack.c.l.b16 %v326
    %v1453 = vunpack.c.h.b16 %v326
    %v1454 = vunpack.c.l.b16 %v327
    %v1455 = vunpack.c.h.b16 %v327
    %v1456 = vunpack.c.l.b16 %v328
    %v1457 = vunpack.c.h.b16 %v328
    %v1458 = vunpack.c.l.b16 %v329
    %v1459 = vunpack.c.h.b16 %v329
    %v1460 = vunpack.c.l.b16 %v330
    %v1461 = vunpack.c.h.b16 %v330
    %v1462 = vunpack.c.l.b16 %v331
    %v1463 = vunpack.c.h.b16 %v331
    %v1464 = vunpack.c.l.b16 %v332
    %v1465 = vunpack.c.h.b16 %v332
    %v1466 = vunpack.c.l.b16 %v333
    %v1467 = vunpack.c.h.b16 %v333
    %v1468 = vunpack.c.l.b16 %v334
    %v1469 = vunpack.c.h.b16 %v334
    %v1470 = vunpack.c.l.b16 %v335
    %v1471 = vunpack.c.h.b16 %v335
    %v1472 = vunpack.c.l.b16 %v336
    %v1473 = vunpack.c.h.b16 %v336
    %v1474 = vunpack.c.l.b16 %v337
    %v1475 = vunpack.c.h.b16 %v337
    %v1476 = vunpack.c.l.b16 %v338
    %v1477 = vunpack.c.h.b16 %v338
    %v1478 = vunpack.c.l.b16 %v339
    %v1479 = vunpack.c.h.b16 %v339
    %v1480 = vunpack.c.l.b16 %v340
    %v1481 = vunpack.c.h.b16 %v340
    %v1482 = vunpack.c.l.b16 %v341
    %v1483 = vunpack.c.h.b16 %v341
    %v1484 = vunpack.c.l.b16 %v342
    %v1485 = vunpack.c.h.b16 %v342
    %v1486 = vunpack.c.l.b16 %v343
    %v1487 = vunpack.c.h.b16 %v343
    %v1488 = vunpack.c.l.b16 %v344
    %v1489 = vunpack.c.h.b16 %v344
    %v1490 = vunpack.c.l.b16 %v345
    %v1491 = vunpack.c.h.b16 %v345
    %v1492 = vunpack.c.l.b16 %v346
    %v1493 = vunpack.c.h.b16 %v346
    %v1494 = vunpack.c.l.b16 %v347
    %v1495 = vunpack.c.h.b16 %v347
    %v1496 = vunpack.c.l.b16 %v348
    %v1497 = vunpack.c.h.b16 %v348
    %v1498 = vunpack.c.l.b16 %v349
    %v1499 = vunpack.c.h.b16 %v349
    %v1500 = vunpack.c.l.b16 %v350
    %v1501 = vunpack.c.h.b16 %v350
    %v1502 = vunpack.c.l.b16 %v351
    %v1503 = vunpack.c.h.b16 %v351
    %v1504 = vunpack.c.l.b16 %v352
    %v1505 = vunpack.c.h.b16 %v352
    %v1506 = vunpack.c.l.b16 %v353
    %v1507 = vunpack.c.h.b16 %v353
    %v1508 = vunpack.c.l.b16 %v354
    %v1509 = vunpack.c.h.b16 %v354
    %v1510 = vunpack.c.l.b16 %v355
    %v1511 = vunpack.c.h.b16 %v355
    %v1512 = vunpack.c.l.b16 %v356
    %v1513 = vunpack.c.h.b16 %v356
    %v1514 = vunpack.c.l.b16 %v357
    %v1515 = vunpack.c.h.b16 %v357
    %v1516 = vunpack.c.l.b16 %v358
    %v1517 = vunpack.c.h.b16 %v358
    %v1518 = vunpack.c.l.b16 %v359
    %v1519 = vunpack.c.h.b16 %v359
    %v1520 = vunpack.c.l.b16 %v360
    %v1521 = vunpack.c.h.b16 %v360
    %v1522 = vunpack.c.l.b16 %v361
    %v1523 = vunpack.c.h.b16 %v361
    %v1524 = vunpack.c.l.b16 %v362
    %v1525 = vunpack.c.h.b16 %v362
    %v1526 = vunpack.c.l.b16 %v363
    %v1527 = vunpack.c.h.b16 %v363
    %v1528 = vunpack.c.l.b16 %v364
    %v1529 = vunpack.c.h.b16 %v364
    %v1530 = vunpack.c.l.b16 %v365
    %v1531 = vunpack.c.h.b16 %v365
    %v1532 = vunpack.c.l.b16 %v366
    %v1533 = vunpack.c.h.b16 %v366
    %v1534 = vunpack.c.l.b16 %v367
    %v1535 = vunpack.c.h.b16 %v367
    %v1536 = vunpack.c.l.b16 %v368
    %v1537 = vunpack.c.h.b16 %v368
    %v1538 = vunpack.c.l.b16 %v369
    %v1539 = vunpack.c.h.b16 %v369
    %v1540 = vunpack.c.l.b16 %v370
    %v1541 = vunpack.c.h.b16 %v370
    %v1542 = vunpack.c.l.b16 %v371
    %v1543 = vunpack.c.h.b16 %v371
    %v1544 = vunpack.c.l.b16 %v372
    %v1545 = vunpack.c.h.b16 %v372
    %v1546 = vunpack.c.l.b16 %v373
    %v1547 = vunpack.c.h.b16 %v373
    %v1548 = vunpack.c.l.b16 %v374
    %v1549 = vunpack.c.h.b16 %v374
    %v1550 = vunpack.c.l.b16 %v375
    %v1551 = vunpack.c.h.b16 %v375
    %v1552 = vunpack.c.l.b16 %v376
    %v1553 = vunpack.c.h.b16 %v376
    %v1554 = vunpack.c.l.b16 %v377
    %v1555 = vunpack.c.h.b16 %v377
    %v1556 = vunpack.c.l.b16 %v378
    %v1557 = vunpack.c.h.b16 %v378
    %v1558 = vunpack.c.l.b16 %v379
    %v1559 = vunpack.c.h.b16 %v379
    %v1560 = vunpack.c.l.b16 %v380
    %v1561 = vunpack.c.h.b16 %v380
    %v1562 = vunpack.c.l.b16 %v381
    %v1563 = vunpack.c.h.b16 %v381
    %v1564 = vunpack.c.l.b16 %v382
    %v1565 = vunpack.c.h.b16 %v382
    %v1566 = vunpack.c.l.b16 %v383
    %v1567 = vunpack.c.h.b16 %v383
    %v1568 = vunpack.c.l.b16 %v384
    %v1569 = vunpack.c.h.b16 %v384
    %v1570 = vunpack.c.l.b16 %v385
    %v1571 = vunpack.c.h.b16 %v385
    %v1572 = vunpack.c.l.b16 %v386
    %v1573 = vunpack.c.h.b16 %v386
    %v1574 = vunpack.c.l.b16 %v387
    %v1575 = vunpack.c.h.b16 %v387
    %v1576 = vunpack.c.l.b16 %v388
    %v1577 = vunpack.c.h.b16 %v388
    %v1578 = vunpack.c.l.b16 %v389
    %v1579 = vunpack.c.h.b16 %v389
    %v1580 = vunpack.c.l.b16 %v390
    %v1581 = vunpack.c.h.b16 %v390
    %v1582 = vunpack.c.l.b16 %v391
    %v1583 = vunpack.c.h.b16 %v391
    %v1584 = vunpack.c.l.b16 %v392
    %v1585 = vunpack.c.h.b16 %v392
    %v1586 = vunpack.c.l.b16 %v393
    %v1587 = vunpack.c.h.b16 %v393
    %v1588 = vunpack.c.l.b16 %v394
    %v1589 = vunpack.c.h.b16 %v394
    %v1590 = vunpack.c.l.b16 %v395
    %v1591 = vunpack.c.h.b16 %v395
    %v1592 = vunpack.c.l.b16 %v396
    %v1593 = vunpack.c.h.b16 %v396
    %v1594 = vunpack.c.l.b16 %v397
    %v1595 = vunpack.c.h.b16 %v397
    %v1596 = vunpack.c.l.b16 %v398
    %v1597 = vunpack.c.h.b16 %v398
    %v1598 = vunpack.c.l.b16 %v399
    %v1599 = vunpack.c.h.b16 %v399
    %v1600 = vunpack.c.l.b16 %v400
    %v1601 = vunpack.c.h.b16 %v400
    %v1602 = vunpack.c.l.b16 %v401
    %v1603 = vunpack.c.h.b16 %v401
    %v1604 = vunpack.c.l.b16 %v402
    %v1605 = vunpack.c.h.b16 %v402
    %v1606 = vunpack.c.l.b16 %v403
    %v1607 = vunpack.c.h.b16 %v403
    %v1608 = vunpack.c.l.b16 %v404
    %v1609 = vunpack.c.h.b16 %v404
    %v1610 = vunpack.c.l.b16 %v405
    %v1611 = vunpack.c.h.b16 %v405
    %v1612 = vunpack.c.l.b16 %v406
    %v1613 = vunpack.c.h.b16 %v406
    %v1614 = vunpack.c.l.b16 %v407
    %v1615 = vunpack.c.h.b16 %v407
    %v1616 = vunpack.c.l.b16 %v408
    %v1617 = vunpack.c.h.b16 %v408
    %v1618 = vunpack.c.l.b16 %v409
    %v1619 = vunpack.c.h.b16 %v409
    %v1620 = vunpack.c.l.b16 %v410
    %v1621 = vunpack.c.h.b16 %v410
    %v1622 = vunpack.c.l.b16 %v411
    %v1623 = vunpack.c.h.b16 %v411
    %v1624 = vunpack.c.l.b16 %v412
    %v1625 = vunpack.c.h.b16 %v412
    %v1626 = vunpack.c.l.b16 %v413
    %v1627 = vunpack.c.h.b16 %v413
    %v1628 = vunpack.c.l.b16 %v414
    %v1629 = vunpack.c.h.b16 %v414
    %v1630 = vunpack.c.l.b16 %v415
    %v1631 = vunpack.c.h.b16 %v415
    %v1632 = vunpack.c.l.b16 %v416
    %v1633 = vunpack.c.h.b16 %v416
    %v1634 = vunpack.c.l.b16 %v417
    %v1635 = vunpack.c.h.b16 %v417
    %v1636 = vunpack.c.l.b16 %v418
    %v1637 = vunpack.c.h.b16 %v418
    %v1638 = vunpack.c.l.b16 %v419
    %v1639 = vunpack.c.h.b16 %v419
    %v1640 = vunpack.c.l.b16 %v420
    %v1641 = vunpack.c.h.b16 %v420
    %v1642 = vunpack.c.l.b16 %v421
    %v1643 = vunpack.c.h.b16 %v421
    %v1644 = vunpack.c.l.b16 %v422
    %v1645 = vunpack.c.h.b16 %v422
    %v1646 = vunpack.c.l.b16 %v423
    %v1647 = vunpack.c.h.b16 %v423
    %v1648 = vunpack.c.l.b16 %v424
    %v1649 = vunpack.c.h.b16 %v424
    %v1650 = vunpack.c.l.b16 %v425
    %v1651 = vunpack.c.h.b16 %v425
    %v1652 = vunpack.c.l.b16 %v426
    %v1653 = vunpack.c.h.b16 %v426
    %v1654 = vunpack.c.l.b16 %v427
    %v1655 = vunpack.c.h.b16 %v427
    %v1656 = vunpack.c.l.b16 %v428
    %v1657 = vunpack.c.h.b16 %v428
    %v1658 = vunpack.c.l.b16 %v429
    %v1659 = vunpack.c.h.b16 %v429
    %v1660 = vunpack.c.l.b16 %v430
    %v1661 = vunpack.c.h.b16 %v430
    %v1662 = vunpack.c.l.b16 %v431
    %v1663 = vunpack.c.h.b16 %v431
    %v1664 = vunpack.c.l.b16 %v432
    %v1665 = vunpack.c.h.b16 %v432
    %v1666 = vunpack.c.l.b16 %v433
    %v1667 = vunpack.c.h.b16 %v433
    %v1668 = vunpack.c.l.b16 %v434
    %v1669 = vunpack.c.h.b16 %v434
    %v1670 = vunpack.c.l.b16 %v435
    %v1671 = vunpack.c.h.b16 %v435
    %v1672 = vunpack.c.l.b16 %v436
    %v1673 = vunpack.c.h.b16 %v436
    %v1674 = vunpack.c.l.b16 %v437
    %v1675 = vunpack.c.h.b16 %v437
    %v1676 = vunpack.c.l.b16 %v438
    %v1677 = vunpack.c.h.b16 %v438
    %v1678 = vunpack.c.l.b16 %v439
    %v1679 = vunpack.c.h.b16 %v439
    %v1680 = vunpack.c.l.b16 %v440
    %v1681 = vunpack.c.h.b16 %v440
    %v1682 = vunpack.c.l.b16 %v441
    %v1683 = vunpack.c.h.b16 %v441
    %v1684 = vunpack.c.l.b16 %v442
    %v1685 = vunpack.c.h.b16 %v442
    %v1686 = vunpack.c.l.b16 %v443
    %v1687 = vunpack.c.h.b16 %v443
    %v1688 = vunpack.c.l.b16 %v444
    %v1689 = vunpack.c.h.b16 %v444
    %v1690 = vunpack.c.l.b16 %v445
    %v1691 = vunpack.c.h.b16 %v445
    %v1692 = vunpack.c.l.b16 %v446
    %v1693 = vunpack.c.h.b16 %v446
    %v1694 = vunpack.c.l.b16 %v447
    %v1695 = vunpack.c.h.b16 %v447
    %v1696 = vunpack.c.l.b16 %v448
    %v1697 = vunpack.c.h.b16 %v448
    %v1698 = vunpack.c.l.b16 %v449
    %v1699 = vunpack.c.h.b16 %v449
    %v1700 = vunpack.c.l.b16 %v450
    %v1701 = vunpack.c.h.b16 %v450
    %v1702 = vunpack.c.l.b16 %v451
    %v1703 = vunpack.c.h.b16 %v451
    %v1704 = vunpack.c.l.b16 %v452
    %v1705 = vunpack.c.h.b16 %v452
    %v1706 = vunpack.c.l.b16 %v453
    %v1707 = vunpack.c.h.b16 %v453
    %v1708 = vunpack.c.l.b16 %v454
    %v1709 = vunpack.c.h.b16 %v454
    %v1710 = vunpack.c.l.b16 %v455
    %v1711 = vunpack.c.h.b16 %v455
    %v1712 = vunpack.c.l.b16 %v456
    %v1713 = vunpack.c.h.b16 %v456
    %v1714 = vunpack.c.l.b16 %v457
    %v1715 = vunpack.c.h.b16 %v457
    %v1716 = vunpack.c.l.b16 %v458
    %v1717 = vunpack.c.h.b16 %v458
    %v1718 = vunpack.c.l.b16 %v459
    %v1719 = vunpack.c.h.b16 %v459
    %v1720 = vunpack.c.l.b16 %v460
    %v1721 = vunpack.c.h.b16 %v460
    %v1722 = vunpack.c.l.b16 %v461
    %v1723 = vunpack.c.h.b16 %v461
    %v1724 = vunpack.c.l.b16 %v462
    %v1725 = vunpack.c.h.b16 %v462
    %v1726 = vunpack.c.l.b16 %v463
    %v1727 = vunpack.c.h.b16 %v463
    %v1728 = vunpack.c.l.b16 %v464
    %v1729 = vunpack.c.h.b16 %v464
    %v1730 = vunpack.c.l.b16 %v465
    %v1731 = vunpack.c.h.b16 %v465
    %v1732 = vunpack.c.l.b16 %v466
    %v1733 = vunpack.c.h.b16 %v466
    %v1734 = vunpack.c.l.b16 %v467
    %v1735 = vunpack.c.h.b16 %v467
    %v1736 = vunpack.c.l.b16 %v468
    %v1737 = vunpack.c.h.b16 %v468
    %v1738 = vunpack.c.l.b16 %v469
    %v1739 = vunpack.c.h.b16 %v469
    %v1740 = vunpack.c.l.b16 %v470
    %v1741 = vunpack.c.h.b16 %v470
    %v1742 = vunpack.c.l.b16 %v471
    %v1743 = vunpack.c.h.b16 %v471
    %v1744 = vunpack.c.l.b16 %v472
    %v1745 = vunpack.c.h.b16 %v472
    %v1746 = vunpack.c.l.b16 %v473
    %v1747 = vunpack.c.h.b16 %v473
    %v1748 = vunpack.c.l.b16 %v474
    %v1749 = vunpack.c.h.b16 %v474
    %v1750 = vunpack.c.l.b16 %v475
    %v1751 = vunpack.c.h.b16 %v475
    %v1752 = vunpack.c.l.b16 %v476
    %v1753 = vunpack.c.h.b16 %v476
    %v1754 = vunpack.c.l.b16 %v477
    %v1755 = vunpack.c.h.b16 %v477
    %v1756 = vunpack.c.l.b16 %v478
    %v1757 = vunpack.c.h.b16 %v478
    %v1758 = vunpack.c.l.b16 %v479
    %v1759 = vunpack.c.h.b16 %v479
    %v1760 = vunpack.c.l.b16 %v480
    %v1761 = vunpack.c.h.b16 %v480
    %v1762 = vunpack.c.l.b16 %v481
    %v1763 = vunpack.c.h.b16 %v481
    %v1764 = vunpack.c.l.b16 %v482
    %v1765 = vunpack.c.h.b16 %v482
    %v1766 = vunpack.c.l.b16 %v483
    %v1767 = vunpack.c.h.b16 %v483
    %v1768 = vunpack.c.l.b16 %v484
    %v1769 = vunpack.c.h.b16 %v484
    %v1770 = vunpack.c.l.b16 %v485
    %v1771 = vunpack.c.h.b16 %v485
    %v1772 = vunpack.c.l.b16 %v486
    %v1773 = vunpack.c.h.b16 %v486
    %v1774 = vunpack.c.l.b16 %v487
    %v1775 = vunpack.c.h.b16 %v487
    %v1776 = vunpack.c.l.b16 %v488
    %v1777 = vunpack.c.h.b16 %v488
    %v1778 = vunpack.c.l.b16 %v489
    %v1779 = vunpack.c.h.b16 %v489
    %v1780 = vunpack.c.l.b16 %v490
    %v1781 = vunpack.c.h.b16 %v490
    %v1782 = vunpack.c.l.b16 %v491
    %v1783 = vunpack.c.h.b16 %v491
    %v1784 = vunpack.c.l.b16 %v492
    %v1785 = vunpack.c.h.b16 %v492
    %v1786 = vunpack.c.l.b16 %v493
    %v1787 = vunpack.c.h.b16 %v493
    %v1788 = vunpack.c.l.b16 %v494
    %v1789 = vunpack.c.h.b16 %v494
    %v1790 = vunpack.c.l.b16 %v495
    %v1791 = vunpack.c.h.b16 %v495
    %v1792 = vunpack.c.l.b16 %v496
    %v1793 = vunpack.c.h.b16 %v496
    %v1794 = vunpack.c.l.b16 %v497
    %v1795 = vunpack.c.h.b16 %v497
    %v1796 = vunpack.c.l.b16 %v498
    %v1797 = vunpack.c.h.b16 %v498
    %v1798 = vunpack.c.l.b16 %v499
    %v1799 = vunpack.c.h.b16 %v499
    %v1800 = vunpack.c.l.b16 %v500
    %v1801 = vunpack.c.h.b16 %v500
    %v1802 = vunpack.c.l.b16 %v501
    %v1803 = vunpack.c.h.b16 %v501
    %v1804 = vunpack.c.l.b16 %v502
    %v1805 = vunpack.c.h.b16 %v502
    %v1806 = vunpack.c.l.b16 %v503
    %v1807 = vunpack.c.h.b16 %v503
    %v1808 = vunpack.c.l.b16 %v504
    %v1809 = vunpack.c.h.b16 %v504
    %v1810 = vunpack.c.l.b16 %v505
    %v1811 = vunpack.c.h.b16 %v505
    %v1812 = vunpack.c.l.b16 %v506
    %v1813 = vunpack.c.h.b16 %v506
    %v1814 = vunpack.c.l.b16 %v507
    %v1815 = vunpack.c.h.b16 %v507
    %v1816 = vunpack.c.l.b16 %v508
    %v1817 = vunpack.c.h.b16 %v508
    %v1818 = vunpack.c.l.b16 %v509
    %v1819 = vunpack.c.h.b16 %v509
    %v1820 = vunpack.c.l.b16 %v510
    %v1821 = vunpack.c.h.b16 %v510
    %v1822 = vunpack.c.l.b16 %v511
    %v1823 = vunpack.c.h.b16 %v511
    %v1824 = vunpack.c.l.b16 %v512
    %v1825 = vunpack.c.h.b16 %v512
    %v1826 = vunpack.c.l.b16 %v513
    %v1827 = vunpack.c.h.b16 %v513
    %v1828 = vunpack.c.l.b16 %v514
    %v1829 = vunpack.c.h.b16 %v514
    %v1830 = vunpack.c.l.b16 %v515
    %v1831 = vunpack.c.h.b16 %v515
    %v1832 = vunpack.c.l.b16 %v516
    %v1833 = vunpack.c.h.b16 %v516
    %v1834 = vunpack.c.l.b16 %v517
    %v1835 = vunpack.c.h.b16 %v517
    %v1836 = vunpack.c.l.b16 %v518
    %v1837 = vunpack.c.h.b16 %v518
    %v1838 = vunpack.c.l.b16 %v519
    %v1839 = vunpack.c.h.b16 %v519
    %v1840 = vunpack.c.l.b16 %v520
    %v1841 = vunpack.c.h.b16 %v520
    %v1842 = vunpack.c.l.b16 %v521
    %v1843 = vunpack.c.h.b16 %v521
    %v1844 = vunpack.c.l.b16 %v522
    %v1845 = vunpack.c.h.b16 %v522
    %v1846 = vunpack.c.l.b16 %v523
    %v1847 = vunpack.c.h.b16 %v523
    %v1848 = vunpack.c.l.b16 %v524
    %v1849 = vunpack.c.h.b16 %v524
    %v1850 = vunpack.c.l.b16 %v525
    %v1851 = vunpack.c.h.b16 %v525
    %v1852 = vunpack.c.l.b16 %v526
    %v1853 = vunpack.c.h.b16 %v526
    %v1854 = vunpack.c.l.b16 %v527
    %v1855 = vunpack.c.h.b16 %v527
    %v1856 = vunpack.c.l.b16 %v528
    %v1857 = vunpack.c.h.b16 %v528
    %v1858 = vunpack.c.l.b16 %v529
    %v1859 = vunpack.c.h.b16 %v529
    %v1860 = vunpack.c.l.b16 %v530
    %v1861 = vunpack.c.h.b16 %v530
    %v1862 = vunpack.c.l.b16 %v531
    %v1863 = vunpack.c.h.b16 %v531
    %v1864 = vunpack.c.l.b16 %v532
    %v1865 = vunpack.c.h.b16 %v532
    %v1866 = vunpack.c.l.b16 %v533
    %v1867 = vunpack.c.h.b16 %v533
    %v1868 = vunpack.c.l.b16 %v534
    %v1869 = vunpack.c.h.b16 %v534
    %v1870 = vunpack.c.l.b16 %v535
    %v1871 = vunpack.c.h.b16 %v535
    %v1872 = vunpack.c.l.b16 %v536
    %v1873 = vunpack.c.h.b16 %v536
    %v1874 = vunpack.c.l.b16 %v537
    %v1875 = vunpack.c.h.b16 %v537
    %v1876 = vunpack.c.l.b16 %v538
    %v1877 = vunpack.c.h.b16 %v538
    %v1878 = vunpack.c.l.b16 %v539
    %v1879 = vunpack.c.h.b16 %v539
    %v1880 = vunpack.c.l.b16 %v540
    %v1881 = vunpack.c.h.b16 %v540
    %v1882 = vunpack.c.l.b16 %v541
    %v1883 = vunpack.c.h.b16 %v541
    %v1884 = vunpack.c.l.b16 %v542
    %v1885 = vunpack.c.h.b16 %v542
    %v1886 = vunpack.c.l.b16 %v543
    %v1887 = vunpack.c.h.b16 %v543
    %v1888 = vunpack.c.l.b16 %v544
    %v1889 = vunpack.c.h.b16 %v544
    %v1890 = vunpack.c.l.b16 %v545
    %v1891 = vunpack.c.h.b16 %v545
    %v1892 = vunpack.c.l.b16 %v546
    %v1893 = vunpack.c.h.b16 %v546
    %v1894 = vunpack.c.l.b16 %v547
    %v1895 = vunpack.c.h.b16 %v547
    %v1896 = vunpack.c.l.b16 %v548
    %v1897 = vunpack.c.h.b16 %v548
    %v1898 = vunpack.c.l.b16 %v549
    %v1899 = vunpack.c.h.b16 %v549
    %v1900 = vunpack.c.l.b16 %v550
    %v1901 = vunpack.c.h.b16 %v550
    %v1902 = vunpack.c.l.b16 %v551
    %v1903 = vunpack.c.h.b16 %v551
    %v1904 = vunpack.c.l.b16 %v552
    %v1905 = vunpack.c.h.b16 %v552
    %v1906 = vunpack.c.l.b16 %v553
    %v1907 = vunpack.c.h.b16 %v553
    %v1908 = vunpack.c.l.b16 %v554
    %v1909 = vunpack.c.h.b16 %v554
    %v1910 = vunpack.c.l.b16 %v555
    %v1911 = vunpack.c.h.b16 %v555
    %v1912 = vunpack.c.l.b16 %v556
    %v1913 = vunpack.c.h.b16 %v556
    %v1914 = vunpack.c.l.b16 %v557
    %v1915 = vunpack.c.h.b16 %v557
    %v1916 = vunpack.c.l.b16 %v558
    %v1917 = vunpack.c.h.b16 %v558
    %v1918 = vunpack.c.l.b16 %v559
    %v1919 = vunpack.c.h.b16 %v559
    %v1920 = vunpack.c.l.b16 %v560
    %v1921 = vunpack.c.h.b16 %v560
    %v1922 = vunpack.c.l.b16 %v561
    %v1923 = vunpack.c.h.b16 %v561
    %v1924 = vunpack.c.l.b16 %v562
    %v1925 = vunpack.c.h.b16 %v562
    %v1926 = vunpack.c.l.b16 %v563
    %v1927 = vunpack.c.h.b16 %v563
    %v1928 = vunpack.c.l.b16 %v564
    %v1929 = vunpack.c.h.b16 %v564
    %v1930 = vunpack.c.l.b16 %v565
    %v1931 = vunpack.c.h.b16 %v565
    %v1932 = vunpack.c.l.b16 %v566
    %v1933 = vunpack.c.h.b16 %v566
    %v1934 = vunpack.c.l.b16 %v567
    %v1935 = vunpack.c.h.b16 %v567
    %v1936 = vunpack.c.l.b16 %v568
    %v1937 = vunpack.c.h.b16 %v568
    %v1938 = vunpack.c.l.b16 %v569
    %v1939 = vunpack.c.h.b16 %v569
    %v1940 = vunpack.c.l.b16 %v570
    %v1941 = vunpack.c.h.b16 %v570
    %v1942 = vunpack.c.l.b16 %v571
    %v1943 = vunpack.c.h.b16 %v571
    %v1944 = vunpack.c.l.b16 %v572
    %v1945 = vunpack.c.h.b16 %v572
    %v1946 = vunpack.c.l.b16 %v573
    %v1947 = vunpack.c.h.b16 %v573
    %v1948 = vunpack.c.l.b16 %v574
    %v1949 = vunpack.c.h.b16 %v574
    %v1950 = vunpack.c.l.b16 %v575
    %v1951 = vunpack.c.h.b16 %v575
    %v1952 = vunpack.c.l.b16 %v576
    %v1953 = vunpack.c.h.b16 %v576
    %v1954 = vunpack.c.l.b16 %v577
    %v1955 = vunpack.c.h.b16 %v577
    %v1956 = vunpack.c.l.b16 %v578
    %v1957 = vunpack.c.h.b16 %v578
    %v1958 = vunpack.c.l.b16 %v579
    %v1959 = vunpack.c.h.b16 %v579
    %v1960 = vunpack.c.l.b16 %v580
    %v1961 = vunpack.c.h.b16 %v580
    %v1962 = vunpack.c.l.b16 %v581
    %v1963 = vunpack.c.h.b16 %v581
    %v1964 = vunpack.c.l.b16 %v582
    %v1965 = vunpack.c.h.b16 %v582
    %v1966 = vunpack.c.l.b16 %v583
    %v1967 = vunpack.c.h.b16 %v583
    %v1968 = vunpack.c.l.b16 %v584
    %v1969 = vunpack.c.h.b16 %v584
    %v1970 = vunpack.c.l.b16 %v585
    %v1971 = vunpack.c.h.b16 %v585
    %v1972 = vunpack.c.l.b16 %v586
    %v1973 = vunpack.c.h.b16 %v586
    %v1974 = vunpack.c.l.b16 %v587
    %v1975 = vunpack.c.h.b16 %v587
    %v1976 = vunpack.c.l.b16 %v588
    %v1977 = vunpack.c.h.b16 %v588
    %v1978 = vunpack.c.l.b16 %v589
    %v1979 = vunpack.c.h.b16 %v589
    %v1980 = vunpack.c.l.b16 %v590
    %v1981 = vunpack.c.h.b16 %v590
    %v1982 = vunpack.c.l.b16 %v591
    %v1983 = vunpack.c.h.b16 %v591
    %v1984 = vunpack.c.l.b16 %v592
    %v1985 = vunpack.c.h.b16 %v592
    %v1986 = vunpack.c.l.b16 %v593
    %v1987 = vunpack.c.h.b16 %v593
    %v1988 = vunpack.c.l.b16 %v594
    %v1989 = vunpack.c.h.b16 %v594
    %v1990 = vunpack.c.l.b16 %v595
    %v1991 = vunpack.c.h.b16 %v595
    %v1992 = vunpack.c.l.b16 %v596
    %v1993 = vunpack.c.h.b16 %v596
    %v1994 = vunpack.c.l.b16 %v597
    %v1995 = vunpack.c.h.b16 %v597
    %v1996 = vunpack.c.l.b16 %v598
    %v1997 = vunpack.c.h.b16 %v598
    %v1998 = vunpack.c.l.b16 %v599
    %v1999 = vunpack.c.h.b16 %v599
    %v2000 = vunpack.c.l.b16 %v600
    %v2001 = vunpack.c.h.b16 %v600
    %v2002 = vunpack.c.l.b16 %v601
    %v2003 = vunpack.c.h.b16 %v601
    %v2004 = vunpack.c.l.b16 %v602
    %v2005 = vunpack.c.h.b16 %v602
    %v2006 = vunpack.c.l.b16 %v603
    %v2007 = vunpack.c.h.b16 %v603
    %v2008 = vunpack.c.l.b16 %v604
    %v2009 = vunpack.c.h.b16 %v604
    %v2010 = vunpack.c.l.b16 %v605
    %v2011 = vunpack.c.h.b16 %v605
    %v2012 = vunpack.c.l.b16 %v606
    %v2013 = vunpack.c.h.b16 %v606
    %v2014 = vunpack.c.l.b16 %v607
    %v2015 = vunpack.c.h.b16 %v607
    %v2016 = vunpack.c.l.b16 %v608
    %v2017 = vunpack.c.h.b16 %v608
    %v2018 = vunpack.c.l.b16 %v609
    %v2019 = vunpack.c.h.b16 %v609
    %v2020 = vunpack.c.l.b16 %v610
    %v2021 = vunpack.c.h.b16 %v610
    %v2022 = vunpack.c.l.b16 %v611
    %v2023 = vunpack.c.h.b16 %v611
    %v2024 = vunpack.c.l.b16 %v612
    %v2025 = vunpack.c.h.b16 %v612
    %v2026 = vunpack.c.l.b16 %v613
    %v2027 = vunpack.c.h.b16 %v613
    %v2028 = vunpack.c.l.b16 %v614
    %v2029 = vunpack.c.h.b16 %v614
    %v2030 = vunpack.c.l.b16 %v615
    %v2031 = vunpack.c.h.b16 %v615
    %v2032 = vunpack.c.l.b16 %v616
    %v2033 = vunpack.c.h.b16 %v616
    %v2034 = vunpack.c.l.b16 %v617
    %v2035 = vunpack.c.h.b16 %v617
    %v2036 = vunpack.c.l.b16 %v618
    %v2037 = vunpack.c.h.b16 %v618
    %v2038 = vunpack.c.l.b16 %v619
    %v2039 = vunpack.c.h.b16 %v619
    %v2040 = vunpack.c.l.b16 %v620
    %v2041 = vunpack.c.h.b16 %v620
    %v2042 = vunpack.c.l.b16 %v621
    %v2043 = vunpack.c.h.b16 %v621
    %v2044 = vunpack.c.l.b16 %v622
    %v2045 = vunpack.c.h.b16 %v622
    %v2046 = vunpack.c.l.b16 %v623
    %v2047 = vunpack.c.h.b16 %v623
    %v2048 = vunpack.c.l.b16 %v624
    %v2049 = vunpack.c.h.b16 %v624
    %v2050 = vunpack.c.l.b16 %v625
    %v2051 = vunpack.c.h.b16 %v625
    %v2052 = vunpack.c.l.b16 %v626
    %v2053 = vunpack.c.h.b16 %v626
    %v2054 = vunpack.c.l.b16 %v627
    %v2055 = vunpack.c.h.b16 %v627
    %v2056 = vunpack.c.l.b16 %v628
    %v2057 = vunpack.c.h.b16 %v628
    %v2058 = vunpack.c.l.b16 %v629
    %v2059 = vunpack.c.h.b16 %v629
    %v2060 = vunpack.c.l.b16 %v630
    %v2061 = vunpack.c.h.b16 %v630
    %v2062 = vunpack.c.l.b16 %v631
    %v2063 = vunpack.c.h.b16 %v631
    %v2064 = vunpack.c.l.b16 %v632
    %v2065 = vunpack.c.h.b16 %v632
    %v2066 = vunpack.c.l.b16 %v633
    %v2067 = vunpack.c.h.b16 %v633
    %v2068 = vunpack.c.l.b16 %v634
    %v2069 = vunpack.c.h.b16 %v634
    %v2070 = vunpack.c.l.b16 %v635
    %v2071 = vunpack.c.h.b16 %v635
    %v2072 = vunpack.c.l.b16 %v636
    %v2073 = vunpack.c.h.b16 %v636
    %v2074 = vunpack.c.l.b16 %v637
    %v2075 = vunpack.c.h.b16 %v637
    %v2076 = vunpack.c.l.b16 %v638
    %v2077 = vunpack.c.h.b16 %v638
    %v2078 = vunpack.c.l.b16 %v639
    %v2079 = vunpack.c.h.b16 %v639
    %v2080 = vunpack.c.l.b16 %v640
    %v2081 = vunpack.c.h.b16 %v640
    %v2082 = vunpack.c.l.b16 %v641
    %v2083 = vunpack.c.h.b16 %v641
    %v2084 = vunpack.c.l.b16 %v642
    %v2085 = vunpack.c.h.b16 %v642
    %v2086 = vunpack.c.l.b16 %v643
    %v2087 = vunpack.c.h.b16 %v643
    %v2088 = vunpack.c.l.b16 %v644
    %v2089 = vunpack.c.h.b16 %v644
    %v2090 = vunpack.c.l.b16 %v645
    %v2091 = vunpack.c.h.b16 %v645
    %v2092 = vunpack.c.l.b16 %v646
    %v2093 = vunpack.c.h.b16 %v646
    %v2094 = vunpack.c.l.b16 %v647
    %v2095 = vunpack.c.h.b16 %v647
    %v2096 = vunpack.c.l.b16 %v648
    %v2097 = vunpack.c.h.b16 %v648
    %v2098 = vunpack.c.l.b16 %v649
    %v2099 = vunpack.c.h.b16 %v649
    %v2100 = vunpack.c.l.b16 %v650
    %v2101 = vunpack.c.h.b16 %v650
    %v2102 = vunpack.c.l.b16 %v651
    %v2103 = vunpack.c.h.b16 %v651
    %v2104 = vunpack.c.l.b16 %v652
    %v2105 = vunpack.c.h.b16 %v652
    %v2106 = vunpack.c.l.b16 %v653
    %v2107 = vunpack.c.h.b16 %v653
    %v2108 = vunpack.c.l.b16 %v654
    %v2109 = vunpack.c.h.b16 %v654
    %v2110 = vunpack.c.l.b16 %v655
    %v2111 = vunpack.c.h.b16 %v655
    %v2112 = vunpack.c.l.b16 %v656
    %v2113 = vunpack.c.h.b16 %v656
    %v2114 = vunpack.c.l.b16 %v657
    %v2115 = vunpack.c.h.b16 %v657
    %v2116 = vunpack.c.l.b16 %v658
    %v2117 = vunpack.c.h.b16 %v658
    %v2118 = vunpack.c.l.b16 %v659
    %v2119 = vunpack.c.h.b16 %v659
    %v2120 = vunpack.c.l.b16 %v660
    %v2121 = vunpack.c.h.b16 %v660
    %v2122 = vunpack.c.l.b16 %v661
    %v2123 = vunpack.c.h.b16 %v661
    %v2124 = vunpack.c.l.b16 %v662
    %v2125 = vunpack.c.h.b16 %v662
    %v2126 = vunpack.c.l.b16 %v663
    %v2127 = vunpack.c.h.b16 %v663
    %v2128 = vunpack.c.l.b16 %v664
    %v2129 = vunpack.c.h.b16 %v664
    %v2130 = vunpack.c.l.b16 %v665
    %v2131 = vunpack.c.h.b16 %v665
    %v2132 = vunpack.c.l.b16 %v666
    %v2133 = vunpack.c.h.b16 %v666
    %v2134 = vunpack.c.l.b16 %v667
    %v2135 = vunpack.c.h.b16 %v667
    %v2136 = vunpack.c.l.b16 %v668
    %v2137 = vunpack.c.h.b16 %v668
    %v2138 = vunpack.c.l.b16 %v669
    %v2139 = vunpack.c.h.b16 %v669
    %v2140 = vunpack.c.l.b16 %v670
    %v2141 = vunpack.c.h.b16 %v670
    %v2142 = vunpack.c.l.b16 %v671
    %v2143 = vunpack.c.h.b16 %v671
    %v2144 = vunpack.c.l.b16 %v672
    %v2145 = vunpack.c.h.b16 %v672
    %v2146 = vunpack.c.l.b16 %v673
    %v2147 = vunpack.c.h.b16 %v673
    %v2148 = vunpack.c.l.b16 %v674
    %v2149 = vunpack.c.h.b16 %v674
    %v2150 = vunpack.c.l.b16 %v675
    %v2151 = vunpack.c.h.b16 %v675
    %v2152 = vunpack.c.l.b16 %v676
    %v2153 = vunpack.c.h.b16 %v676
    %v2154 = vunpack.c.l.b16 %v677
    %v2155 = vunpack.c.h.b16 %v677
    %v2156 = vunpack.c.l.b16 %v678
    %v2157 = vunpack.c.h.b16 %v678
    %v2158 = vunpack.c.l.b16 %v679
    %v2159 = vunpack.c.h.b16 %v679
    %v2160 = vunpack.c.l.b16 %v680
    %v2161 = vunpack.c.h.b16 %v680
    %v2162 = vunpack.c.l.b16 %v681
    %v2163 = vunpack.c.h.b16 %v681
    %v2164 = vunpack.c.l.b16 %v682
    %v2165 = vunpack.c.h.b16 %v682
    %v2166 = vunpack.c.l.b16 %v683
    %v2167 = vunpack.c.h.b16 %v683
    %v2168 = vunpack.c.l.b16 %v684
    %v2169 = vunpack.c.h.b16 %v684
    %v2170 = vunpack.c.l.b16 %v685
    %v2171 = vunpack.c.h.b16 %v685
    %v2172 = vunpack.c.l.b16 %v686
    %v2173 = vunpack.c.h.b16 %v686
    %v2174 = vunpack.c.l.b16 %v687
    %v2175 = vunpack.c.h.b16 %v687
    %v2176 = vunpack.c.l.b16 %v688
    %v2177 = vunpack.c.h.b16 %v688
    %v2178 = vunpack.c.l.b16 %v689
    %v2179 = vunpack.c.h.b16 %v689
    %v2180 = vunpack.c.l.b16 %v690
    %v2181 = vunpack.c.h.b16 %v690
    %v2182 = vunpack.c.l.b16 %v691
    %v2183 = vunpack.c.h.b16 %v691
    %v2184 = vunpack.c.l.b16 %v692
    %v2185 = vunpack.c.h.b16 %v692
    %v2186 = vunpack.c.l.b16 %v693
    %v2187 = vunpack.c.h.b16 %v693
    %v2188 = vunpack.c.l.b16 %v694
    %v2189 = vunpack.c.h.b16 %v694
    %v2190 = vunpack.c.l.b16 %v695
    %v2191 = vunpack.c.h.b16 %v695
    %v2192 = vunpack.c.l.b16 %v696
    %v2193 = vunpack.c.h.b16 %v696
    %v2194 = vunpack.c.l.b16 %v697
    %v2195 = vunpack.c.h.b16 %v697
    %v2196 = vunpack.c.l.b16 %v698
    %v2197 = vunpack.c.h.b16 %v698
    %v2198 = vunpack.c.l.b16 %v699
    %v2199 = vunpack.c.h.b16 %v699
    %v2200 = vunpack.c.l.b16 %v700
    %v2201 = vunpack.c.h.b16 %v700
    %v2202 = vunpack.c.l.b16 %v701
    %v2203 = vunpack.c.h.b16 %v701
    %v2204 = vunpack.c.l.b16 %v702
    %v2205 = vunpack.c.h.b16 %v702
    %v2206 = vunpack.c.l.b16 %v703
    %v2207 = vunpack.c.h.b16 %v703
    %v2208 = vunpack.c.l.b16 %v704
    %v2209 = vunpack.c.h.b16 %v704
    %v2210 = vunpack.c.l.b16 %v705
    %v2211 = vunpack.c.h.b16 %v705
    %v2212 = vunpack.c.l.b16 %v706
    %v2213 = vunpack.c.h.b16 %v706
    %v2214 = vunpack.c.l.b16 %v707
    %v2215 = vunpack.c.h.b16 %v707
    %v2216 = vunpack.c.l.b16 %v708
    %v2217 = vunpack.c.h.b16 %v708
    %v2218 = vunpack.c.l.b16 %v709
    %v2219 = vunpack.c.h.b16 %v709
    %v2220 = vunpack.c.l.b16 %v710
    %v2221 = vunpack.c.h.b16 %v710
    %v2222 = vunpack.c.l.b16 %v711
    %v2223 = vunpack.c.h.b16 %v711
    %v2224 = vunpack.c.l.b16 %v712
    %v2225 = vunpack.c.h.b16 %v712
    %v2226 = vunpack.c.l.b16 %v713
    %v2227 = vunpack.c.h.b16 %v713
    %v2228 = vunpack.c.l.b16 %v714
    %v2229 = vunpack.c.h.b16 %v714
    %v2230 = vunpack.c.l.b16 %v715
    %v2231 = vunpack.c.h.b16 %v715
    %v2232 = vunpack.c.l.b16 %v716
    %v2233 = vunpack.c.h.b16 %v716
    %v2234 = vunpack.c.l.b16 %v717
    %v2235 = vunpack.c.h.b16 %v717
    %v2236 = vunpack.c.l.b16 %v718
    %v2237 = vunpack.c.h.b16 %v718
    %v2238 = vunpack.c.l.b16 %v719
    %v2239 = vunpack.c.h.b16 %v719
    %v2240 = vunpack.c.l.b16 %v720
    %v2241 = vunpack.c.h.b16 %v720
    %v2242 = vunpack.c.l.b16 %v721
    %v2243 = vunpack.c.h.b16 %v721
    %v2244 = vunpack.c.l.b16 %v722
    %v2245 = vunpack.c.h.b16 %v722
    %v2246 = vunpack.c.l.b16 %v723
    %v2247 = vunpack.c.h.b16 %v723
    %v2248 = vunpack.c.l.b16 %v724
    %v2249 = vunpack.c.h.b16 %v724
    %v2250 = vunpack.c.l.b16 %v725
    %v2251 = vunpack.c.h.b16 %v725
    %v2252 = vunpack.c.l.b16 %v726
    %v2253 = vunpack.c.h.b16 %v726
    %v2254 = vunpack.c.l.b16 %v727
    %v2255 = vunpack.c.h.b16 %v727
    %v2256 = vunpack.c.l.b16 %v728
    %v2257 = vunpack.c.h.b16 %v728
    %v2258 = vunpack.c.l.b16 %v729
    %v2259 = vunpack.c.h.b16 %v729
    %v2260 = vunpack.c.l.b16 %v730
    %v2261 = vunpack.c.h.b16 %v730
    %v2262 = vunpack.c.l.b16 %v731
    %v2263 = vunpack.c.h.b16 %v731
    %v2264 = vunpack.c.l.b16 %v732
    %v2265 = vunpack.c.h.b16 %v732
    %v2266 = vunpack.c.l.b16 %v733
    %v2267 = vunpack.c.h.b16 %v733
    %v2268 = vunpack.c.l.b16 %v734
    %v2269 = vunpack.c.h.b16 %v734
    %v2270 = vunpack.c.l.b16 %v735
    %v2271 = vunpack.c.h.b16 %v735
    %v2272 = vpack.c.b16 %v1256, %v1248
    %v2273 = vpack.c.b16 %v1257, %v1249
    %v2274 = vpack.c.b16 %v1258, %v1250
    %v2275 = vpack.c.b16 %v1259, %v1251
    %v2276 = vpack.c.b16 %v1260, %v1252
    %v2277 = vpack.c.b16 %v1261, %v1253
    %v2278 = vpack.c.b16 %v1262, %v1254
    %v2279 = vpack.c.b16 %v1263, %v1255
    %v2280 = vpack.c.b16 %v1272, %v1264
    %v2281 = vpack.c.b16 %v1273, %v1265
    %v2282 = vpack.c.b16 %v1274, %v1266
    %v2283 = vpack.c.b16 %v1275, %v1267
    %v2284 = vpack.c.b16 %v1276, %v1268
    %v2285 = vpack.c.b16 %v1277, %v1269
    %v2286 = vpack.c.b16 %v1278, %v1270
    %v2287 = vpack.c.b16 %v1279, %v1271
    %v2288 = vpack.c.b16 %v1288, %v1280
    %v2289 = vpack.c.b16 %v1289, %v1281
    %v2290 = vpack.c.b16 %v1290, %v1282
    %v2291 = vpack.c.b16 %v1291, %v1283
    %v2292 = vpack.c.b16 %v1292, %v1284
    %v2293 = vpack.c.b16 %v1293, %v1285
    %v2294 = vpack.c.b16 %v1294, %v1286
    %v2295 = vpack.c.b16 %v1295, %v1287
    %v2296 = vpack.c.b16 %v1304, %v1296
    %v2297 = vpack.c.b16 %v1305, %v1297
    %v2298 = vpack.c.b16 %v1306, %v1298
    %v2299 = vpack.c.b16 %v1307, %v1299
    %v2300 = vpack.c.b16 %v1308, %v1300
    %v2301 = vpack.c.b16 %v1309, %v1301
    %v2302 = vpack.c.b16 %v1310, %v1302
    %v2303 = vpack.c.b16 %v1311, %v1303
    %v2304 = vpack.c.b16 %v1320, %v1312
    %v2305 = vpack.c.b16 %v1321, %v1313
    %v2306 = vpack.c.b16 %v1322, %v1314
    %v2307 = vpack.c.b16 %v1323, %v1315
    %v2308 = vpack.c.b16 %v1324, %v1316
    %v2309 = vpack.c.b16 %v1325, %v1317
    %v2310 = vpack.c.b16 %v1326, %v1318
    %v2311 = vpack.c.b16 %v1327, %v1319
    %v2312 = vpack.c.b16 %v1336, %v1328
    %v2313 = vpack.c.b16 %v1337, %v1329
    %v2314 = vpack.c.b16 %v1338, %v1330
    %v2315 = vpack.c.b16 %v1339, %v1331
    %v2316 = vpack.c.b16 %v1340, %v1332
    %v2317 = vpack.c.b16 %v1341, %v1333
    %v2318 = vpack.c.b16 %v1342, %v1334
    %v2319 = vpack.c.b16 %v1343, %v1335
    %v2320 = vpack.c.b16 %v1352, %v1344
    %v2321 = vpack.c.b16 %v1353, %v1345
    %v2322 = vpack.c.b16 %v1354, %v1346
    %v2323 = vpack.c.b16 %v1355, %v1347
    %v2324 = vpack.c.b16 %v1356, %v1348
    %v2325 = vpack.c.b16 %v1357, %v1349
    %v2326 = vpack.c.b16 %v1358, %v1350
    %v2327 = vpack.c.b16 %v1359, %v1351
    %v2328 = vpack.c.b16 %v1368, %v1360
    %v2329 = vpack.c.b16 %v1369, %v1361
    %v2330 = vpack.c.b16 %v1370, %v1362
    %v2331 = vpack.c.b16 %v1371, %v1363
    %v2332 = vpack.c.b16 %v1372, %v1364
    %v2333 = vpack.c.b16 %v1373, %v1365
    %v2334 = vpack.c.b16 %v1374, %v1366
    %v2335 = vpack.c.b16 %v1375, %v1367
    %v2336 = vpack.c.b16 %v1384, %v1376
    %v2337 = vpack.c.b16 %v1385, %v1377
    %v2338 = vpack.c.b16 %v1386, %v1378
    %v2339 = vpack.c.b16 %v1387, %v1379
    %v2340 = vpack.c.b16 %v1388, %v1380
    %v2341 = vpack.c.b16 %v1389, %v1381
    %v2342 = vpack.c.b16 %v1390, %v1382
    %v2343 = vpack.c.b16 %v1391, %v1383
    %v2344 = vpack.c.b16 %v1400, %v1392
    %v2345 = vpack.c.b16 %v1401, %v1393
    %v2346 = vpack.c.b16 %v1402, %v1394
    %v2347 = vpack.c.b16 %v1403, %v1395
    %v2348 = vpack.c.b16 %v1404, %v1396
    %v2349 = vpack.c.b16 %v1405, %v1397
    %v2350 = vpack.c.b16 %v1406, %v1398
    %v2351 = vpack.c.b16 %v1407, %v1399
    %v2352 = vpack.c.b16 %v1416, %v1408
    %v2353 = vpack.c.b16 %v1417, %v1409
    %v2354 = vpack.c.b16 %v1418, %v1410
    %v2355 = vpack.c.b16 %v1419, %v1411
    %v2356 = vpack.c.b16 %v1420, %v1412
    %v2357 = vpack.c.b16 %v1421, %v1413
    %v2358 = vpack.c.b16 %v1422, %v1414
    %v2359 = vpack.c.b16 %v1423, %v1415
    %v2360 = vpack.c.b16 %v1432, %v1424
    %v2361 = vpack.c.b16 %v1433, %v1425
    %v2362 = vpack.c.b16 %v1434, %v1426
    %v2363 = vpack.c.b16 %v1435, %v1427
    %v2364 = vpack.c.b16 %v1436, %v1428
    %v2365 = vpack.c.b16 %v1437, %v1429
    %v2366 = vpack.c.b16 %v1438, %v1430
    %v2367 = vpack.c.b16 %v1439, %v1431
    %v2368 = vpack.c.b16 %v1448, %v1440
    %v2369 = vpack.c.b16 %v1449, %v1441
    %v2370 = vpack.c.b16 %v1450, %v1442
    %v2371 = vpack.c.b16 %v1451, %v1443
    %v2372 = vpack.c.b16 %v1452, %v1444
    %v2373 = vpack.c.b16 %v1453, %v1445
    %v2374 = vpack.c.b16 %v1454, %v1446
    %v2375 = vpack.c.b16 %v1455, %v1447
    %v2376 = vpack.c.b16 %v1464, %v1456
    %v2377 = vpack.c.b16 %v1465, %v1457
    %v2378 = vpack.c.b16 %v1466, %v1458
    %v2379 = vpack.c.b16 %v1467, %v1459
    %v2380 = vpack.c.b16 %v1468, %v1460
    %v2381 = vpack.c.b16 %v1469, %v1461
    %v2382 = vpack.c.b16 %v1470, %v1462
    %v2383 = vpack.c.b16 %v1471, %v1463
    %v2384 = vpack.c.b16 %v1480, %v1472
    %v2385 = vpack.c.b16 %v1481, %v1473
    %v2386 = vpack.c.b16 %v1482, %v1474
    %v2387 = vpack.c.b16 %v1483, %v1475
    %v2388 = vpack.c.b16 %v1484, %v1476
    %v2389 = vpack.c.b16 %v1485, %v1477
    %v2390 = vpack.c.b16 %v1486, %v1478
    %v2391 = vpack.c.b16 %v1487, %v1479
    %v2392 = vpack.c.b16 %v1496, %v1488
    %v2393 = vpack.c.b16 %v1497, %v1489
    %v2394 = vpack.c.b16 %v1498, %v1490
    %v2395 = vpack.c.b16 %v1499, %v1491
    %v2396 = vpack.c.b16 %v1500, %v1492
    %v2397 = vpack.c.b16 %v1501, %v1493
    %v2398 = vpack.c.b16 %v1502, %v1494
    %v2399 = vpack.c.b16 %v1503, %v1495
    %v2400 = vpack.c.b16 %v1512, %v1504
    %v2401 = vpack.c.b16 %v1513, %v1505
    %v2402 = vpack.c.b16 %v1514, %v1506
    %v2403 = vpack.c.b16 %v1515, %v1507
    %v2404 = vpack.c.b16 %v1516, %v1508
    %v2405 = vpack.c.b16 %v1517, %v1509
    %v2406 = vpack.c.b16 %v1518, %v1510
    %v2407 = vpack.c.b16 %v1519, %v1511
    %v2408 = vpack.c.b16 %v1528, %v1520
    %v2409 = vpack.c.b16 %v1529, %v1521
    %v2410 = vpack.c.b16 %v1530, %v1522
    %v2411 = vpack.c.b16 %v1531, %v1523
    %v2412 = vpack.c.b16 %v1532, %v1524
    %v2413 = vpack.c.b16 %v1533, %v1525
    %v2414 = vpack.c.b16 %v1534, %v1526
    %v2415 = vpack.c.b16 %v1535, %v1527
    %v2416 = vpack.c.b16 %v1544, %v1536
    %v2417 = vpack.c.b16 %v1545, %v1537
    %v2418 = vpack.c.b16 %v1546, %v1538
    %v2419 = vpack.c.b16 %v1547, %v1539
    %v2420 = vpack.c.b16 %v1548, %v1540
    %v2421 = vpack.c.b16 %v1549, %v1541
    %v2422 = vpack.c.b16 %v1550, %v1542
    %v2423 = vpack.c.b16 %v1551, %v1543
    %v2424 = vpack.c.b16 %v1560, %v1552
    %v2425 = vpack.c.b16 %v1561, %v1553
    %v2426 = vpack.c.b16 %v1562, %v1554
    %v2427 = vpack.c.b16 %v1563, %v1555
    %v2428 = vpack.c.b16 %v1564, %v1556
    %v2429 = vpack.c.b16 %v1565, %v1557
    %v2430 = vpack.c.b16 %v1566, %v1558
    %v2431 = vpack.c.b16 %v1567, %v1559
    %v2432 = vpack.c.b16 %v1576, %v1568
    %v2433 = vpack.c.b16 %v1577, %v1569
    %v2434 = vpack.c.b16 %v1578, %v1570
    %v2435 = vpack.c.b16 %v1579, %v1571
    %v2436 = vpack.c.b16 %v1580, %v1572
    %v2437 = vpack.c.b16 %v1581, %v1573
    %v2438 = vpack.c.b16 %v1582, %v1574
    %v2439 = vpack.c.b16 %v1583, %v1575
    %v2440 = vpack.c.b16 %v1592, %v1584
    %v2441 = vpack.c.b16 %v1593, %v1585
    %v2442 = vpack.c.b16 %v1594, %v1586
    %v2443 = vpack.c.b16 %v1595, %v1587
    %v2444 = vpack.c.b16 %v1596, %v1588
    %v2445 = vpack.c.b16 %v1597, %v1589
    %v2446 = vpack.c.b16 %v1598, %v1590
    %v2447 = vpack.c.b16 %v1599, %v1591
    %v2448 = vpack.c.b16 %v1608, %v1600
    %v2449 = vpack.c.b16 %v1609, %v1601
    %v2450 = vpack.c.b16 %v1610, %v1602
    %v2451 = vpack.c.b16 %v1611, %v1603
    %v2452 = vpack.c.b16 %v1612, %v1604
    %v2453 = vpack.c.b16 %v1613, %v1605
    %v2454 = vpack.c.b16 %v1614, %v1606
    %v2455 = vpack.c.b16 %v1615, %v1607
    %v2456 = vpack.c.b16 %v1624, %v1616
    %v2457 = vpack.c.b16 %v1625, %v1617
    %v2458 = vpack.c.b16 %v1626, %v1618
    %v2459 = vpack.c.b16 %v1627, %v1619
    %v2460 = vpack.c.b16 %v1628, %v1620
    %v2461 = vpack.c.b16 %v1629, %v1621
    %v2462 = vpack.c.b16 %v1630, %v1622
    %v2463 = vpack.c.b16 %v1631, %v1623
    %v2464 = vpack.c.b16 %v1640, %v1632
    %v2465 = vpack.c.b16 %v1641, %v1633
    %v2466 = vpack.c.b16 %v1642, %v1634
    %v2467 = vpack.c.b16 %v1643, %v1635
    %v2468 = vpack.c.b16 %v1644, %v1636
    %v2469 = vpack.c.b16 %v1645, %v1637
    %v2470 = vpack.c.b16 %v1646, %v1638
    %v2471 = vpack.c.b16 %v1647, %v1639
    %v2472 = vpack.c.b16 %v1656, %v1648
    %v2473 = vpack.c.b16 %v1657, %v1649
    %v2474 = vpack.c.b16 %v1658, %v1650
    %v2475 = vpack.c.b16 %v1659, %v1651
    %v2476 = vpack.c.b16 %v1660, %v1652
    %v2477 = vpack.c.b16 %v1661, %v1653
    %v2478 = vpack.c.b16 %v1662, %v1654
    %v2479 = vpack.c.b16 %v1663, %v1655
    %v2480 = vpack.c.b16 %v1672, %v1664
    %v2481 = vpack.c.b16 %v1673, %v1665
    %v2482 = vpack.c.b16 %v1674, %v1666
    %v2483 = vpack.c.b16 %v1675, %v1667
    %v2484 = vpack.c.b16 %v1676, %v1668
    %v2485 = vpack.c.b16 %v1677, %v1669
    %v2486 = vpack.c.b16 %v1678, %v1670
    %v2487 = vpack.c.b16 %v1679, %v1671
    %v2488 = vpack.c.b16 %v1688, %v1680
    %v2489 = vpack.c.b16 %v1689, %v1681
    %v2490 = vpack.c.b16 %v1690, %v1682
    %v2491 = vpack.c.b16 %v1691, %v1683
    %v2492 = vpack.c.b16 %v1692, %v1684
    %v2493 = vpack.c.b16 %v1693, %v1685
    %v2494 = vpack.c.b16 %v1694, %v1686
    %v2495 = vpack.c.b16 %v1695, %v1687
    %v2496 = vpack.c.b16 %v1704, %v1696
    %v2497 = vpack.c.b16 %v1705, %v1697
    %v2498 = vpack.c.b16 %v1706, %v1698
    %v2499 = vpack.c.b16 %v1707, %v1699
    %v2500 = vpack.c.b16 %v1708, %v1700
    %v2501 = vpack.c.b16 %v1709, %v1701
    %v2502 = vpack.c.b16 %v1710, %v1702
    %v2503 = vpack.c.b16 %v1711, %v1703
    %v2504 = vpack.c.b16 %v1720, %v1712
    %v2505 = vpack.c.b16 %v1721, %v1713
    %v2506 = vpack.c.b16 %v1722, %v1714
    %v2507 = vpack.c.b16 %v1723, %v1715
    %v2508 = vpack.c.b16 %v1724, %v1716
    %v2509 = vpack.c.b16 %v1725, %v1717
    %v2510 = vpack.c.b16 %v1726, %v1718
    %v2511 = vpack.c.b16 %v1727, %v1719
    %v2512 = vpack.c.b16 %v1736, %v1728
    %v2513 = vpack.c.b16 %v1737, %v1729
    %v2514 = vpack.c.b16 %v1738, %v1730
    %v2515 = vpack.c.b16 %v1739, %v1731
    %v2516 = vpack.c.b16 %v1740, %v1732
    %v2517 = vpack.c.b16 %v1741, %v1733
    %v2518 = vpack.c.b16 %v1742, %v1734
    %v2519 = vpack.c.b16 %v1743, %v1735
    %v2520 = vpack.c.b16 %v1752, %v1744
    %v2521 = vpack.c.b16 %v1753, %v1745
    %v2522 = vpack.c.b16 %v1754, %v1746
    %v2523 = vpack.c.b16 %v1755, %v1747
    %v2524 = vpack.c.b16 %v1756, %v1748
    %v2525 = vpack.c.b16 %v1757, %v1749
    %v2526 = vpack.c.b16 %v1758, %v1750
    %v2527 = vpack.c.b16 %v1759, %v1751
    %v2528 = vpack.c.b16 %v1768, %v1760
    %v2529 = vpack.c.b16 %v1769, %v1761
    %v2530 = vpack.c.b16 %v1770, %v1762
    %v2531 = vpack.c.b16 %v1771, %v1763
    %v2532 = vpack.c.b16 %v1772, %v1764
    %v2533 = vpack.c.b16 %v1773, %v1765
    %v2534 = vpack.c.b16 %v1774, %v1766
    %v2535 = vpack.c.b16 %v1775, %v1767
    %v2536 = vpack.c.b16 %v1784, %v1776
    %v2537 = vpack.c.b16 %v1785, %v1777
    %v2538 = vpack.c.b16 %v1786, %v1778
    %v2539 = vpack.c.b16 %v1787, %v1779
    %v2540 = vpack.c.b16 %v1788, %v1780
    %v2541 = vpack.c.b16 %v1789, %v1781
    %v2542 = vpack.c.b16 %v1790, %v1782
    %v2543 = vpack.c.b16 %v1791, %v1783
    %v2544 = vpack.c.b16 %v1800, %v1792
    %v2545 = vpack.c.b16 %v1801, %v1793
    %v2546 = vpack.c.b16 %v1802, %v1794
    %v2547 = vpack.c.b16 %v1803, %v1795
    %v2548 = vpack.c.b16 %v1804, %v1796
    %v2549 = vpack.c.b16 %v1805, %v1797
    %v2550 = vpack.c.b16 %v1806, %v1798
    %v2551 = vpack.c.b16 %v1807, %v1799
    %v2552 = vpack.c.b16 %v1816, %v1808
    %v2553 = vpack.c.b16 %v1817, %v1809
    %v2554 = vpack.c.b16 %v1818, %v1810
    %v2555 = vpack.c.b16 %v1819, %v1811
    %v2556 = vpack.c.b16 %v1820, %v1812
    %v2557 = vpack.c.b16 %v1821, %v1813
    %v2558 = vpack.c.b16 %v1822, %v1814
    %v2559 = vpack.c.b16 %v1823, %v1815
    %v2560 = vpack.c.b16 %v1832, %v1824
    %v2561 = vpack.c.b16 %v1833, %v1825
    %v2562 = vpack.c.b16 %v1834, %v1826
    %v2563 = vpack.c.b16 %v1835, %v1827
    %v2564 = vpack.c.b16 %v1836, %v1828
    %v2565 = vpack.c.b16 %v1837, %v1829
    %v2566 = vpack.c.b16 %v1838, %v1830
    %v2567 = vpack.c.b16 %v1839, %v1831
    %v2568 = vpack.c.b16 %v1848, %v1840
    %v2569 = vpack.c.b16 %v1849, %v1841
    %v2570 = vpack.c.b16 %v1850, %v1842
    %v2571 = vpack.c.b16 %v1851, %v1843
    %v2572 = vpack.c.b16 %v1852, %v1844
    %v2573 = vpack.c.b16 %v1853, %v1845
    %v2574 = vpack.c.b16 %v1854, %v1846
    %v2575 = vpack.c.b16 %v1855, %v1847
    %v2576 = vpack.c.b16 %v1864, %v1856
    %v2577 = vpack.c.b16 %v1865, %v1857
    %v2578 = vpack.c.b16 %v1866, %v1858
    %v2579 = vpack.c.b16 %v1867, %v1859
    %v2580 = vpack.c.b16 %v1868, %v1860
    %v2581 = vpack.c.b16 %v1869, %v1861
    %v2582 = vpack.c.b16 %v1870, %v1862
    %v2583 = vpack.c.b16 %v1871, %v1863
    %v2584 = vpack.c.b16 %v1880, %v1872
    %v2585 = vpack.c.b16 %v1881, %v1873
    %v2586 = vpack.c.b16 %v1882, %v1874
    %v2587 = vpack.c.b16 %v1883, %v1875
    %v2588 = vpack.c.b16 %v1884, %v1876
    %v2589 = vpack.c.b16 %v1885, %v1877
    %v2590 = vpack.c.b16 %v1886, %v1878
    %v2591 = vpack.c.b16 %v1887, %v1879
    %v2592 = vpack.c.b16 %v1896, %v1888
    %v2593 = vpack.c.b16 %v1897, %v1889
    %v2594 = vpack.c.b16 %v1898, %v1890
    %v2595 = vpack.c.b16 %v1899, %v1891
    %v2596 = vpack.c.b16 %v1900, %v1892
    %v2597 = vpack.c.b16 %v1901, %v1893
    %v2598 = vpack.c.b16 %v1902, %v1894
    %v2599 = vpack.c.b16 %v1903, %v1895
    %v2600 = vpack.c.b16 %v1912, %v1904
    %v2601 = vpack.c.b16 %v1913, %v1905
    %v2602 = vpack.c.b16 %v1914, %v1906
    %v2603 = vpack.c.b16 %v1915, %v1907
    %v2604 = vpack.c.b16 %v1916, %v1908
    %v2605 = vpack.c.b16 %v1917, %v1909
    %v2606 = vpack.c.b16 %v1918, %v1910
    %v2607 = vpack.c.b16 %v1919, %v1911
    %v2608 = vpack.c.b16 %v1928, %v1920
    %v2609 = vpack.c.b16 %v1929, %v1921
    %v2610 = vpack.c.b16 %v1930, %v1922
    %v2611 = vpack.c.b16 %v1931, %v1923
    %v2612 = vpack.c.b16 %v1932, %v1924
    %v2613 = vpack.c.b16 %v1933, %v1925
    %v2614 = vpack.c.b16 %v1934, %v1926
    %v2615 = vpack.c.b16 %v1935, %v1927
    %v2616 = vpack.c.b16 %v1944, %v1936
    %v2617 = vpack.c.b16 %v1945, %v1937
    %v2618 = vpack.c.b16 %v1946, %v1938
    %v2619 = vpack.c.b16 %v1947, %v1939
    %v2620 = vpack.c.b16 %v1948, %v1940
    %v2621 = vpack.c.b16 %v1949, %v1941
    %v2622 = vpack.c.b16 %v1950, %v1942
    %v2623 = vpack.c.b16 %v1951, %v1943
    %v2624 = vpack.c.b16 %v1960, %v1952
    %v2625 = vpack.c.b16 %v1961, %v1953
    %v2626 = vpack.c.b16 %v1962, %v1954
    %v2627 = vpack.c.b16 %v1963, %v1955
    %v2628 = vpack.c.b16 %v1964, %v1956
    %v2629 = vpack.c.b16 %v1965, %v1957
    %v2630 = vpack.c.b16 %v1966, %v1958
    %v2631 = vpack.c.b16 %v1967, %v1959
    %v2632 = vpack.c.b16 %v1976, %v1968
    %v2633 = vpack.c.b16 %v1977, %v1969
    %v2634 = vpack.c.b16 %v1978, %v1970
    %v2635 = vpack.c.b16 %v1979, %v1971
    %v2636 = vpack.c.b16 %v1980, %v1972
    %v2637 = vpack.c.b16 %v1981, %v1973
    %v2638 = vpack.c.b16 %v1982, %v1974
    %v2639 = vpack.c.b16 %v1983, %v1975
    %v2640 = vpack.c.b16 %v1992, %v1984
    %v2641 = vpack.c.b16 %v1993, %v1985
    %v2642 = vpack.c.b16 %v1994, %v1986
    %v2643 = vpack.c.b16 %v1995, %v1987
    %v2644 = vpack.c.b16 %v1996, %v1988
    %v2645 = vpack.c.b16 %v1997, %v1989
    %v2646 = vpack.c.b16 %v1998, %v1990
    %v2647 = vpack.c.b16 %v1999, %v1991
    %v2648 = vpack.c.b16 %v2008, %v2000
    %v2649 = vpack.c.b16 %v2009, %v2001
    %v2650 = vpack.c.b16 %v2010, %v2002
    %v2651 = vpack.c.b16 %v2011, %v2003
    %v2652 = vpack.c.b16 %v2012, %v2004
    %v2653 = vpack.c.b16 %v2013, %v2005
    %v2654 = vpack.c.b16 %v2014, %v2006
    %v2655 = vpack.c.b16 %v2015, %v2007
    %v2656 = vpack.c.b16 %v2024, %v2016
    %v2657 = vpack.c.b16 %v2025, %v2017
    %v2658 = vpack.c.b16 %v2026, %v2018
    %v2659 = vpack.c.b16 %v2027, %v2019
    %v2660 = vpack.c.b16 %v2028, %v2020
    %v2661 = vpack.c.b16 %v2029, %v2021
    %v2662 = vpack.c.b16 %v2030, %v2022
    %v2663 = vpack.c.b16 %v2031, %v2023
    %v2664 = vpack.c.b16 %v2040, %v2032
    %v2665 = vpack.c.b16 %v2041, %v2033
    %v2666 = vpack.c.b16 %v2042, %v2034
    %v2667 = vpack.c.b16 %v2043, %v2035
    %v2668 = vpack.c.b16 %v2044, %v2036
    %v2669 = vpack.c.b16 %v2045, %v2037
    %v2670 = vpack.c.b16 %v2046, %v2038
    %v2671 = vpack.c.b16 %v2047, %v2039
    %v2672 = vpack.c.b16 %v2056, %v2048
    %v2673 = vpack.c.b16 %v2057, %v2049
    %v2674 = vpack.c.b16 %v2058, %v2050
    %v2675 = vpack.c.b16 %v2059, %v2051
    %v2676 = vpack.c.b16 %v2060, %v2052
    %v2677 = vpack.c.b16 %v2061, %v2053
    %v2678 = vpack.c.b16 %v2062, %v2054
    %v2679 = vpack.c.b16 %v2063, %v2055
    %v2680 = vpack.c.b16 %v2072, %v2064
    %v2681 = vpack.c.b16 %v2073, %v2065
    %v2682 = vpack.c.b16 %v2074, %v2066
    %v2683 = vpack.c.b16 %v2075, %v2067
    %v2684 = vpack.c.b16 %v2076, %v2068
    %v2685 = vpack.c.b16 %v2077, %v2069
    %v2686 = vpack.c.b16 %v2078, %v2070
    %v2687 = vpack.c.b16 %v2079, %v2071
    %v2688 = vpack.c.b16 %v2088, %v2080
    %v2689 = vpack.c.b16 %v2089, %v2081
    %v2690 = vpack.c.b16 %v2090, %v2082
    %v2691 = vpack.c.b16 %v2091, %v2083
    %v2692 = vpack.c.b16 %v2092, %v2084
    %v2693 = vpack.c.b16 %v2093, %v2085
    %v2694 = vpack.c.b16 %v2094, %v2086
    %v2695 = vpack.c.b16 %v2095, %v2087
    %v2696 = vpack.c.b16 %v2104, %v2096
    %v2697 = vpack.c.b16 %v2105, %v2097
    %v2698 = vpack.c.b16 %v2106, %v2098
    %v2699 = vpack.c.b16 %v2107, %v2099
    %v2700 = vpack.c.b16 %v2108, %v2100
    %v2701 = vpack.c.b16 %v2109, %v2101
    %v2702 = vpack.c.b16 %v2110, %v2102
    %v2703 = vpack.c.b16 %v2111, %v2103
    %v2704 = vpack.c.b16 %v2120, %v2112
    %v2705 = vpack.c.b16 %v2121, %v2113
    %v2706 = vpack.c.b16 %v2122, %v2114
    %v2707 = vpack.c.b16 %v2123, %v2115
    %v2708 = vpack.c.b16 %v2124, %v2116
    %v2709 = vpack.c.b16 %v2125, %v2117
    %v2710 = vpack.c.b16 %v2126, %v2118
    %v2711 = vpack.c.b16 %v2127, %v2119
    %v2712 = vpack.c.b16 %v2136, %v2128
    %v2713 = vpack.c.b16 %v2137, %v2129
    %v2714 = vpack.c.b16 %v2138, %v2130
    %v2715 = vpack.c.b16 %v2139, %v2131
    %v2716 = vpack.c.b16 %v2140, %v2132
    %v2717 = vpack.c.b16 %v2141, %v2133
    %v2718 = vpack.c.b16 %v2142, %v2134
    %v2719 = vpack.c.b16 %v2143, %v2135
    %v2720 = vpack.c.b16 %v2152, %v2144
    %v2721 = vpack.c.b16 %v2153, %v2145
    %v2722 = vpack.c.b16 %v2154, %v2146
    %v2723 = vpack.c.b16 %v2155, %v2147
    %v2724 = vpack.c.b16 %v2156, %v2148
    %v2725 = vpack.c.b16 %v2157, %v2149
    %v2726 = vpack.c.b16 %v2158, %v2150
    %v2727 = vpack.c.b16 %v2159, %v2151
    %v2728 = vpack.c.b16 %v2168, %v2160
    %v2729 = vpack.c.b16 %v2169, %v2161
    %v2730 = vpack.c.b16 %v2170, %v2162
    %v2731 = vpack.c.b16 %v2171, %v2163
    %v2732 = vpack.c.b16 %v2172, %v2164
    %v2733 = vpack.c.b16 %v2173, %v2165
    %v2734 = vpack.c.b16 %v2174, %v2166
    %v2735 = vpack.c.b16 %v2175, %v2167
    %v2736 = vpack.c.b16 %v2184, %v2176
    %v2737 = vpack.c.b16 %v2185, %v2177
    %v2738 = vpack.c.b16 %v2186, %v2178
    %v2739 = vpack.c.b16 %v2187, %v2179
    %v2740 = vpack.c.b16 %v2188, %v2180
    %v2741 = vpack.c.b16 %v2189, %v2181
    %v2742 = vpack.c.b16 %v2190, %v2182
    %v2743 = vpack.c.b16 %v2191, %v2183
    %v2744 = vpack.c.b16 %v2200, %v2192
    %v2745 = vpack.c.b16 %v2201, %v2193
    %v2746 = vpack.c.b16 %v2202, %v2194
    %v2747 = vpack.c.b16 %v2203, %v2195
    %v2748 = vpack.c.b16 %v2204, %v2196
    %v2749 = vpack.c.b16 %v2205, %v2197
    %v2750 = vpack.c.b16 %v2206, %v2198
    %v2751 = vpack.c.b16 %v2207, %v2199
    %v2752 = vpack.c.b16 %v2216, %v2208
    %v2753 = vpack.c.b16 %v2217, %v2209
    %v2754 = vpack.c.b16 %v2218, %v2210
    %v2755 = vpack.c.b16 %v2219, %v2211
    %v2756 = vpack.c.b16 %v2220, %v2212
    %v2757 = vpack.c.b16 %v2221, %v2213
    %v2758 = vpack.c.b16 %v2222, %v2214
    %v2759 = vpack.c.b16 %v2223, %v2215
    %v2760 = vpack.c.b16 %v2232, %v2224
    %v2761 = vpack.c.b16 %v2233, %v2225
    %v2762 = vpack.c.b16 %v2234, %v2226
    %v2763 = vpack.c.b16 %v2235, %v2227
    %v2764 = vpack.c.b16 %v2236, %v2228
    %v2765 = vpack.c.b16 %v2237, %v2229
    %v2766 = vpack.c.b16 %v2238, %v2230
    %v2767 = vpack.c.b16 %v2239, %v2231
    %v2768 = vpack.c.b16 %v2248, %v2240
    %v2769 = vpack.c.b16 %v2249, %v2241
    %v2770 = vpack.c.b16 %v2250, %v2242
    %v2771 = vpack.c.b16 %v2251, %v2243
    %v2772 = vpack.c.b16 %v2252, %v2244
    %v2773 = vpack.c.b16 %v2253, %v2245
    %v2774 = vpack.c.b16 %v2254, %v2246
    %v2775 = vpack.c.b16 %v2255, %v2247
    %v2776 = vpack.c.b16 %v2264, %v2256
    %v2777 = vpack.c.b16 %v2265, %v2257
    %v2778 = vpack.c.b16 %v2266, %v2258
    %v2779 = vpack.c.b16 %v2267, %v2259
    %v2780 = vpack.c.b16 %v2268, %v2260
    %v2781 = vpack.c.b16 %v2269, %v2261
    %v2782 = vpack.c.b16 %v2270, %v2262
    %v2783 = vpack.c.b16 %v2271, %v2263
    %3296 = vmatprep.subr.bf16.mxu0 %v2273
    %3297 = vmatpush1.bf16.msra.mxu0 %v2272
    %3298 = vmatprep.subr.bf16.mxu0 %v2281
    %3299 = vmatpush1.bf16.msra.mxu0 %v2280
    %3300 = vmatprep.subr.bf16.mxu0 %v2289
    %3301 = vmatpush1.bf16.msra.mxu0 %v2288
    %3302 = vmatprep.subr.bf16.mxu0 %v2297
    %3303 = vmatpush1.bf16.msra.mxu0 %v2296
    %3304 = vmatprep.subr.bf16.mxu0 %v2305
    %3305 = vmatpush1.bf16.msra.mxu0 %v2304
    %3306 = vmatprep.subr.bf16.mxu0 %v2313
    %3307 = vmatpush1.bf16.msra.mxu0 %v2312
    %3308 = vmatprep.subr.bf16.mxu0 %v2321
    %3309 = vmatpush1.bf16.msra.mxu0 %v2320
    %3310 = vmatprep.subr.bf16.mxu0 %v2329
    %3311 = vmatpush1.bf16.msra.mxu0 %v2328
    %3312 = vmatprep.subr.bf16.mxu0 %v2337
    %3313 = vmatpush1.bf16.msra.mxu0 %v2336
    %3314 = vmatprep.subr.bf16.mxu0 %v2345
    %3315 = vmatpush1.bf16.msra.mxu0 %v2344
    %3316 = vmatprep.subr.bf16.mxu0 %v2353
    %3317 = vmatpush1.bf16.msra.mxu0 %v2352
    %3318 = vmatprep.subr.bf16.mxu0 %v2361
    %3319 = vmatpush1.bf16.msra.mxu0 %v2360
    %3320 = vmatprep.subr.bf16.mxu0 %v2369
    %3321 = vmatpush1.bf16.msra.mxu0 %v2368
    %3322 = vmatprep.subr.bf16.mxu0 %v2377
    %3323 = vmatpush1.bf16.msra.mxu0 %v2376
    %3324 = vmatprep.subr.bf16.mxu0 %v2385
    %3325 = vmatpush1.bf16.msra.mxu0 %v2384
    %3326 = vmatprep.subr.bf16.mxu0 %v2393
    %3327 = vmatpush1.bf16.msra.mxu0 %v2392
    %3328 = vmatprep.mubr.bf16.mxu0 %v217
    %3329 = vmatmul.mubr.bf16.gmra.mrb[0].mxu0 %v216
    %v3330 = vpop.f32.mrb[0].mxu0
    %v3331 = vadd.f32 0.0, %v3330
    %v3332 = vpop.f32.mrb[0].mxu0
    %v3333 = vadd.f32 0.0, %v3332
    %v3334 = vpop.f32.mrb[0].mxu0
    %v3335 = vpop.f32.mrb[0].mxu0
    %3336 = vdwg.mxu0
    %3337 = vmatprep.subr.bf16.mxu0 %v2401
    %3338 = vmatpush1.bf16.msra.mxu0 %v2400
    %3339 = vmatprep.subr.bf16.mxu0 %v2409
    %3340 = vmatpush1.bf16.msra.mxu0 %v2408
    %3341 = vmatprep.subr.bf16.mxu0 %v2417
    %3342 = vmatpush1.bf16.msra.mxu0 %v2416
    %3343 = vmatprep.subr.bf16.mxu0 %v2425
    %3344 = vmatpush1.bf16.msra.mxu0 %v2424
    %3345 = vmatprep.subr.bf16.mxu0 %v2433
    %3346 = vmatpush1.bf16.msra.mxu0 %v2432
    %3347 = vmatprep.subr.bf16.mxu0 %v2441
    %3348 = vmatpush1.bf16.msra.mxu0 %v2440
    %3349 = vmatprep.subr.bf16.mxu0 %v2449
    %3350 = vmatpush1.bf16.msra.mxu0 %v2448
    %3351 = vmatprep.subr.bf16.mxu0 %v2457
    %3352 = vmatpush1.bf16.msra.mxu0 %v2456
    %3353 = vmatprep.subr.bf16.mxu0 %v2465
    %3354 = vmatpush1.bf16.msra.mxu0 %v2464
    %3355 = vmatprep.subr.bf16.mxu0 %v2473
    %3356 = vmatpush1.bf16.msra.mxu0 %v2472
    %3357 = vmatprep.subr.bf16.mxu0 %v2481
    %3358 = vmatpush1.bf16.msra.mxu0 %v2480
    %3359 = vmatprep.subr.bf16.mxu0 %v2489
    %3360 = vmatpush1.bf16.msra.mxu0 %v2488
    %3361 = vmatprep.subr.bf16.mxu0 %v2497
    %3362 = vmatpush1.bf16.msra.mxu0 %v2496
    %3363 = vmatprep.subr.bf16.mxu0 %v2505
    %3364 = vmatpush1.bf16.msra.mxu0 %v2504
    %3365 = vmatprep.subr.bf16.mxu0 %v2513
    %3366 = vmatpush1.bf16.msra.mxu0 %v2512
    %3367 = vmatprep.subr.bf16.mxu0 %v2521
    %3368 = vmatpush1.bf16.msra.mxu0 %v2520
    %3369 = vmatprep.mubr.bf16.mxu0 %v219
    %3370 = vmatmul.mubr.bf16.gmra.mrb[0].mxu0 %v218
    %v3371 = vpop.f32.mrb[0].mxu0
    %v3372 = vadd.f32 %v3331, %v3371
    %v3373 = vpop.f32.mrb[0].mxu0
    %v3374 = vadd.f32 %v3333, %v3373
    %v3375 = vpop.f32.mrb[0].mxu0
    %v3376 = vpop.f32.mrb[0].mxu0
    %3377 = vdwg.mxu0
    %3378 = vmatprep.subr.bf16.mxu0 %v2529
    %3379 = vmatpush1.bf16.msra.mxu0 %v2528
    %3380 = vmatprep.subr.bf16.mxu0 %v2537
    %3381 = vmatpush1.bf16.msra.mxu0 %v2536
    %3382 = vmatprep.subr.bf16.mxu0 %v2545
    %3383 = vmatpush1.bf16.msra.mxu0 %v2544
    %3384 = vmatprep.subr.bf16.mxu0 %v2553
    %3385 = vmatpush1.bf16.msra.mxu0 %v2552
    %3386 = vmatprep.subr.bf16.mxu0 %v2561
    %3387 = vmatpush1.bf16.msra.mxu0 %v2560
    %3388 = vmatprep.subr.bf16.mxu0 %v2569
    %3389 = vmatpush1.bf16.msra.mxu0 %v2568
    %3390 = vmatprep.subr.bf16.mxu0 %v2577
    %3391 = vmatpush1.bf16.msra.mxu0 %v2576
    %3392 = vmatprep.subr.bf16.mxu0 %v2585
    %3393 = vmatpush1.bf16.msra.mxu0 %v2584
    %3394 = vmatprep.subr.bf16.mxu0 %v2593
    %3395 = vmatpush1.bf16.msra.mxu0 %v2592
    %3396 = vmatprep.subr.bf16.mxu0 %v2601
    %3397 = vmatpush1.bf16.msra.mxu0 %v2600
    %3398 = vmatprep.subr.bf16.mxu0 %v2609
    %3399 = vmatpush1.bf16.msra.mxu0 %v2608
    %3400 = vmatprep.subr.bf16.mxu0 %v2617
    %3401 = vmatpush1.bf16.msra.mxu0 %v2616
    %3402 = vmatprep.subr.bf16.mxu0 %v2625
    %3403 = vmatpush1.bf16.msra.mxu0 %v2624
    %3404 = vmatprep.subr.bf16.mxu0 %v2633
    %3405 = vmatpush1.bf16.msra.mxu0 %v2632
    %3406 = vmatprep.subr.bf16.mxu0 %v2641
    %3407 = vmatpush1.bf16.msra.mxu0 %v2640
    %3408 = vmatprep.subr.bf16.mxu0 %v2649
    %3409 = vmatpush1.bf16.msra.mxu0 %v2648
    %3410 = vmatprep.mubr.bf16.mxu0 %v221
    %3411 = vmatmul.mubr.bf16.gmra.mrb[0].mxu0 %v220
    %v3412 = vpop.f32.mrb[0].mxu0
    %v3413 = vadd.f32 %v3372, %v3412
    %v3414 = vpop.f32.mrb[0].mxu0
    %v3415 = vadd.f32 %v3374, %v3414
    %v3416 = vpop.f32.mrb[0].mxu0
    %v3417 = vpop.f32.mrb[0].mxu0
    %3418 = vdwg.mxu0
    %3419 = vmatprep.subr.bf16.mxu0 %v2657
    %3420 = vmatpush1.bf16.msra.mxu0 %v2656
    %3421 = vmatprep.subr.bf16.mxu0 %v2665
    %3422 = vmatpush1.bf16.msra.mxu0 %v2664
    %3423 = vmatprep.subr.bf16.mxu0 %v2673
    %3424 = vmatpush1.bf16.msra.mxu0 %v2672
    %3425 = vmatprep.subr.bf16.mxu0 %v2681
    %3426 = vmatpush1.bf16.msra.mxu0 %v2680
    %3427 = vmatprep.subr.bf16.mxu0 %v2689
    %3428 = vmatpush1.bf16.msra.mxu0 %v2688
    %3429 = vmatprep.subr.bf16.mxu0 %v2697
    %3430 = vmatpush1.bf16.msra.mxu0 %v2696
    %3431 = vmatprep.subr.bf16.mxu0 %v2705
    %3432 = vmatpush1.bf16.msra.mxu0 %v2704
    %3433 = vmatprep.subr.bf16.mxu0 %v2713
    %3434 = vmatpush1.bf16.msra.mxu0 %v2712
    %3435 = vmatprep.subr.bf16.mxu0 %v2721
    %3436 = vmatpush1.bf16.msra.mxu0 %v2720
    %3437 = vmatprep.subr.bf16.mxu0 %v2729
    %3438 = vmatpush1.bf16.msra.mxu0 %v2728
    %3439 = vmatprep.subr.bf16.mxu0 %v2737
    %3440 = vmatpush1.bf16.msra.mxu0 %v2736
    %3441 = vmatprep.subr.bf16.mxu0 %v2745
    %3442 = vmatpush1.bf16.msra.mxu0 %v2744
    %3443 = vmatprep.subr.bf16.mxu0 %v2753
    %3444 = vmatpush1.bf16.msra.mxu0 %v2752
    %3445 = vmatprep.subr.bf16.mxu0 %v2761
    %3446 = vmatpush1.bf16.msra.mxu0 %v2760
    %3447 = vmatprep.subr.bf16.mxu0 %v2769
    %3448 = vmatpush1.bf16.msra.mxu0 %v2768
    %3449 = vmatprep.subr.bf16.mxu0 %v2777
    %3450 = vmatpush1.bf16.msra.mxu0 %v2776
    %3451 = vmatprep.mubr.bf16.mxu0 %v223
    %3452 = vmatmul.mubr.bf16.gmra.mrb[0].mxu0 %v222
    %v3453 = vpop.f32.mrb[0].mxu0
    %v3454 = vadd.f32 %v3413, %v3453
    %v3455 = vpop.f32.mrb[0].mxu0
    %v3456 = vadd.f32 %v3415, %v3455
    %v3457 = vpop.f32.mrb[0].mxu0
    %v3458 = vpop.f32.mrb[0].mxu0
    %3459 = vdwg.mxu0
    %3460 = vmatprep.subr.bf16.mxu0 %v2275
    %3461 = vmatpush1.bf16.msra.mxu0 %v2274
    %3462 = vmatprep.subr.bf16.mxu0 %v2283
    %3463 = vmatpush1.bf16.msra.mxu0 %v2282
    %3464 = vmatprep.subr.bf16.mxu0 %v2291
    %3465 = vmatpush1.bf16.msra.mxu0 %v2290
    %3466 = vmatprep.subr.bf16.mxu0 %v2299
    %3467 = vmatpush1.bf16.msra.mxu0 %v2298
    %3468 = vmatprep.subr.bf16.mxu0 %v2307
    %3469 = vmatpush1.bf16.msra.mxu0 %v2306
    %3470 = vmatprep.subr.bf16.mxu0 %v2315
    %3471 = vmatpush1.bf16.msra.mxu0 %v2314
    %3472 = vmatprep.subr.bf16.mxu0 %v2323
    %3473 = vmatpush1.bf16.msra.mxu0 %v2322
    %3474 = vmatprep.subr.bf16.mxu0 %v2331
    %3475 = vmatpush1.bf16.msra.mxu0 %v2330
    %3476 = vmatprep.subr.bf16.mxu0 %v2339
    %3477 = vmatpush1.bf16.msra.mxu0 %v2338
    %3478 = vmatprep.subr.bf16.mxu0 %v2347
    %3479 = vmatpush1.bf16.msra.mxu0 %v2346
    %3480 = vmatprep.subr.bf16.mxu0 %v2355
    %3481 = vmatpush1.bf16.msra.mxu0 %v2354
    %3482 = vmatprep.subr.bf16.mxu0 %v2363
    %3483 = vmatpush1.bf16.msra.mxu0 %v2362
    %3484 = vmatprep.subr.bf16.mxu0 %v2371
    %3485 = vmatpush1.bf16.msra.mxu0 %v2370
    %3486 = vmatprep.subr.bf16.mxu0 %v2379
    %3487 = vmatpush1.bf16.msra.mxu0 %v2378
    %3488 = vmatprep.subr.bf16.mxu0 %v2387
    %3489 = vmatpush1.bf16.msra.mxu0 %v2386
    %3490 = vmatprep.subr.bf16.mxu0 %v2395
    %3491 = vmatpush1.bf16.msra.mxu0 %v2394
    %3492 = vmatprep.mubr.bf16.mxu0 %v217
    %3493 = vmatmul.mubr.bf16.gmra.mrb[0].mxu0 %v216
    %v3494 = vpop.f32.mrb[0].mxu0
    %v3495 = vadd.f32 0.0, %v3494
    %v3496 = vpop.f32.mrb[0].mxu0
    %v3497 = vadd.f32 0.0, %v3496
    %v3498 = vpop.f32.mrb[0].mxu0
    %v3499 = vpop.f32.mrb[0].mxu0
    %3500 = vdwg.mxu0
    %3501 = vmatprep.subr.bf16.mxu0 %v2403
    %3502 = vmatpush1.bf16.msra.mxu0 %v2402
    %3503 = vmatprep.subr.bf16.mxu0 %v2411
    %3504 = vmatpush1.bf16.msra.mxu0 %v2410
    %3505 = vmatprep.subr.bf16.mxu0 %v2419
    %3506 = vmatpush1.bf16.msra.mxu0 %v2418
    %3507 = vmatprep.subr.bf16.mxu0 %v2427
    %3508 = vmatpush1.bf16.msra.mxu0 %v2426
    %3509 = vmatprep.subr.bf16.mxu0 %v2435
    %3510 = vmatpush1.bf16.msra.mxu0 %v2434
    %3511 = vmatprep.subr.bf16.mxu0 %v2443
    %3512 = vmatpush1.bf16.msra.mxu0 %v2442
    %3513 = vmatprep.subr.bf16.mxu0 %v2451
    %3514 = vmatpush1.bf16.msra.mxu0 %v2450
    %3515 = vmatprep.subr.bf16.mxu0 %v2459
    %3516 = vmatpush1.bf16.msra.mxu0 %v2458
    %3517 = vmatprep.subr.bf16.mxu0 %v2467
    %3518 = vmatpush1.bf16.msra.mxu0 %v2466
    %3519 = vmatprep.subr.bf16.mxu0 %v2475
    %3520 = vmatpush1.bf16.msra.mxu0 %v2474
    %3521 = vmatprep.subr.bf16.mxu0 %v2483
    %3522 = vmatpush1.bf16.msra.mxu0 %v2482
    %3523 = vmatprep.subr.bf16.mxu0 %v2491
    %3524 = vmatpush1.bf16.msra.mxu0 %v2490
    %3525 = vmatprep.subr.bf16.mxu0 %v2499
    %3526 = vmatpush1.bf16.msra.mxu0 %v2498
    %3527 = vmatprep.subr.bf16.mxu0 %v2507
    %3528 = vmatpush1.bf16.msra.mxu0 %v2506
    %3529 = vmatprep.subr.bf16.mxu0 %v2515
    %3530 = vmatpush1.bf16.msra.mxu0 %v2514
    %3531 = vmatprep.subr.bf16.mxu0 %v2523
    %3532 = vmatpush1.bf16.msra.mxu0 %v2522
    %3533 = vmatprep.mubr.bf16.mxu0 %v219
    %3534 = vmatmul.mubr.bf16.gmra.mrb[0].mxu0 %v218
    %v3535 = vpop.f32.mrb[0].mxu0
    %v3536 = vadd.f32 %v3495, %v3535
    %v3537 = vpop.f32.mrb[0].mxu0
    %v3538 = vadd.f32 %v3497, %v3537
    %v3539 = vpop.f32.mrb[0].mxu0
    %v3540 = vpop.f32.mrb[0].mxu0
    %3541 = vdwg.mxu0
    %3542 = vmatprep.subr.bf16.mxu0 %v2531
    %3543 = vmatpush1.bf16.msra.mxu0 %v2530
    %3544 = vmatprep.subr.bf16.mxu0 %v2539
    %3545 = vmatpush1.bf16.msra.mxu0 %v2538
    %3546 = vmatprep.subr.bf16.mxu0 %v2547
    %3547 = vmatpush1.bf16.msra.mxu0 %v2546
    %3548 = vmatprep.subr.bf16.mxu0 %v2555
    %3549 = vmatpush1.bf16.msra.mxu0 %v2554
    %3550 = vmatprep.subr.bf16.mxu0 %v2563
    %3551 = vmatpush1.bf16.msra.mxu0 %v2562
    %3552 = vmatprep.subr.bf16.mxu0 %v2571
    %3553 = vmatpush1.bf16.msra.mxu0 %v2570
    %3554 = vmatprep.subr.bf16.mxu0 %v2579
    %3555 = vmatpush1.bf16.msra.mxu0 %v2578
    %3556 = vmatprep.subr.bf16.mxu0 %v2587
    %3557 = vmatpush1.bf16.msra.mxu0 %v2586
    %3558 = vmatprep.subr.bf16.mxu0 %v2595
    %3559 = vmatpush1.bf16.msra.mxu0 %v2594
    %3560 = vmatprep.subr.bf16.mxu0 %v2603
    %3561 = vmatpush1.bf16.msra.mxu0 %v2602
    %3562 = vmatprep.subr.bf16.mxu0 %v2611
    %3563 = vmatpush1.bf16.msra.mxu0 %v2610
    %3564 = vmatprep.subr.bf16.mxu0 %v2619
    %3565 = vmatpush1.bf16.msra.mxu0 %v2618
    %3566 = vmatprep.subr.bf16.mxu0 %v2627
    %3567 = vmatpush1.bf16.msra.mxu0 %v2626
    %3568 = vmatprep.subr.bf16.mxu0 %v2635
    %3569 = vmatpush1.bf16.msra.mxu0 %v2634
    %3570 = vmatprep.subr.bf16.mxu0 %v2643
    %3571 = vmatpush1.bf16.msra.mxu0 %v2642
    %3572 = vmatprep.subr.bf16.mxu0 %v2651
    %3573 = vmatpush1.bf16.msra.mxu0 %v2650
    %3574 = vmatprep.mubr.bf16.mxu0 %v221
    %3575 = vmatmul.mubr.bf16.gmra.mrb[0].mxu0 %v220
    %v3576 = vpop.f32.mrb[0].mxu0
    %v3577 = vadd.f32 %v3536, %v3576
    %v3578 = vpop.f32.mrb[0].mxu0
    %v3579 = vadd.f32 %v3538, %v3578
    %v3580 = vpop.f32.mrb[0].mxu0
    %v3581 = vpop.f32.mrb[0].mxu0
    %3582 = vdwg.mxu0
    %3583 = vmatprep.subr.bf16.mxu0 %v2659
    %3584 = vmatpush1.bf16.msra.mxu0 %v2658
    %3585 = vmatprep.subr.bf16.mxu0 %v2667
    %3586 = vmatpush1.bf16.msra.mxu0 %v2666
    %3587 = vmatprep.subr.bf16.mxu0 %v2675
    %3588 = vmatpush1.bf16.msra.mxu0 %v2674
    %3589 = vmatprep.subr.bf16.mxu0 %v2683
    %3590 = vmatpush1.bf16.msra.mxu0 %v2682
    %3591 = vmatprep.subr.bf16.mxu0 %v2691
    %3592 = vmatpush1.bf16.msra.mxu0 %v2690
    %3593 = vmatprep.subr.bf16.mxu0 %v2699
    %3594 = vmatpush1.bf16.msra.mxu0 %v2698
    %3595 = vmatprep.subr.bf16.mxu0 %v2707
    %3596 = vmatpush1.bf16.msra.mxu0 %v2706
    %3597 = vmatprep.subr.bf16.mxu0 %v2715
    %3598 = vmatpush1.bf16.msra.mxu0 %v2714
    %3599 = vmatprep.subr.bf16.mxu0 %v2723
    %3600 = vmatpush1.bf16.msra.mxu0 %v2722
    %3601 = vmatprep.subr.bf16.mxu0 %v2731
    %3602 = vmatpush1.bf16.msra.mxu0 %v2730
    %3603 = vmatprep.subr.bf16.mxu0 %v2739
    %3604 = vmatpush1.bf16.msra.mxu0 %v2738
    %3605 = vmatprep.subr.bf16.mxu0 %v2747
    %3606 = vmatpush1.bf16.msra.mxu0 %v2746
    %3607 = vmatprep.subr.bf16.mxu0 %v2755
    %3608 = vmatpush1.bf16.msra.mxu0 %v2754
    %3609 = vmatprep.subr.bf16.mxu0 %v2763
    %3610 = vmatpush1.bf16.msra.mxu0 %v2762
    %3611 = vmatprep.subr.bf16.mxu0 %v2771
    %3612 = vmatpush1.bf16.msra.mxu0 %v2770
    %3613 = vmatprep.subr.bf16.mxu0 %v2779
    %3614 = vmatpush1.bf16.msra.mxu0 %v2778
    %3615 = vmatprep.mubr.bf16.mxu0 %v223
    %3616 = vmatmul.mubr.bf16.gmra.mrb[0].mxu0 %v222
    %v3617 = vpop.f32.mrb[0].mxu0
    %v3618 = vadd.f32 %v3577, %v3617
    %v3619 = vpop.f32.mrb[0].mxu0
    %v3620 = vadd.f32 %v3579, %v3619
    %v3621 = vpop.f32.mrb[0].mxu0
    %v3622 = vpop.f32.mrb[0].mxu0
    %3623 = vdwg.mxu0
    %3624 = vmatprep.subr.bf16.mxu0 %v2277
    %3625 = vmatpush1.bf16.msra.mxu0 %v2276
    %3626 = vmatprep.subr.bf16.mxu0 %v2285
    %3627 = vmatpush1.bf16.msra.mxu0 %v2284
    %3628 = vmatprep.subr.bf16.mxu0 %v2293
    %3629 = vmatpush1.bf16.msra.mxu0 %v2292
    %3630 = vmatprep.subr.bf16.mxu0 %v2301
    %3631 = vmatpush1.bf16.msra.mxu0 %v2300
    %3632 = vmatprep.subr.bf16.mxu0 %v2309
    %3633 = vmatpush1.bf16.msra.mxu0 %v2308
    %3634 = vmatprep.subr.bf16.mxu0 %v2317
    %3635 = vmatpush1.bf16.msra.mxu0 %v2316
    %3636 = vmatprep.subr.bf16.mxu0 %v2325
    %3637 = vmatpush1.bf16.msra.mxu0 %v2324
    %3638 = vmatprep.subr.bf16.mxu0 %v2333
    %3639 = vmatpush1.bf16.msra.mxu0 %v2332
    %3640 = vmatprep.subr.bf16.mxu0 %v2341
    %3641 = vmatpush1.bf16.msra.mxu0 %v2340
    %3642 = vmatprep.subr.bf16.mxu0 %v2349
    %3643 = vmatpush1.bf16.msra.mxu0 %v2348
    %3644 = vmatprep.subr.bf16.mxu0 %v2357
    %3645 = vmatpush1.bf16.msra.mxu0 %v2356
    %3646 = vmatprep.subr.bf16.mxu0 %v2365
    %3647 = vmatpush1.bf16.msra.mxu0 %v2364
    %3648 = vmatprep.subr.bf16.mxu0 %v2373
    %3649 = vmatpush1.bf16.msra.mxu0 %v2372
    %3650 = vmatprep.subr.bf16.mxu0 %v2381
    %3651 = vmatpush1.bf16.msra.mxu0 %v2380
    %3652 = vmatprep.subr.bf16.mxu0 %v2389
    %3653 = vmatpush1.bf16.msra.mxu0 %v2388
    %3654 = vmatprep.subr.bf16.mxu0 %v2397
    %3655 = vmatpush1.bf16.msra.mxu0 %v2396
    %3656 = vmatprep.mubr.bf16.mxu0 %v217
    %3657 = vmatmul.mubr.bf16.gmra.mrb[0].mxu0 %v216
    %v3658 = vpop.f32.mrb[0].mxu0
    %v3659 = vadd.f32 0.0, %v3658
    %v3660 = vpop.f32.mrb[0].mxu0
    %v3661 = vadd.f32 0.0, %v3660
    %v3662 = vpop.f32.mrb[0].mxu0
    %v3663 = vpop.f32.mrb[0].mxu0
    %3664 = vdwg.mxu0
    %3665 = vmatprep.subr.bf16.mxu0 %v2405
    %3666 = vmatpush1.bf16.msra.mxu0 %v2404
    %3667 = vmatprep.subr.bf16.mxu0 %v2413
    %3668 = vmatpush1.bf16.msra.mxu0 %v2412
    %3669 = vmatprep.subr.bf16.mxu0 %v2421
    %3670 = vmatpush1.bf16.msra.mxu0 %v2420
    %3671 = vmatprep.subr.bf16.mxu0 %v2429
    %3672 = vmatpush1.bf16.msra.mxu0 %v2428
    %3673 = vmatprep.subr.bf16.mxu0 %v2437
    %3674 = vmatpush1.bf16.msra.mxu0 %v2436
    %3675 = vmatprep.subr.bf16.mxu0 %v2445
    %3676 = vmatpush1.bf16.msra.mxu0 %v2444
    %3677 = vmatprep.subr.bf16.mxu0 %v2453
    %3678 = vmatpush1.bf16.msra.mxu0 %v2452
    %3679 = vmatprep.subr.bf16.mxu0 %v2461
    %3680 = vmatpush1.bf16.msra.mxu0 %v2460
    %3681 = vmatprep.subr.bf16.mxu0 %v2469
    %3682 = vmatpush1.bf16.msra.mxu0 %v2468
    %3683 = vmatprep.subr.bf16.mxu0 %v2477
    %3684 = vmatpush1.bf16.msra.mxu0 %v2476
    %3685 = vmatprep.subr.bf16.mxu0 %v2485
    %3686 = vmatpush1.bf16.msra.mxu0 %v2484
    %3687 = vmatprep.subr.bf16.mxu0 %v2493
    %3688 = vmatpush1.bf16.msra.mxu0 %v2492
    %3689 = vmatprep.subr.bf16.mxu0 %v2501
    %3690 = vmatpush1.bf16.msra.mxu0 %v2500
    %3691 = vmatprep.subr.bf16.mxu0 %v2509
    %3692 = vmatpush1.bf16.msra.mxu0 %v2508
    %3693 = vmatprep.subr.bf16.mxu0 %v2517
    %3694 = vmatpush1.bf16.msra.mxu0 %v2516
    %3695 = vmatprep.subr.bf16.mxu0 %v2525
    %3696 = vmatpush1.bf16.msra.mxu0 %v2524
    %3697 = vmatprep.mubr.bf16.mxu0 %v219
    %3698 = vmatmul.mubr.bf16.gmra.mrb[0].mxu0 %v218
    %v3699 = vpop.f32.mrb[0].mxu0
    %v3700 = vadd.f32 %v3659, %v3699
    %v3701 = vpop.f32.mrb[0].mxu0
    %v3702 = vadd.f32 %v3661, %v3701
    %v3703 = vpop.f32.mrb[0].mxu0
    %v3704 = vpop.f32.mrb[0].mxu0
    %3705 = vdwg.mxu0
    %3706 = vmatprep.subr.bf16.mxu0 %v2533
    %3707 = vmatpush1.bf16.msra.mxu0 %v2532
    %3708 = vmatprep.subr.bf16.mxu0 %v2541
    %3709 = vmatpush1.bf16.msra.mxu0 %v2540
    %3710 = vmatprep.subr.bf16.mxu0 %v2549
    %3711 = vmatpush1.bf16.msra.mxu0 %v2548
    %3712 = vmatprep.subr.bf16.mxu0 %v2557
    %3713 = vmatpush1.bf16.msra.mxu0 %v2556
    %3714 = vmatprep.subr.bf16.mxu0 %v2565
    %3715 = vmatpush1.bf16.msra.mxu0 %v2564
    %3716 = vmatprep.subr.bf16.mxu0 %v2573
    %3717 = vmatpush1.bf16.msra.mxu0 %v2572
    %3718 = vmatprep.subr.bf16.mxu0 %v2581
    %3719 = vmatpush1.bf16.msra.mxu0 %v2580
    %3720 = vmatprep.subr.bf16.mxu0 %v2589
    %3721 = vmatpush1.bf16.msra.mxu0 %v2588
    %3722 = vmatprep.subr.bf16.mxu0 %v2597
    %3723 = vmatpush1.bf16.msra.mxu0 %v2596
    %3724 = vmatprep.subr.bf16.mxu0 %v2605
    %3725 = vmatpush1.bf16.msra.mxu0 %v2604
    %3726 = vmatprep.subr.bf16.mxu0 %v2613
    %3727 = vmatpush1.bf16.msra.mxu0 %v2612
    %3728 = vmatprep.subr.bf16.mxu0 %v2621
    %3729 = vmatpush1.bf16.msra.mxu0 %v2620
    %3730 = vmatprep.subr.bf16.mxu0 %v2629
    %3731 = vmatpush1.bf16.msra.mxu0 %v2628
    %3732 = vmatprep.subr.bf16.mxu0 %v2637
    %3733 = vmatpush1.bf16.msra.mxu0 %v2636
    %3734 = vmatprep.subr.bf16.mxu0 %v2645
    %3735 = vmatpush1.bf16.msra.mxu0 %v2644
    %3736 = vmatprep.subr.bf16.mxu0 %v2653
    %3737 = vmatpush1.bf16.msra.mxu0 %v2652
    %3738 = vmatprep.mubr.bf16.mxu0 %v221
    %3739 = vmatmul.mubr.bf16.gmra.mrb[0].mxu0 %v220
    %v3740 = vpop.f32.mrb[0].mxu0
    %v3741 = vadd.f32 %v3700, %v3740
    %v3742 = vpop.f32.mrb[0].mxu0
    %v3743 = vadd.f32 %v3702, %v3742
    %v3744 = vpop.f32.mrb[0].mxu0
    %v3745 = vpop.f32.mrb[0].mxu0
    %3746 = vdwg.mxu0
    %3747 = vmatprep.subr.bf16.mxu0 %v2661
    %3748 = vmatpush1.bf16.msra.mxu0 %v2660
    %3749 = vmatprep.subr.bf16.mxu0 %v2669
    %3750 = vmatpush1.bf16.msra.mxu0 %v2668
    %3751 = vmatprep.subr.bf16.mxu0 %v2677
    %3752 = vmatpush1.bf16.msra.mxu0 %v2676
    %3753 = vmatprep.subr.bf16.mxu0 %v2685
    %3754 = vmatpush1.bf16.msra.mxu0 %v2684
    %3755 = vmatprep.subr.bf16.mxu0 %v2693
    %3756 = vmatpush1.bf16.msra.mxu0 %v2692
    %3757 = vmatprep.subr.bf16.mxu0 %v2701
    %3758 = vmatpush1.bf16.msra.mxu0 %v2700
    %3759 = vmatprep.subr.bf16.mxu0 %v2709
    %3760 = vmatpush1.bf16.msra.mxu0 %v2708
    %3761 = vmatprep.subr.bf16.mxu0 %v2717
    %3762 = vmatpush1.bf16.msra.mxu0 %v2716
    %3763 = vmatprep.subr.bf16.mxu0 %v2725
    %3764 = vmatpush1.bf16.msra.mxu0 %v2724
    %3765 = vmatprep.subr.bf16.mxu0 %v2733
    %3766 = vmatpush1.bf16.msra.mxu0 %v2732
    %3767 = vmatprep.subr.bf16.mxu0 %v2741
    %3768 = vmatpush1.bf16.msra.mxu0 %v2740
    %3769 = vmatprep.subr.bf16.mxu0 %v2749
    %3770 = vmatpush1.bf16.msra.mxu0 %v2748
    %3771 = vmatprep.subr.bf16.mxu0 %v2757
    %3772 = vmatpush1.bf16.msra.mxu0 %v2756
    %3773 = vmatprep.subr.bf16.mxu0 %v2765
    %3774 = vmatpush1.bf16.msra.mxu0 %v2764
    %3775 = vmatprep.subr.bf16.mxu0 %v2773
    %3776 = vmatpush1.bf16.msra.mxu0 %v2772
    %3777 = vmatprep.subr.bf16.mxu0 %v2781
    %3778 = vmatpush1.bf16.msra.mxu0 %v2780
    %3779 = vmatprep.mubr.bf16.mxu0 %v223
    %3780 = vmatmul.mubr.bf16.gmra.mrb[0].mxu0 %v222
    %v3781 = vpop.f32.mrb[0].mxu0
    %v3782 = vadd.f32 %v3741, %v3781
    %v3783 = vpop.f32.mrb[0].mxu0
    %v3784 = vadd.f32 %v3743, %v3783
    %v3785 = vpop.f32.mrb[0].mxu0
    %v3786 = vpop.f32.mrb[0].mxu0
    %3787 = vdwg.mxu0
    %3788 = vmatprep.subr.bf16.mxu0 %v2279
    %3789 = vmatpush1.bf16.msra.mxu0 %v2278
    %3790 = vmatprep.subr.bf16.mxu0 %v2287
    %3791 = vmatpush1.bf16.msra.mxu0 %v2286
    %3792 = vmatprep.subr.bf16.mxu0 %v2295
    %3793 = vmatpush1.bf16.msra.mxu0 %v2294
    %3794 = vmatprep.subr.bf16.mxu0 %v2303
    %3795 = vmatpush1.bf16.msra.mxu0 %v2302
    %3796 = vmatprep.subr.bf16.mxu0 %v2311
    %3797 = vmatpush1.bf16.msra.mxu0 %v2310
    %3798 = vmatprep.subr.bf16.mxu0 %v2319
    %3799 = vmatpush1.bf16.msra.mxu0 %v2318
    %3800 = vmatprep.subr.bf16.mxu0 %v2327
    %3801 = vmatpush1.bf16.msra.mxu0 %v2326
    %3802 = vmatprep.subr.bf16.mxu0 %v2335
    %3803 = vmatpush1.bf16.msra.mxu0 %v2334
    %3804 = vmatprep.subr.bf16.mxu0 %v2343
    %3805 = vmatpush1.bf16.msra.mxu0 %v2342
    %3806 = vmatprep.subr.bf16.mxu0 %v2351
    %3807 = vmatpush1.bf16.msra.mxu0 %v2350
    %3808 = vmatprep.subr.bf16.mxu0 %v2359
    %3809 = vmatpush1.bf16.msra.mxu0 %v2358
    %3810 = vmatprep.subr.bf16.mxu0 %v2367
    %3811 = vmatpush1.bf16.msra.mxu0 %v2366
    %3812 = vmatprep.subr.bf16.mxu0 %v2375
    %3813 = vmatpush1.bf16.msra.mxu0 %v2374
    %3814 = vmatprep.subr.bf16.mxu0 %v2383
    %3815 = vmatpush1.bf16.msra.mxu0 %v2382
    %3816 = vmatprep.subr.bf16.mxu0 %v2391
    %3817 = vmatpush1.bf16.msra.mxu0 %v2390
    %3818 = vmatprep.subr.bf16.mxu0 %v2399
    %3819 = vmatpush1.bf16.msra.mxu0 %v2398
    %3820 = vmatprep.mubr.bf16.mxu0 %v217
    %3821 = vmatmul.mubr.bf16.gmra.mrb[0].mxu0 %v216
    %v3822 = vpop.f32.mrb[0].mxu0
    %v3823 = vadd.f32 0.0, %v3822
    %v3824 = vpop.f32.mrb[0].mxu0
    %v3825 = vadd.f32 0.0, %v3824
    %v3826 = vpop.f32.mrb[0].mxu0
    %v3827 = vpop.f32.mrb[0].mxu0
    %3828 = vdwg.mxu0
    %3829 = vmatprep.subr.bf16.mxu0 %v2407
    %3830 = vmatpush1.bf16.msra.mxu0 %v2406
    %3831 = vmatprep.subr.bf16.mxu0 %v2415
    %3832 = vmatpush1.bf16.msra.mxu0 %v2414
    %3833 = vmatprep.subr.bf16.mxu0 %v2423
    %3834 = vmatpush1.bf16.msra.mxu0 %v2422
    %3835 = vmatprep.subr.bf16.mxu0 %v2431
    %3836 = vmatpush1.bf16.msra.mxu0 %v2430
    %3837 = vmatprep.subr.bf16.mxu0 %v2439
    %3838 = vmatpush1.bf16.msra.mxu0 %v2438
    %3839 = vmatprep.subr.bf16.mxu0 %v2447
    %3840 = vmatpush1.bf16.msra.mxu0 %v2446
    %3841 = vmatprep.subr.bf16.mxu0 %v2455
    %3842 = vmatpush1.bf16.msra.mxu0 %v2454
    %3843 = vmatprep.subr.bf16.mxu0 %v2463
    %3844 = vmatpush1.bf16.msra.mxu0 %v2462
    %3845 = vmatprep.subr.bf16.mxu0 %v2471
    %3846 = vmatpush1.bf16.msra.mxu0 %v2470
    %3847 = vmatprep.subr.bf16.mxu0 %v2479
    %3848 = vmatpush1.bf16.msra.mxu0 %v2478
    %3849 = vmatprep.subr.bf16.mxu0 %v2487
    %3850 = vmatpush1.bf16.msra.mxu0 %v2486
    %3851 = vmatprep.subr.bf16.mxu0 %v2495
    %3852 = vmatpush1.bf16.msra.mxu0 %v2494
    %3853 = vmatprep.subr.bf16.mxu0 %v2503
    %3854 = vmatpush1.bf16.msra.mxu0 %v2502
    %3855 = vmatprep.subr.bf16.mxu0 %v2511
    %3856 = vmatpush1.bf16.msra.mxu0 %v2510
    %3857 = vmatprep.subr.bf16.mxu0 %v2519
    %3858 = vmatpush1.bf16.msra.mxu0 %v2518
    %3859 = vmatprep.subr.bf16.mxu0 %v2527
    %3860 = vmatpush1.bf16.msra.mxu0 %v2526
    %3861 = vmatprep.mubr.bf16.mxu0 %v219
    %3862 = vmatmul.mubr.bf16.gmra.mrb[0].mxu0 %v218
    %v3863 = vpop.f32.mrb[0].mxu0
    %v3864 = vadd.f32 %v3823, %v3863
    %v3865 = vpop.f32.mrb[0].mxu0
    %v3866 = vadd.f32 %v3825, %v3865
    %v3867 = vpop.f32.mrb[0].mxu0
    %v3868 = vpop.f32.mrb[0].mxu0
    %3869 = vdwg.mxu0
    %3870 = vmatprep.subr.bf16.mxu0 %v2535
    %3871 = vmatpush1.bf16.msra.mxu0 %v2534
    %3872 = vmatprep.subr.bf16.mxu0 %v2543
    %3873 = vmatpush1.bf16.msra.mxu0 %v2542
    %3874 = vmatprep.subr.bf16.mxu0 %v2551
    %3875 = vmatpush1.bf16.msra.mxu0 %v2550
    %3876 = vmatprep.subr.bf16.mxu0 %v2559
    %3877 = vmatpush1.bf16.msra.mxu0 %v2558
    %3878 = vmatprep.subr.bf16.mxu0 %v2567
    %3879 = vmatpush1.bf16.msra.mxu0 %v2566
    %3880 = vmatprep.subr.bf16.mxu0 %v2575
    %3881 = vmatpush1.bf16.msra.mxu0 %v2574
    %3882 = vmatprep.subr.bf16.mxu0 %v2583
    %3883 = vmatpush1.bf16.msra.mxu0 %v2582
    %3884 = vmatprep.subr.bf16.mxu0 %v2591
    %3885 = vmatpush1.bf16.msra.mxu0 %v2590
    %3886 = vmatprep.subr.bf16.mxu0 %v2599
    %3887 = vmatpush1.bf16.msra.mxu0 %v2598
    %3888 = vmatprep.subr.bf16.mxu0 %v2607
    %3889 = vmatpush1.bf16.msra.mxu0 %v2606
    %3890 = vmatprep.subr.bf16.mxu0 %v2615
    %3891 = vmatpush1.bf16.msra.mxu0 %v2614
    %3892 = vmatprep.subr.bf16.mxu0 %v2623
    %3893 = vmatpush1.bf16.msra.mxu0 %v2622
    %3894 = vmatprep.subr.bf16.mxu0 %v2631
    %3895 = vmatpush1.bf16.msra.mxu0 %v2630
    %3896 = vmatprep.subr.bf16.mxu0 %v2639
    %3897 = vmatpush1.bf16.msra.mxu0 %v2638
    %3898 = vmatprep.subr.bf16.mxu0 %v2647
    %3899 = vmatpush1.bf16.msra.mxu0 %v2646
    %3900 = vmatprep.subr.bf16.mxu0 %v2655
    %3901 = vmatpush1.bf16.msra.mxu0 %v2654
    %3902 = vmatprep.mubr.bf16.mxu0 %v221
    %3903 = vmatmul.mubr.bf16.gmra.mrb[0].mxu0 %v220
    %v3904 = vpop.f32.mrb[0].mxu0
    %v3905 = vadd.f32 %v3864, %v3904
    %v3906 = vpop.f32.mrb[0].mxu0
    %v3907 = vadd.f32 %v3866, %v3906
    %v3908 = vpop.f32.mrb[0].mxu0
    %v3909 = vpop.f32.mrb[0].mxu0
    %3910 = vdwg.mxu0
    %3911 = vmatprep.subr.bf16.mxu0 %v2663
    %3912 = vmatpush1.bf16.msra.mxu0 %v2662
    %3913 = vmatprep.subr.bf16.mxu0 %v2671
    %3914 = vmatpush1.bf16.msra.mxu0 %v2670
    %3915 = vmatprep.subr.bf16.mxu0 %v2679
    %3916 = vmatpush1.bf16.msra.mxu0 %v2678
    %3917 = vmatprep.subr.bf16.mxu0 %v2687
    %3918 = vmatpush1.bf16.msra.mxu0 %v2686
    %3919 = vmatprep.subr.bf16.mxu0 %v2695
    %3920 = vmatpush1.bf16.msra.mxu0 %v2694
    %3921 = vmatprep.subr.bf16.mxu0 %v2703
    %3922 = vmatpush1.bf16.msra.mxu0 %v2702
    %3923 = vmatprep.subr.bf16.mxu0 %v2711
    %3924 = vmatpush1.bf16.msra.mxu0 %v2710
    %3925 = vmatprep.subr.bf16.mxu0 %v2719
    %3926 = vmatpush1.bf16.msra.mxu0 %v2718
    %3927 = vmatprep.subr.bf16.mxu0 %v2727
    %3928 = vmatpush1.bf16.msra.mxu0 %v2726
    %3929 = vmatprep.subr.bf16.mxu0 %v2735
    %3930 = vmatpush1.bf16.msra.mxu0 %v2734
    %3931 = vmatprep.subr.bf16.mxu0 %v2743
    %3932 = vmatpush1.bf16.msra.mxu0 %v2742
    %3933 = vmatprep.subr.bf16.mxu0 %v2751
    %3934 = vmatpush1.bf16.msra.mxu0 %v2750
    %3935 = vmatprep.subr.bf16.mxu0 %v2759
    %3936 = vmatpush1.bf16.msra.mxu0 %v2758
    %3937 = vmatprep.subr.bf16.mxu0 %v2767
    %3938 = vmatpush1.bf16.msra.mxu0 %v2766
    %3939 = vmatprep.subr.bf16.mxu0 %v2775
    %3940 = vmatpush1.bf16.msra.mxu0 %v2774
    %3941 = vmatprep.subr.bf16.mxu0 %v2783
    %3942 = vmatpush1.bf16.msra.mxu0 %v2782
    %3943 = vmatprep.mubr.bf16.mxu0 %v223
    %3944 = vmatmul.mubr.bf16.gmra.mrb[0].mxu0 %v222
    %v3945 = vpop.f32.mrb[0].mxu0
    %v3946 = vadd.f32 %v3905, %v3945
    %v3947 = vpop.f32.mrb[0].mxu0
    %v3948 = vadd.f32 %v3907, %v3947
    %v3949 = vpop.f32.mrb[0].mxu0
    %v3950 = vpop.f32.mrb[0].mxu0
    %3951 = vdwg.mxu0
    %vm3952 = vcmask 1041408
    %v3953 = vsel %vm3952, %v3454, 0.0
    %v3954 = vrot.slane %v3953, 4
    %v3955 = vadd.f32 %v3953, %v3954
    %v3956 = vrot.slane %v3955, 2
    %v3957 = vadd.f32 %v3955, %v3956
    %v3958 = vrot.slane %v3957, 1
    %v3959 = vadd.f32 %v3957, %v3958
    %v3960 = vsel %vm3952, %v3456, 0.0
    %v3961 = vrot.slane %v3960, 4
    %v3962 = vadd.f32 %v3960, %v3961
    %v3963 = vrot.slane %v3962, 2
    %v3964 = vadd.f32 %v3962, %v3963
    %v3965 = vrot.slane %v3964, 1
    %v3966 = vadd.f32 %v3964, %v3965
    %v3967 = vsel %vm3952, %v3618, 0.0
    %v3968 = vrot.slane %v3967, 4
    %v3969 = vadd.f32 %v3967, %v3968
    %v3970 = vrot.slane %v3969, 2
    %v3971 = vadd.f32 %v3969, %v3970
    %v3972 = vrot.slane %v3971, 1
    %v3973 = vadd.f32 %v3971, %v3972
    %v3974 = vsel %vm3952, %v3620, 0.0
    %v3975 = vrot.slane %v3974, 4
    %v3976 = vadd.f32 %v3974, %v3975
    %v3977 = vrot.slane %v3976, 2
    %v3978 = vadd.f32 %v3976, %v3977
    %v3979 = vrot.slane %v3978, 1
    %v3980 = vadd.f32 %v3978, %v3979
    %v3981 = vsel %vm3952, %v3782, 0.0
    %v3982 = vrot.slane %v3981, 4
    %v3983 = vadd.f32 %v3981, %v3982
    %v3984 = vrot.slane %v3983, 2
    %v3985 = vadd.f32 %v3983, %v3984
    %v3986 = vrot.slane %v3985, 1
    %v3987 = vadd.f32 %v3985, %v3986
    %v3988 = vsel %vm3952, %v3784, 0.0
    %v3989 = vrot.slane %v3988, 4
    %v3990 = vadd.f32 %v3988, %v3989
    %v3991 = vrot.slane %v3990, 2
    %v3992 = vadd.f32 %v3990, %v3991
    %v3993 = vrot.slane %v3992, 1
    %v3994 = vadd.f32 %v3992, %v3993
    %v3995 = vsel %vm3952, %v3946, 0.0
    %v3996 = vrot.slane %v3995, 4
    %v3997 = vadd.f32 %v3995, %v3996
    %v3998 = vrot.slane %v3997, 2
    %v3999 = vadd.f32 %v3997, %v3998
    %v4000 = vrot.slane %v3999, 1
    %v4001 = vadd.f32 %v3999, %v4000
    %v4002 = vsel %vm3952, %v3948, 0.0
    %v4003 = vrot.slane %v4002, 4
    %v4004 = vadd.f32 %v4002, %v4003
    %v4005 = vrot.slane %v4004, 2
    %v4006 = vadd.f32 %v4004, %v4005
    %v4007 = vrot.slane %v4006, 1
    %v4008 = vadd.f32 %v4006, %v4007
    %v4009 = vmul.f32 %v3454, %v3454
    %v4010 = vmul.f32 %v3456, %v3456
    %v4011 = vmul.f32 %v3618, %v3618
    %v4012 = vmul.f32 %v3620, %v3620
    %v4013 = vmul.f32 %v3782, %v3782
    %v4014 = vmul.f32 %v3784, %v3784
    %v4015 = vmul.f32 %v3946, %v3946
    %v4016 = vmul.f32 %v3948, %v3948
    %v4017 = vsel %vm3952, %v4009, 0.0
    %v4018 = vrot.slane %v4017, 4
    %v4019 = vadd.f32 %v4017, %v4018
    %v4020 = vrot.slane %v4019, 2
    %v4021 = vadd.f32 %v4019, %v4020
    %v4022 = vrot.slane %v4021, 1
    %v4023 = vadd.f32 %v4021, %v4022
    %v4024 = vsel %vm3952, %v4010, 0.0
    %v4025 = vrot.slane %v4024, 4
    %v4026 = vadd.f32 %v4024, %v4025
    %v4027 = vrot.slane %v4026, 2
    %v4028 = vadd.f32 %v4026, %v4027
    %v4029 = vrot.slane %v4028, 1
    %v4030 = vadd.f32 %v4028, %v4029
    %v4031 = vsel %vm3952, %v4011, 0.0
    %v4032 = vrot.slane %v4031, 4
    %v4033 = vadd.f32 %v4031, %v4032
    %v4034 = vrot.slane %v4033, 2
    %v4035 = vadd.f32 %v4033, %v4034
    %v4036 = vrot.slane %v4035, 1
    %v4037 = vadd.f32 %v4035, %v4036
    %v4038 = vsel %vm3952, %v4012, 0.0
    %v4039 = vrot.slane %v4038, 4
    %v4040 = vadd.f32 %v4038, %v4039
    %v4041 = vrot.slane %v4040, 2
    %v4042 = vadd.f32 %v4040, %v4041
    %v4043 = vrot.slane %v4042, 1
    %v4044 = vadd.f32 %v4042, %v4043
    %v4045 = vsel %vm3952, %v4013, 0.0
    %v4046 = vrot.slane %v4045, 4
    %v4047 = vadd.f32 %v4045, %v4046
    %v4048 = vrot.slane %v4047, 2
    %v4049 = vadd.f32 %v4047, %v4048
    %v4050 = vrot.slane %v4049, 1
    %v4051 = vadd.f32 %v4049, %v4050
    %v4052 = vsel %vm3952, %v4014, 0.0
    %v4053 = vrot.slane %v4052, 4
    %v4054 = vadd.f32 %v4052, %v4053
    %v4055 = vrot.slane %v4054, 2
    %v4056 = vadd.f32 %v4054, %v4055
    %v4057 = vrot.slane %v4056, 1
    %v4058 = vadd.f32 %v4056, %v4057
    %v4059 = vsel %vm3952, %v4015, 0.0
    %v4060 = vrot.slane %v4059, 4
    %v4061 = vadd.f32 %v4059, %v4060
    %v4062 = vrot.slane %v4061, 2
    %v4063 = vadd.f32 %v4061, %v4062
    %v4064 = vrot.slane %v4063, 1
    %v4065 = vadd.f32 %v4063, %v4064
    %v4066 = vsel %vm3952, %v4016, 0.0
    %v4067 = vrot.slane %v4066, 4
    %v4068 = vadd.f32 %v4066, %v4067
    %v4069 = vrot.slane %v4068, 2
    %v4070 = vadd.f32 %v4068, %v4069
    %v4071 = vrot.slane %v4070, 1
    %v4072 = vadd.f32 %v4070, %v4071
    %v4073 = vld [vmem:[%s2] sm:$0xff]
    %v4074 = vld [vmem:[%s2 + $0x8] sm:$0xff]
    %v4075 = vld [vmem:[%s2 + $0x10] sm:$0xff]
    %v4076 = vld [vmem:[%s2 + $0x18] sm:$0xff]
    %v4077 = vld [vmem:[%s2 + $0x20] sm:$0xff]
    %v4078 = vld [vmem:[%s2 + $0x28] sm:$0xff]
    %v4079 = vld [vmem:[%s2 + $0x30] sm:$0xff]
    %v4080 = vld [vmem:[%s2 + $0x38] sm:$0xff]
    %v4081 = vld [vmem:[%s2 + $0x40] sm:$0xff]
    %v4082 = vld [vmem:[%s2 + $0x48] sm:$0xff]
    %v4083 = vld [vmem:[%s2 + $0x50] sm:$0xff]
    %v4084 = vld [vmem:[%s2 + $0x58] sm:$0xff]
    %v4085 = vld [vmem:[%s2 + $0x60] sm:$0xff]
    %v4086 = vld [vmem:[%s2 + $0x68] sm:$0xff]
    %v4087 = vld [vmem:[%s2 + $0x70] sm:$0xff]
    %v4088 = vld [vmem:[%s2 + $0x78] sm:$0xff]
    %v4089 = vld [vmem:[%s2 + $0x80] sm:$0xff]
    %v4090 = vld [vmem:[%s2 + $0x88] sm:$0xff]
    %v4091 = vld [vmem:[%s2 + $0x90] sm:$0xff]
    %v4092 = vld [vmem:[%s2 + $0x98] sm:$0xff]
    %v4093 = vld [vmem:[%s2 + $0xa0] sm:$0xff]
    %v4094 = vld [vmem:[%s2 + $0xa8] sm:$0xff]
    %v4095 = vld [vmem:[%s2 + $0xb0] sm:$0xff]
    %v4096 = vld [vmem:[%s2 + $0xb8] sm:$0xff]
    %v4097 = vld [vmem:[%s2 + $0xc0] sm:$0xff]
    %v4098 = vld [vmem:[%s2 + $0xc8] sm:$0xff]
    %v4099 = vld [vmem:[%s2 + $0xd0] sm:$0xff]
    %v4100 = vld [vmem:[%s2 + $0xd8] sm:$0xff]
    %v4101 = vld [vmem:[%s2 + $0xe0] sm:$0xff]
    %v4102 = vld [vmem:[%s2 + $0xe8] sm:$0xff]
    %v4103 = vld [vmem:[%s2 + $0xf0] sm:$0xff]
    %v4104 = vld [vmem:[%s2 + $0xf8] sm:$0xff]
    %v4105 = vld [vmem:[%s2 + $0x100] sm:$0xff]
    %v4106 = vld [vmem:[%s2 + $0x108] sm:$0xff]
    %v4107 = vld [vmem:[%s2 + $0x110] sm:$0xff]
    %v4108 = vld [vmem:[%s2 + $0x118] sm:$0xff]
    %v4109 = vld [vmem:[%s2 + $0x120] sm:$0xff]
    %v4110 = vld [vmem:[%s2 + $0x128] sm:$0xff]
    %v4111 = vld [vmem:[%s2 + $0x130] sm:$0xff]
    %v4112 = vld [vmem:[%s2 + $0x138] sm:$0xff]
    %v4113 = vld [vmem:[%s2 + $0x140] sm:$0xff]
    %v4114 = vld [vmem:[%s2 + $0x148] sm:$0xff]
    %v4115 = vld [vmem:[%s2 + $0x150] sm:$0xff]
    %v4116 = vld [vmem:[%s2 + $0x158] sm:$0xff]
    %v4117 = vld [vmem:[%s2 + $0x160] sm:$0xff]
    %v4118 = vld [vmem:[%s2 + $0x168] sm:$0xff]
    %v4119 = vld [vmem:[%s2 + $0x170] sm:$0xff]
    %v4120 = vld [vmem:[%s2 + $0x178] sm:$0xff]
    %v4121 = vld [vmem:[%s2 + $0x180] sm:$0xff]
    %v4122 = vld [vmem:[%s2 + $0x188] sm:$0xff]
    %v4123 = vld [vmem:[%s2 + $0x190] sm:$0xff]
    %v4124 = vld [vmem:[%s2 + $0x198] sm:$0xff]
    %v4125 = vld [vmem:[%s2 + $0x1a0] sm:$0xff]
    %v4126 = vld [vmem:[%s2 + $0x1a8] sm:$0xff]
    %v4127 = vld [vmem:[%s2 + $0x1b0] sm:$0xff]
    %v4128 = vld [vmem:[%s2 + $0x1b8] sm:$0xff]
    %v4129 = vld [vmem:[%s2 + $0x1c0] sm:$0xff]
    %v4130 = vld [vmem:[%s2 + $0x1c8] sm:$0xff]
    %v4131 = vld [vmem:[%s2 + $0x1d0] sm:$0xff]
    %v4132 = vld [vmem:[%s2 + $0x1d8] sm:$0xff]
    %v4133 = vld [vmem:[%s2 + $0x1e0] sm:$0xff]
    %v4134 = vld [vmem:[%s2 + $0x1e8] sm:$0xff]
    %v4135 = vld [vmem:[%s2 + $0x1f0] sm:$0xff]
    %v4136 = vld [vmem:[%s2 + $0x1f8] sm:$0xff]
    %v4137 = vld [vmem:[%s2 + $0x200] sm:$0xff]
    %v4138 = vld [vmem:[%s2 + $0x208] sm:$0xff]
    %v4139 = vld [vmem:[%s2 + $0x210] sm:$0xff]
    %v4140 = vld [vmem:[%s2 + $0x218] sm:$0xff]
    %v4141 = vld [vmem:[%s2 + $0x220] sm:$0xff]
    %v4142 = vld [vmem:[%s2 + $0x228] sm:$0xff]
    %v4143 = vld [vmem:[%s2 + $0x230] sm:$0xff]
    %v4144 = vld [vmem:[%s2 + $0x238] sm:$0xff]
    %v4145 = vld [vmem:[%s2 + $0x240] sm:$0xff]
    %v4146 = vld [vmem:[%s2 + $0x248] sm:$0xff]
    %v4147 = vld [vmem:[%s2 + $0x250] sm:$0xff]
    %v4148 = vld [vmem:[%s2 + $0x258] sm:$0xff]
    %v4149 = vld [vmem:[%s2 + $0x260] sm:$0xff]
    %v4150 = vld [vmem:[%s2 + $0x268] sm:$0xff]
    %v4151 = vld [vmem:[%s2 + $0x270] sm:$0xff]
    %v4152 = vld [vmem:[%s2 + $0x278] sm:$0xff]
    %v4153 = vld [vmem:[%s2 + $0x280] sm:$0xff]
    %v4154 = vld [vmem:[%s2 + $0x288] sm:$0xff]
    %v4155 = vld [vmem:[%s2 + $0x290] sm:$0xff]
    %v4156 = vld [vmem:[%s2 + $0x298] sm:$0xff]
    %v4157 = vld [vmem:[%s2 + $0x2a0] sm:$0xff]
    %v4158 = vld [vmem:[%s2 + $0x2a8] sm:$0xff]
    %v4159 = vld [vmem:[%s2 + $0x2b0] sm:$0xff]
    %v4160 = vld [vmem:[%s2 + $0x2b8] sm:$0xff]
    %v4161 = vld [vmem:[%s2 + $0x2c0] sm:$0xff]
    %v4162 = vld [vmem:[%s2 + $0x2c8] sm:$0xff]
    %v4163 = vld [vmem:[%s2 + $0x2d0] sm:$0xff]
    %v4164 = vld [vmem:[%s2 + $0x2d8] sm:$0xff]
    %v4165 = vld [vmem:[%s2 + $0x2e0] sm:$0xff]
    %v4166 = vld [vmem:[%s2 + $0x2e8] sm:$0xff]
    %v4167 = vld [vmem:[%s2 + $0x2f0] sm:$0xff]
    %v4168 = vld [vmem:[%s2 + $0x2f8] sm:$0xff]
    %v4169 = vld [vmem:[%s2 + $0x300] sm:$0xff]
    %v4170 = vld [vmem:[%s2 + $0x308] sm:$0xff]
    %v4171 = vld [vmem:[%s2 + $0x310] sm:$0xff]
    %v4172 = vld [vmem:[%s2 + $0x318] sm:$0xff]
    %v4173 = vld [vmem:[%s2 + $0x320] sm:$0xff]
    %v4174 = vld [vmem:[%s2 + $0x328] sm:$0xff]
    %v4175 = vld [vmem:[%s2 + $0x330] sm:$0xff]
    %v4176 = vld [vmem:[%s2 + $0x338] sm:$0xff]
    %v4177 = vld [vmem:[%s2 + $0x340] sm:$0xff]
    %v4178 = vld [vmem:[%s2 + $0x348] sm:$0xff]
    %v4179 = vld [vmem:[%s2 + $0x350] sm:$0xff]
    %v4180 = vld [vmem:[%s2 + $0x358] sm:$0xff]
    %v4181 = vld [vmem:[%s2 + $0x360] sm:$0xff]
    %v4182 = vld [vmem:[%s2 + $0x368] sm:$0xff]
    %v4183 = vld [vmem:[%s2 + $0x370] sm:$0xff]
    %v4184 = vld [vmem:[%s2 + $0x378] sm:$0xff]
    %v4185 = vld [vmem:[%s2 + $0x380] sm:$0xff]
    %v4186 = vld [vmem:[%s2 + $0x388] sm:$0xff]
    %v4187 = vld [vmem:[%s2 + $0x390] sm:$0xff]
    %v4188 = vld [vmem:[%s2 + $0x398] sm:$0xff]
    %v4189 = vld [vmem:[%s2 + $0x3a0] sm:$0xff]
    %v4190 = vld [vmem:[%s2 + $0x3a8] sm:$0xff]
    %v4191 = vld [vmem:[%s2 + $0x3b0] sm:$0xff]
    %v4192 = vld [vmem:[%s2 + $0x3b8] sm:$0xff]
    %v4193 = vld [vmem:[%s2 + $0x3c0] sm:$0xff]
    %v4194 = vld [vmem:[%s2 + $0x3c8] sm:$0xff]
    %v4195 = vld [vmem:[%s2 + $0x3d0] sm:$0xff]
    %v4196 = vld [vmem:[%s2 + $0x3d8] sm:$0xff]
    %v4197 = vld [vmem:[%s2 + $0x3e0] sm:$0xff]
    %v4198 = vld [vmem:[%s2 + $0x3e8] sm:$0xff]
    %v4199 = vld [vmem:[%s2 + $0x3f0] sm:$0xff]
    %v4200 = vld [vmem:[%s2 + $0x3f8] sm:$0xff]
    %4201 = vmatprep.subr.mxu0 0.0
    %4202 = vmatpush1.msra.mxu0 %v4073
    %4203 = vmatprep.subr.mxu0 0.0
    %4204 = vmatpush1.msra.mxu0 %v4074
    %4205 = vmatprep.subr.mxu0 0.0
    %4206 = vmatpush1.msra.mxu0 %v4075
    %4207 = vmatprep.subr.mxu0 0.0
    %4208 = vmatpush1.msra.mxu0 %v4076
    %4209 = vmatprep.subr.mxu0 0.0
    %4210 = vmatpush1.msra.mxu0 %v4077
    %4211 = vmatprep.subr.mxu0 0.0
    %4212 = vmatpush1.msra.mxu0 %v4078
    %4213 = vmatprep.subr.mxu0 0.0
    %4214 = vmatpush1.msra.mxu0 %v4079
    %4215 = vmatprep.subr.mxu0 0.0
    %4216 = vmatpush1.msra.mxu0 %v4080
    %4217 = vmatprep.subr.mxu0 0.0
    %4218 = vmatpush1.msra.mxu0 %v4081
    %4219 = vmatprep.subr.mxu0 0.0
    %4220 = vmatpush1.msra.mxu0 %v4082
    %4221 = vmatprep.subr.mxu0 0.0
    %4222 = vmatpush1.msra.mxu0 %v4083
    %4223 = vmatprep.subr.mxu0 0.0
    %4224 = vmatpush1.msra.mxu0 %v4084
    %4225 = vmatprep.subr.mxu0 0.0
    %4226 = vmatpush1.msra.mxu0 %v4085
    %4227 = vmatprep.subr.mxu0 0.0
    %4228 = vmatpush1.msra.mxu0 %v4086
    %4229 = vmatprep.subr.mxu0 0.0
    %4230 = vmatpush1.msra.mxu0 %v4087
    %4231 = vmatprep.subr.mxu0 0.0
    %4232 = vmatpush1.msra.mxu0 %v4088
    %4233 = vmatprep.subr.mxu0 0.0
    %4234 = vmatpush1.msra.mxu0 %v4089
    %4235 = vmatprep.subr.mxu0 0.0
    %4236 = vmatpush1.msra.mxu0 %v4090
    %4237 = vmatprep.subr.mxu0 0.0
    %4238 = vmatpush1.msra.mxu0 %v4091
    %4239 = vmatprep.subr.mxu0 0.0
    %4240 = vmatpush1.msra.mxu0 %v4092
    %4241 = vmatprep.subr.mxu0 0.0
    %4242 = vmatpush1.msra.mxu0 %v4093
    %4243 = vmatprep.subr.mxu0 0.0
    %4244 = vmatpush1.msra.mxu0 %v4094
    %4245 = vmatprep.subr.mxu0 0.0
    %4246 = vmatpush1.msra.mxu0 %v4095
    %4247 = vmatprep.subr.mxu0 0.0
    %4248 = vmatpush1.msra.mxu0 %v4096
    %4249 = vmatprep.subr.mxu0 0.0
    %4250 = vmatpush1.msra.mxu0 %v4097
    %4251 = vmatprep.subr.mxu0 0.0
    %4252 = vmatpush1.msra.mxu0 %v4098
    %4253 = vmatprep.subr.mxu0 0.0
    %4254 = vmatpush1.msra.mxu0 %v4099
    %4255 = vmatprep.subr.mxu0 0.0
    %4256 = vmatpush1.msra.mxu0 %v4100
    %4257 = vmatprep.subr.mxu0 0.0
    %4258 = vmatpush1.msra.mxu0 %v4101
    %4259 = vmatprep.subr.mxu0 0.0
    %4260 = vmatpush1.msra.mxu0 %v4102
    %4261 = vmatprep.subr.mxu0 0.0
    %4262 = vmatpush1.msra.mxu0 %v4103
    %4263 = vmatprep.subr.mxu0 0.0
    %4264 = vmatpush1.msra.mxu0 %v4104
    %4265 = vmatprep.mubr.f32.mxu0 %v3966
    %4266 = vmatmul.mubr.f32.gmra.mrb[0].mxu0 %v3959
    %v4267 = vpop.f32.mrb[0].mxu0
    %v4268 = vadd.f32 0.0, %v4267
    %v4269 = vpop.f32.mrb[0].mxu0
    %4270 = vdwg.mxu0
    %4271 = vmatprep.subr.mxu0 0.0
    %4272 = vmatpush1.msra.mxu0 %v4105
    %4273 = vmatprep.subr.mxu0 0.0
    %4274 = vmatpush1.msra.mxu0 %v4106
    %4275 = vmatprep.subr.mxu0 0.0
    %4276 = vmatpush1.msra.mxu0 %v4107
    %4277 = vmatprep.subr.mxu0 0.0
    %4278 = vmatpush1.msra.mxu0 %v4108
    %4279 = vmatprep.subr.mxu0 0.0
    %4280 = vmatpush1.msra.mxu0 %v4109
    %4281 = vmatprep.subr.mxu0 0.0
    %4282 = vmatpush1.msra.mxu0 %v4110
    %4283 = vmatprep.subr.mxu0 0.0
    %4284 = vmatpush1.msra.mxu0 %v4111
    %4285 = vmatprep.subr.mxu0 0.0
    %4286 = vmatpush1.msra.mxu0 %v4112
    %4287 = vmatprep.subr.mxu0 0.0
    %4288 = vmatpush1.msra.mxu0 %v4113
    %4289 = vmatprep.subr.mxu0 0.0
    %4290 = vmatpush1.msra.mxu0 %v4114
    %4291 = vmatprep.subr.mxu0 0.0
    %4292 = vmatpush1.msra.mxu0 %v4115
    %4293 = vmatprep.subr.mxu0 0.0
    %4294 = vmatpush1.msra.mxu0 %v4116
    %4295 = vmatprep.subr.mxu0 0.0
    %4296 = vmatpush1.msra.mxu0 %v4117
    %4297 = vmatprep.subr.mxu0 0.0
    %4298 = vmatpush1.msra.mxu0 %v4118
    %4299 = vmatprep.subr.mxu0 0.0
    %4300 = vmatpush1.msra.mxu0 %v4119
    %4301 = vmatprep.subr.mxu0 0.0
    %4302 = vmatpush1.msra.mxu0 %v4120
    %4303 = vmatprep.subr.mxu0 0.0
    %4304 = vmatpush1.msra.mxu0 %v4121
    %4305 = vmatprep.subr.mxu0 0.0
    %4306 = vmatpush1.msra.mxu0 %v4122
    %4307 = vmatprep.subr.mxu0 0.0
    %4308 = vmatpush1.msra.mxu0 %v4123
    %4309 = vmatprep.subr.mxu0 0.0
    %4310 = vmatpush1.msra.mxu0 %v4124
    %4311 = vmatprep.subr.mxu0 0.0
    %4312 = vmatpush1.msra.mxu0 %v4125
    %4313 = vmatprep.subr.mxu0 0.0
    %4314 = vmatpush1.msra.mxu0 %v4126
    %4315 = vmatprep.subr.mxu0 0.0
    %4316 = vmatpush1.msra.mxu0 %v4127
    %4317 = vmatprep.subr.mxu0 0.0
    %4318 = vmatpush1.msra.mxu0 %v4128
    %4319 = vmatprep.subr.mxu0 0.0
    %4320 = vmatpush1.msra.mxu0 %v4129
    %4321 = vmatprep.subr.mxu0 0.0
    %4322 = vmatpush1.msra.mxu0 %v4130
    %4323 = vmatprep.subr.mxu0 0.0
    %4324 = vmatpush1.msra.mxu0 %v4131
    %4325 = vmatprep.subr.mxu0 0.0
    %4326 = vmatpush1.msra.mxu0 %v4132
    %4327 = vmatprep.subr.mxu0 0.0
    %4328 = vmatpush1.msra.mxu0 %v4133
    %4329 = vmatprep.subr.mxu0 0.0
    %4330 = vmatpush1.msra.mxu0 %v4134
    %4331 = vmatprep.subr.mxu0 0.0
    %4332 = vmatpush1.msra.mxu0 %v4135
    %4333 = vmatprep.subr.mxu0 0.0
    %4334 = vmatpush1.msra.mxu0 %v4136
    %4335 = vmatprep.mubr.f32.mxu0 %v3980
    %4336 = vmatmul.mubr.f32.gmra.mrb[0].mxu0 %v3973
    %v4337 = vpop.f32.mrb[0].mxu0
    %v4338 = vadd.f32 %v4268, %v4337
    %v4339 = vpop.f32.mrb[0].mxu0
    %4340 = vdwg.mxu0
    %4341 = vmatprep.subr.mxu0 0.0
    %4342 = vmatpush1.msra.mxu0 %v4137
    %4343 = vmatprep.subr.mxu0 0.0
    %4344 = vmatpush1.msra.mxu0 %v4138
    %4345 = vmatprep.subr.mxu0 0.0
    %4346 = vmatpush1.msra.mxu0 %v4139
    %4347 = vmatprep.subr.mxu0 0.0
    %4348 = vmatpush1.msra.mxu0 %v4140
    %4349 = vmatprep.subr.mxu0 0.0
    %4350 = vmatpush1.msra.mxu0 %v4141
    %4351 = vmatprep.subr.mxu0 0.0
    %4352 = vmatpush1.msra.mxu0 %v4142
    %4353 = vmatprep.subr.mxu0 0.0
    %4354 = vmatpush1.msra.mxu0 %v4143
    %4355 = vmatprep.subr.mxu0 0.0
    %4356 = vmatpush1.msra.mxu0 %v4144
    %4357 = vmatprep.subr.mxu0 0.0
    %4358 = vmatpush1.msra.mxu0 %v4145
    %4359 = vmatprep.subr.mxu0 0.0
    %4360 = vmatpush1.msra.mxu0 %v4146
    %4361 = vmatprep.subr.mxu0 0.0
    %4362 = vmatpush1.msra.mxu0 %v4147
    %4363 = vmatprep.subr.mxu0 0.0
    %4364 = vmatpush1.msra.mxu0 %v4148
    %4365 = vmatprep.subr.mxu0 0.0
    %4366 = vmatpush1.msra.mxu0 %v4149
    %4367 = vmatprep.subr.mxu0 0.0
    %4368 = vmatpush1.msra.mxu0 %v4150
    %4369 = vmatprep.subr.mxu0 0.0
    %4370 = vmatpush1.msra.mxu0 %v4151
    %4371 = vmatprep.subr.mxu0 0.0
    %4372 = vmatpush1.msra.mxu0 %v4152
    %4373 = vmatprep.subr.mxu0 0.0
    %4374 = vmatpush1.msra.mxu0 %v4153
    %4375 = vmatprep.subr.mxu0 0.0
    %4376 = vmatpush1.msra.mxu0 %v4154
    %4377 = vmatprep.subr.mxu0 0.0
    %4378 = vmatpush1.msra.mxu0 %v4155
    %4379 = vmatprep.subr.mxu0 0.0
    %4380 = vmatpush1.msra.mxu0 %v4156
    %4381 = vmatprep.subr.mxu0 0.0
    %4382 = vmatpush1.msra.mxu0 %v4157
    %4383 = vmatprep.subr.mxu0 0.0
    %4384 = vmatpush1.msra.mxu0 %v4158
    %4385 = vmatprep.subr.mxu0 0.0
    %4386 = vmatpush1.msra.mxu0 %v4159
    %4387 = vmatprep.subr.mxu0 0.0
    %4388 = vmatpush1.msra.mxu0 %v4160
    %4389 = vmatprep.subr.mxu0 0.0
    %4390 = vmatpush1.msra.mxu0 %v4161
    %4391 = vmatprep.subr.mxu0 0.0
    %4392 = vmatpush1.msra.mxu0 %v4162
    %4393 = vmatprep.subr.mxu0 0.0
    %4394 = vmatpush1.msra.mxu0 %v4163
    %4395 = vmatprep.subr.mxu0 0.0
    %4396 = vmatpush1.msra.mxu0 %v4164
    %4397 = vmatprep.subr.mxu0 0.0
    %4398 = vmatpush1.msra.mxu0 %v4165
    %4399 = vmatprep.subr.mxu0 0.0
    %4400 = vmatpush1.msra.mxu0 %v4166
    %4401 = vmatprep.subr.mxu0 0.0
    %4402 = vmatpush1.msra.mxu0 %v4167
    %4403 = vmatprep.subr.mxu0 0.0
    %4404 = vmatpush1.msra.mxu0 %v4168
    %4405 = vmatprep.mubr.f32.mxu0 %v3994
    %4406 = vmatmul.mubr.f32.gmra.mrb[0].mxu0 %v3987
    %v4407 = vpop.f32.mrb[0].mxu0
    %v4408 = vadd.f32 %v4338, %v4407
    %v4409 = vpop.f32.mrb[0].mxu0
    %4410 = vdwg.mxu0
    %4411 = vmatprep.subr.mxu0 0.0
    %4412 = vmatpush1.msra.mxu0 %v4169
    %4413 = vmatprep.subr.mxu0 0.0
    %4414 = vmatpush1.msra.mxu0 %v4170
    %4415 = vmatprep.subr.mxu0 0.0
    %4416 = vmatpush1.msra.mxu0 %v4171
    %4417 = vmatprep.subr.mxu0 0.0
    %4418 = vmatpush1.msra.mxu0 %v4172
    %4419 = vmatprep.subr.mxu0 0.0
    %4420 = vmatpush1.msra.mxu0 %v4173
    %4421 = vmatprep.subr.mxu0 0.0
    %4422 = vmatpush1.msra.mxu0 %v4174
    %4423 = vmatprep.subr.mxu0 0.0
    %4424 = vmatpush1.msra.mxu0 %v4175
    %4425 = vmatprep.subr.mxu0 0.0
    %4426 = vmatpush1.msra.mxu0 %v4176
    %4427 = vmatprep.subr.mxu0 0.0
    %4428 = vmatpush1.msra.mxu0 %v4177
    %4429 = vmatprep.subr.mxu0 0.0
    %4430 = vmatpush1.msra.mxu0 %v4178
    %4431 = vmatprep.subr.mxu0 0.0
    %4432 = vmatpush1.msra.mxu0 %v4179
    %4433 = vmatprep.subr.mxu0 0.0
    %4434 = vmatpush1.msra.mxu0 %v4180
    %4435 = vmatprep.subr.mxu0 0.0
    %4436 = vmatpush1.msra.mxu0 %v4181
    %4437 = vmatprep.subr.mxu0 0.0
    %4438 = vmatpush1.msra.mxu0 %v4182
    %4439 = vmatprep.subr.mxu0 0.0
    %4440 = vmatpush1.msra.mxu0 %v4183
    %4441 = vmatprep.subr.mxu0 0.0
    %4442 = vmatpush1.msra.mxu0 %v4184
    %4443 = vmatprep.subr.mxu0 0.0
    %4444 = vmatpush1.msra.mxu0 %v4185
    %4445 = vmatprep.subr.mxu0 0.0
    %4446 = vmatpush1.msra.mxu0 %v4186
    %4447 = vmatprep.subr.mxu0 0.0
    %4448 = vmatpush1.msra.mxu0 %v4187
    %4449 = vmatprep.subr.mxu0 0.0
    %4450 = vmatpush1.msra.mxu0 %v4188
    %4451 = vmatprep.subr.mxu0 0.0
    %4452 = vmatpush1.msra.mxu0 %v4189
    %4453 = vmatprep.subr.mxu0 0.0
    %4454 = vmatpush1.msra.mxu0 %v4190
    %4455 = vmatprep.subr.mxu0 0.0
    %4456 = vmatpush1.msra.mxu0 %v4191
    %4457 = vmatprep.subr.mxu0 0.0
    %4458 = vmatpush1.msra.mxu0 %v4192
    %4459 = vmatprep.subr.mxu0 0.0
    %4460 = vmatpush1.msra.mxu0 %v4193
    %4461 = vmatprep.subr.mxu0 0.0
    %4462 = vmatpush1.msra.mxu0 %v4194
    %4463 = vmatprep.subr.mxu0 0.0
    %4464 = vmatpush1.msra.mxu0 %v4195
    %4465 = vmatprep.subr.mxu0 0.0
    %4466 = vmatpush1.msra.mxu0 %v4196
    %4467 = vmatprep.subr.mxu0 0.0
    %4468 = vmatpush1.msra.mxu0 %v4197
    %4469 = vmatprep.subr.mxu0 0.0
    %4470 = vmatpush1.msra.mxu0 %v4198
    %4471 = vmatprep.subr.mxu0 0.0
    %4472 = vmatpush1.msra.mxu0 %v4199
    %4473 = vmatprep.subr.mxu0 0.0
    %4474 = vmatpush1.msra.mxu0 %v4200
    %4475 = vmatprep.mubr.f32.mxu0 %v4008
    %4476 = vmatmul.mubr.f32.gmra.mrb[0].mxu0 %v4001
    %v4477 = vpop.f32.mrb[0].mxu0
    %v4478 = vadd.f32 %v4408, %v4477
    %v4479 = vpop.f32.mrb[0].mxu0
    %4480 = vdwg.mxu0
    %v4481 = vmul.f32 %v4478, 0.0078125
    %4482 = vmatprep.subr.mxu0 0.0
    %4483 = vmatpush1.msra.mxu0 %v4073
    %4484 = vmatprep.subr.mxu0 0.0
    %4485 = vmatpush1.msra.mxu0 %v4074
    %4486 = vmatprep.subr.mxu0 0.0
    %4487 = vmatpush1.msra.mxu0 %v4075
    %4488 = vmatprep.subr.mxu0 0.0
    %4489 = vmatpush1.msra.mxu0 %v4076
    %4490 = vmatprep.subr.mxu0 0.0
    %4491 = vmatpush1.msra.mxu0 %v4077
    %4492 = vmatprep.subr.mxu0 0.0
    %4493 = vmatpush1.msra.mxu0 %v4078
    %4494 = vmatprep.subr.mxu0 0.0
    %4495 = vmatpush1.msra.mxu0 %v4079
    %4496 = vmatprep.subr.mxu0 0.0
    %4497 = vmatpush1.msra.mxu0 %v4080
    %4498 = vmatprep.subr.mxu0 0.0
    %4499 = vmatpush1.msra.mxu0 %v4081
    %4500 = vmatprep.subr.mxu0 0.0
    %4501 = vmatpush1.msra.mxu0 %v4082
    %4502 = vmatprep.subr.mxu0 0.0
    %4503 = vmatpush1.msra.mxu0 %v4083
    %4504 = vmatprep.subr.mxu0 0.0
    %4505 = vmatpush1.msra.mxu0 %v4084
    %4506 = vmatprep.subr.mxu0 0.0
    %4507 = vmatpush1.msra.mxu0 %v4085
    %4508 = vmatprep.subr.mxu0 0.0
    %4509 = vmatpush1.msra.mxu0 %v4086
    %4510 = vmatprep.subr.mxu0 0.0
    %4511 = vmatpush1.msra.mxu0 %v4087
    %4512 = vmatprep.subr.mxu0 0.0
    %4513 = vmatpush1.msra.mxu0 %v4088
    %4514 = vmatprep.subr.mxu0 0.0
    %4515 = vmatpush1.msra.mxu0 %v4089
    %4516 = vmatprep.subr.mxu0 0.0
    %4517 = vmatpush1.msra.mxu0 %v4090
    %4518 = vmatprep.subr.mxu0 0.0
    %4519 = vmatpush1.msra.mxu0 %v4091
    %4520 = vmatprep.subr.mxu0 0.0
    %4521 = vmatpush1.msra.mxu0 %v4092
    %4522 = vmatprep.subr.mxu0 0.0
    %4523 = vmatpush1.msra.mxu0 %v4093
    %4524 = vmatprep.subr.mxu0 0.0
    %4525 = vmatpush1.msra.mxu0 %v4094
    %4526 = vmatprep.subr.mxu0 0.0
    %4527 = vmatpush1.msra.mxu0 %v4095
    %4528 = vmatprep.subr.mxu0 0.0
    %4529 = vmatpush1.msra.mxu0 %v4096
    %4530 = vmatprep.subr.mxu0 0.0
    %4531 = vmatpush1.msra.mxu0 %v4097
    %4532 = vmatprep.subr.mxu0 0.0
    %4533 = vmatpush1.msra.mxu0 %v4098
    %4534 = vmatprep.subr.mxu0 0.0
    %4535 = vmatpush1.msra.mxu0 %v4099
    %4536 = vmatprep.subr.mxu0 0.0
    %4537 = vmatpush1.msra.mxu0 %v4100
    %4538 = vmatprep.subr.mxu0 0.0
    %4539 = vmatpush1.msra.mxu0 %v4101
    %4540 = vmatprep.subr.mxu0 0.0
    %4541 = vmatpush1.msra.mxu0 %v4102
    %4542 = vmatprep.subr.mxu0 0.0
    %4543 = vmatpush1.msra.mxu0 %v4103
    %4544 = vmatprep.subr.mxu0 0.0
    %4545 = vmatpush1.msra.mxu0 %v4104
    %4546 = vmatprep.mubr.f32.mxu0 %v4030
    %4547 = vmatmul.mubr.f32.gmra.mrb[0].mxu0 %v4023
    %v4548 = vpop.f32.mrb[0].mxu0
    %v4549 = vadd.f32 0.0, %v4548
    %v4550 = vpop.f32.mrb[0].mxu0
    %4551 = vdwg.mxu0
    %4552 = vmatprep.subr.mxu0 0.0
    %4553 = vmatpush1.msra.mxu0 %v4105
    %4554 = vmatprep.subr.mxu0 0.0
    %4555 = vmatpush1.msra.mxu0 %v4106
    %4556 = vmatprep.subr.mxu0 0.0
    %4557 = vmatpush1.msra.mxu0 %v4107
    %4558 = vmatprep.subr.mxu0 0.0
    %4559 = vmatpush1.msra.mxu0 %v4108
    %4560 = vmatprep.subr.mxu0 0.0
    %4561 = vmatpush1.msra.mxu0 %v4109
    %4562 = vmatprep.subr.mxu0 0.0
    %4563 = vmatpush1.msra.mxu0 %v4110
    %4564 = vmatprep.subr.mxu0 0.0
    %4565 = vmatpush1.msra.mxu0 %v4111
    %4566 = vmatprep.subr.mxu0 0.0
    %4567 = vmatpush1.msra.mxu0 %v4112
    %4568 = vmatprep.subr.mxu0 0.0
    %4569 = vmatpush1.msra.mxu0 %v4113
    %4570 = vmatprep.subr.mxu0 0.0
    %4571 = vmatpush1.msra.mxu0 %v4114
    %4572 = vmatprep.subr.mxu0 0.0
    %4573 = vmatpush1.msra.mxu0 %v4115
    %4574 = vmatprep.subr.mxu0 0.0
    %4575 = vmatpush1.msra.mxu0 %v4116
    %4576 = vmatprep.subr.mxu0 0.0
    %4577 = vmatpush1.msra.mxu0 %v4117
    %4578 = vmatprep.subr.mxu0 0.0
    %4579 = vmatpush1.msra.mxu0 %v4118
    %4580 = vmatprep.subr.mxu0 0.0
    %4581 = vmatpush1.msra.mxu0 %v4119
    %4582 = vmatprep.subr.mxu0 0.0
    %4583 = vmatpush1.msra.mxu0 %v4120
    %4584 = vmatprep.subr.mxu0 0.0
    %4585 = vmatpush1.msra.mxu0 %v4121
    %4586 = vmatprep.subr.mxu0 0.0
    %4587 = vmatpush1.msra.mxu0 %v4122
    %4588 = vmatprep.subr.mxu0 0.0
    %4589 = vmatpush1.msra.mxu0 %v4123
    %4590 = vmatprep.subr.mxu0 0.0
    %4591 = vmatpush1.msra.mxu0 %v4124
    %4592 = vmatprep.subr.mxu0 0.0
    %4593 = vmatpush1.msra.mxu0 %v4125
    %4594 = vmatprep.subr.mxu0 0.0
    %4595 = vmatpush1.msra.mxu0 %v4126
    %4596 = vmatprep.subr.mxu0 0.0
    %4597 = vmatpush1.msra.mxu0 %v4127
    %4598 = vmatprep.subr.mxu0 0.0
    %4599 = vmatpush1.msra.mxu0 %v4128
    %4600 = vmatprep.subr.mxu0 0.0
    %4601 = vmatpush1.msra.mxu0 %v4129
    %4602 = vmatprep.subr.mxu0 0.0
    %4603 = vmatpush1.msra.mxu0 %v4130
    %4604 = vmatprep.subr.mxu0 0.0
    %4605 = vmatpush1.msra.mxu0 %v4131
    %4606 = vmatprep.subr.mxu0 0.0
    %4607 = vmatpush1.msra.mxu0 %v4132
    %4608 = vmatprep.subr.mxu0 0.0
    %4609 = vmatpush1.msra.mxu0 %v4133
    %4610 = vmatprep.subr.mxu0 0.0
    %4611 = vmatpush1.msra.mxu0 %v4134
    %4612 = vmatprep.subr.mxu0 0.0
    %4613 = vmatpush1.msra.mxu0 %v4135
    %4614 = vmatprep.subr.mxu0 0.0
    %4615 = vmatpush1.msra.mxu0 %v4136
    %4616 = vmatprep.mubr.f32.mxu0 %v4044
    %4617 = vmatmul.mubr.f32.gmra.mrb[0].mxu0 %v4037
    %v4618 = vpop.f32.mrb[0].mxu0
    %v4619 = vadd.f32 %v4549, %v4618
    %v4620 = vpop.f32.mrb[0].mxu0
    %4621 = vdwg.mxu0
    %4622 = vmatprep.subr.mxu0 0.0
    %4623 = vmatpush1.msra.mxu0 %v4137
    %4624 = vmatprep.subr.mxu0 0.0
    %4625 = vmatpush1.msra.mxu0 %v4138
    %4626 = vmatprep.subr.mxu0 0.0
    %4627 = vmatpush1.msra.mxu0 %v4139
    %4628 = vmatprep.subr.mxu0 0.0
    %4629 = vmatpush1.msra.mxu0 %v4140
    %4630 = vmatprep.subr.mxu0 0.0
    %4631 = vmatpush1.msra.mxu0 %v4141
    %4632 = vmatprep.subr.mxu0 0.0
    %4633 = vmatpush1.msra.mxu0 %v4142
    %4634 = vmatprep.subr.mxu0 0.0
    %4635 = vmatpush1.msra.mxu0 %v4143
    %4636 = vmatprep.subr.mxu0 0.0
    %4637 = vmatpush1.msra.mxu0 %v4144
    %4638 = vmatprep.subr.mxu0 0.0
    %4639 = vmatpush1.msra.mxu0 %v4145
    %4640 = vmatprep.subr.mxu0 0.0
    %4641 = vmatpush1.msra.mxu0 %v4146
    %4642 = vmatprep.subr.mxu0 0.0
    %4643 = vmatpush1.msra.mxu0 %v4147
    %4644 = vmatprep.subr.mxu0 0.0
    %4645 = vmatpush1.msra.mxu0 %v4148
    %4646 = vmatprep.subr.mxu0 0.0
    %4647 = vmatpush1.msra.mxu0 %v4149
    %4648 = vmatprep.subr.mxu0 0.0
    %4649 = vmatpush1.msra.mxu0 %v4150
    %4650 = vmatprep.subr.mxu0 0.0
    %4651 = vmatpush1.msra.mxu0 %v4151
    %4652 = vmatprep.subr.mxu0 0.0
    %4653 = vmatpush1.msra.mxu0 %v4152
    %4654 = vmatprep.subr.mxu0 0.0
    %4655 = vmatpush1.msra.mxu0 %v4153
    %4656 = vmatprep.subr.mxu0 0.0
    %4657 = vmatpush1.msra.mxu0 %v4154
    %4658 = vmatprep.subr.mxu0 0.0
    %4659 = vmatpush1.msra.mxu0 %v4155
    %4660 = vmatprep.subr.mxu0 0.0
    %4661 = vmatpush1.msra.mxu0 %v4156
    %4662 = vmatprep.subr.mxu0 0.0
    %4663 = vmatpush1.msra.mxu0 %v4157
    %4664 = vmatprep.subr.mxu0 0.0
    %4665 = vmatpush1.msra.mxu0 %v4158
    %4666 = vmatprep.subr.mxu0 0.0
    %4667 = vmatpush1.msra.mxu0 %v4159
    %4668 = vmatprep.subr.mxu0 0.0
    %4669 = vmatpush1.msra.mxu0 %v4160
    %4670 = vmatprep.subr.mxu0 0.0
    %4671 = vmatpush1.msra.mxu0 %v4161
    %4672 = vmatprep.subr.mxu0 0.0
    %4673 = vmatpush1.msra.mxu0 %v4162
    %4674 = vmatprep.subr.mxu0 0.0
    %4675 = vmatpush1.msra.mxu0 %v4163
    %4676 = vmatprep.subr.mxu0 0.0
    %4677 = vmatpush1.msra.mxu0 %v4164
    %4678 = vmatprep.subr.mxu0 0.0
    %4679 = vmatpush1.msra.mxu0 %v4165
    %4680 = vmatprep.subr.mxu0 0.0
    %4681 = vmatpush1.msra.mxu0 %v4166
    %4682 = vmatprep.subr.mxu0 0.0
    %4683 = vmatpush1.msra.mxu0 %v4167
    %4684 = vmatprep.subr.mxu0 0.0
    %4685 = vmatpush1.msra.mxu0 %v4168
    %4686 = vmatprep.mubr.f32.mxu0 %v4058
    %4687 = vmatmul.mubr.f32.gmra.mrb[0].mxu0 %v4051
    %v4688 = vpop.f32.mrb[0].mxu0
    %v4689 = vadd.f32 %v4619, %v4688
    %v4690 = vpop.f32.mrb[0].mxu0
    %4691 = vdwg.mxu0
    %4692 = vmatprep.subr.mxu0 0.0
    %4693 = vmatpush1.msra.mxu0 %v4169
    %4694 = vmatprep.subr.mxu0 0.0
    %4695 = vmatpush1.msra.mxu0 %v4170
    %4696 = vmatprep.subr.mxu0 0.0
    %4697 = vmatpush1.msra.mxu0 %v4171
    %4698 = vmatprep.subr.mxu0 0.0
    %4699 = vmatpush1.msra.mxu0 %v4172
    %4700 = vmatprep.subr.mxu0 0.0
    %4701 = vmatpush1.msra.mxu0 %v4173
    %4702 = vmatprep.subr.mxu0 0.0
    %4703 = vmatpush1.msra.mxu0 %v4174
    %4704 = vmatprep.subr.mxu0 0.0
    %4705 = vmatpush1.msra.mxu0 %v4175
    %4706 = vmatprep.subr.mxu0 0.0
    %4707 = vmatpush1.msra.mxu0 %v4176
    %4708 = vmatprep.subr.mxu0 0.0
    %4709 = vmatpush1.msra.mxu0 %v4177
    %4710 = vmatprep.subr.mxu0 0.0
    %4711 = vmatpush1.msra.mxu0 %v4178
    %4712 = vmatprep.subr.mxu0 0.0
    %4713 = vmatpush1.msra.mxu0 %v4179
    %4714 = vmatprep.subr.mxu0 0.0
    %4715 = vmatpush1.msra.mxu0 %v4180
    %4716 = vmatprep.subr.mxu0 0.0
    %4717 = vmatpush1.msra.mxu0 %v4181
    %4718 = vmatprep.subr.mxu0 0.0
    %4719 = vmatpush1.msra.mxu0 %v4182
    %4720 = vmatprep.subr.mxu0 0.0
    %4721 = vmatpush1.msra.mxu0 %v4183
    %4722 = vmatprep.subr.mxu0 0.0
    %4723 = vmatpush1.msra.mxu0 %v4184
    %4724 = vmatprep.subr.mxu0 0.0
    %4725 = vmatpush1.msra.mxu0 %v4185
    %4726 = vmatprep.subr.mxu0 0.0
    %4727 = vmatpush1.msra.mxu0 %v4186
    %4728 = vmatprep.subr.mxu0 0.0
    %4729 = vmatpush1.msra.mxu0 %v4187
    %4730 = vmatprep.subr.mxu0 0.0
    %4731 = vmatpush1.msra.mxu0 %v4188
    %4732 = vmatprep.subr.mxu0 0.0
    %4733 = vmatpush1.msra.mxu0 %v4189
    %4734 = vmatprep.subr.mxu0 0.0
    %4735 = vmatpush1.msra.mxu0 %v4190
    %4736 = vmatprep.subr.mxu0 0.0
    %4737 = vmatpush1.msra.mxu0 %v4191
    %4738 = vmatprep.subr.mxu0 0.0
    %4739 = vmatpush1.msra.mxu0 %v4192
    %4740 = vmatprep.subr.mxu0 0.0
    %4741 = vmatpush1.msra.mxu0 %v4193
    %4742 = vmatprep.subr.mxu0 0.0
    %4743 = vmatpush1.msra.mxu0 %v4194
    %4744 = vmatprep.subr.mxu0 0.0
    %4745 = vmatpush1.msra.mxu0 %v4195
    %4746 = vmatprep.subr.mxu0 0.0
    %4747 = vmatpush1.msra.mxu0 %v4196
    %4748 = vmatprep.subr.mxu0 0.0
    %4749 = vmatpush1.msra.mxu0 %v4197
    %4750 = vmatprep.subr.mxu0 0.0
    %4751 = vmatpush1.msra.mxu0 %v4198
    %4752 = vmatprep.subr.mxu0 0.0
    %4753 = vmatpush1.msra.mxu0 %v4199
    %4754 = vmatprep.subr.mxu0 0.0
    %4755 = vmatpush1.msra.mxu0 %v4200
    %4756 = vmatprep.mubr.f32.mxu0 %v4072
    %4757 = vmatmul.mubr.f32.gmra.mrb[0].mxu0 %v4065
    %v4758 = vpop.f32.mrb[0].mxu0
    %v4759 = vadd.f32 %v4689, %v4758
    %v4760 = vpop.f32.mrb[0].mxu0
    %4761 = vdwg.mxu0
    %v4762 = vmul.f32 %v4759, 0.0078125
    %v4763 = vmul.f32 %v4481, %v4481
    %v4764 = vsub.f32 %v4762, %v4763
    %v4765 = vmax.f32 %v4764, 0.0
    %v4766 = vld [vmem:[#allocation8] sm:$0x1]
    %v4767 = vadd.f32 %v4765, 1e-05
    %v4768 = vrsqrt.pop %v4767
    %v4769 = vmul.f32 %v4766, %v4768
    %v4770 = vld [vmem:[#allocation10] sm:$0x1]
    %v4771 = vmul.f32 %v4481, %v4769
    %v4772 = vsub.f32 %v4770, %v4771
    %v4773 = vld [vmem:[#allocation7] sm:$0xff]
    %v4774 = vld [vmem:[#allocation7 + $0x8] sm:$0xff]
    %v4775 = vld [vmem:[#allocation7 + $0x10] sm:$0xff]
    %v4776 = vld [vmem:[#allocation7 + $0x18] sm:$0xff]
    %v4777 = vld [vmem:[#allocation7 + $0x20] sm:$0xff]
    %v4778 = vld [vmem:[#allocation7 + $0x28] sm:$0xff]
    %v4779 = vld [vmem:[#allocation7 + $0x30] sm:$0xff]
    %v4780 = vld [vmem:[#allocation7 + $0x38] sm:$0xff]
    %v4781 = vld [vmem:[#allocation7 + $0x40] sm:$0xff]
    %v4782 = vld [vmem:[#allocation7 + $0x48] sm:$0xff]
    %v4783 = vld [vmem:[#allocation7 + $0x50] sm:$0xff]
    %v4784 = vld [vmem:[#allocation7 + $0x58] sm:$0xff]
    %v4785 = vld [vmem:[#allocation7 + $0x60] sm:$0xff]
    %v4786 = vld [vmem:[#allocation7 + $0x68] sm:$0xff]
    %v4787 = vld [vmem:[#allocation7 + $0x70] sm:$0xff]
    %v4788 = vld [vmem:[#allocation7 + $0x78] sm:$0xff]
    %vm4789 = vcmask 130048
    %v4791 = vsel %vm4789, %v4769, 0
    %4793 = vmatprep.subr.mxu0 %v4774
    %4794 = vmatpush1.msra.mxu0 %v4773
    %4795 = vmatprep.subr.mxu0 %v4782
    %4796 = vmatpush1.msra.mxu0 %v4781
    %4797 = vmatprep.subr.mxu0 0.0
    %4798 = vmatpush1.msra.mxu0 0.0
    %4799 = vmatprep.subr.mxu0 0.0
    %4800 = vmatpush1.msra.mxu0 0.0
    %4801 = vmatprep.subr.mxu0 0.0
    %4802 = vmatpush1.msra.mxu0 0.0
    %4803 = vmatprep.subr.mxu0 0.0
    %4804 = vmatpush1.msra.mxu0 0.0
    %4805 = vmatprep.subr.mxu0 0.0
    %4806 = vmatpush1.msra.mxu0 0.0
    %4807 = vmatprep.subr.mxu0 0.0
    %4808 = vmatpush1.msra.mxu0 0.0
    %4809 = vmatprep.subr.mxu0 0.0
    %4810 = vmatpush1.msra.mxu0 0.0
    %4811 = vmatprep.subr.mxu0 0.0
    %4812 = vmatpush1.msra.mxu0 0.0
    %4813 = vmatprep.subr.mxu0 0.0
    %4814 = vmatpush1.msra.mxu0 0.0
    %4815 = vmatprep.subr.mxu0 0.0
    %4816 = vmatpush1.msra.mxu0 0.0
    %4817 = vmatprep.subr.mxu0 0.0
    %4818 = vmatpush1.msra.mxu0 0.0
    %4819 = vmatprep.subr.mxu0 0.0
    %4820 = vmatpush1.msra.mxu0 0.0
    %4821 = vmatprep.subr.mxu0 0.0
    %4822 = vmatpush1.msra.mxu0 0.0
    %4823 = vmatprep.subr.mxu0 0.0
    %4824 = vmatpush1.msra.mxu0 0.0
    %4825 = vmatprep.subr.mxu0 0.0
    %4826 = vmatpush1.msra.mxu0 0.0
    %4827 = vmatprep.subr.mxu0 0.0
    %4828 = vmatpush1.msra.mxu0 0.0
    %4829 = vmatprep.subr.mxu0 0.0
    %4830 = vmatpush1.msra.mxu0 0.0
    %4831 = vmatprep.subr.mxu0 0.0
    %4832 = vmatpush1.msra.mxu0 0.0
    %4833 = vmatprep.subr.mxu0 0.0
    %4834 = vmatpush1.msra.mxu0 0.0
    %4835 = vmatprep.subr.mxu0 0.0
    %4836 = vmatpush1.msra.mxu0 0.0
    %4837 = vmatprep.subr.mxu0 0.0
    %4838 = vmatpush1.msra.mxu0 0.0
    %4839 = vmatprep.subr.mxu0 0.0
    %4840 = vmatpush1.msra.mxu0 0.0
    %4841 = vmatprep.subr.mxu0 0.0
    %4842 = vmatpush1.msra.mxu0 0.0
    %4843 = vmatprep.subr.mxu0 0.0
    %4844 = vmatpush1.msra.mxu0 0.0
    %4845 = vmatprep.subr.mxu0 0.0
    %4846 = vmatpush1.msra.mxu0 0.0
    %4847 = vmatprep.subr.mxu0 0.0
    %4848 = vmatpush1.msra.mxu0 0.0
    %4849 = vmatprep.subr.mxu0 0.0
    %4850 = vmatpush1.msra.mxu0 0.0
    %4851 = vmatprep.subr.mxu0 0.0
    %4852 = vmatpush1.msra.mxu0 0.0
    %4853 = vmatprep.subr.mxu0 0.0
    %4854 = vmatpush1.msra.mxu0 0.0
    %4855 = vmatprep.subr.mxu0 0.0
    %4856 = vmatpush1.msra.mxu0 0.0
    %4857 = vmatprep.mubr.f32.mxu0 0.0
    %4858 = vmatmul.mubr.f32.gmra.mrb[0].mxu0 %v4791
    %v4859 = vpop.f32.mrb[0].mxu0
    %v4860 = vadd.f32 0.0, %v4859
    %v4861 = vpop.f32.mrb[0].mxu0
    %v4862 = vadd.f32 0.0, %v4861
    %4863 = vdwg.mxu0
    %4864 = vmatprep.subr.mxu0 %v4776
    %4865 = vmatpush1.msra.mxu0 %v4775
    %4866 = vmatprep.subr.mxu0 %v4784
    %4867 = vmatpush1.msra.mxu0 %v4783
    %4868 = vmatprep.subr.mxu0 0.0
    %4869 = vmatpush1.msra.mxu0 0.0
    %4870 = vmatprep.subr.mxu0 0.0
    %4871 = vmatpush1.msra.mxu0 0.0
    %4872 = vmatprep.subr.mxu0 0.0
    %4873 = vmatpush1.msra.mxu0 0.0
    %4874 = vmatprep.subr.mxu0 0.0
    %4875 = vmatpush1.msra.mxu0 0.0
    %4876 = vmatprep.subr.mxu0 0.0
    %4877 = vmatpush1.msra.mxu0 0.0
    %4878 = vmatprep.subr.mxu0 0.0
    %4879 = vmatpush1.msra.mxu0 0.0
    %4880 = vmatprep.subr.mxu0 0.0
    %4881 = vmatpush1.msra.mxu0 0.0
    %4882 = vmatprep.subr.mxu0 0.0
    %4883 = vmatpush1.msra.mxu0 0.0
    %4884 = vmatprep.subr.mxu0 0.0
    %4885 = vmatpush1.msra.mxu0 0.0
    %4886 = vmatprep.subr.mxu0 0.0
    %4887 = vmatpush1.msra.mxu0 0.0
    %4888 = vmatprep.subr.mxu0 0.0
    %4889 = vmatpush1.msra.mxu0 0.0
    %4890 = vmatprep.subr.mxu0 0.0
    %4891 = vmatpush1.msra.mxu0 0.0
    %4892 = vmatprep.subr.mxu0 0.0
    %4893 = vmatpush1.msra.mxu0 0.0
    %4894 = vmatprep.subr.mxu0 0.0
    %4895 = vmatpush1.msra.mxu0 0.0
    %4896 = vmatprep.subr.mxu0 0.0
    %4897 = vmatpush1.msra.mxu0 0.0
    %4898 = vmatprep.subr.mxu0 0.0
    %4899 = vmatpush1.msra.mxu0 0.0
    %4900 = vmatprep.subr.mxu0 0.0
    %4901 = vmatpush1.msra.mxu0 0.0
    %4902 = vmatprep.subr.mxu0 0.0
    %4903 = vmatpush1.msra.mxu0 0.0
    %4904 = vmatprep.subr.mxu0 0.0
    %4905 = vmatpush1.msra.mxu0 0.0
    %4906 = vmatprep.subr.mxu0 0.0
    %4907 = vmatpush1.msra.mxu0 0.0
    %4908 = vmatprep.subr.mxu0 0.0
    %4909 = vmatpush1.msra.mxu0 0.0
    %4910 = vmatprep.subr.mxu0 0.0
    %4911 = vmatpush1.msra.mxu0 0.0
    %4912 = vmatprep.subr.mxu0 0.0
    %4913 = vmatpush1.msra.mxu0 0.0
    %4914 = vmatprep.subr.mxu0 0.0
    %4915 = vmatpush1.msra.mxu0 0.0
    %4916 = vmatprep.subr.mxu0 0.0
    %4917 = vmatpush1.msra.mxu0 0.0
    %4918 = vmatprep.subr.mxu0 0.0
    %4919 = vmatpush1.msra.mxu0 0.0
    %4920 = vmatprep.subr.mxu0 0.0
    %4921 = vmatpush1.msra.mxu0 0.0
    %4922 = vmatprep.subr.mxu0 0.0
    %4923 = vmatpush1.msra.mxu0 0.0
    %4924 = vmatprep.subr.mxu0 0.0
    %4925 = vmatpush1.msra.mxu0 0.0
    %4926 = vmatprep.subr.mxu0 0.0
    %4927 = vmatpush1.msra.mxu0 0.0
    %4928 = vmatprep.mubr.f32.mxu0 0.0
    %4929 = vmatmul.mubr.f32.gmra.mrb[0].mxu0 %v4791
    %v4930 = vpop.f32.mrb[0].mxu0
    %v4931 = vadd.f32 0.0, %v4930
    %v4932 = vpop.f32.mrb[0].mxu0
    %v4933 = vadd.f32 0.0, %v4932
    %4934 = vdwg.mxu0
    %4935 = vmatprep.subr.mxu0 %v4778
    %4936 = vmatpush1.msra.mxu0 %v4777
    %4937 = vmatprep.subr.mxu0 %v4786
    %4938 = vmatpush1.msra.mxu0 %v4785
    %4939 = vmatprep.subr.mxu0 0.0
    %4940 = vmatpush1.msra.mxu0 0.0
    %4941 = vmatprep.subr.mxu0 0.0
    %4942 = vmatpush1.msra.mxu0 0.0
    %4943 = vmatprep.subr.mxu0 0.0
    %4944 = vmatpush1.msra.mxu0 0.0
    %4945 = vmatprep.subr.mxu0 0.0
    %4946 = vmatpush1.msra.mxu0 0.0
    %4947 = vmatprep.subr.mxu0 0.0
    %4948 = vmatpush1.msra.mxu0 0.0
    %4949 = vmatprep.subr.mxu0 0.0
    %4950 = vmatpush1.msra.mxu0 0.0
    %4951 = vmatprep.subr.mxu0 0.0
    %4952 = vmatpush1.msra.mxu0 0.0
    %4953 = vmatprep.subr.mxu0 0.0
    %4954 = vmatpush1.msra.mxu0 0.0
    %4955 = vmatprep.subr.mxu0 0.0
    %4956 = vmatpush1.msra.mxu0 0.0
    %4957 = vmatprep.subr.mxu0 0.0
    %4958 = vmatpush1.msra.mxu0 0.0
    %4959 = vmatprep.subr.mxu0 0.0
    %4960 = vmatpush1.msra.mxu0 0.0
    %4961 = vmatprep.subr.mxu0 0.0
    %4962 = vmatpush1.msra.mxu0 0.0
    %4963 = vmatprep.subr.mxu0 0.0
    %4964 = vmatpush1.msra.mxu0 0.0
    %4965 = vmatprep.subr.mxu0 0.0
    %4966 = vmatpush1.msra.mxu0 0.0
    %4967 = vmatprep.subr.mxu0 0.0
    %4968 = vmatpush1.msra.mxu0 0.0
    %4969 = vmatprep.subr.mxu0 0.0
    %4970 = vmatpush1.msra.mxu0 0.0
    %4971 = vmatprep.subr.mxu0 0.0
    %4972 = vmatpush1.msra.mxu0 0.0
    %4973 = vmatprep.subr.mxu0 0.0
    %4974 = vmatpush1.msra.mxu0 0.0
    %4975 = vmatprep.subr.mxu0 0.0
    %4976 = vmatpush1.msra.mxu0 0.0
    %4977 = vmatprep.subr.mxu0 0.0
    %4978 = vmatpush1.msra.mxu0 0.0
    %4979 = vmatprep.subr.mxu0 0.0
    %4980 = vmatpush1.msra.mxu0 0.0
    %4981 = vmatprep.subr.mxu0 0.0
    %4982 = vmatpush1.msra.mxu0 0.0
    %4983 = vmatprep.subr.mxu0 0.0
    %4984 = vmatpush1.msra.mxu0 0.0
    %4985 = vmatprep.subr.mxu0 0.0
    %4986 = vmatpush1.msra.mxu0 0.0
    %4987 = vmatprep.subr.mxu0 0.0
    %4988 = vmatpush1.msra.mxu0 0.0
    %4989 = vmatprep.subr.mxu0 0.0
    %4990 = vmatpush1.msra.mxu0 0.0
    %4991 = vmatprep.subr.mxu0 0.0
    %4992 = vmatpush1.msra.mxu0 0.0
    %4993 = vmatprep.subr.mxu0 0.0
    %4994 = vmatpush1.msra.mxu0 0.0
    %4995 = vmatprep.subr.mxu0 0.0
    %4996 = vmatpush1.msra.mxu0 0.0
    %4997 = vmatprep.subr.mxu0 0.0
    %4998 = vmatpush1.msra.mxu0 0.0
    %4999 = vmatprep.mubr.f32.mxu0 0.0
    %5000 = vmatmul.mubr.f32.gmra.mrb[0].mxu0 %v4791
    %v5001 = vpop.f32.mrb[0].mxu0
    %v5002 = vadd.f32 0.0, %v5001
    %v5003 = vpop.f32.mrb[0].mxu0
    %v5004 = vadd.f32 0.0, %v5003
    %5005 = vdwg.mxu0
    %5006 = vmatprep.subr.mxu0 %v4780
    %5007 = vmatpush1.msra.mxu0 %v4779
    %5008 = vmatprep.subr.mxu0 %v4788
    %5009 = vmatpush1.msra.mxu0 %v4787
    %5010 = vmatprep.subr.mxu0 0.0
    %5011 = vmatpush1.msra.mxu0 0.0
    %5012 = vmatprep.subr.mxu0 0.0
    %5013 = vmatpush1.msra.mxu0 0.0
    %5014 = vmatprep.subr.mxu0 0.0
    %5015 = vmatpush1.msra.mxu0 0.0
    %5016 = vmatprep.subr.mxu0 0.0
    %5017 = vmatpush1.msra.mxu0 0.0
    %5018 = vmatprep.subr.mxu0 0.0
    %5019 = vmatpush1.msra.mxu0 0.0
    %5020 = vmatprep.subr.mxu0 0.0
    %5021 = vmatpush1.msra.mxu0 0.0
    %5022 = vmatprep.subr.mxu0 0.0
    %5023 = vmatpush1.msra.mxu0 0.0
    %5024 = vmatprep.subr.mxu0 0.0
    %5025 = vmatpush1.msra.mxu0 0.0
    %5026 = vmatprep.subr.mxu0 0.0
    %5027 = vmatpush1.msra.mxu0 0.0
    %5028 = vmatprep.subr.mxu0 0.0
    %5029 = vmatpush1.msra.mxu0 0.0
    %5030 = vmatprep.subr.mxu0 0.0
    %5031 = vmatpush1.msra.mxu0 0.0
    %5032 = vmatprep.subr.mxu0 0.0
    %5033 = vmatpush1.msra.mxu0 0.0
    %5034 = vmatprep.subr.mxu0 0.0
    %5035 = vmatpush1.msra.mxu0 0.0
    %5036 = vmatprep.subr.mxu0 0.0
    %5037 = vmatpush1.msra.mxu0 0.0
    %5038 = vmatprep.subr.mxu0 0.0
    %5039 = vmatpush1.msra.mxu0 0.0
    %5040 = vmatprep.subr.mxu0 0.0
    %5041 = vmatpush1.msra.mxu0 0.0
    %5042 = vmatprep.subr.mxu0 0.0
    %5043 = vmatpush1.msra.mxu0 0.0
    %5044 = vmatprep.subr.mxu0 0.0
    %5045 = vmatpush1.msra.mxu0 0.0
    %5046 = vmatprep.subr.mxu0 0.0
    %5047 = vmatpush1.msra.mxu0 0.0
    %5048 = vmatprep.subr.mxu0 0.0
    %5049 = vmatpush1.msra.mxu0 0.0
    %5050 = vmatprep.subr.mxu0 0.0
    %5051 = vmatpush1.msra.mxu0 0.0
    %5052 = vmatprep.subr.mxu0 0.0
    %5053 = vmatpush1.msra.mxu0 0.0
    %5054 = vmatprep.subr.mxu0 0.0
    %5055 = vmatpush1.msra.mxu0 0.0
    %5056 = vmatprep.subr.mxu0 0.0
    %5057 = vmatpush1.msra.mxu0 0.0
    %5058 = vmatprep.subr.mxu0 0.0
    %5059 = vmatpush1.msra.mxu0 0.0
    %5060 = vmatprep.subr.mxu0 0.0
    %5061 = vmatpush1.msra.mxu0 0.0
    %5062 = vmatprep.subr.mxu0 0.0
    %5063 = vmatpush1.msra.mxu0 0.0
    %5064 = vmatprep.subr.mxu0 0.0
    %5065 = vmatpush1.msra.mxu0 0.0
    %5066 = vmatprep.subr.mxu0 0.0
    %5067 = vmatpush1.msra.mxu0 0.0
    %5068 = vmatprep.subr.mxu0 0.0
    %5069 = vmatpush1.msra.mxu0 0.0
    %5070 = vmatprep.mubr.f32.mxu0 0.0
    %5071 = vmatmul.mubr.f32.gmra.mrb[0].mxu0 %v4791
    %v5072 = vpop.f32.mrb[0].mxu0
    %v5073 = vadd.f32 0.0, %v5072
    %v5074 = vpop.f32.mrb[0].mxu0
    %v5075 = vadd.f32 0.0, %v5074
    %5076 = vdwg.mxu0
    %v5078 = vsel %vm4789, %v4772, 0
    %5080 = vmatprep.subr.mxu0 %v4774
    %5081 = vmatpush1.msra.mxu0 %v4773
    %5082 = vmatprep.subr.mxu0 %v4782
    %5083 = vmatpush1.msra.mxu0 %v4781
    %5084 = vmatprep.subr.mxu0 0.0
    %5085 = vmatpush1.msra.mxu0 0.0
    %5086 = vmatprep.subr.mxu0 0.0
    %5087 = vmatpush1.msra.mxu0 0.0
    %5088 = vmatprep.subr.mxu0 0.0
    %5089 = vmatpush1.msra.mxu0 0.0
    %5090 = vmatprep.subr.mxu0 0.0
    %5091 = vmatpush1.msra.mxu0 0.0
    %5092 = vmatprep.subr.mxu0 0.0
    %5093 = vmatpush1.msra.mxu0 0.0
    %5094 = vmatprep.subr.mxu0 0.0
    %5095 = vmatpush1.msra.mxu0 0.0
    %5096 = vmatprep.subr.mxu0 0.0
    %5097 = vmatpush1.msra.mxu0 0.0
    %5098 = vmatprep.subr.mxu0 0.0
    %5099 = vmatpush1.msra.mxu0 0.0
    %5100 = vmatprep.subr.mxu0 0.0
    %5101 = vmatpush1.msra.mxu0 0.0
    %5102 = vmatprep.subr.mxu0 0.0
    %5103 = vmatpush1.msra.mxu0 0.0
    %5104 = vmatprep.subr.mxu0 0.0
    %5105 = vmatpush1.msra.mxu0 0.0
    %5106 = vmatprep.subr.mxu0 0.0
    %5107 = vmatpush1.msra.mxu0 0.0
    %5108 = vmatprep.subr.mxu0 0.0
    %5109 = vmatpush1.msra.mxu0 0.0
    %5110 = vmatprep.subr.mxu0 0.0
    %5111 = vmatpush1.msra.mxu0 0.0
    %5112 = vmatprep.subr.mxu0 0.0
    %5113 = vmatpush1.msra.mxu0 0.0
    %5114 = vmatprep.subr.mxu0 0.0
    %5115 = vmatpush1.msra.mxu0 0.0
    %5116 = vmatprep.subr.mxu0 0.0
    %5117 = vmatpush1.msra.mxu0 0.0
    %5118 = vmatprep.subr.mxu0 0.0
    %5119 = vmatpush1.msra.mxu0 0.0
    %5120 = vmatprep.subr.mxu0 0.0
    %5121 = vmatpush1.msra.mxu0 0.0
    %5122 = vmatprep.subr.mxu0 0.0
    %5123 = vmatpush1.msra.mxu0 0.0
    %5124 = vmatprep.subr.mxu0 0.0
    %5125 = vmatpush1.msra.mxu0 0.0
    %5126 = vmatprep.subr.mxu0 0.0
    %5127 = vmatpush1.msra.mxu0 0.0
    %5128 = vmatprep.subr.mxu0 0.0
    %5129 = vmatpush1.msra.mxu0 0.0
    %5130 = vmatprep.subr.mxu0 0.0
    %5131 = vmatpush1.msra.mxu0 0.0
    %5132 = vmatprep.subr.mxu0 0.0
    %5133 = vmatpush1.msra.mxu0 0.0
    %5134 = vmatprep.subr.mxu0 0.0
    %5135 = vmatpush1.msra.mxu0 0.0
    %5136 = vmatprep.subr.mxu0 0.0
    %5137 = vmatpush1.msra.mxu0 0.0
    %5138 = vmatprep.subr.mxu0 0.0
    %5139 = vmatpush1.msra.mxu0 0.0
    %5140 = vmatprep.subr.mxu0 0.0
    %5141 = vmatpush1.msra.mxu0 0.0
    %5142 = vmatprep.subr.mxu0 0.0
    %5143 = vmatpush1.msra.mxu0 0.0
    %5144 = vmatprep.mubr.f32.mxu0 0.0
    %5145 = vmatmul.mubr.f32.gmra.mrb[0].mxu0 %v5078
    %v5146 = vpop.f32.mrb[0].mxu0
    %v5147 = vadd.f32 0.0, %v5146
    %v5148 = vpop.f32.mrb[0].mxu0
    %v5149 = vadd.f32 0.0, %v5148
    %5150 = vdwg.mxu0
    %5151 = vmatprep.subr.mxu0 %v4776
    %5152 = vmatpush1.msra.mxu0 %v4775
    %5153 = vmatprep.subr.mxu0 %v4784
    %5154 = vmatpush1.msra.mxu0 %v4783
    %5155 = vmatprep.subr.mxu0 0.0
    %5156 = vmatpush1.msra.mxu0 0.0
    %5157 = vmatprep.subr.mxu0 0.0
    %5158 = vmatpush1.msra.mxu0 0.0
    %5159 = vmatprep.subr.mxu0 0.0
    %5160 = vmatpush1.msra.mxu0 0.0
    %5161 = vmatprep.subr.mxu0 0.0
    %5162 = vmatpush1.msra.mxu0 0.0
    %5163 = vmatprep.subr.mxu0 0.0
    %5164 = vmatpush1.msra.mxu0 0.0
    %5165 = vmatprep.subr.mxu0 0.0
    %5166 = vmatpush1.msra.mxu0 0.0
    %5167 = vmatprep.subr.mxu0 0.0
    %5168 = vmatpush1.msra.mxu0 0.0
    %5169 = vmatprep.subr.mxu0 0.0
    %5170 = vmatpush1.msra.mxu0 0.0
    %5171 = vmatprep.subr.mxu0 0.0
    %5172 = vmatpush1.msra.mxu0 0.0
    %5173 = vmatprep.subr.mxu0 0.0
    %5174 = vmatpush1.msra.mxu0 0.0
    %5175 = vmatprep.subr.mxu0 0.0
    %5176 = vmatpush1.msra.mxu0 0.0
    %5177 = vmatprep.subr.mxu0 0.0
    %5178 = vmatpush1.msra.mxu0 0.0
    %5179 = vmatprep.subr.mxu0 0.0
    %5180 = vmatpush1.msra.mxu0 0.0
    %5181 = vmatprep.subr.mxu0 0.0
    %5182 = vmatpush1.msra.mxu0 0.0
    %5183 = vmatprep.subr.mxu0 0.0
    %5184 = vmatpush1.msra.mxu0 0.0
    %5185 = vmatprep.subr.mxu0 0.0
    %5186 = vmatpush1.msra.mxu0 0.0
    %5187 = vmatprep.subr.mxu0 0.0
    %5188 = vmatpush1.msra.mxu0 0.0
    %5189 = vmatprep.subr.mxu0 0.0
    %5190 = vmatpush1.msra.mxu0 0.0
    %5191 = vmatprep.subr.mxu0 0.0
    %5192 = vmatpush1.msra.mxu0 0.0
    %5193 = vmatprep.subr.mxu0 0.0
    %5194 = vmatpush1.msra.mxu0 0.0
    %5195 = vmatprep.subr.mxu0 0.0
    %5196 = vmatpush1.msra.mxu0 0.0
    %5197 = vmatprep.subr.mxu0 0.0
    %5198 = vmatpush1.msra.mxu0 0.0
    %5199 = vmatprep.subr.mxu0 0.0
    %5200 = vmatpush1.msra.mxu0 0.0
    %5201 = vmatprep.subr.mxu0 0.0
    %5202 = vmatpush1.msra.mxu0 0.0
    %5203 = vmatprep.subr.mxu0 0.0
    %5204 = vmatpush1.msra.mxu0 0.0
    %5205 = vmatprep.subr.mxu0 0.0
    %5206 = vmatpush1.msra.mxu0 0.0
    %5207 = vmatprep.subr.mxu0 0.0
    %5208 = vmatpush1.msra.mxu0 0.0
    %5209 = vmatprep.subr.mxu0 0.0
    %5210 = vmatpush1.msra.mxu0 0.0
    %5211 = vmatprep.subr.mxu0 0.0
    %5212 = vmatpush1.msra.mxu0 0.0
    %5213 = vmatprep.subr.mxu0 0.0
    %5214 = vmatpush1.msra.mxu0 0.0
    %5215 = vmatprep.mubr.f32.mxu0 0.0
    %5216 = vmatmul.mubr.f32.gmra.mrb[0].mxu0 %v5078
    %v5217 = vpop.f32.mrb[0].mxu0
    %v5218 = vadd.f32 0.0, %v5217
    %v5219 = vpop.f32.mrb[0].mxu0
    %v5220 = vadd.f32 0.0, %v5219
    %5221 = vdwg.mxu0
    %5222 = vmatprep.subr.mxu0 %v4778
    %5223 = vmatpush1.msra.mxu0 %v4777
    %5224 = vmatprep.subr.mxu0 %v4786
    %5225 = vmatpush1.msra.mxu0 %v4785
    %5226 = vmatprep.subr.mxu0 0.0
    %5227 = vmatpush1.msra.mxu0 0.0
    %5228 = vmatprep.subr.mxu0 0.0
    %5229 = vmatpush1.msra.mxu0 0.0
    %5230 = vmatprep.subr.mxu0 0.0
    %5231 = vmatpush1.msra.mxu0 0.0
    %5232 = vmatprep.subr.mxu0 0.0
    %5233 = vmatpush1.msra.mxu0 0.0
    %5234 = vmatprep.subr.mxu0 0.0
    %5235 = vmatpush1.msra.mxu0 0.0
    %5236 = vmatprep.subr.mxu0 0.0
    %5237 = vmatpush1.msra.mxu0 0.0
    %5238 = vmatprep.subr.mxu0 0.0
    %5239 = vmatpush1.msra.mxu0 0.0
    %5240 = vmatprep.subr.mxu0 0.0
    %5241 = vmatpush1.msra.mxu0 0.0
    %5242 = vmatprep.subr.mxu0 0.0
    %5243 = vmatpush1.msra.mxu0 0.0
    %5244 = vmatprep.subr.mxu0 0.0
    %5245 = vmatpush1.msra.mxu0 0.0
    %5246 = vmatprep.subr.mxu0 0.0
    %5247 = vmatpush1.msra.mxu0 0.0
    %5248 = vmatprep.subr.mxu0 0.0
    %5249 = vmatpush1.msra.mxu0 0.0
    %5250 = vmatprep.subr.mxu0 0.0
    %5251 = vmatpush1.msra.mxu0 0.0
    %5252 = vmatprep.subr.mxu0 0.0
    %5253 = vmatpush1.msra.mxu0 0.0
    %5254 = vmatprep.subr.mxu0 0.0
    %5255 = vmatpush1.msra.mxu0 0.0
    %5256 = vmatprep.subr.mxu0 0.0
    %5257 = vmatpush1.msra.mxu0 0.0
    %5258 = vmatprep.subr.mxu0 0.0
    %5259 = vmatpush1.msra.mxu0 0.0
    %5260 = vmatprep.subr.mxu0 0.0
    %5261 = vmatpush1.msra.mxu0 0.0
    %5262 = vmatprep.subr.mxu0 0.0
    %5263 = vmatpush1.msra.mxu0 0.0
    %5264 = vmatprep.subr.mxu0 0.0
    %5265 = vmatpush1.msra.mxu0 0.0
    %5266 = vmatprep.subr.mxu0 0.0
    %5267 = vmatpush1.msra.mxu0 0.0
    %5268 = vmatprep.subr.mxu0 0.0
    %5269 = vmatpush1.msra.mxu0 0.0
    %5270 = vmatprep.subr.mxu0 0.0
    %5271 = vmatpush1.msra.mxu0 0.0
    %5272 = vmatprep.subr.mxu0 0.0
    %5273 = vmatpush1.msra.mxu0 0.0
    %5274 = vmatprep.subr.mxu0 0.0
    %5275 = vmatpush1.msra.mxu0 0.0
    %5276 = vmatprep.subr.mxu0 0.0
    %5277 = vmatpush1.msra.mxu0 0.0
    %5278 = vmatprep.subr.mxu0 0.0
    %5279 = vmatpush1.msra.mxu0 0.0
    %5280 = vmatprep.subr.mxu0 0.0
    %5281 = vmatpush1.msra.mxu0 0.0
    %5282 = vmatprep.subr.mxu0 0.0
    %5283 = vmatpush1.msra.mxu0 0.0
    %5284 = vmatprep.subr.mxu0 0.0
    %5285 = vmatpush1.msra.mxu0 0.0
    %5286 = vmatprep.mubr.f32.mxu0 0.0
    %5287 = vmatmul.mubr.f32.gmra.mrb[0].mxu0 %v5078
    %v5288 = vpop.f32.mrb[0].mxu0
    %v5289 = vadd.f32 0.0, %v5288
    %v5290 = vpop.f32.mrb[0].mxu0
    %v5291 = vadd.f32 0.0, %v5290
    %5292 = vdwg.mxu0
    %5293 = vmatprep.subr.mxu0 %v4780
    %5294 = vmatpush1.msra.mxu0 %v4779
    %5295 = vmatprep.subr.mxu0 %v4788
    %5296 = vmatpush1.msra.mxu0 %v4787
    %5297 = vmatprep.subr.mxu0 0.0
    %5298 = vmatpush1.msra.mxu0 0.0
    %5299 = vmatprep.subr.mxu0 0.0
    %5300 = vmatpush1.msra.mxu0 0.0
    %5301 = vmatprep.subr.mxu0 0.0
    %5302 = vmatpush1.msra.mxu0 0.0
    %5303 = vmatprep.subr.mxu0 0.0
    %5304 = vmatpush1.msra.mxu0 0.0
    %5305 = vmatprep.subr.mxu0 0.0
    %5306 = vmatpush1.msra.mxu0 0.0
    %5307 = vmatprep.subr.mxu0 0.0
    %5308 = vmatpush1.msra.mxu0 0.0
    %5309 = vmatprep.subr.mxu0 0.0
    %5310 = vmatpush1.msra.mxu0 0.0
    %5311 = vmatprep.subr.mxu0 0.0
    %5312 = vmatpush1.msra.mxu0 0.0
    %5313 = vmatprep.subr.mxu0 0.0
    %5314 = vmatpush1.msra.mxu0 0.0
    %5315 = vmatprep.subr.mxu0 0.0
    %5316 = vmatpush1.msra.mxu0 0.0
    %5317 = vmatprep.subr.mxu0 0.0
    %5318 = vmatpush1.msra.mxu0 0.0
    %5319 = vmatprep.subr.mxu0 0.0
    %5320 = vmatpush1.msra.mxu0 0.0
    %5321 = vmatprep.subr.mxu0 0.0
    %5322 = vmatpush1.msra.mxu0 0.0
    %5323 = vmatprep.subr.mxu0 0.0
    %5324 = vmatpush1.msra.mxu0 0.0
    %5325 = vmatprep.subr.mxu0 0.0
    %5326 = vmatpush1.msra.mxu0 0.0
    %5327 = vmatprep.subr.mxu0 0.0
    %5328 = vmatpush1.msra.mxu0 0.0
    %5329 = vmatprep.subr.mxu0 0.0
    %5330 = vmatpush1.msra.mxu0 0.0
    %5331 = vmatprep.subr.mxu0 0.0
    %5332 = vmatpush1.msra.mxu0 0.0
    %5333 = vmatprep.subr.mxu0 0.0
    %5334 = vmatpush1.msra.mxu0 0.0
    %5335 = vmatprep.subr.mxu0 0.0
    %5336 = vmatpush1.msra.mxu0 0.0
    %5337 = vmatprep.subr.mxu0 0.0
    %5338 = vmatpush1.msra.mxu0 0.0
    %5339 = vmatprep.subr.mxu0 0.0
    %5340 = vmatpush1.msra.mxu0 0.0
    %5341 = vmatprep.subr.mxu0 0.0
    %5342 = vmatpush1.msra.mxu0 0.0
    %5343 = vmatprep.subr.mxu0 0.0
    %5344 = vmatpush1.msra.mxu0 0.0
    %5345 = vmatprep.subr.mxu0 0.0
    %5346 = vmatpush1.msra.mxu0 0.0
    %5347 = vmatprep.subr.mxu0 0.0
    %5348 = vmatpush1.msra.mxu0 0.0
    %5349 = vmatprep.subr.mxu0 0.0
    %5350 = vmatpush1.msra.mxu0 0.0
    %5351 = vmatprep.subr.mxu0 0.0
    %5352 = vmatpush1.msra.mxu0 0.0
    %5353 = vmatprep.subr.mxu0 0.0
    %5354 = vmatpush1.msra.mxu0 0.0
    %5355 = vmatprep.subr.mxu0 0.0
    %5356 = vmatpush1.msra.mxu0 0.0
    %5357 = vmatprep.mubr.f32.mxu0 0.0
    %5358 = vmatmul.mubr.f32.gmra.mrb[0].mxu0 %v5078
    %v5359 = vpop.f32.mrb[0].mxu0
    %v5360 = vadd.f32 0.0, %v5359
    %v5361 = vpop.f32.mrb[0].mxu0
    %v5362 = vadd.f32 0.0, %v5361
    %5363 = vdwg.mxu0
    %v5364 = vlaneseq
    %v5365 = vshrl.u32 %v5364, 7
    %v5366 = vsub.s32 0, %v5365
    %v5367 = vrot.slane %v4860, %v5366
    %v5368 = vlaneseq
    %v5369 = vshrl.u32 %v5368, 7
    %v5370 = vsub.s32 0, %v5369
    %v5371 = vrot.slane %v4862, %v5370
    %v5372 = vlaneseq
    %v5373 = vshrl.u32 %v5372, 7
    %v5374 = vsub.s32 0, %v5373
    %v5375 = vrot.slane %v4931, %v5374
    %v5376 = vlaneseq
    %v5377 = vshrl.u32 %v5376, 7
    %v5378 = vsub.s32 0, %v5377
    %v5379 = vrot.slane %v4933, %v5378
    %v5380 = vlaneseq
    %v5381 = vshrl.u32 %v5380, 7
    %v5382 = vsub.s32 0, %v5381
    %v5383 = vrot.slane %v5002, %v5382
    %v5384 = vlaneseq
    %v5385 = vshrl.u32 %v5384, 7
    %v5386 = vsub.s32 0, %v5385
    %v5387 = vrot.slane %v5004, %v5386
    %v5388 = vlaneseq
    %v5389 = vshrl.u32 %v5388, 7
    %v5390 = vsub.s32 0, %v5389
    %v5391 = vrot.slane %v5073, %v5390
    %v5392 = vlaneseq
    %v5393 = vshrl.u32 %v5392, 7
    %v5394 = vsub.s32 0, %v5393
    %v5395 = vrot.slane %v5075, %v5394
    %v5396 = vmul.f32 %v3454, %v5367
    %v5397 = vmul.f32 %v3456, %v5371
    %v5398 = vmul.f32 %v3618, %v5375
    %v5399 = vmul.f32 %v3620, %v5379
    %v5400 = vmul.f32 %v3782, %v5383
    %v5401 = vmul.f32 %v3784, %v5387
    %v5402 = vmul.f32 %v3946, %v5391
    %v5403 = vmul.f32 %v3948, %v5395
    %v5404 = vlaneseq
    %v5405 = vshrl.u32 %v5404, 7
    %v5406 = vsub.s32 0, %v5405
    %v5407 = vrot.slane %v5147, %v5406
    %v5408 = vlaneseq
    %v5409 = vshrl.u32 %v5408, 7
    %v5410 = vsub.s32 0, %v5409
    %v5411 = vrot.slane %v5149, %v5410
    %v5412 = vlaneseq
    %v5413 = vshrl.u32 %v5412, 7
    %v5414 = vsub.s32 0, %v5413
    %v5415 = vrot.slane %v5218, %v5414
    %v5416 = vlaneseq
    %v5417 = vshrl.u32 %v5416, 7
    %v5418 = vsub.s32 0, %v5417
    %v5419 = vrot.slane %v5220, %v5418
    %v5420 = vlaneseq
    %v5421 = vshrl.u32 %v5420, 7
    %v5422 = vsub.s32 0, %v5421
    %v5423 = vrot.slane %v5289, %v5422
    %v5424 = vlaneseq
    %v5425 = vshrl.u32 %v5424, 7
    %v5426 = vsub.s32 0, %v5425
    %v5427 = vrot.slane %v5291, %v5426
    %v5428 = vlaneseq
    %v5429 = vshrl.u32 %v5428, 7
    %v5430 = vsub.s32 0, %v5429
    %v5431 = vrot.slane %v5360, %v5430
    %v5432 = vlaneseq
    %v5433 = vshrl.u32 %v5432, 7
    %v5434 = vsub.s32 0, %v5433
    %v5435 = vrot.slane %v5362, %v5434
    %v5436 = vadd.f32 %v5396, %v5407
    %v5437 = vadd.f32 %v5397, %v5411
    %v5438 = vadd.f32 %v5398, %v5415
    %v5439 = vadd.f32 %v5399, %v5419
    %v5440 = vadd.f32 %v5400, %v5423
    %v5441 = vadd.f32 %v5401, %v5427
    %v5442 = vadd.f32 %v5402, %v5431
    %v5443 = vadd.f32 %v5403, %v5435
    %v5444 = vmax.f32 %v5436, 0.0
    %v5445 = vmax.f32 %v5437, 0.0
    %v5446 = vmax.f32 %v5438, 0.0
    %v5447 = vmax.f32 %v5439, 0.0
    %v5448 = vmax.f32 %v5440, 0.0
    %v5449 = vmax.f32 %v5441, 0.0
    %v5450 = vmax.f32 %v5442, 0.0
    %v5451 = vmax.f32 %v5443, 0.0
    %v5452 = vpack.c.bf16 %v5444, %v5444
    %v5453 = vpack.c.bf16 %v5445, %v5445
    %v5454 = vpack.c.bf16 %v5446, %v5446
    %v5455 = vpack.c.bf16 %v5447, %v5447
    %v5456 = vpack.c.bf16 %v5448, %v5448
    %v5457 = vpack.c.bf16 %v5449, %v5449
    %v5458 = vpack.c.bf16 %v5450, %v5450
    %v5459 = vpack.c.bf16 %v5451, %v5451
    %v5460 = vld [vmem:[#allocation11] sm:$0xff]
    %v5461 = vld [vmem:[#allocation11 + $0x8] sm:$0xff]
    %v5462 = vld [vmem:[#allocation11 + $0x10] sm:$0xff]
    %v5463 = vld [vmem:[#allocation11 + $0x18] sm:$0xff]
    %v5464 = vld [vmem:[#allocation11 + $0x20] sm:$0xff]
    %v5465 = vld [vmem:[#allocation11 + $0x28] sm:$0xff]
    %v5466 = vld [vmem:[#allocation11 + $0x30] sm:$0xff]
    %v5467 = vld [vmem:[#allocation11 + $0x38] sm:$0xff]
    %v5468 = vld [vmem:[#allocation11 + $0x40] sm:$0xff]
    %v5469 = vld [vmem:[#allocation11 + $0x48] sm:$0xff]
    %v5470 = vld [vmem:[#allocation11 + $0x50] sm:$0xff]
    %v5471 = vld [vmem:[#allocation11 + $0x58] sm:$0xff]
    %v5472 = vld [vmem:[#allocation11 + $0x60] sm:$0xff]
    %v5473 = vld [vmem:[#allocation11 + $0x68] sm:$0xff]
    %v5474 = vld [vmem:[#allocation11 + $0x70] sm:$0xff]
    %v5475 = vld [vmem:[#allocation11 + $0x78] sm:$0xff]
    %v5476 = vld [vmem:[#allocation11 + $0x80] sm:$0xff]
    %v5477 = vld [vmem:[#allocation11 + $0x88] sm:$0xff]
    %v5478 = vld [vmem:[#allocation11 + $0x90] sm:$0xff]
    %v5479 = vld [vmem:[#allocation11 + $0x98] sm:$0xff]
    %v5480 = vld [vmem:[#allocation11 + $0xa0] sm:$0xff]
    %v5481 = vld [vmem:[#allocation11 + $0xa8] sm:$0xff]
    %v5482 = vld [vmem:[#allocation11 + $0xb0] sm:$0xff]
    %v5483 = vld [vmem:[#allocation11 + $0xb8] sm:$0xff]
    %v5484 = vld [vmem:[#allocation11 + $0xc0] sm:$0xff]
    %v5485 = vld [vmem:[#allocation11 + $0xc8] sm:$0xff]
    %v5486 = vld [vmem:[#allocation11 + $0xd0] sm:$0xff]
    %v5487 = vld [vmem:[#allocation11 + $0xd8] sm:$0xff]
    %v5488 = vld [vmem:[#allocation11 + $0xe0] sm:$0xff]
    %v5489 = vld [vmem:[#allocation11 + $0xe8] sm:$0xff]
    %v5490 = vld [vmem:[#allocation11 + $0xf0] sm:$0xff]
    %v5491 = vld [vmem:[#allocation11 + $0xf8] sm:$0xff]
    %v5492 = vld [vmem:[#allocation11 + $0x100] sm:$0xff]
    %v5493 = vld [vmem:[#allocation11 + $0x108] sm:$0xff]
    %v5494 = vld [vmem:[#allocation11 + $0x110] sm:$0xff]
    %v5495 = vld [vmem:[#allocation11 + $0x118] sm:$0xff]
    %v5496 = vld [vmem:[#allocation11 + $0x120] sm:$0xff]
    %v5497 = vld [vmem:[#allocation11 + $0x128] sm:$0xff]
    %v5498 = vld [vmem:[#allocation11 + $0x130] sm:$0xff]
    %v5499 = vld [vmem:[#allocation11 + $0x138] sm:$0xff]
    %v5500 = vld [vmem:[#allocation11 + $0x140] sm:$0xff]
    %v5501 = vld [vmem:[#allocation11 + $0x148] sm:$0xff]
    %v5502 = vld [vmem:[#allocation11 + $0x150] sm:$0xff]
    %v5503 = vld [vmem:[#allocation11 + $0x158] sm:$0xff]
    %v5504 = vld [vmem:[#allocation11 + $0x160] sm:$0xff]
    %v5505 = vld [vmem:[#allocation11 + $0x168] sm:$0xff]
    %v5506 = vld [vmem:[#allocation11 + $0x170] sm:$0xff]
    %v5507 = vld [vmem:[#allocation11 + $0x178] sm:$0xff]
    %v5508 = vld [vmem:[#allocation11 + $0x180] sm:$0xff]
    %v5509 = vld [vmem:[#allocation11 + $0x188] sm:$0xff]
    %v5510 = vld [vmem:[#allocation11 + $0x190] sm:$0xff]
    %v5511 = vld [vmem:[#allocation11 + $0x198] sm:$0xff]
    %v5512 = vld [vmem:[#allocation11 + $0x1a0] sm:$0xff]
    %v5513 = vld [vmem:[#allocation11 + $0x1a8] sm:$0xff]
    %v5514 = vld [vmem:[#allocation11 + $0x1b0] sm:$0xff]
    %v5515 = vld [vmem:[#allocation11 + $0x1b8] sm:$0xff]
    %v5516 = vld [vmem:[#allocation11 + $0x1c0] sm:$0xff]
    %v5517 = vld [vmem:[#allocation11 + $0x1c8] sm:$0xff]
    %v5518 = vld [vmem:[#allocation11 + $0x1d0] sm:$0xff]
    %v5519 = vld [vmem:[#allocation11 + $0x1d8] sm:$0xff]
    %v5520 = vld [vmem:[#allocation11 + $0x1e0] sm:$0xff]
    %v5521 = vld [vmem:[#allocation11 + $0x1e8] sm:$0xff]
    %v5522 = vld [vmem:[#allocation11 + $0x1f0] sm:$0xff]
    %v5523 = vld [vmem:[#allocation11 + $0x1f8] sm:$0xff]
    %v5524 = vld [vmem:[#allocation11 + $0x200] sm:$0xff]
    %v5525 = vld [vmem:[#allocation11 + $0x208] sm:$0xff]
    %v5526 = vld [vmem:[#allocation11 + $0x210] sm:$0xff]
    %v5527 = vld [vmem:[#allocation11 + $0x218] sm:$0xff]
    %v5528 = vld [vmem:[#allocation11 + $0x220] sm:$0xff]
    %v5529 = vld [vmem:[#allocation11 + $0x228] sm:$0xff]
    %v5530 = vld [vmem:[#allocation11 + $0x230] sm:$0xff]
    %v5531 = vld [vmem:[#allocation11 + $0x238] sm:$0xff]
    %v5532 = vld [vmem:[#allocation11 + $0x240] sm:$0xff]
    %v5533 = vld [vmem:[#allocation11 + $0x248] sm:$0xff]
    %v5534 = vld [vmem:[#allocation11 + $0x250] sm:$0xff]
    %v5535 = vld [vmem:[#allocation11 + $0x258] sm:$0xff]
    %v5536 = vld [vmem:[#allocation11 + $0x260] sm:$0xff]
    %v5537 = vld [vmem:[#allocation11 + $0x268] sm:$0xff]
    %v5538 = vld [vmem:[#allocation11 + $0x270] sm:$0xff]
    %v5539 = vld [vmem:[#allocation11 + $0x278] sm:$0xff]
    %v5540 = vld [vmem:[#allocation11 + $0x280] sm:$0xff]
    %v5541 = vld [vmem:[#allocation11 + $0x288] sm:$0xff]
    %v5542 = vld [vmem:[#allocation11 + $0x290] sm:$0xff]
    %v5543 = vld [vmem:[#allocation11 + $0x298] sm:$0xff]
    %v5544 = vld [vmem:[#allocation11 + $0x2a0] sm:$0xff]
    %v5545 = vld [vmem:[#allocation11 + $0x2a8] sm:$0xff]
    %v5546 = vld [vmem:[#allocation11 + $0x2b0] sm:$0xff]
    %v5547 = vld [vmem:[#allocation11 + $0x2b8] sm:$0xff]
    %v5548 = vld [vmem:[#allocation11 + $0x2c0] sm:$0xff]
    %v5549 = vld [vmem:[#allocation11 + $0x2c8] sm:$0xff]
    %v5550 = vld [vmem:[#allocation11 + $0x2d0] sm:$0xff]
    %v5551 = vld [vmem:[#allocation11 + $0x2d8] sm:$0xff]
    %v5552 = vld [vmem:[#allocation11 + $0x2e0] sm:$0xff]
    %v5553 = vld [vmem:[#allocation11 + $0x2e8] sm:$0xff]
    %v5554 = vld [vmem:[#allocation11 + $0x2f0] sm:$0xff]
    %v5555 = vld [vmem:[#allocation11 + $0x2f8] sm:$0xff]
    %v5556 = vld [vmem:[#allocation11 + $0x300] sm:$0xff]
    %v5557 = vld [vmem:[#allocation11 + $0x308] sm:$0xff]
    %v5558 = vld [vmem:[#allocation11 + $0x310] sm:$0xff]
    %v5559 = vld [vmem:[#allocation11 + $0x318] sm:$0xff]
    %v5560 = vld [vmem:[#allocation11 + $0x320] sm:$0xff]
    %v5561 = vld [vmem:[#allocation11 + $0x328] sm:$0xff]
    %v5562 = vld [vmem:[#allocation11 + $0x330] sm:$0xff]
    %v5563 = vld [vmem:[#allocation11 + $0x338] sm:$0xff]
    %v5564 = vld [vmem:[#allocation11 + $0x340] sm:$0xff]
    %v5565 = vld [vmem:[#allocation11 + $0x348] sm:$0xff]
    %v5566 = vld [vmem:[#allocation11 + $0x350] sm:$0xff]
    %v5567 = vld [vmem:[#allocation11 + $0x358] sm:$0xff]
    %v5568 = vld [vmem:[#allocation11 + $0x360] sm:$0xff]
    %v5569 = vld [vmem:[#allocation11 + $0x368] sm:$0xff]
    %v5570 = vld [vmem:[#allocation11 + $0x370] sm:$0xff]
    %v5571 = vld [vmem:[#allocation11 + $0x378] sm:$0xff]
    %v5572 = vld [vmem:[#allocation11 + $0x380] sm:$0xff]
    %v5573 = vld [vmem:[#allocation11 + $0x388] sm:$0xff]
    %v5574 = vld [vmem:[#allocation11 + $0x390] sm:$0xff]
    %v5575 = vld [vmem:[#allocation11 + $0x398] sm:$0xff]
    %v5576 = vld [vmem:[#allocation11 + $0x3a0] sm:$0xff]
    %v5577 = vld [vmem:[#allocation11 + $0x3a8] sm:$0xff]
    %v5578 = vld [vmem:[#allocation11 + $0x3b0] sm:$0xff]
    %v5579 = vld [vmem:[#allocation11 + $0x3b8] sm:$0xff]
    %v5580 = vld [vmem:[#allocation11 + $0x3c0] sm:$0xff]
    %v5581 = vld [vmem:[#allocation11 + $0x3c8] sm:$0xff]
    %v5582 = vld [vmem:[#allocation11 + $0x3d0] sm:$0xff]
    %v5583 = vld [vmem:[#allocation11 + $0x3d8] sm:$0xff]
    %v5584 = vld [vmem:[#allocation11 + $0x3e0] sm:$0xff]
    %v5585 = vld [vmem:[#allocation11 + $0x3e8] sm:$0xff]
    %v5586 = vld [vmem:[#allocation11 + $0x3f0] sm:$0xff]
    %v5587 = vld [vmem:[#allocation11 + $0x3f8] sm:$0xff]
    %v5588 = vld [vmem:[#allocation11 + $0x400] sm:$0xff]
    %v5589 = vld [vmem:[#allocation11 + $0x408] sm:$0xff]
    %v5590 = vld [vmem:[#allocation11 + $0x410] sm:$0xff]
    %v5591 = vld [vmem:[#allocation11 + $0x418] sm:$0xff]
    %v5592 = vld [vmem:[#allocation11 + $0x420] sm:$0xff]
    %v5593 = vld [vmem:[#allocation11 + $0x428] sm:$0xff]
    %v5594 = vld [vmem:[#allocation11 + $0x430] sm:$0xff]
    %v5595 = vld [vmem:[#allocation11 + $0x438] sm:$0xff]
    %v5596 = vld [vmem:[#allocation11 + $0x440] sm:$0xff]
    %v5597 = vld [vmem:[#allocation11 + $0x448] sm:$0xff]
    %v5598 = vld [vmem:[#allocation11 + $0x450] sm:$0xff]
    %v5599 = vld [vmem:[#allocation11 + $0x458] sm:$0xff]
    %v5600 = vld [vmem:[#allocation11 + $0x460] sm:$0xff]
    %v5601 = vld [vmem:[#allocation11 + $0x468] sm:$0xff]
    %v5602 = vld [vmem:[#allocation11 + $0x470] sm:$0xff]
    %v5603 = vld [vmem:[#allocation11 + $0x478] sm:$0xff]
    %v5604 = vld [vmem:[#allocation11 + $0x480] sm:$0xff]
    %v5605 = vld [vmem:[#allocation11 + $0x488] sm:$0xff]
    %v5606 = vld [vmem:[#allocation11 + $0x490] sm:$0xff]
    %v5607 = vld [vmem:[#allocation11 + $0x498] sm:$0xff]
    %v5608 = vld [vmem:[#allocation11 + $0x4a0] sm:$0xff]
    %v5609 = vld [vmem:[#allocation11 + $0x4a8] sm:$0xff]
    %v5610 = vld [vmem:[#allocation11 + $0x4b0] sm:$0xff]
    %v5611 = vld [vmem:[#allocation11 + $0x4b8] sm:$0xff]
    %v5612 = vld [vmem:[#allocation11 + $0x4c0] sm:$0xff]
    %v5613 = vld [vmem:[#allocation11 + $0x4c8] sm:$0xff]
    %v5614 = vld [vmem:[#allocation11 + $0x4d0] sm:$0xff]
    %v5615 = vld [vmem:[#allocation11 + $0x4d8] sm:$0xff]
    %v5616 = vld [vmem:[#allocation11 + $0x4e0] sm:$0xff]
    %v5617 = vld [vmem:[#allocation11 + $0x4e8] sm:$0xff]
    %v5618 = vld [vmem:[#allocation11 + $0x4f0] sm:$0xff]
    %v5619 = vld [vmem:[#allocation11 + $0x4f8] sm:$0xff]
    %v5620 = vld [vmem:[#allocation11 + $0x500] sm:$0xff]
    %v5621 = vld [vmem:[#allocation11 + $0x508] sm:$0xff]
    %v5622 = vld [vmem:[#allocation11 + $0x510] sm:$0xff]
    %v5623 = vld [vmem:[#allocation11 + $0x518] sm:$0xff]
    %v5624 = vld [vmem:[#allocation11 + $0x520] sm:$0xff]
    %v5625 = vld [vmem:[#allocation11 + $0x528] sm:$0xff]
    %v5626 = vld [vmem:[#allocation11 + $0x530] sm:$0xff]
    %v5627 = vld [vmem:[#allocation11 + $0x538] sm:$0xff]
    %v5628 = vld [vmem:[#allocation11 + $0x540] sm:$0xff]
    %v5629 = vld [vmem:[#allocation11 + $0x548] sm:$0xff]
    %v5630 = vld [vmem:[#allocation11 + $0x550] sm:$0xff]
    %v5631 = vld [vmem:[#allocation11 + $0x558] sm:$0xff]
    %v5632 = vld [vmem:[#allocation11 + $0x560] sm:$0xff]
    %v5633 = vld [vmem:[#allocation11 + $0x568] sm:$0xff]
    %v5634 = vld [vmem:[#allocation11 + $0x570] sm:$0xff]
    %v5635 = vld [vmem:[#allocation11 + $0x578] sm:$0xff]
    %v5636 = vld [vmem:[#allocation11 + $0x580] sm:$0xff]
    %v5637 = vld [vmem:[#allocation11 + $0x588] sm:$0xff]
    %v5638 = vld [vmem:[#allocation11 + $0x590] sm:$0xff]
    %v5639 = vld [vmem:[#allocation11 + $0x598] sm:$0xff]
    %v5640 = vld [vmem:[#allocation11 + $0x5a0] sm:$0xff]
    %v5641 = vld [vmem:[#allocation11 + $0x5a8] sm:$0xff]
    %v5642 = vld [vmem:[#allocation11 + $0x5b0] sm:$0xff]
    %v5643 = vld [vmem:[#allocation11 + $0x5b8] sm:$0xff]
    %v5644 = vld [vmem:[#allocation11 + $0x5c0] sm:$0xff]
    %v5645 = vld [vmem:[#allocation11 + $0x5c8] sm:$0xff]
    %v5646 = vld [vmem:[#allocation11 + $0x5d0] sm:$0xff]
    %v5647 = vld [vmem:[#allocation11 + $0x5d8] sm:$0xff]
    %v5648 = vld [vmem:[#allocation11 + $0x5e0] sm:$0xff]
    %v5649 = vld [vmem:[#allocation11 + $0x5e8] sm:$0xff]
    %v5650 = vld [vmem:[#allocation11 + $0x5f0] sm:$0xff]
    %v5651 = vld [vmem:[#allocation11 + $0x5f8] sm:$0xff]
    %v5652 = vld [vmem:[#allocation11 + $0x600] sm:$0xff]
    %v5653 = vld [vmem:[#allocation11 + $0x608] sm:$0xff]
    %v5654 = vld [vmem:[#allocation11 + $0x610] sm:$0xff]
    %v5655 = vld [vmem:[#allocation11 + $0x618] sm:$0xff]
    %v5656 = vld [vmem:[#allocation11 + $0x620] sm:$0xff]
    %v5657 = vld [vmem:[#allocation11 + $0x628] sm:$0xff]
    %v5658 = vld [vmem:[#allocation11 + $0x630] sm:$0xff]
    %v5659 = vld [vmem:[#allocation11 + $0x638] sm:$0xff]
    %v5660 = vld [vmem:[#allocation11 + $0x640] sm:$0xff]
    %v5661 = vld [vmem:[#allocation11 + $0x648] sm:$0xff]
    %v5662 = vld [vmem:[#allocation11 + $0x650] sm:$0xff]
    %v5663 = vld [vmem:[#allocation11 + $0x658] sm:$0xff]
    %v5664 = vld [vmem:[#allocation11 + $0x660] sm:$0xff]
    %v5665 = vld [vmem:[#allocation11 + $0x668] sm:$0xff]
    %v5666 = vld [vmem:[#allocation11 + $0x670] sm:$0xff]
    %v5667 = vld [vmem:[#allocation11 + $0x678] sm:$0xff]
    %v5668 = vld [vmem:[#allocation11 + $0x680] sm:$0xff]
    %v5669 = vld [vmem:[#allocation11 + $0x688] sm:$0xff]
    %v5670 = vld [vmem:[#allocation11 + $0x690] sm:$0xff]
    %v5671 = vld [vmem:[#allocation11 + $0x698] sm:$0xff]
    %v5672 = vld [vmem:[#allocation11 + $0x6a0] sm:$0xff]
    %v5673 = vld [vmem:[#allocation11 + $0x6a8] sm:$0xff]
    %v5674 = vld [vmem:[#allocation11 + $0x6b0] sm:$0xff]
    %v5675 = vld [vmem:[#allocation11 + $0x6b8] sm:$0xff]
    %v5676 = vld [vmem:[#allocation11 + $0x6c0] sm:$0xff]
    %v5677 = vld [vmem:[#allocation11 + $0x6c8] sm:$0xff]
    %v5678 = vld [vmem:[#allocation11 + $0x6d0] sm:$0xff]
    %v5679 = vld [vmem:[#allocation11 + $0x6d8] sm:$0xff]
    %v5680 = vld [vmem:[#allocation11 + $0x6e0] sm:$0xff]
    %v5681 = vld [vmem:[#allocation11 + $0x6e8] sm:$0xff]
    %v5682 = vld [vmem:[#allocation11 + $0x6f0] sm:$0xff]
    %v5683 = vld [vmem:[#allocation11 + $0x6f8] sm:$0xff]
    %v5684 = vld [vmem:[#allocation11 + $0x700] sm:$0xff]
    %v5685 = vld [vmem:[#allocation11 + $0x708] sm:$0xff]
    %v5686 = vld [vmem:[#allocation11 + $0x710] sm:$0xff]
    %v5687 = vld [vmem:[#allocation11 + $0x718] sm:$0xff]
    %v5688 = vld [vmem:[#allocation11 + $0x720] sm:$0xff]
    %v5689 = vld [vmem:[#allocation11 + $0x728] sm:$0xff]
    %v5690 = vld [vmem:[#allocation11 + $0x730] sm:$0xff]
    %v5691 = vld [vmem:[#allocation11 + $0x738] sm:$0xff]
    %v5692 = vld [vmem:[#allocation11 + $0x740] sm:$0xff]
    %v5693 = vld [vmem:[#allocation11 + $0x748] sm:$0xff]
    %v5694 = vld [vmem:[#allocation11 + $0x750] sm:$0xff]
    %v5695 = vld [vmem:[#allocation11 + $0x758] sm:$0xff]
    %v5696 = vld [vmem:[#allocation11 + $0x760] sm:$0xff]
    %v5697 = vld [vmem:[#allocation11 + $0x768] sm:$0xff]
    %v5698 = vld [vmem:[#allocation11 + $0x770] sm:$0xff]
    %v5699 = vld [vmem:[#allocation11 + $0x778] sm:$0xff]
    %v5700 = vld [vmem:[#allocation11 + $0x780] sm:$0xff]
    %v5701 = vld [vmem:[#allocation11 + $0x788] sm:$0xff]
    %v5702 = vld [vmem:[#allocation11 + $0x790] sm:$0xff]
    %v5703 = vld [vmem:[#allocation11 + $0x798] sm:$0xff]
    %v5704 = vld [vmem:[#allocation11 + $0x7a0] sm:$0xff]
    %v5705 = vld [vmem:[#allocation11 + $0x7a8] sm:$0xff]
    %v5706 = vld [vmem:[#allocation11 + $0x7b0] sm:$0xff]
    %v5707 = vld [vmem:[#allocation11 + $0x7b8] sm:$0xff]
    %v5708 = vld [vmem:[#allocation11 + $0x7c0] sm:$0xff]
    %v5709 = vld [vmem:[#allocation11 + $0x7c8] sm:$0xff]
    %v5710 = vld [vmem:[#allocation11 + $0x7d0] sm:$0xff]
    %v5711 = vld [vmem:[#allocation11 + $0x7d8] sm:$0xff]
    %v5712 = vld [vmem:[#allocation11 + $0x7e0] sm:$0xff]
    %v5713 = vld [vmem:[#allocation11 + $0x7e8] sm:$0xff]
    %v5714 = vld [vmem:[#allocation11 + $0x7f0] sm:$0xff]
    %v5715 = vld [vmem:[#allocation11 + $0x7f8] sm:$0xff]
    %v5972 = vunpack.c.l.b16 %v5460
    %v5973 = vunpack.c.h.b16 %v5460
    %v5974 = vunpack.c.l.b16 %v5461
    %v5975 = vunpack.c.h.b16 %v5461
    %v5976 = vunpack.c.l.b16 %v5462
    %v5977 = vunpack.c.h.b16 %v5462
    %v5978 = vunpack.c.l.b16 %v5463
    %v5979 = vunpack.c.h.b16 %v5463
    %v5980 = vunpack.c.l.b16 %v5464
    %v5981 = vunpack.c.h.b16 %v5464
    %v5982 = vunpack.c.l.b16 %v5465
    %v5983 = vunpack.c.h.b16 %v5465
    %v5984 = vunpack.c.l.b16 %v5466
    %v5985 = vunpack.c.h.b16 %v5466
    %v5986 = vunpack.c.l.b16 %v5467
    %v5987 = vunpack.c.h.b16 %v5467
    %v5988 = vunpack.c.l.b16 %v5468
    %v5989 = vunpack.c.h.b16 %v5468
    %v5990 = vunpack.c.l.b16 %v5469
    %v5991 = vunpack.c.h.b16 %v5469
    %v5992 = vunpack.c.l.b16 %v5470
    %v5993 = vunpack.c.h.b16 %v5470
    %v5994 = vunpack.c.l.b16 %v5471
    %v5995 = vunpack.c.h.b16 %v5471
    %v5996 = vunpack.c.l.b16 %v5472
    %v5997 = vunpack.c.h.b16 %v5472
    %v5998 = vunpack.c.l.b16 %v5473
    %v5999 = vunpack.c.h.b16 %v5473
    %v6000 = vunpack.c.l.b16 %v5474
    %v6001 = vunpack.c.h.b16 %v5474
    %v6002 = vunpack.c.l.b16 %v5475
    %v6003 = vunpack.c.h.b16 %v5475
    %v6004 = vunpack.c.l.b16 %v5476
    %v6005 = vunpack.c.h.b16 %v5476
    %v6006 = vunpack.c.l.b16 %v5477
    %v6007 = vunpack.c.h.b16 %v5477
    %v6008 = vunpack.c.l.b16 %v5478
    %v6009 = vunpack.c.h.b16 %v5478
    %v6010 = vunpack.c.l.b16 %v5479
    %v6011 = vunpack.c.h.b16 %v5479
    %v6012 = vunpack.c.l.b16 %v5480
    %v6013 = vunpack.c.h.b16 %v5480
    %v6014 = vunpack.c.l.b16 %v5481
    %v6015 = vunpack.c.h.b16 %v5481
    %v6016 = vunpack.c.l.b16 %v5482
    %v6017 = vunpack.c.h.b16 %v5482
    %v6018 = vunpack.c.l.b16 %v5483
    %v6019 = vunpack.c.h.b16 %v5483
    %v6020 = vunpack.c.l.b16 %v5484
    %v6021 = vunpack.c.h.b16 %v5484
    %v6022 = vunpack.c.l.b16 %v5485
    %v6023 = vunpack.c.h.b16 %v5485
    %v6024 = vunpack.c.l.b16 %v5486
    %v6025 = vunpack.c.h.b16 %v5486
    %v6026 = vunpack.c.l.b16 %v5487
    %v6027 = vunpack.c.h.b16 %v5487
    %v6028 = vunpack.c.l.b16 %v5488
    %v6029 = vunpack.c.h.b16 %v5488
    %v6030 = vunpack.c.l.b16 %v5489
    %v6031 = vunpack.c.h.b16 %v5489
    %v6032 = vunpack.c.l.b16 %v5490
    %v6033 = vunpack.c.h.b16 %v5490
    %v6034 = vunpack.c.l.b16 %v5491
    %v6035 = vunpack.c.h.b16 %v5491
    %v6036 = vunpack.c.l.b16 %v5492
    %v6037 = vunpack.c.h.b16 %v5492
    %v6038 = vunpack.c.l.b16 %v5493
    %v6039 = vunpack.c.h.b16 %v5493
    %v6040 = vunpack.c.l.b16 %v5494
    %v6041 = vunpack.c.h.b16 %v5494
    %v6042 = vunpack.c.l.b16 %v5495
    %v6043 = vunpack.c.h.b16 %v5495
    %v6044 = vunpack.c.l.b16 %v5496
    %v6045 = vunpack.c.h.b16 %v5496
    %v6046 = vunpack.c.l.b16 %v5497
    %v6047 = vunpack.c.h.b16 %v5497
    %v6048 = vunpack.c.l.b16 %v5498
    %v6049 = vunpack.c.h.b16 %v5498
    %v6050 = vunpack.c.l.b16 %v5499
    %v6051 = vunpack.c.h.b16 %v5499
    %v6052 = vunpack.c.l.b16 %v5500
    %v6053 = vunpack.c.h.b16 %v5500
    %v6054 = vunpack.c.l.b16 %v5501
    %v6055 = vunpack.c.h.b16 %v5501
    %v6056 = vunpack.c.l.b16 %v5502
    %v6057 = vunpack.c.h.b16 %v5502
    %v6058 = vunpack.c.l.b16 %v5503
    %v6059 = vunpack.c.h.b16 %v5503
    %v6060 = vunpack.c.l.b16 %v5504
    %v6061 = vunpack.c.h.b16 %v5504
    %v6062 = vunpack.c.l.b16 %v5505
    %v6063 = vunpack.c.h.b16 %v5505
    %v6064 = vunpack.c.l.b16 %v5506
    %v6065 = vunpack.c.h.b16 %v5506
    %v6066 = vunpack.c.l.b16 %v5507
    %v6067 = vunpack.c.h.b16 %v5507
    %v6068 = vunpack.c.l.b16 %v5508
    %v6069 = vunpack.c.h.b16 %v5508
    %v6070 = vunpack.c.l.b16 %v5509
    %v6071 = vunpack.c.h.b16 %v5509
    %v6072 = vunpack.c.l.b16 %v5510
    %v6073 = vunpack.c.h.b16 %v5510
    %v6074 = vunpack.c.l.b16 %v5511
    %v6075 = vunpack.c.h.b16 %v5511
    %v6076 = vunpack.c.l.b16 %v5512
    %v6077 = vunpack.c.h.b16 %v5512
    %v6078 = vunpack.c.l.b16 %v5513
    %v6079 = vunpack.c.h.b16 %v5513
    %v6080 = vunpack.c.l.b16 %v5514
    %v6081 = vunpack.c.h.b16 %v5514
    %v6082 = vunpack.c.l.b16 %v5515
    %v6083 = vunpack.c.h.b16 %v5515
    %v6084 = vunpack.c.l.b16 %v5516
    %v6085 = vunpack.c.h.b16 %v5516
    %v6086 = vunpack.c.l.b16 %v5517
    %v6087 = vunpack.c.h.b16 %v5517
    %v6088 = vunpack.c.l.b16 %v5518
    %v6089 = vunpack.c.h.b16 %v5518
    %v6090 = vunpack.c.l.b16 %v5519
    %v6091 = vunpack.c.h.b16 %v5519
    %v6092 = vunpack.c.l.b16 %v5520
    %v6093 = vunpack.c.h.b16 %v5520
    %v6094 = vunpack.c.l.b16 %v5521
    %v6095 = vunpack.c.h.b16 %v5521
    %v6096 = vunpack.c.l.b16 %v5522
    %v6097 = vunpack.c.h.b16 %v5522
    %v6098 = vunpack.c.l.b16 %v5523
    %v6099 = vunpack.c.h.b16 %v5523
    %v6100 = vunpack.c.l.b16 %v5524
    %v6101 = vunpack.c.h.b16 %v5524
    %v6102 = vunpack.c.l.b16 %v5525
    %v6103 = vunpack.c.h.b16 %v5525
    %v6104 = vunpack.c.l.b16 %v5526
    %v6105 = vunpack.c.h.b16 %v5526
    %v6106 = vunpack.c.l.b16 %v5527
    %v6107 = vunpack.c.h.b16 %v5527
    %v6108 = vunpack.c.l.b16 %v5528
    %v6109 = vunpack.c.h.b16 %v5528
    %v6110 = vunpack.c.l.b16 %v5529
    %v6111 = vunpack.c.h.b16 %v5529
    %v6112 = vunpack.c.l.b16 %v5530
    %v6113 = vunpack.c.h.b16 %v5530
    %v6114 = vunpack.c.l.b16 %v5531
    %v6115 = vunpack.c.h.b16 %v5531
    %v6116 = vunpack.c.l.b16 %v5532
    %v6117 = vunpack.c.h.b16 %v5532
    %v6118 = vunpack.c.l.b16 %v5533
    %v6119 = vunpack.c.h.b16 %v5533
    %v6120 = vunpack.c.l.b16 %v5534
    %v6121 = vunpack.c.h.b16 %v5534
    %v6122 = vunpack.c.l.b16 %v5535
    %v6123 = vunpack.c.h.b16 %v5535
    %v6124 = vunpack.c.l.b16 %v5536
    %v6125 = vunpack.c.h.b16 %v5536
    %v6126 = vunpack.c.l.b16 %v5537
    %v6127 = vunpack.c.h.b16 %v5537
    %v6128 = vunpack.c.l.b16 %v5538
    %v6129 = vunpack.c.h.b16 %v5538
    %v6130 = vunpack.c.l.b16 %v5539
    %v6131 = vunpack.c.h.b16 %v5539
    %v6132 = vunpack.c.l.b16 %v5540
    %v6133 = vunpack.c.h.b16 %v5540
    %v6134 = vunpack.c.l.b16 %v5541
    %v6135 = vunpack.c.h.b16 %v5541
    %v6136 = vunpack.c.l.b16 %v5542
    %v6137 = vunpack.c.h.b16 %v5542
    %v6138 = vunpack.c.l.b16 %v5543
    %v6139 = vunpack.c.h.b16 %v5543
    %v6140 = vunpack.c.l.b16 %v5544
    %v6141 = vunpack.c.h.b16 %v5544
    %v6142 = vunpack.c.l.b16 %v5545
    %v6143 = vunpack.c.h.b16 %v5545
    %v6144 = vunpack.c.l.b16 %v5546
    %v6145 = vunpack.c.h.b16 %v5546
    %v6146 = vunpack.c.l.b16 %v5547
    %v6147 = vunpack.c.h.b16 %v5547
    %v6148 = vunpack.c.l.b16 %v5548
    %v6149 = vunpack.c.h.b16 %v5548
    %v6150 = vunpack.c.l.b16 %v5549
    %v6151 = vunpack.c.h.b16 %v5549
    %v6152 = vunpack.c.l.b16 %v5550
    %v6153 = vunpack.c.h.b16 %v5550
    %v6154 = vunpack.c.l.b16 %v5551
    %v6155 = vunpack.c.h.b16 %v5551
    %v6156 = vunpack.c.l.b16 %v5552
    %v6157 = vunpack.c.h.b16 %v5552
    %v6158 = vunpack.c.l.b16 %v5553
    %v6159 = vunpack.c.h.b16 %v5553
    %v6160 = vunpack.c.l.b16 %v5554
    %v6161 = vunpack.c.h.b16 %v5554
    %v6162 = vunpack.c.l.b16 %v5555
    %v6163 = vunpack.c.h.b16 %v5555
    %v6164 = vunpack.c.l.b16 %v5556
    %v6165 = vunpack.c.h.b16 %v5556
    %v6166 = vunpack.c.l.b16 %v5557
    %v6167 = vunpack.c.h.b16 %v5557
    %v6168 = vunpack.c.l.b16 %v5558
    %v6169 = vunpack.c.h.b16 %v5558
    %v6170 = vunpack.c.l.b16 %v5559
    %v6171 = vunpack.c.h.b16 %v5559
    %v6172 = vunpack.c.l.b16 %v5560
    %v6173 = vunpack.c.h.b16 %v5560
    %v6174 = vunpack.c.l.b16 %v5561
    %v6175 = vunpack.c.h.b16 %v5561
    %v6176 = vunpack.c.l.b16 %v5562
    %v6177 = vunpack.c.h.b16 %v5562
    %v6178 = vunpack.c.l.b16 %v5563
    %v6179 = vunpack.c.h.b16 %v5563
    %v6180 = vunpack.c.l.b16 %v5564
    %v6181 = vunpack.c.h.b16 %v5564
    %v6182 = vunpack.c.l.b16 %v5565
    %v6183 = vunpack.c.h.b16 %v5565
    %v6184 = vunpack.c.l.b16 %v5566
    %v6185 = vunpack.c.h.b16 %v5566
    %v6186 = vunpack.c.l.b16 %v5567
    %v6187 = vunpack.c.h.b16 %v5567
    %v6188 = vunpack.c.l.b16 %v5568
    %v6189 = vunpack.c.h.b16 %v5568
    %v6190 = vunpack.c.l.b16 %v5569
    %v6191 = vunpack.c.h.b16 %v5569
    %v6192 = vunpack.c.l.b16 %v5570
    %v6193 = vunpack.c.h.b16 %v5570
    %v6194 = vunpack.c.l.b16 %v5571
    %v6195 = vunpack.c.h.b16 %v5571
    %v6196 = vunpack.c.l.b16 %v5572
    %v6197 = vunpack.c.h.b16 %v5572
    %v6198 = vunpack.c.l.b16 %v5573
    %v6199 = vunpack.c.h.b16 %v5573
    %v6200 = vunpack.c.l.b16 %v5574
    %v6201 = vunpack.c.h.b16 %v5574
    %v6202 = vunpack.c.l.b16 %v5575
    %v6203 = vunpack.c.h.b16 %v5575
    %v6204 = vunpack.c.l.b16 %v5576
    %v6205 = vunpack.c.h.b16 %v5576
    %v6206 = vunpack.c.l.b16 %v5577
    %v6207 = vunpack.c.h.b16 %v5577
    %v6208 = vunpack.c.l.b16 %v5578
    %v6209 = vunpack.c.h.b16 %v5578
    %v6210 = vunpack.c.l.b16 %v5579
    %v6211 = vunpack.c.h.b16 %v5579
    %v6212 = vunpack.c.l.b16 %v5580
    %v6213 = vunpack.c.h.b16 %v5580
    %v6214 = vunpack.c.l.b16 %v5581
    %v6215 = vunpack.c.h.b16 %v5581
    %v6216 = vunpack.c.l.b16 %v5582
    %v6217 = vunpack.c.h.b16 %v5582
    %v6218 = vunpack.c.l.b16 %v5583
    %v6219 = vunpack.c.h.b16 %v5583
    %v6220 = vunpack.c.l.b16 %v5584
    %v6221 = vunpack.c.h.b16 %v5584
    %v6222 = vunpack.c.l.b16 %v5585
    %v6223 = vunpack.c.h.b16 %v5585
    %v6224 = vunpack.c.l.b16 %v5586
    %v6225 = vunpack.c.h.b16 %v5586
    %v6226 = vunpack.c.l.b16 %v5587
    %v6227 = vunpack.c.h.b16 %v5587
    %v6228 = vunpack.c.l.b16 %v5588
    %v6229 = vunpack.c.h.b16 %v5588
    %v6230 = vunpack.c.l.b16 %v5589
    %v6231 = vunpack.c.h.b16 %v5589
    %v6232 = vunpack.c.l.b16 %v5590
    %v6233 = vunpack.c.h.b16 %v5590
    %v6234 = vunpack.c.l.b16 %v5591
    %v6235 = vunpack.c.h.b16 %v5591
    %v6236 = vunpack.c.l.b16 %v5592
    %v6237 = vunpack.c.h.b16 %v5592
    %v6238 = vunpack.c.l.b16 %v5593
    %v6239 = vunpack.c.h.b16 %v5593
    %v6240 = vunpack.c.l.b16 %v5594
    %v6241 = vunpack.c.h.b16 %v5594
    %v6242 = vunpack.c.l.b16 %v5595
    %v6243 = vunpack.c.h.b16 %v5595
    %v6244 = vunpack.c.l.b16 %v5596
    %v6245 = vunpack.c.h.b16 %v5596
    %v6246 = vunpack.c.l.b16 %v5597
    %v6247 = vunpack.c.h.b16 %v5597
    %v6248 = vunpack.c.l.b16 %v5598
    %v6249 = vunpack.c.h.b16 %v5598
    %v6250 = vunpack.c.l.b16 %v5599
    %v6251 = vunpack.c.h.b16 %v5599
    %v6252 = vunpack.c.l.b16 %v5600
    %v6253 = vunpack.c.h.b16 %v5600
    %v6254 = vunpack.c.l.b16 %v5601
    %v6255 = vunpack.c.h.b16 %v5601
    %v6256 = vunpack.c.l.b16 %v5602
    %v6257 = vunpack.c.h.b16 %v5602
    %v6258 = vunpack.c.l.b16 %v5603
    %v6259 = vunpack.c.h.b16 %v5603
    %v6260 = vunpack.c.l.b16 %v5604
    %v6261 = vunpack.c.h.b16 %v5604
    %v6262 = vunpack.c.l.b16 %v5605
    %v6263 = vunpack.c.h.b16 %v5605
    %v6264 = vunpack.c.l.b16 %v5606
    %v6265 = vunpack.c.h.b16 %v5606
    %v6266 = vunpack.c.l.b16 %v5607
    %v6267 = vunpack.c.h.b16 %v5607
    %v6268 = vunpack.c.l.b16 %v5608
    %v6269 = vunpack.c.h.b16 %v5608
    %v6270 = vunpack.c.l.b16 %v5609
    %v6271 = vunpack.c.h.b16 %v5609
    %v6272 = vunpack.c.l.b16 %v5610
    %v6273 = vunpack.c.h.b16 %v5610
    %v6274 = vunpack.c.l.b16 %v5611
    %v6275 = vunpack.c.h.b16 %v5611
    %v6276 = vunpack.c.l.b16 %v5612
    %v6277 = vunpack.c.h.b16 %v5612
    %v6278 = vunpack.c.l.b16 %v5613
    %v6279 = vunpack.c.h.b16 %v5613
    %v6280 = vunpack.c.l.b16 %v5614
    %v6281 = vunpack.c.h.b16 %v5614
    %v6282 = vunpack.c.l.b16 %v5615
    %v6283 = vunpack.c.h.b16 %v5615
    %v6284 = vunpack.c.l.b16 %v5616
    %v6285 = vunpack.c.h.b16 %v5616
    %v6286 = vunpack.c.l.b16 %v5617
    %v6287 = vunpack.c.h.b16 %v5617
    %v6288 = vunpack.c.l.b16 %v5618
    %v6289 = vunpack.c.h.b16 %v5618
    %v6290 = vunpack.c.l.b16 %v5619
    %v6291 = vunpack.c.h.b16 %v5619
    %v6292 = vunpack.c.l.b16 %v5620
    %v6293 = vunpack.c.h.b16 %v5620
    %v6294 = vunpack.c.l.b16 %v5621
    %v6295 = vunpack.c.h.b16 %v5621
    %v6296 = vunpack.c.l.b16 %v5622
    %v6297 = vunpack.c.h.b16 %v5622
    %v6298 = vunpack.c.l.b16 %v5623
    %v6299 = vunpack.c.h.b16 %v5623
    %v6300 = vunpack.c.l.b16 %v5624
    %v6301 = vunpack.c.h.b16 %v5624
    %v6302 = vunpack.c.l.b16 %v5625
    %v6303 = vunpack.c.h.b16 %v5625
    %v6304 = vunpack.c.l.b16 %v5626
    %v6305 = vunpack.c.h.b16 %v5626
    %v6306 = vunpack.c.l.b16 %v5627
    %v6307 = vunpack.c.h.b16 %v5627
    %v6308 = vunpack.c.l.b16 %v5628
    %v6309 = vunpack.c.h.b16 %v5628
    %v6310 = vunpack.c.l.b16 %v5629
    %v6311 = vunpack.c.h.b16 %v5629
    %v6312 = vunpack.c.l.b16 %v5630
    %v6313 = vunpack.c.h.b16 %v5630
    %v6314 = vunpack.c.l.b16 %v5631
    %v6315 = vunpack.c.h.b16 %v5631
    %v6316 = vunpack.c.l.b16 %v5632
    %v6317 = vunpack.c.h.b16 %v5632
    %v6318 = vunpack.c.l.b16 %v5633
    %v6319 = vunpack.c.h.b16 %v5633
    %v6320 = vunpack.c.l.b16 %v5634
    %v6321 = vunpack.c.h.b16 %v5634
    %v6322 = vunpack.c.l.b16 %v5635
    %v6323 = vunpack.c.h.b16 %v5635
    %v6324 = vunpack.c.l.b16 %v5636
    %v6325 = vunpack.c.h.b16 %v5636
    %v6326 = vunpack.c.l.b16 %v5637
    %v6327 = vunpack.c.h.b16 %v5637
    %v6328 = vunpack.c.l.b16 %v5638
    %v6329 = vunpack.c.h.b16 %v5638
    %v6330 = vunpack.c.l.b16 %v5639
    %v6331 = vunpack.c.h.b16 %v5639
    %v6332 = vunpack.c.l.b16 %v5640
    %v6333 = vunpack.c.h.b16 %v5640
    %v6334 = vunpack.c.l.b16 %v5641
    %v6335 = vunpack.c.h.b16 %v5641
    %v6336 = vunpack.c.l.b16 %v5642
    %v6337 = vunpack.c.h.b16 %v5642
    %v6338 = vunpack.c.l.b16 %v5643
    %v6339 = vunpack.c.h.b16 %v5643
    %v6340 = vunpack.c.l.b16 %v5644
    %v6341 = vunpack.c.h.b16 %v5644
    %v6342 = vunpack.c.l.b16 %v5645
    %v6343 = vunpack.c.h.b16 %v5645
    %v6344 = vunpack.c.l.b16 %v5646
    %v6345 = vunpack.c.h.b16 %v5646
    %v6346 = vunpack.c.l.b16 %v5647
    %v6347 = vunpack.c.h.b16 %v5647
    %v6348 = vunpack.c.l.b16 %v5648
    %v6349 = vunpack.c.h.b16 %v5648
    %v6350 = vunpack.c.l.b16 %v5649
    %v6351 = vunpack.c.h.b16 %v5649
    %v6352 = vunpack.c.l.b16 %v5650
    %v6353 = vunpack.c.h.b16 %v5650
    %v6354 = vunpack.c.l.b16 %v5651
    %v6355 = vunpack.c.h.b16 %v5651
    %v6356 = vunpack.c.l.b16 %v5652
    %v6357 = vunpack.c.h.b16 %v5652
    %v6358 = vunpack.c.l.b16 %v5653
    %v6359 = vunpack.c.h.b16 %v5653
    %v6360 = vunpack.c.l.b16 %v5654
    %v6361 = vunpack.c.h.b16 %v5654
    %v6362 = vunpack.c.l.b16 %v5655
    %v6363 = vunpack.c.h.b16 %v5655
    %v6364 = vunpack.c.l.b16 %v5656
    %v6365 = vunpack.c.h.b16 %v5656
    %v6366 = vunpack.c.l.b16 %v5657
    %v6367 = vunpack.c.h.b16 %v5657
    %v6368 = vunpack.c.l.b16 %v5658
    %v6369 = vunpack.c.h.b16 %v5658
    %v6370 = vunpack.c.l.b16 %v5659
    %v6371 = vunpack.c.h.b16 %v5659
    %v6372 = vunpack.c.l.b16 %v5660
    %v6373 = vunpack.c.h.b16 %v5660
    %v6374 = vunpack.c.l.b16 %v5661
    %v6375 = vunpack.c.h.b16 %v5661
    %v6376 = vunpack.c.l.b16 %v5662
    %v6377 = vunpack.c.h.b16 %v5662
    %v6378 = vunpack.c.l.b16 %v5663
    %v6379 = vunpack.c.h.b16 %v5663
    %v6380 = vunpack.c.l.b16 %v5664
    %v6381 = vunpack.c.h.b16 %v5664
    %v6382 = vunpack.c.l.b16 %v5665
    %v6383 = vunpack.c.h.b16 %v5665
    %v6384 = vunpack.c.l.b16 %v5666
    %v6385 = vunpack.c.h.b16 %v5666
    %v6386 = vunpack.c.l.b16 %v5667
    %v6387 = vunpack.c.h.b16 %v5667
    %v6388 = vunpack.c.l.b16 %v5668
    %v6389 = vunpack.c.h.b16 %v5668
    %v6390 = vunpack.c.l.b16 %v5669
    %v6391 = vunpack.c.h.b16 %v5669
    %v6392 = vunpack.c.l.b16 %v5670
    %v6393 = vunpack.c.h.b16 %v5670
    %v6394 = vunpack.c.l.b16 %v5671
    %v6395 = vunpack.c.h.b16 %v5671
    %v6396 = vunpack.c.l.b16 %v5672
    %v6397 = vunpack.c.h.b16 %v5672
    %v6398 = vunpack.c.l.b16 %v5673
    %v6399 = vunpack.c.h.b16 %v5673
    %v6400 = vunpack.c.l.b16 %v5674
    %v6401 = vunpack.c.h.b16 %v5674
    %v6402 = vunpack.c.l.b16 %v5675
    %v6403 = vunpack.c.h.b16 %v5675
    %v6404 = vunpack.c.l.b16 %v5676
    %v6405 = vunpack.c.h.b16 %v5676
    %v6406 = vunpack.c.l.b16 %v5677
    %v6407 = vunpack.c.h.b16 %v5677
    %v6408 = vunpack.c.l.b16 %v5678
    %v6409 = vunpack.c.h.b16 %v5678
    %v6410 = vunpack.c.l.b16 %v5679
    %v6411 = vunpack.c.h.b16 %v5679
    %v6412 = vunpack.c.l.b16 %v5680
    %v6413 = vunpack.c.h.b16 %v5680
    %v6414 = vunpack.c.l.b16 %v5681
    %v6415 = vunpack.c.h.b16 %v5681
    %v6416 = vunpack.c.l.b16 %v5682
    %v6417 = vunpack.c.h.b16 %v5682
    %v6418 = vunpack.c.l.b16 %v5683
    %v6419 = vunpack.c.h.b16 %v5683
    %v6420 = vunpack.c.l.b16 %v5684
    %v6421 = vunpack.c.h.b16 %v5684
    %v6422 = vunpack.c.l.b16 %v5685
    %v6423 = vunpack.c.h.b16 %v5685
    %v6424 = vunpack.c.l.b16 %v5686
    %v6425 = vunpack.c.h.b16 %v5686
    %v6426 = vunpack.c.l.b16 %v5687
    %v6427 = vunpack.c.h.b16 %v5687
    %v6428 = vunpack.c.l.b16 %v5688
    %v6429 = vunpack.c.h.b16 %v5688
    %v6430 = vunpack.c.l.b16 %v5689
    %v6431 = vunpack.c.h.b16 %v5689
    %v6432 = vunpack.c.l.b16 %v5690
    %v6433 = vunpack.c.h.b16 %v5690
    %v6434 = vunpack.c.l.b16 %v5691
    %v6435 = vunpack.c.h.b16 %v5691
    %v6436 = vunpack.c.l.b16 %v5692
    %v6437 = vunpack.c.h.b16 %v5692
    %v6438 = vunpack.c.l.b16 %v5693
    %v6439 = vunpack.c.h.b16 %v5693
    %v6440 = vunpack.c.l.b16 %v5694
    %v6441 = vunpack.c.h.b16 %v5694
    %v6442 = vunpack.c.l.b16 %v5695
    %v6443 = vunpack.c.h.b16 %v5695
    %v6444 = vunpack.c.l.b16 %v5696
    %v6445 = vunpack.c.h.b16 %v5696
    %v6446 = vunpack.c.l.b16 %v5697
    %v6447 = vunpack.c.h.b16 %v5697
    %v6448 = vunpack.c.l.b16 %v5698
    %v6449 = vunpack.c.h.b16 %v5698
    %v6450 = vunpack.c.l.b16 %v5699
    %v6451 = vunpack.c.h.b16 %v5699
    %v6452 = vunpack.c.l.b16 %v5700
    %v6453 = vunpack.c.h.b16 %v5700
    %v6454 = vunpack.c.l.b16 %v5701
    %v6455 = vunpack.c.h.b16 %v5701
    %v6456 = vunpack.c.l.b16 %v5702
    %v6457 = vunpack.c.h.b16 %v5702
    %v6458 = vunpack.c.l.b16 %v5703
    %v6459 = vunpack.c.h.b16 %v5703
    %v6460 = vunpack.c.l.b16 %v5704
    %v6461 = vunpack.c.h.b16 %v5704
    %v6462 = vunpack.c.l.b16 %v5705
    %v6463 = vunpack.c.h.b16 %v5705
    %v6464 = vunpack.c.l.b16 %v5706
    %v6465 = vunpack.c.h.b16 %v5706
    %v6466 = vunpack.c.l.b16 %v5707
    %v6467 = vunpack.c.h.b16 %v5707
    %v6468 = vunpack.c.l.b16 %v5708
    %v6469 = vunpack.c.h.b16 %v5708
    %v6470 = vunpack.c.l.b16 %v5709
    %v6471 = vunpack.c.h.b16 %v5709
    %v6472 = vunpack.c.l.b16 %v5710
    %v6473 = vunpack.c.h.b16 %v5710
    %v6474 = vunpack.c.l.b16 %v5711
    %v6475 = vunpack.c.h.b16 %v5711
    %v6476 = vunpack.c.l.b16 %v5712
    %v6477 = vunpack.c.h.b16 %v5712
    %v6478 = vunpack.c.l.b16 %v5713
    %v6479 = vunpack.c.h.b16 %v5713
    %v6480 = vunpack.c.l.b16 %v5714
    %v6481 = vunpack.c.h.b16 %v5714
    %v6482 = vunpack.c.l.b16 %v5715
    %v6483 = vunpack.c.h.b16 %v5715
    %v6484 = vpack.c.b16 %v5976, %v5972
    %v6485 = vpack.c.b16 %v5977, %v5973
    %v6486 = vpack.c.b16 %v5978, %v5974
    %v6487 = vpack.c.b16 %v5979, %v5975
    %v6488 = vpack.c.b16 %v5984, %v5980
    %v6489 = vpack.c.b16 %v5985, %v5981
    %v6490 = vpack.c.b16 %v5986, %v5982
    %v6491 = vpack.c.b16 %v5987, %v5983
    %v6492 = vpack.c.b16 %v5992, %v5988
    %v6493 = vpack.c.b16 %v5993, %v5989
    %v6494 = vpack.c.b16 %v5994, %v5990
    %v6495 = vpack.c.b16 %v5995, %v5991
    %v6496 = vpack.c.b16 %v6000, %v5996
    %v6497 = vpack.c.b16 %v6001, %v5997
    %v6498 = vpack.c.b16 %v6002, %v5998
    %v6499 = vpack.c.b16 %v6003, %v5999
    %v6500 = vpack.c.b16 %v6008, %v6004
    %v6501 = vpack.c.b16 %v6009, %v6005
    %v6502 = vpack.c.b16 %v6010, %v6006
    %v6503 = vpack.c.b16 %v6011, %v6007
    %v6504 = vpack.c.b16 %v6016, %v6012
    %v6505 = vpack.c.b16 %v6017, %v6013
    %v6506 = vpack.c.b16 %v6018, %v6014
    %v6507 = vpack.c.b16 %v6019, %v6015
    %v6508 = vpack.c.b16 %v6024, %v6020
    %v6509 = vpack.c.b16 %v6025, %v6021
    %v6510 = vpack.c.b16 %v6026, %v6022
    %v6511 = vpack.c.b16 %v6027, %v6023
    %v6512 = vpack.c.b16 %v6032, %v6028
    %v6513 = vpack.c.b16 %v6033, %v6029
    %v6514 = vpack.c.b16 %v6034, %v6030
    %v6515 = vpack.c.b16 %v6035, %v6031
    %v6516 = vpack.c.b16 %v6040, %v6036
    %v6517 = vpack.c.b16 %v6041, %v6037
    %v6518 = vpack.c.b16 %v6042, %v6038
    %v6519 = vpack.c.b16 %v6043, %v6039
    %v6520 = vpack.c.b16 %v6048, %v6044
    %v6521 = vpack.c.b16 %v6049, %v6045
    %v6522 = vpack.c.b16 %v6050, %v6046
    %v6523 = vpack.c.b16 %v6051, %v6047
    %v6524 = vpack.c.b16 %v6056, %v6052
    %v6525 = vpack.c.b16 %v6057, %v6053
    %v6526 = vpack.c.b16 %v6058, %v6054
    %v6527 = vpack.c.b16 %v6059, %v6055
    %v6528 = vpack.c.b16 %v6064, %v6060
    %v6529 = vpack.c.b16 %v6065, %v6061
    %v6530 = vpack.c.b16 %v6066, %v6062
    %v6531 = vpack.c.b16 %v6067, %v6063
    %v6532 = vpack.c.b16 %v6072, %v6068
    %v6533 = vpack.c.b16 %v6073, %v6069
    %v6534 = vpack.c.b16 %v6074, %v6070
    %v6535 = vpack.c.b16 %v6075, %v6071
    %v6536 = vpack.c.b16 %v6080, %v6076
    %v6537 = vpack.c.b16 %v6081, %v6077
    %v6538 = vpack.c.b16 %v6082, %v6078
    %v6539 = vpack.c.b16 %v6083, %v6079
    %v6540 = vpack.c.b16 %v6088, %v6084
    %v6541 = vpack.c.b16 %v6089, %v6085
    %v6542 = vpack.c.b16 %v6090, %v6086
    %v6543 = vpack.c.b16 %v6091, %v6087
    %v6544 = vpack.c.b16 %v6096, %v6092
    %v6545 = vpack.c.b16 %v6097, %v6093
    %v6546 = vpack.c.b16 %v6098, %v6094
    %v6547 = vpack.c.b16 %v6099, %v6095
    %v6548 = vpack.c.b16 %v6104, %v6100
    %v6549 = vpack.c.b16 %v6105, %v6101
    %v6550 = vpack.c.b16 %v6106, %v6102
    %v6551 = vpack.c.b16 %v6107, %v6103
    %v6552 = vpack.c.b16 %v6112, %v6108
    %v6553 = vpack.c.b16 %v6113, %v6109
    %v6554 = vpack.c.b16 %v6114, %v6110
    %v6555 = vpack.c.b16 %v6115, %v6111
    %v6556 = vpack.c.b16 %v6120, %v6116
    %v6557 = vpack.c.b16 %v6121, %v6117
    %v6558 = vpack.c.b16 %v6122, %v6118
    %v6559 = vpack.c.b16 %v6123, %v6119
    %v6560 = vpack.c.b16 %v6128, %v6124
    %v6561 = vpack.c.b16 %v6129, %v6125
    %v6562 = vpack.c.b16 %v6130, %v6126
    %v6563 = vpack.c.b16 %v6131, %v6127
    %v6564 = vpack.c.b16 %v6136, %v6132
    %v6565 = vpack.c.b16 %v6137, %v6133
    %v6566 = vpack.c.b16 %v6138, %v6134
    %v6567 = vpack.c.b16 %v6139, %v6135
    %v6568 = vpack.c.b16 %v6144, %v6140
    %v6569 = vpack.c.b16 %v6145, %v6141
    %v6570 = vpack.c.b16 %v6146, %v6142
    %v6571 = vpack.c.b16 %v6147, %v6143
    %v6572 = vpack.c.b16 %v6152, %v6148
    %v6573 = vpack.c.b16 %v6153, %v6149
    %v6574 = vpack.c.b16 %v6154, %v6150
    %v6575 = vpack.c.b16 %v6155, %v6151
    %v6576 = vpack.c.b16 %v6160, %v6156
    %v6577 = vpack.c.b16 %v6161, %v6157
    %v6578 = vpack.c.b16 %v6162, %v6158
    %v6579 = vpack.c.b16 %v6163, %v6159
    %v6580 = vpack.c.b16 %v6168, %v6164
    %v6581 = vpack.c.b16 %v6169, %v6165
    %v6582 = vpack.c.b16 %v6170, %v6166
    %v6583 = vpack.c.b16 %v6171, %v6167
    %v6584 = vpack.c.b16 %v6176, %v6172
    %v6585 = vpack.c.b16 %v6177, %v6173
    %v6586 = vpack.c.b16 %v6178, %v6174
    %v6587 = vpack.c.b16 %v6179, %v6175
    %v6588 = vpack.c.b16 %v6184, %v6180
    %v6589 = vpack.c.b16 %v6185, %v6181
    %v6590 = vpack.c.b16 %v6186, %v6182
    %v6591 = vpack.c.b16 %v6187, %v6183
    %v6592 = vpack.c.b16 %v6192, %v6188
    %v6593 = vpack.c.b16 %v6193, %v6189
    %v6594 = vpack.c.b16 %v6194, %v6190
    %v6595 = vpack.c.b16 %v6195, %v6191
    %v6596 = vpack.c.b16 %v6200, %v6196
    %v6597 = vpack.c.b16 %v6201, %v6197
    %v6598 = vpack.c.b16 %v6202, %v6198
    %v6599 = vpack.c.b16 %v6203, %v6199
    %v6600 = vpack.c.b16 %v6208, %v6204
    %v6601 = vpack.c.b16 %v6209, %v6205
    %v6602 = vpack.c.b16 %v6210, %v6206
    %v6603 = vpack.c.b16 %v6211, %v6207
    %v6604 = vpack.c.b16 %v6216, %v6212
    %v6605 = vpack.c.b16 %v6217, %v6213
    %v6606 = vpack.c.b16 %v6218, %v6214
    %v6607 = vpack.c.b16 %v6219, %v6215
    %v6608 = vpack.c.b16 %v6224, %v6220
    %v6609 = vpack.c.b16 %v6225, %v6221
    %v6610 = vpack.c.b16 %v6226, %v6222
    %v6611 = vpack.c.b16 %v6227, %v6223
    %v6612 = vpack.c.b16 %v6232, %v6228
    %v6613 = vpack.c.b16 %v6233, %v6229
    %v6614 = vpack.c.b16 %v6234, %v6230
    %v6615 = vpack.c.b16 %v6235, %v6231
    %v6616 = vpack.c.b16 %v6240, %v6236
    %v6617 = vpack.c.b16 %v6241, %v6237
    %v6618 = vpack.c.b16 %v6242, %v6238
    %v6619 = vpack.c.b16 %v6243, %v6239
    %v6620 = vpack.c.b16 %v6248, %v6244
    %v6621 = vpack.c.b16 %v6249, %v6245
    %v6622 = vpack.c.b16 %v6250, %v6246
    %v6623 = vpack.c.b16 %v6251, %v6247
    %v6624 = vpack.c.b16 %v6256, %v6252
    %v6625 = vpack.c.b16 %v6257, %v6253
    %v6626 = vpack.c.b16 %v6258, %v6254
    %v6627 = vpack.c.b16 %v6259, %v6255
    %v6628 = vpack.c.b16 %v6264, %v6260
    %v6629 = vpack.c.b16 %v6265, %v6261
    %v6630 = vpack.c.b16 %v6266, %v6262
    %v6631 = vpack.c.b16 %v6267, %v6263
    %v6632 = vpack.c.b16 %v6272, %v6268
    %v6633 = vpack.c.b16 %v6273, %v6269
    %v6634 = vpack.c.b16 %v6274, %v6270
    %v6635 = vpack.c.b16 %v6275, %v6271
    %v6636 = vpack.c.b16 %v6280, %v6276
    %v6637 = vpack.c.b16 %v6281, %v6277
    %v6638 = vpack.c.b16 %v6282, %v6278
    %v6639 = vpack.c.b16 %v6283, %v6279
    %v6640 = vpack.c.b16 %v6288, %v6284
    %v6641 = vpack.c.b16 %v6289, %v6285
    %v6642 = vpack.c.b16 %v6290, %v6286
    %v6643 = vpack.c.b16 %v6291, %v6287
    %v6644 = vpack.c.b16 %v6296, %v6292
    %v6645 = vpack.c.b16 %v6297, %v6293
    %v6646 = vpack.c.b16 %v6298, %v6294
    %v6647 = vpack.c.b16 %v6299, %v6295
    %v6648 = vpack.c.b16 %v6304, %v6300
    %v6649 = vpack.c.b16 %v6305, %v6301
    %v6650 = vpack.c.b16 %v6306, %v6302
    %v6651 = vpack.c.b16 %v6307, %v6303
    %v6652 = vpack.c.b16 %v6312, %v6308
    %v6653 = vpack.c.b16 %v6313, %v6309
    %v6654 = vpack.c.b16 %v6314, %v6310
    %v6655 = vpack.c.b16 %v6315, %v6311
    %v6656 = vpack.c.b16 %v6320, %v6316
    %v6657 = vpack.c.b16 %v6321, %v6317
    %v6658 = vpack.c.b16 %v6322, %v6318
    %v6659 = vpack.c.b16 %v6323, %v6319
    %v6660 = vpack.c.b16 %v6328, %v6324
    %v6661 = vpack.c.b16 %v6329, %v6325
    %v6662 = vpack.c.b16 %v6330, %v6326
    %v6663 = vpack.c.b16 %v6331, %v6327
    %v6664 = vpack.c.b16 %v6336, %v6332
    %v6665 = vpack.c.b16 %v6337, %v6333
    %v6666 = vpack.c.b16 %v6338, %v6334
    %v6667 = vpack.c.b16 %v6339, %v6335
    %v6668 = vpack.c.b16 %v6344, %v6340
    %v6669 = vpack.c.b16 %v6345, %v6341
    %v6670 = vpack.c.b16 %v6346, %v6342
    %v6671 = vpack.c.b16 %v6347, %v6343
    %v6672 = vpack.c.b16 %v6352, %v6348
    %v6673 = vpack.c.b16 %v6353, %v6349
    %v6674 = vpack.c.b16 %v6354, %v6350
    %v6675 = vpack.c.b16 %v6355, %v6351
    %v6676 = vpack.c.b16 %v6360, %v6356
    %v6677 = vpack.c.b16 %v6361, %v6357
    %v6678 = vpack.c.b16 %v6362, %v6358
    %v6679 = vpack.c.b16 %v6363, %v6359
    %v6680 = vpack.c.b16 %v6368, %v6364
    %v6681 = vpack.c.b16 %v6369, %v6365
    %v6682 = vpack.c.b16 %v6370, %v6366
    %v6683 = vpack.c.b16 %v6371, %v6367
    %v6684 = vpack.c.b16 %v6376, %v6372
    %v6685 = vpack.c.b16 %v6377, %v6373
    %v6686 = vpack.c.b16 %v6378, %v6374
    %v6687 = vpack.c.b16 %v6379, %v6375
    %v6688 = vpack.c.b16 %v6384, %v6380
    %v6689 = vpack.c.b16 %v6385, %v6381
    %v6690 = vpack.c.b16 %v6386, %v6382
    %v6691 = vpack.c.b16 %v6387, %v6383
    %v6692 = vpack.c.b16 %v6392, %v6388
    %v6693 = vpack.c.b16 %v6393, %v6389
    %v6694 = vpack.c.b16 %v6394, %v6390
    %v6695 = vpack.c.b16 %v6395, %v6391
    %v6696 = vpack.c.b16 %v6400, %v6396
    %v6697 = vpack.c.b16 %v6401, %v6397
    %v6698 = vpack.c.b16 %v6402, %v6398
    %v6699 = vpack.c.b16 %v6403, %v6399
    %v6700 = vpack.c.b16 %v6408, %v6404
    %v6701 = vpack.c.b16 %v6409, %v6405
    %v6702 = vpack.c.b16 %v6410, %v6406
    %v6703 = vpack.c.b16 %v6411, %v6407
    %v6704 = vpack.c.b16 %v6416, %v6412
    %v6705 = vpack.c.b16 %v6417, %v6413
    %v6706 = vpack.c.b16 %v6418, %v6414
    %v6707 = vpack.c.b16 %v6419, %v6415
    %v6708 = vpack.c.b16 %v6424, %v6420
    %v6709 = vpack.c.b16 %v6425, %v6421
    %v6710 = vpack.c.b16 %v6426, %v6422
    %v6711 = vpack.c.b16 %v6427, %v6423
    %v6712 = vpack.c.b16 %v6432, %v6428
    %v6713 = vpack.c.b16 %v6433, %v6429
    %v6714 = vpack.c.b16 %v6434, %v6430
    %v6715 = vpack.c.b16 %v6435, %v6431
    %v6716 = vpack.c.b16 %v6440, %v6436
    %v6717 = vpack.c.b16 %v6441, %v6437
    %v6718 = vpack.c.b16 %v6442, %v6438
    %v6719 = vpack.c.b16 %v6443, %v6439
    %v6720 = vpack.c.b16 %v6448, %v6444
    %v6721 = vpack.c.b16 %v6449, %v6445
    %v6722 = vpack.c.b16 %v6450, %v6446
    %v6723 = vpack.c.b16 %v6451, %v6447
    %v6724 = vpack.c.b16 %v6456, %v6452
    %v6725 = vpack.c.b16 %v6457, %v6453
    %v6726 = vpack.c.b16 %v6458, %v6454
    %v6727 = vpack.c.b16 %v6459, %v6455
    %v6728 = vpack.c.b16 %v6464, %v6460
    %v6729 = vpack.c.b16 %v6465, %v6461
    %v6730 = vpack.c.b16 %v6466, %v6462
    %v6731 = vpack.c.b16 %v6467, %v6463
    %v6732 = vpack.c.b16 %v6472, %v6468
    %v6733 = vpack.c.b16 %v6473, %v6469
    %v6734 = vpack.c.b16 %v6474, %v6470
    %v6735 = vpack.c.b16 %v6475, %v6471
    %v6736 = vpack.c.b16 %v6480, %v6476
    %v6737 = vpack.c.b16 %v6481, %v6477
    %v6738 = vpack.c.b16 %v6482, %v6478
    %v6739 = vpack.c.b16 %v6483, %v6479
    %6996 = vmatprep.subr.bf16.mxu0 %v6485
    %6997 = vmatpush1.bf16.msra.mxu0 %v6484
    %6998 = vmatprep.subr.bf16.mxu0 %v6489
    %6999 = vmatpush1.bf16.msra.mxu0 %v6488
    %7000 = vmatprep.subr.bf16.mxu0 %v6493
    %7001 = vmatpush1.bf16.msra.mxu0 %v6492
    %7002 = vmatprep.subr.bf16.mxu0 %v6497
    %7003 = vmatpush1.bf16.msra.mxu0 %v6496
    %7004 = vmatprep.subr.bf16.mxu0 %v6501
    %7005 = vmatpush1.bf16.msra.mxu0 %v6500
    %7006 = vmatprep.subr.bf16.mxu0 %v6505
    %7007 = vmatpush1.bf16.msra.mxu0 %v6504
    %7008 = vmatprep.subr.bf16.mxu0 %v6509
    %7009 = vmatpush1.bf16.msra.mxu0 %v6508
    %7010 = vmatprep.subr.bf16.mxu0 %v6513
    %7011 = vmatpush1.bf16.msra.mxu0 %v6512
    %7012 = vmatprep.subr.bf16.mxu0 %v6517
    %7013 = vmatpush1.bf16.msra.mxu0 %v6516
    %7014 = vmatprep.subr.bf16.mxu0 %v6521
    %7015 = vmatpush1.bf16.msra.mxu0 %v6520
    %7016 = vmatprep.subr.bf16.mxu0 %v6525
    %7017 = vmatpush1.bf16.msra.mxu0 %v6524
    %7018 = vmatprep.subr.bf16.mxu0 %v6529
    %7019 = vmatpush1.bf16.msra.mxu0 %v6528
    %7020 = vmatprep.subr.bf16.mxu0 %v6533
    %7021 = vmatpush1.bf16.msra.mxu0 %v6532
    %7022 = vmatprep.subr.bf16.mxu0 %v6537
    %7023 = vmatpush1.bf16.msra.mxu0 %v6536
    %7024 = vmatprep.subr.bf16.mxu0 %v6541
    %7025 = vmatpush1.bf16.msra.mxu0 %v6540
    %7026 = vmatprep.subr.bf16.mxu0 %v6545
    %7027 = vmatpush1.bf16.msra.mxu0 %v6544
    %7028 = vmatprep.mubr.bf16.mxu0 %v5453
    %7029 = vmatmul.mubr.bf16.gmra.mrb[0].mxu0 %v5452
    %v7030 = vpop.f32.mrb[0].mxu0
    %v7031 = vadd.f32 0.0, %v7030
    %v7032 = vpop.f32.mrb[0].mxu0
    %v7033 = vadd.f32 0.0, %v7032
    %v7034 = vpop.f32.mrb[0].mxu0
    %v7035 = vpop.f32.mrb[0].mxu0
    %7036 = vdwg.mxu0
    %7037 = vmatprep.subr.bf16.mxu0 %v6549
    %7038 = vmatpush1.bf16.msra.mxu0 %v6548
    %7039 = vmatprep.subr.bf16.mxu0 %v6553
    %7040 = vmatpush1.bf16.msra.mxu0 %v6552
    %7041 = vmatprep.subr.bf16.mxu0 %v6557
    %7042 = vmatpush1.bf16.msra.mxu0 %v6556
    %7043 = vmatprep.subr.bf16.mxu0 %v6561
    %7044 = vmatpush1.bf16.msra.mxu0 %v6560
    %7045 = vmatprep.subr.bf16.mxu0 %v6565
    %7046 = vmatpush1.bf16.msra.mxu0 %v6564
    %7047 = vmatprep.subr.bf16.mxu0 %v6569
    %7048 = vmatpush1.bf16.msra.mxu0 %v6568
    %7049 = vmatprep.subr.bf16.mxu0 %v6573
    %7050 = vmatpush1.bf16.msra.mxu0 %v6572
    %7051 = vmatprep.subr.bf16.mxu0 %v6577
    %7052 = vmatpush1.bf16.msra.mxu0 %v6576
    %7053 = vmatprep.subr.bf16.mxu0 %v6581
    %7054 = vmatpush1.bf16.msra.mxu0 %v6580
    %7055 = vmatprep.subr.bf16.mxu0 %v6585
    %7056 = vmatpush1.bf16.msra.mxu0 %v6584
    %7057 = vmatprep.subr.bf16.mxu0 %v6589
    %7058 = vmatpush1.bf16.msra.mxu0 %v6588
    %7059 = vmatprep.subr.bf16.mxu0 %v6593
    %7060 = vmatpush1.bf16.msra.mxu0 %v6592
    %7061 = vmatprep.subr.bf16.mxu0 %v6597
    %7062 = vmatpush1.bf16.msra.mxu0 %v6596
    %7063 = vmatprep.subr.bf16.mxu0 %v6601
    %7064 = vmatpush1.bf16.msra.mxu0 %v6600
    %7065 = vmatprep.subr.bf16.mxu0 %v6605
    %7066 = vmatpush1.bf16.msra.mxu0 %v6604
    %7067 = vmatprep.subr.bf16.mxu0 %v6609
    %7068 = vmatpush1.bf16.msra.mxu0 %v6608
    %7069 = vmatprep.mubr.bf16.mxu0 %v5455
    %7070 = vmatmul.mubr.bf16.gmra.mrb[0].mxu0 %v5454
    %v7071 = vpop.f32.mrb[0].mxu0
    %v7072 = vadd.f32 %v7031, %v7071
    %v7073 = vpop.f32.mrb[0].mxu0
    %v7074 = vadd.f32 %v7033, %v7073
    %v7075 = vpop.f32.mrb[0].mxu0
    %v7076 = vpop.f32.mrb[0].mxu0
    %7077 = vdwg.mxu0
    %7078 = vmatprep.subr.bf16.mxu0 %v6613
    %7079 = vmatpush1.bf16.msra.mxu0 %v6612
    %7080 = vmatprep.subr.bf16.mxu0 %v6617
    %7081 = vmatpush1.bf16.msra.mxu0 %v6616
    %7082 = vmatprep.subr.bf16.mxu0 %v6621
    %7083 = vmatpush1.bf16.msra.mxu0 %v6620
    %7084 = vmatprep.subr.bf16.mxu0 %v6625
    %7085 = vmatpush1.bf16.msra.mxu0 %v6624
    %7086 = vmatprep.subr.bf16.mxu0 %v6629
    %7087 = vmatpush1.bf16.msra.mxu0 %v6628
    %7088 = vmatprep.subr.bf16.mxu0 %v6633
    %7089 = vmatpush1.bf16.msra.mxu0 %v6632
    %7090 = vmatprep.subr.bf16.mxu0 %v6637
    %7091 = vmatpush1.bf16.msra.mxu0 %v6636
    %7092 = vmatprep.subr.bf16.mxu0 %v6641
    %7093 = vmatpush1.bf16.msra.mxu0 %v6640
    %7094 = vmatprep.subr.bf16.mxu0 %v6645
    %7095 = vmatpush1.bf16.msra.mxu0 %v6644
    %7096 = vmatprep.subr.bf16.mxu0 %v6649
    %7097 = vmatpush1.bf16.msra.mxu0 %v6648
    %7098 = vmatprep.subr.bf16.mxu0 %v6653
    %7099 = vmatpush1.bf16.msra.mxu0 %v6652
    %7100 = vmatprep.subr.bf16.mxu0 %v6657
    %7101 = vmatpush1.bf16.msra.mxu0 %v6656
    %7102 = vmatprep.subr.bf16.mxu0 %v6661
    %7103 = vmatpush1.bf16.msra.mxu0 %v6660
    %7104 = vmatprep.subr.bf16.mxu0 %v6665
    %7105 = vmatpush1.bf16.msra.mxu0 %v6664
    %7106 = vmatprep.subr.bf16.mxu0 %v6669
    %7107 = vmatpush1.bf16.msra.mxu0 %v6668
    %7108 = vmatprep.subr.bf16.mxu0 %v6673
    %7109 = vmatpush1.bf16.msra.mxu0 %v6672
    %7110 = vmatprep.mubr.bf16.mxu0 %v5457
    %7111 = vmatmul.mubr.bf16.gmra.mrb[0].mxu0 %v5456
    %v7112 = vpop.f32.mrb[0].mxu0
    %v7113 = vadd.f32 %v7072, %v7112
    %v7114 = vpop.f32.mrb[0].mxu0
    %v7115 = vadd.f32 %v7074, %v7114
    %v7116 = vpop.f32.mrb[0].mxu0
    %v7117 = vpop.f32.mrb[0].mxu0
    %7118 = vdwg.mxu0
    %7119 = vmatprep.subr.bf16.mxu0 %v6677
    %7120 = vmatpush1.bf16.msra.mxu0 %v6676
    %7121 = vmatprep.subr.bf16.mxu0 %v6681
    %7122 = vmatpush1.bf16.msra.mxu0 %v6680
    %7123 = vmatprep.subr.bf16.mxu0 %v6685
    %7124 = vmatpush1.bf16.msra.mxu0 %v6684
    %7125 = vmatprep.subr.bf16.mxu0 %v6689
    %7126 = vmatpush1.bf16.msra.mxu0 %v6688
    %7127 = vmatprep.subr.bf16.mxu0 %v6693
    %7128 = vmatpush1.bf16.msra.mxu0 %v6692
    %7129 = vmatprep.subr.bf16.mxu0 %v6697
    %7130 = vmatpush1.bf16.msra.mxu0 %v6696
    %7131 = vmatprep.subr.bf16.mxu0 %v6701
    %7132 = vmatpush1.bf16.msra.mxu0 %v6700
    %7133 = vmatprep.subr.bf16.mxu0 %v6705
    %7134 = vmatpush1.bf16.msra.mxu0 %v6704
    %7135 = vmatprep.subr.bf16.mxu0 %v6709
    %7136 = vmatpush1.bf16.msra.mxu0 %v6708
    %7137 = vmatprep.subr.bf16.mxu0 %v6713
    %7138 = vmatpush1.bf16.msra.mxu0 %v6712
    %7139 = vmatprep.subr.bf16.mxu0 %v6717
    %7140 = vmatpush1.bf16.msra.mxu0 %v6716
    %7141 = vmatprep.subr.bf16.mxu0 %v6721
    %7142 = vmatpush1.bf16.msra.mxu0 %v6720
    %7143 = vmatprep.subr.bf16.mxu0 %v6725
    %7144 = vmatpush1.bf16.msra.mxu0 %v6724
    %7145 = vmatprep.subr.bf16.mxu0 %v6729
    %7146 = vmatpush1.bf16.msra.mxu0 %v6728
    %7147 = vmatprep.subr.bf16.mxu0 %v6733
    %7148 = vmatpush1.bf16.msra.mxu0 %v6732
    %7149 = vmatprep.subr.bf16.mxu0 %v6737
    %7150 = vmatpush1.bf16.msra.mxu0 %v6736
    %7151 = vmatprep.mubr.bf16.mxu0 %v5459
    %7152 = vmatmul.mubr.bf16.gmra.mrb[0].mxu0 %v5458
    %v7153 = vpop.f32.mrb[0].mxu0
    %v7154 = vadd.f32 %v7113, %v7153
    %v7155 = vpop.f32.mrb[0].mxu0
    %v7156 = vadd.f32 %v7115, %v7155
    %v7157 = vpop.f32.mrb[0].mxu0
    %v7158 = vpop.f32.mrb[0].mxu0
    %7159 = vdwg.mxu0
    %7160 = vmatprep.subr.bf16.mxu0 %v6487
    %7161 = vmatpush1.bf16.msra.mxu0 %v6486
    %7162 = vmatprep.subr.bf16.mxu0 %v6491
    %7163 = vmatpush1.bf16.msra.mxu0 %v6490
    %7164 = vmatprep.subr.bf16.mxu0 %v6495
    %7165 = vmatpush1.bf16.msra.mxu0 %v6494
    %7166 = vmatprep.subr.bf16.mxu0 %v6499
    %7167 = vmatpush1.bf16.msra.mxu0 %v6498
    %7168 = vmatprep.subr.bf16.mxu0 %v6503
    %7169 = vmatpush1.bf16.msra.mxu0 %v6502
    %7170 = vmatprep.subr.bf16.mxu0 %v6507
    %7171 = vmatpush1.bf16.msra.mxu0 %v6506
    %7172 = vmatprep.subr.bf16.mxu0 %v6511
    %7173 = vmatpush1.bf16.msra.mxu0 %v6510
    %7174 = vmatprep.subr.bf16.mxu0 %v6515
    %7175 = vmatpush1.bf16.msra.mxu0 %v6514
    %7176 = vmatprep.subr.bf16.mxu0 %v6519
    %7177 = vmatpush1.bf16.msra.mxu0 %v6518
    %7178 = vmatprep.subr.bf16.mxu0 %v6523
    %7179 = vmatpush1.bf16.msra.mxu0 %v6522
    %7180 = vmatprep.subr.bf16.mxu0 %v6527
    %7181 = vmatpush1.bf16.msra.mxu0 %v6526
    %7182 = vmatprep.subr.bf16.mxu0 %v6531
    %7183 = vmatpush1.bf16.msra.mxu0 %v6530
    %7184 = vmatprep.subr.bf16.mxu0 %v6535
    %7185 = vmatpush1.bf16.msra.mxu0 %v6534
    %7186 = vmatprep.subr.bf16.mxu0 %v6539
    %7187 = vmatpush1.bf16.msra.mxu0 %v6538
    %7188 = vmatprep.subr.bf16.mxu0 %v6543
    %7189 = vmatpush1.bf16.msra.mxu0 %v6542
    %7190 = vmatprep.subr.bf16.mxu0 %v6547
    %7191 = vmatpush1.bf16.msra.mxu0 %v6546
    %7192 = vmatprep.mubr.bf16.mxu0 %v5453
    %7193 = vmatmul.mubr.bf16.gmra.mrb[0].mxu0 %v5452
    %v7194 = vpop.f32.mrb[0].mxu0
    %v7195 = vadd.f32 0.0, %v7194
    %v7196 = vpop.f32.mrb[0].mxu0
    %v7197 = vadd.f32 0.0, %v7196
    %v7198 = vpop.f32.mrb[0].mxu0
    %v7199 = vpop.f32.mrb[0].mxu0
    %7200 = vdwg.mxu0
    %7201 = vmatprep.subr.bf16.mxu0 %v6551
    %7202 = vmatpush1.bf16.msra.mxu0 %v6550
    %7203 = vmatprep.subr.bf16.mxu0 %v6555
    %7204 = vmatpush1.bf16.msra.mxu0 %v6554
    %7205 = vmatprep.subr.bf16.mxu0 %v6559
    %7206 = vmatpush1.bf16.msra.mxu0 %v6558
    %7207 = vmatprep.subr.bf16.mxu0 %v6563
    %7208 = vmatpush1.bf16.msra.mxu0 %v6562
    %7209 = vmatprep.subr.bf16.mxu0 %v6567
    %7210 = vmatpush1.bf16.msra.mxu0 %v6566
    %7211 = vmatprep.subr.bf16.mxu0 %v6571
    %7212 = vmatpush1.bf16.msra.mxu0 %v6570
    %7213 = vmatprep.subr.bf16.mxu0 %v6575
    %7214 = vmatpush1.bf16.msra.mxu0 %v6574
    %7215 = vmatprep.subr.bf16.mxu0 %v6579
    %7216 = vmatpush1.bf16.msra.mxu0 %v6578
    %7217 = vmatprep.subr.bf16.mxu0 %v6583
    %7218 = vmatpush1.bf16.msra.mxu0 %v6582
    %7219 = vmatprep.subr.bf16.mxu0 %v6587
    %7220 = vmatpush1.bf16.msra.mxu0 %v6586
    %7221 = vmatprep.subr.bf16.mxu0 %v6591
    %7222 = vmatpush1.bf16.msra.mxu0 %v6590
    %7223 = vmatprep.subr.bf16.mxu0 %v6595
    %7224 = vmatpush1.bf16.msra.mxu0 %v6594
    %7225 = vmatprep.subr.bf16.mxu0 %v6599
    %7226 = vmatpush1.bf16.msra.mxu0 %v6598
    %7227 = vmatprep.subr.bf16.mxu0 %v6603
    %7228 = vmatpush1.bf16.msra.mxu0 %v6602
    %7229 = vmatprep.subr.bf16.mxu0 %v6607
    %7230 = vmatpush1.bf16.msra.mxu0 %v6606
    %7231 = vmatprep.subr.bf16.mxu0 %v6611
    %7232 = vmatpush1.bf16.msra.mxu0 %v6610
    %7233 = vmatprep.mubr.bf16.mxu0 %v5455
    %7234 = vmatmul.mubr.bf16.gmra.mrb[0].mxu0 %v5454
    %v7235 = vpop.f32.mrb[0].mxu0
    %v7236 = vadd.f32 %v7195, %v7235
    %v7237 = vpop.f32.mrb[0].mxu0
    %v7238 = vadd.f32 %v7197, %v7237
    %v7239 = vpop.f32.mrb[0].mxu0
    %v7240 = vpop.f32.mrb[0].mxu0
    %7241 = vdwg.mxu0
    %7242 = vmatprep.subr.bf16.mxu0 %v6615
    %7243 = vmatpush1.bf16.msra.mxu0 %v6614
    %7244 = vmatprep.subr.bf16.mxu0 %v6619
    %7245 = vmatpush1.bf16.msra.mxu0 %v6618
    %7246 = vmatprep.subr.bf16.mxu0 %v6623
    %7247 = vmatpush1.bf16.msra.mxu0 %v6622
    %7248 = vmatprep.subr.bf16.mxu0 %v6627
    %7249 = vmatpush1.bf16.msra.mxu0 %v6626
    %7250 = vmatprep.subr.bf16.mxu0 %v6631
    %7251 = vmatpush1.bf16.msra.mxu0 %v6630
    %7252 = vmatprep.subr.bf16.mxu0 %v6635
    %7253 = vmatpush1.bf16.msra.mxu0 %v6634
    %7254 = vmatprep.subr.bf16.mxu0 %v6639
    %7255 = vmatpush1.bf16.msra.mxu0 %v6638
    %7256 = vmatprep.subr.bf16.mxu0 %v6643
    %7257 = vmatpush1.bf16.msra.mxu0 %v6642
    %7258 = vmatprep.subr.bf16.mxu0 %v6647
    %7259 = vmatpush1.bf16.msra.mxu0 %v6646
    %7260 = vmatprep.subr.bf16.mxu0 %v6651
    %7261 = vmatpush1.bf16.msra.mxu0 %v6650
    %7262 = vmatprep.subr.bf16.mxu0 %v6655
    %7263 = vmatpush1.bf16.msra.mxu0 %v6654
    %7264 = vmatprep.subr.bf16.mxu0 %v6659
    %7265 = vmatpush1.bf16.msra.mxu0 %v6658
    %7266 = vmatprep.subr.bf16.mxu0 %v6663
    %7267 = vmatpush1.bf16.msra.mxu0 %v6662
    %7268 = vmatprep.subr.bf16.mxu0 %v6667
    %7269 = vmatpush1.bf16.msra.mxu0 %v6666
    %7270 = vmatprep.subr.bf16.mxu0 %v6671
    %7271 = vmatpush1.bf16.msra.mxu0 %v6670
    %7272 = vmatprep.subr.bf16.mxu0 %v6675
    %7273 = vmatpush1.bf16.msra.mxu0 %v6674
    %7274 = vmatprep.mubr.bf16.mxu0 %v5457
    %7275 = vmatmul.mubr.bf16.gmra.mrb[0].mxu0 %v5456
    %v7276 = vpop.f32.mrb[0].mxu0
    %v7277 = vadd.f32 %v7236, %v7276
    %v7278 = vpop.f32.mrb[0].mxu0
    %v7279 = vadd.f32 %v7238, %v7278
    %v7280 = vpop.f32.mrb[0].mxu0
    %v7281 = vpop.f32.mrb[0].mxu0
    %7282 = vdwg.mxu0
    %7283 = vmatprep.subr.bf16.mxu0 %v6679
    %7284 = vmatpush1.bf16.msra.mxu0 %v6678
    %7285 = vmatprep.subr.bf16.mxu0 %v6683
    %7286 = vmatpush1.bf16.msra.mxu0 %v6682
    %7287 = vmatprep.subr.bf16.mxu0 %v6687
    %7288 = vmatpush1.bf16.msra.mxu0 %v6686
    %7289 = vmatprep.subr.bf16.mxu0 %v6691
    %7290 = vmatpush1.bf16.msra.mxu0 %v6690
    %7291 = vmatprep.subr.bf16.mxu0 %v6695
    %7292 = vmatpush1.bf16.msra.mxu0 %v6694
    %7293 = vmatprep.subr.bf16.mxu0 %v6699
    %7294 = vmatpush1.bf16.msra.mxu0 %v6698
    %7295 = vmatprep.subr.bf16.mxu0 %v6703
    %7296 = vmatpush1.bf16.msra.mxu0 %v6702
    %7297 = vmatprep.subr.bf16.mxu0 %v6707
    %7298 = vmatpush1.bf16.msra.mxu0 %v6706
    %7299 = vmatprep.subr.bf16.mxu0 %v6711
    %7300 = vmatpush1.bf16.msra.mxu0 %v6710
    %7301 = vmatprep.subr.bf16.mxu0 %v6715
    %7302 = vmatpush1.bf16.msra.mxu0 %v6714
    %7303 = vmatprep.subr.bf16.mxu0 %v6719
    %7304 = vmatpush1.bf16.msra.mxu0 %v6718
    %7305 = vmatprep.subr.bf16.mxu0 %v6723
    %7306 = vmatpush1.bf16.msra.mxu0 %v6722
    %7307 = vmatprep.subr.bf16.mxu0 %v6727
    %7308 = vmatpush1.bf16.msra.mxu0 %v6726
    %7309 = vmatprep.subr.bf16.mxu0 %v6731
    %7310 = vmatpush1.bf16.msra.mxu0 %v6730
    %7311 = vmatprep.subr.bf16.mxu0 %v6735
    %7312 = vmatpush1.bf16.msra.mxu0 %v6734
    %7313 = vmatprep.subr.bf16.mxu0 %v6739
    %7314 = vmatpush1.bf16.msra.mxu0 %v6738
    %7315 = vmatprep.mubr.bf16.mxu0 %v5459
    %7316 = vmatmul.mubr.bf16.gmra.mrb[0].mxu0 %v5458
    %v7317 = vpop.f32.mrb[0].mxu0
    %v7318 = vadd.f32 %v7277, %v7317
    %v7319 = vpop.f32.mrb[0].mxu0
    %v7320 = vadd.f32 %v7279, %v7319
    %v7321 = vpop.f32.mrb[0].mxu0
    %v7322 = vpop.f32.mrb[0].mxu0
    %7323 = vdwg.mxu0
    %v7324 = vsel %vm3952, %v7154, 0.0
    %v7325 = vrot.slane %v7324, 4
    %v7326 = vadd.f32 %v7324, %v7325
    %v7327 = vrot.slane %v7326, 2
    %v7328 = vadd.f32 %v7326, %v7327
    %v7329 = vrot.slane %v7328, 1
    %v7330 = vadd.f32 %v7328, %v7329
    %v7331 = vsel %vm3952, %v7156, 0.0
    %v7332 = vrot.slane %v7331, 4
    %v7333 = vadd.f32 %v7331, %v7332
    %v7334 = vrot.slane %v7333, 2
    %v7335 = vadd.f32 %v7333, %v7334
    %v7336 = vrot.slane %v7335, 1
    %v7337 = vadd.f32 %v7335, %v7336
    %v7338 = vsel %vm3952, %v7318, 0.0
    %v7339 = vrot.slane %v7338, 4
    %v7340 = vadd.f32 %v7338, %v7339
    %v7341 = vrot.slane %v7340, 2
    %v7342 = vadd.f32 %v7340, %v7341
    %v7343 = vrot.slane %v7342, 1
    %v7344 = vadd.f32 %v7342, %v7343
    %v7345 = vsel %vm3952, %v7320, 0.0
    %v7346 = vrot.slane %v7345, 4
    %v7347 = vadd.f32 %v7345, %v7346
    %v7348 = vrot.slane %v7347, 2
    %v7349 = vadd.f32 %v7347, %v7348
    %v7350 = vrot.slane %v7349, 1
    %v7351 = vadd.f32 %v7349, %v7350
    %v7352 = vmul.f32 %v7154, %v7154
    %v7353 = vmul.f32 %v7156, %v7156
    %v7354 = vmul.f32 %v7318, %v7318
    %v7355 = vmul.f32 %v7320, %v7320
    %v7356 = vsel %vm3952, %v7352, 0.0
    %v7357 = vrot.slane %v7356, 4
    %v7358 = vadd.f32 %v7356, %v7357
    %v7359 = vrot.slane %v7358, 2
    %v7360 = vadd.f32 %v7358, %v7359
    %v7361 = vrot.slane %v7360, 1
    %v7362 = vadd.f32 %v7360, %v7361
    %v7363 = vsel %vm3952, %v7353, 0.0
    %v7364 = vrot.slane %v7363, 4
    %v7365 = vadd.f32 %v7363, %v7364
    %v7366 = vrot.slane %v7365, 2
    %v7367 = vadd.f32 %v7365, %v7366
    %v7368 = vrot.slane %v7367, 1
    %v7369 = vadd.f32 %v7367, %v7368
    %v7370 = vsel %vm3952, %v7354, 0.0
    %v7371 = vrot.slane %v7370, 4
    %v7372 = vadd.f32 %v7370, %v7371
    %v7373 = vrot.slane %v7372, 2
    %v7374 = vadd.f32 %v7372, %v7373
    %v7375 = vrot.slane %v7374, 1
    %v7376 = vadd.f32 %v7374, %v7375
    %v7377 = vsel %vm3952, %v7355, 0.0
    %v7378 = vrot.slane %v7377, 4
    %v7379 = vadd.f32 %v7377, %v7378
    %v7380 = vrot.slane %v7379, 2
    %v7381 = vadd.f32 %v7379, %v7380
    %v7382 = vrot.slane %v7381, 1
    %v7383 = vadd.f32 %v7381, %v7382
    %v7384 = vld [vmem:[%s7] sm:$0xff]
    %v7385 = vld [vmem:[%s7 + $0x8] sm:$0xff]
    %v7386 = vld [vmem:[%s7 + $0x10] sm:$0xff]
    %v7387 = vld [vmem:[%s7 + $0x18] sm:$0xff]
    %v7388 = vld [vmem:[%s7 + $0x20] sm:$0xff]
    %v7389 = vld [vmem:[%s7 + $0x28] sm:$0xff]
    %v7390 = vld [vmem:[%s7 + $0x30] sm:$0xff]
    %v7391 = vld [vmem:[%s7 + $0x38] sm:$0xff]
    %v7392 = vld [vmem:[%s7 + $0x40] sm:$0xff]
    %v7393 = vld [vmem:[%s7 + $0x48] sm:$0xff]
    %v7394 = vld [vmem:[%s7 + $0x50] sm:$0xff]
    %v7395 = vld [vmem:[%s7 + $0x58] sm:$0xff]
    %v7396 = vld [vmem:[%s7 + $0x60] sm:$0xff]
    %v7397 = vld [vmem:[%s7 + $0x68] sm:$0xff]
    %v7398 = vld [vmem:[%s7 + $0x70] sm:$0xff]
    %v7399 = vld [vmem:[%s7 + $0x78] sm:$0xff]
    %v7400 = vld [vmem:[%s7 + $0x80] sm:$0xff]
    %v7401 = vld [vmem:[%s7 + $0x88] sm:$0xff]
    %v7402 = vld [vmem:[%s7 + $0x90] sm:$0xff]
    %v7403 = vld [vmem:[%s7 + $0x98] sm:$0xff]
    %v7404 = vld [vmem:[%s7 + $0xa0] sm:$0xff]
    %v7405 = vld [vmem:[%s7 + $0xa8] sm:$0xff]
    %v7406 = vld [vmem:[%s7 + $0xb0] sm:$0xff]
    %v7407 = vld [vmem:[%s7 + $0xb8] sm:$0xff]
    %v7408 = vld [vmem:[%s7 + $0xc0] sm:$0xff]
    %v7409 = vld [vmem:[%s7 + $0xc8] sm:$0xff]
    %v7410 = vld [vmem:[%s7 + $0xd0] sm:$0xff]
    %v7411 = vld [vmem:[%s7 + $0xd8] sm:$0xff]
    %v7412 = vld [vmem:[%s7 + $0xe0] sm:$0xff]
    %v7413 = vld [vmem:[%s7 + $0xe8] sm:$0xff]
    %v7414 = vld [vmem:[%s7 + $0xf0] sm:$0xff]
    %v7415 = vld [vmem:[%s7 + $0xf8] sm:$0xff]
    %v7416 = vld [vmem:[%s7 + $0x100] sm:$0xff]
    %v7417 = vld [vmem:[%s7 + $0x108] sm:$0xff]
    %v7418 = vld [vmem:[%s7 + $0x110] sm:$0xff]
    %v7419 = vld [vmem:[%s7 + $0x118] sm:$0xff]
    %v7420 = vld [vmem:[%s7 + $0x120] sm:$0xff]
    %v7421 = vld [vmem:[%s7 + $0x128] sm:$0xff]
    %v7422 = vld [vmem:[%s7 + $0x130] sm:$0xff]
    %v7423 = vld [vmem:[%s7 + $0x138] sm:$0xff]
    %v7424 = vld [vmem:[%s7 + $0x140] sm:$0xff]
    %v7425 = vld [vmem:[%s7 + $0x148] sm:$0xff]
    %v7426 = vld [vmem:[%s7 + $0x150] sm:$0xff]
    %v7427 = vld [vmem:[%s7 + $0x158] sm:$0xff]
    %v7428 = vld [vmem:[%s7 + $0x160] sm:$0xff]
    %v7429 = vld [vmem:[%s7 + $0x168] sm:$0xff]
    %v7430 = vld [vmem:[%s7 + $0x170] sm:$0xff]
    %v7431 = vld [vmem:[%s7 + $0x178] sm:$0xff]
    %v7432 = vld [vmem:[%s7 + $0x180] sm:$0xff]
    %v7433 = vld [vmem:[%s7 + $0x188] sm:$0xff]
    %v7434 = vld [vmem:[%s7 + $0x190] sm:$0xff]
    %v7435 = vld [vmem:[%s7 + $0x198] sm:$0xff]
    %v7436 = vld [vmem:[%s7 + $0x1a0] sm:$0xff]
    %v7437 = vld [vmem:[%s7 + $0x1a8] sm:$0xff]
    %v7438 = vld [vmem:[%s7 + $0x1b0] sm:$0xff]
    %v7439 = vld [vmem:[%s7 + $0x1b8] sm:$0xff]
    %v7440 = vld [vmem:[%s7 + $0x1c0] sm:$0xff]
    %v7441 = vld [vmem:[%s7 + $0x1c8] sm:$0xff]
    %v7442 = vld [vmem:[%s7 + $0x1d0] sm:$0xff]
    %v7443 = vld [vmem:[%s7 + $0x1d8] sm:$0xff]
    %v7444 = vld [vmem:[%s7 + $0x1e0] sm:$0xff]
    %v7445 = vld [vmem:[%s7 + $0x1e8] sm:$0xff]
    %v7446 = vld [vmem:[%s7 + $0x1f0] sm:$0xff]
    %v7447 = vld [vmem:[%s7 + $0x1f8] sm:$0xff]
    %7448 = vmatprep.subr.mxu0 0.0
    %7449 = vmatpush1.msra.mxu0 %v7384
    %7450 = vmatprep.subr.mxu0 0.0
    %7451 = vmatpush1.msra.mxu0 %v7385
    %7452 = vmatprep.subr.mxu0 0.0
    %7453 = vmatpush1.msra.mxu0 %v7386
    %7454 = vmatprep.subr.mxu0 0.0
    %7455 = vmatpush1.msra.mxu0 %v7387
    %7456 = vmatprep.subr.mxu0 0.0
    %7457 = vmatpush1.msra.mxu0 %v7388
    %7458 = vmatprep.subr.mxu0 0.0
    %7459 = vmatpush1.msra.mxu0 %v7389
    %7460 = vmatprep.subr.mxu0 0.0
    %7461 = vmatpush1.msra.mxu0 %v7390
    %7462 = vmatprep.subr.mxu0 0.0
    %7463 = vmatpush1.msra.mxu0 %v7391
    %7464 = vmatprep.subr.mxu0 0.0
    %7465 = vmatpush1.msra.mxu0 %v7392
    %7466 = vmatprep.subr.mxu0 0.0
    %7467 = vmatpush1.msra.mxu0 %v7393
    %7468 = vmatprep.subr.mxu0 0.0
    %7469 = vmatpush1.msra.mxu0 %v7394
    %7470 = vmatprep.subr.mxu0 0.0
    %7471 = vmatpush1.msra.mxu0 %v7395
    %7472 = vmatprep.subr.mxu0 0.0
    %7473 = vmatpush1.msra.mxu0 %v7396
    %7474 = vmatprep.subr.mxu0 0.0
    %7475 = vmatpush1.msra.mxu0 %v7397
    %7476 = vmatprep.subr.mxu0 0.0
    %7477 = vmatpush1.msra.mxu0 %v7398
    %7478 = vmatprep.subr.mxu0 0.0
    %7479 = vmatpush1.msra.mxu0 %v7399
    %7480 = vmatprep.subr.mxu0 0.0
    %7481 = vmatpush1.msra.mxu0 %v7400
    %7482 = vmatprep.subr.mxu0 0.0
    %7483 = vmatpush1.msra.mxu0 %v7401
    %7484 = vmatprep.subr.mxu0 0.0
    %7485 = vmatpush1.msra.mxu0 %v7402
    %7486 = vmatprep.subr.mxu0 0.0
    %7487 = vmatpush1.msra.mxu0 %v7403
    %7488 = vmatprep.subr.mxu0 0.0
    %7489 = vmatpush1.msra.mxu0 %v7404
    %7490 = vmatprep.subr.mxu0 0.0
    %7491 = vmatpush1.msra.mxu0 %v7405
    %7492 = vmatprep.subr.mxu0 0.0
    %7493 = vmatpush1.msra.mxu0 %v7406
    %7494 = vmatprep.subr.mxu0 0.0
    %7495 = vmatpush1.msra.mxu0 %v7407
    %7496 = vmatprep.subr.mxu0 0.0
    %7497 = vmatpush1.msra.mxu0 %v7408
    %7498 = vmatprep.subr.mxu0 0.0
    %7499 = vmatpush1.msra.mxu0 %v7409
    %7500 = vmatprep.subr.mxu0 0.0
    %7501 = vmatpush1.msra.mxu0 %v7410
    %7502 = vmatprep.subr.mxu0 0.0
    %7503 = vmatpush1.msra.mxu0 %v7411
    %7504 = vmatprep.subr.mxu0 0.0
    %7505 = vmatpush1.msra.mxu0 %v7412
    %7506 = vmatprep.subr.mxu0 0.0
    %7507 = vmatpush1.msra.mxu0 %v7413
    %7508 = vmatprep.subr.mxu0 0.0
    %7509 = vmatpush1.msra.mxu0 %v7414
    %7510 = vmatprep.subr.mxu0 0.0
    %7511 = vmatpush1.msra.mxu0 %v7415
    %7512 = vmatprep.mubr.f32.mxu0 %v7337
    %7513 = vmatmul.mubr.f32.gmra.mrb[0].mxu0 %v7330
    %v7514 = vpop.f32.mrb[0].mxu0
    %v7515 = vadd.f32 0.0, %v7514
    %v7516 = vpop.f32.mrb[0].mxu0
    %7517 = vdwg.mxu0
    %7518 = vmatprep.subr.mxu0 0.0
    %7519 = vmatpush1.msra.mxu0 %v7416
    %7520 = vmatprep.subr.mxu0 0.0
    %7521 = vmatpush1.msra.mxu0 %v7417
    %7522 = vmatprep.subr.mxu0 0.0
    %7523 = vmatpush1.msra.mxu0 %v7418
    %7524 = vmatprep.subr.mxu0 0.0
    %7525 = vmatpush1.msra.mxu0 %v7419
    %7526 = vmatprep.subr.mxu0 0.0
    %7527 = vmatpush1.msra.mxu0 %v7420
    %7528 = vmatprep.subr.mxu0 0.0
    %7529 = vmatpush1.msra.mxu0 %v7421
    %7530 = vmatprep.subr.mxu0 0.0
    %7531 = vmatpush1.msra.mxu0 %v7422
    %7532 = vmatprep.subr.mxu0 0.0
    %7533 = vmatpush1.msra.mxu0 %v7423
    %7534 = vmatprep.subr.mxu0 0.0
    %7535 = vmatpush1.msra.mxu0 %v7424
    %7536 = vmatprep.subr.mxu0 0.0
    %7537 = vmatpush1.msra.mxu0 %v7425
    %7538 = vmatprep.subr.mxu0 0.0
    %7539 = vmatpush1.msra.mxu0 %v7426
    %7540 = vmatprep.subr.mxu0 0.0
    %7541 = vmatpush1.msra.mxu0 %v7427
    %7542 = vmatprep.subr.mxu0 0.0
    %7543 = vmatpush1.msra.mxu0 %v7428
    %7544 = vmatprep.subr.mxu0 0.0
    %7545 = vmatpush1.msra.mxu0 %v7429
    %7546 = vmatprep.subr.mxu0 0.0
    %7547 = vmatpush1.msra.mxu0 %v7430
    %7548 = vmatprep.subr.mxu0 0.0
    %7549 = vmatpush1.msra.mxu0 %v7431
    %7550 = vmatprep.subr.mxu0 0.0
    %7551 = vmatpush1.msra.mxu0 %v7432
    %7552 = vmatprep.subr.mxu0 0.0
    %7553 = vmatpush1.msra.mxu0 %v7433
    %7554 = vmatprep.subr.mxu0 0.0
    %7555 = vmatpush1.msra.mxu0 %v7434
    %7556 = vmatprep.subr.mxu0 0.0
    %7557 = vmatpush1.msra.mxu0 %v7435
    %7558 = vmatprep.subr.mxu0 0.0
    %7559 = vmatpush1.msra.mxu0 %v7436
    %7560 = vmatprep.subr.mxu0 0.0
    %7561 = vmatpush1.msra.mxu0 %v7437
    %7562 = vmatprep.subr.mxu0 0.0
    %7563 = vmatpush1.msra.mxu0 %v7438
    %7564 = vmatprep.subr.mxu0 0.0
    %7565 = vmatpush1.msra.mxu0 %v7439
    %7566 = vmatprep.subr.mxu0 0.0
    %7567 = vmatpush1.msra.mxu0 %v7440
    %7568 = vmatprep.subr.mxu0 0.0
    %7569 = vmatpush1.msra.mxu0 %v7441
    %7570 = vmatprep.subr.mxu0 0.0
    %7571 = vmatpush1.msra.mxu0 %v7442
    %7572 = vmatprep.subr.mxu0 0.0
    %7573 = vmatpush1.msra.mxu0 %v7443
    %7574 = vmatprep.subr.mxu0 0.0
    %7575 = vmatpush1.msra.mxu0 %v7444
    %7576 = vmatprep.subr.mxu0 0.0
    %7577 = vmatpush1.msra.mxu0 %v7445
    %7578 = vmatprep.subr.mxu0 0.0
    %7579 = vmatpush1.msra.mxu0 %v7446
    %7580 = vmatprep.subr.mxu0 0.0
    %7581 = vmatpush1.msra.mxu0 %v7447
    %7582 = vmatprep.mubr.f32.mxu0 %v7351
    %7583 = vmatmul.mubr.f32.gmra.mrb[0].mxu0 %v7344
    %v7584 = vpop.f32.mrb[0].mxu0
    %v7585 = vadd.f32 %v7515, %v7584
    %v7586 = vpop.f32.mrb[0].mxu0
    %7587 = vdwg.mxu0
    %v7588 = vmul.f32 %v7585, 0.03125
    %7589 = vmatprep.subr.mxu0 0.0
    %7590 = vmatpush1.msra.mxu0 %v7384
    %7591 = vmatprep.subr.mxu0 0.0
    %7592 = vmatpush1.msra.mxu0 %v7385
    %7593 = vmatprep.subr.mxu0 0.0
    %7594 = vmatpush1.msra.mxu0 %v7386
    %7595 = vmatprep.subr.mxu0 0.0
    %7596 = vmatpush1.msra.mxu0 %v7387
    %7597 = vmatprep.subr.mxu0 0.0
    %7598 = vmatpush1.msra.mxu0 %v7388
    %7599 = vmatprep.subr.mxu0 0.0
    %7600 = vmatpush1.msra.mxu0 %v7389
    %7601 = vmatprep.subr.mxu0 0.0
    %7602 = vmatpush1.msra.mxu0 %v7390
    %7603 = vmatprep.subr.mxu0 0.0
    %7604 = vmatpush1.msra.mxu0 %v7391
    %7605 = vmatprep.subr.mxu0 0.0
    %7606 = vmatpush1.msra.mxu0 %v7392
    %7607 = vmatprep.subr.mxu0 0.0
    %7608 = vmatpush1.msra.mxu0 %v7393
    %7609 = vmatprep.subr.mxu0 0.0
    %7610 = vmatpush1.msra.mxu0 %v7394
    %7611 = vmatprep.subr.mxu0 0.0
    %7612 = vmatpush1.msra.mxu0 %v7395
    %7613 = vmatprep.subr.mxu0 0.0
    %7614 = vmatpush1.msra.mxu0 %v7396
    %7615 = vmatprep.subr.mxu0 0.0
    %7616 = vmatpush1.msra.mxu0 %v7397
    %7617 = vmatprep.subr.mxu0 0.0
    %7618 = vmatpush1.msra.mxu0 %v7398
    %7619 = vmatprep.subr.mxu0 0.0
    %7620 = vmatpush1.msra.mxu0 %v7399
    %7621 = vmatprep.subr.mxu0 0.0
    %7622 = vmatpush1.msra.mxu0 %v7400
    %7623 = vmatprep.subr.mxu0 0.0
    %7624 = vmatpush1.msra.mxu0 %v7401
    %7625 = vmatprep.subr.mxu0 0.0
    %7626 = vmatpush1.msra.mxu0 %v7402
    %7627 = vmatprep.subr.mxu0 0.0
    %7628 = vmatpush1.msra.mxu0 %v7403
    %7629 = vmatprep.subr.mxu0 0.0
    %7630 = vmatpush1.msra.mxu0 %v7404
    %7631 = vmatprep.subr.mxu0 0.0
    %7632 = vmatpush1.msra.mxu0 %v7405
    %7633 = vmatprep.subr.mxu0 0.0
    %7634 = vmatpush1.msra.mxu0 %v7406
    %7635 = vmatprep.subr.mxu0 0.0
    %7636 = vmatpush1.msra.mxu0 %v7407
    %7637 = vmatprep.subr.mxu0 0.0
    %7638 = vmatpush1.msra.mxu0 %v7408
    %7639 = vmatprep.subr.mxu0 0.0
    %7640 = vmatpush1.msra.mxu0 %v7409
    %7641 = vmatprep.subr.mxu0 0.0
    %7642 = vmatpush1.msra.mxu0 %v7410
    %7643 = vmatprep.subr.mxu0 0.0
    %7644 = vmatpush1.msra.mxu0 %v7411
    %7645 = vmatprep.subr.mxu0 0.0
    %7646 = vmatpush1.msra.mxu0 %v7412
    %7647 = vmatprep.subr.mxu0 0.0
    %7648 = vmatpush1.msra.mxu0 %v7413
    %7649 = vmatprep.subr.mxu0 0.0
    %7650 = vmatpush1.msra.mxu0 %v7414
    %7651 = vmatprep.subr.mxu0 0.0
    %7652 = vmatpush1.msra.mxu0 %v7415
    %7653 = vmatprep.mubr.f32.mxu0 %v7369
    %7654 = vmatmul.mubr.f32.gmra.mrb[0].mxu0 %v7362
    %v7655 = vpop.f32.mrb[0].mxu0
    %v7656 = vadd.f32 0.0, %v7655
    %v7657 = vpop.f32.mrb[0].mxu0
    %7658 = vdwg.mxu0
    %7659 = vmatprep.subr.mxu0 0.0
    %7660 = vmatpush1.msra.mxu0 %v7416
    %7661 = vmatprep.subr.mxu0 0.0
    %7662 = vmatpush1.msra.mxu0 %v7417
    %7663 = vmatprep.subr.mxu0 0.0
    %7664 = vmatpush1.msra.mxu0 %v7418
    %7665 = vmatprep.subr.mxu0 0.0
    %7666 = vmatpush1.msra.mxu0 %v7419
    %7667 = vmatprep.subr.mxu0 0.0
    %7668 = vmatpush1.msra.mxu0 %v7420
    %7669 = vmatprep.subr.mxu0 0.0
    %7670 = vmatpush1.msra.mxu0 %v7421
    %7671 = vmatprep.subr.mxu0 0.0
    %7672 = vmatpush1.msra.mxu0 %v7422
    %7673 = vmatprep.subr.mxu0 0.0
    %7674 = vmatpush1.msra.mxu0 %v7423
    %7675 = vmatprep.subr.mxu0 0.0
    %7676 = vmatpush1.msra.mxu0 %v7424
    %7677 = vmatprep.subr.mxu0 0.0
    %7678 = vmatpush1.msra.mxu0 %v7425
    %7679 = vmatprep.subr.mxu0 0.0
    %7680 = vmatpush1.msra.mxu0 %v7426
    %7681 = vmatprep.subr.mxu0 0.0
    %7682 = vmatpush1.msra.mxu0 %v7427
    %7683 = vmatprep.subr.mxu0 0.0
    %7684 = vmatpush1.msra.mxu0 %v7428
    %7685 = vmatprep.subr.mxu0 0.0
    %7686 = vmatpush1.msra.mxu0 %v7429
    %7687 = vmatprep.subr.mxu0 0.0
    %7688 = vmatpush1.msra.mxu0 %v7430
    %7689 = vmatprep.subr.mxu0 0.0
    %7690 = vmatpush1.msra.mxu0 %v7431
    %7691 = vmatprep.subr.mxu0 0.0
    %7692 = vmatpush1.msra.mxu0 %v7432
    %7693 = vmatprep.subr.mxu0 0.0
    %7694 = vmatpush1.msra.mxu0 %v7433
    %7695 = vmatprep.subr.mxu0 0.0
    %7696 = vmatpush1.msra.mxu0 %v7434
    %7697 = vmatprep.subr.mxu0 0.0
    %7698 = vmatpush1.msra.mxu0 %v7435
    %7699 = vmatprep.subr.mxu0 0.0
    %7700 = vmatpush1.msra.mxu0 %v7436
    %7701 = vmatprep.subr.mxu0 0.0
    %7702 = vmatpush1.msra.mxu0 %v7437
    %7703 = vmatprep.subr.mxu0 0.0
    %7704 = vmatpush1.msra.mxu0 %v7438
    %7705 = vmatprep.subr.mxu0 0.0
    %7706 = vmatpush1.msra.mxu0 %v7439
    %7707 = vmatprep.subr.mxu0 0.0
    %7708 = vmatpush1.msra.mxu0 %v7440
    %7709 = vmatprep.subr.mxu0 0.0
    %7710 = vmatpush1.msra.mxu0 %v7441
    %7711 = vmatprep.subr.mxu0 0.0
    %7712 = vmatpush1.msra.mxu0 %v7442
    %7713 = vmatprep.subr.mxu0 0.0
    %7714 = vmatpush1.msra.mxu0 %v7443
    %7715 = vmatprep.subr.mxu0 0.0
    %7716 = vmatpush1.msra.mxu0 %v7444
    %7717 = vmatprep.subr.mxu0 0.0
    %7718 = vmatpush1.msra.mxu0 %v7445
    %7719 = vmatprep.subr.mxu0 0.0
    %7720 = vmatpush1.msra.mxu0 %v7446
    %7721 = vmatprep.subr.mxu0 0.0
    %7722 = vmatpush1.msra.mxu0 %v7447
    %7723 = vmatprep.mubr.f32.mxu0 %v7383
    %7724 = vmatmul.mubr.f32.gmra.mrb[0].mxu0 %v7376
    %v7725 = vpop.f32.mrb[0].mxu0
    %v7726 = vadd.f32 %v7656, %v7725
    %v7727 = vpop.f32.mrb[0].mxu0
    %7728 = vdwg.mxu0
    %v7729 = vmul.f32 %v7726, 0.03125
    %v7730 = vmul.f32 %v7588, %v7588
    %v7731 = vsub.f32 %v7729, %v7730
    %v7732 = vmax.f32 %v7731, 0.0
    %v7733 = vld [vmem:[#allocation14] sm:$0x1]
    %v7734 = vadd.f32 %v7732, 1e-05
    %v7735 = vrsqrt.pop %v7734
    %v7736 = vmul.f32 %v7733, %v7735
    %v7737 = vld [vmem:[#allocation16] sm:$0x1]
    %v7738 = vmul.f32 %v7588, %v7736
    %v7739 = vsub.f32 %v7737, %v7738
    %v7740 = vld [vmem:[#allocation13] sm:$0xff]
    %v7741 = vld [vmem:[#allocation13 + $0x8] sm:$0xff]
    %v7742 = vld [vmem:[#allocation13 + $0x10] sm:$0xff]
    %v7743 = vld [vmem:[#allocation13 + $0x18] sm:$0xff]
    %v7744 = vld [vmem:[#allocation13 + $0x20] sm:$0xff]
    %v7745 = vld [vmem:[#allocation13 + $0x28] sm:$0xff]
    %v7746 = vld [vmem:[#allocation13 + $0x30] sm:$0xff]
    %v7747 = vld [vmem:[#allocation13 + $0x38] sm:$0xff]
    %v7748 = vld [vmem:[#allocation13 + $0x40] sm:$0xff]
    %v7749 = vld [vmem:[#allocation13 + $0x48] sm:$0xff]
    %v7750 = vld [vmem:[#allocation13 + $0x50] sm:$0xff]
    %v7751 = vld [vmem:[#allocation13 + $0x58] sm:$0xff]
    %v7752 = vld [vmem:[#allocation13 + $0x60] sm:$0xff]
    %v7753 = vld [vmem:[#allocation13 + $0x68] sm:$0xff]
    %v7754 = vld [vmem:[#allocation13 + $0x70] sm:$0xff]
    %v7755 = vld [vmem:[#allocation13 + $0x78] sm:$0xff]
    %vm7756 = vcmask 261120
    %v7758 = vsel %vm7756, %v7736, 0
    %7760 = vmatprep.subr.mxu0 %v7741
    %7761 = vmatpush1.msra.mxu0 %v7740
    %7762 = vmatprep.subr.mxu0 %v7745
    %7763 = vmatpush1.msra.mxu0 %v7744
    %7764 = vmatprep.subr.mxu0 %v7749
    %7765 = vmatpush1.msra.mxu0 %v7748
    %7766 = vmatprep.subr.mxu0 %v7753
    %7767 = vmatpush1.msra.mxu0 %v7752
    %7768 = vmatprep.subr.mxu0 0.0
    %7769 = vmatpush1.msra.mxu0 0.0
    %7770 = vmatprep.subr.mxu0 0.0
    %7771 = vmatpush1.msra.mxu0 0.0
    %7772 = vmatprep.subr.mxu0 0.0
    %7773 = vmatpush1.msra.mxu0 0.0
    %7774 = vmatprep.subr.mxu0 0.0
    %7775 = vmatpush1.msra.mxu0 0.0
    %7776 = vmatprep.subr.mxu0 0.0
    %7777 = vmatpush1.msra.mxu0 0.0
    %7778 = vmatprep.subr.mxu0 0.0
    %7779 = vmatpush1.msra.mxu0 0.0
    %7780 = vmatprep.subr.mxu0 0.0
    %7781 = vmatpush1.msra.mxu0 0.0
    %7782 = vmatprep.subr.mxu0 0.0
    %7783 = vmatpush1.msra.mxu0 0.0
    %7784 = vmatprep.subr.mxu0 0.0
    %7785 = vmatpush1.msra.mxu0 0.0
    %7786 = vmatprep.subr.mxu0 0.0
    %7787 = vmatpush1.msra.mxu0 0.0
    %7788 = vmatprep.subr.mxu0 0.0
    %7789 = vmatpush1.msra.mxu0 0.0
    %7790 = vmatprep.subr.mxu0 0.0
    %7791 = vmatpush1.msra.mxu0 0.0
    %7792 = vmatprep.subr.mxu0 0.0
    %7793 = vmatpush1.msra.mxu0 0.0
    %7794 = vmatprep.subr.mxu0 0.0
    %7795 = vmatpush1.msra.mxu0 0.0
    %7796 = vmatprep.subr.mxu0 0.0
    %7797 = vmatpush1.msra.mxu0 0.0
    %7798 = vmatprep.subr.mxu0 0.0
    %7799 = vmatpush1.msra.mxu0 0.0
    %7800 = vmatprep.subr.mxu0 0.0
    %7801 = vmatpush1.msra.mxu0 0.0
    %7802 = vmatprep.subr.mxu0 0.0
    %7803 = vmatpush1.msra.mxu0 0.0
    %7804 = vmatprep.subr.mxu0 0.0
    %7805 = vmatpush1.msra.mxu0 0.0
    %7806 = vmatprep.subr.mxu0 0.0
    %7807 = vmatpush1.msra.mxu0 0.0
    %7808 = vmatprep.subr.mxu0 0.0
    %7809 = vmatpush1.msra.mxu0 0.0
    %7810 = vmatprep.subr.mxu0 0.0
    %7811 = vmatpush1.msra.mxu0 0.0
    %7812 = vmatprep.subr.mxu0 0.0
    %7813 = vmatpush1.msra.mxu0 0.0
    %7814 = vmatprep.subr.mxu0 0.0
    %7815 = vmatpush1.msra.mxu0 0.0
    %7816 = vmatprep.subr.mxu0 0.0
    %7817 = vmatpush1.msra.mxu0 0.0
    %7818 = vmatprep.subr.mxu0 0.0
    %7819 = vmatpush1.msra.mxu0 0.0
    %7820 = vmatprep.subr.mxu0 0.0
    %7821 = vmatpush1.msra.mxu0 0.0
    %7822 = vmatprep.subr.mxu0 0.0
    %7823 = vmatpush1.msra.mxu0 0.0
    %7824 = vmatprep.mubr.f32.mxu0 0.0
    %7825 = vmatmul.mubr.f32.gmra.mrb[0].mxu0 %v7758
    %v7826 = vpop.f32.mrb[0].mxu0
    %v7827 = vadd.f32 0.0, %v7826
    %v7828 = vpop.f32.mrb[0].mxu0
    %v7829 = vadd.f32 0.0, %v7828
    %7830 = vdwg.mxu0
    %7831 = vmatprep.subr.mxu0 %v7743
    %7832 = vmatpush1.msra.mxu0 %v7742
    %7833 = vmatprep.subr.mxu0 %v7747
    %7834 = vmatpush1.msra.mxu0 %v7746
    %7835 = vmatprep.subr.mxu0 %v7751
    %7836 = vmatpush1.msra.mxu0 %v7750
    %7837 = vmatprep.subr.mxu0 %v7755
    %7838 = vmatpush1.msra.mxu0 %v7754
    %7839 = vmatprep.subr.mxu0 0.0
    %7840 = vmatpush1.msra.mxu0 0.0
    %7841 = vmatprep.subr.mxu0 0.0
    %7842 = vmatpush1.msra.mxu0 0.0
    %7843 = vmatprep.subr.mxu0 0.0
    %7844 = vmatpush1.msra.mxu0 0.0
    %7845 = vmatprep.subr.mxu0 0.0
    %7846 = vmatpush1.msra.mxu0 0.0
    %7847 = vmatprep.subr.mxu0 0.0
    %7848 = vmatpush1.msra.mxu0 0.0
    %7849 = vmatprep.subr.mxu0 0.0
    %7850 = vmatpush1.msra.mxu0 0.0
    %7851 = vmatprep.subr.mxu0 0.0
    %7852 = vmatpush1.msra.mxu0 0.0
    %7853 = vmatprep.subr.mxu0 0.0
    %7854 = vmatpush1.msra.mxu0 0.0
    %7855 = vmatprep.subr.mxu0 0.0
    %7856 = vmatpush1.msra.mxu0 0.0
    %7857 = vmatprep.subr.mxu0 0.0
    %7858 = vmatpush1.msra.mxu0 0.0
    %7859 = vmatprep.subr.mxu0 0.0
    %7860 = vmatpush1.msra.mxu0 0.0
    %7861 = vmatprep.subr.mxu0 0.0
    %7862 = vmatpush1.msra.mxu0 0.0
    %7863 = vmatprep.subr.mxu0 0.0
    %7864 = vmatpush1.msra.mxu0 0.0
    %7865 = vmatprep.subr.mxu0 0.0
    %7866 = vmatpush1.msra.mxu0 0.0
    %7867 = vmatprep.subr.mxu0 0.0
    %7868 = vmatpush1.msra.mxu0 0.0
    %7869 = vmatprep.subr.mxu0 0.0
    %7870 = vmatpush1.msra.mxu0 0.0
    %7871 = vmatprep.subr.mxu0 0.0
    %7872 = vmatpush1.msra.mxu0 0.0
    %7873 = vmatprep.subr.mxu0 0.0
    %7874 = vmatpush1.msra.mxu0 0.0
    %7875 = vmatprep.subr.mxu0 0.0
    %7876 = vmatpush1.msra.mxu0 0.0
    %7877 = vmatprep.subr.mxu0 0.0
    %7878 = vmatpush1.msra.mxu0 0.0
    %7879 = vmatprep.subr.mxu0 0.0
    %7880 = vmatpush1.msra.mxu0 0.0
    %7881 = vmatprep.subr.mxu0 0.0
    %7882 = vmatpush1.msra.mxu0 0.0
    %7883 = vmatprep.subr.mxu0 0.0
    %7884 = vmatpush1.msra.mxu0 0.0
    %7885 = vmatprep.subr.mxu0 0.0
    %7886 = vmatpush1.msra.mxu0 0.0
    %7887 = vmatprep.subr.mxu0 0.0
    %7888 = vmatpush1.msra.mxu0 0.0
    %7889 = vmatprep.subr.mxu0 0.0
    %7890 = vmatpush1.msra.mxu0 0.0
    %7891 = vmatprep.subr.mxu0 0.0
    %7892 = vmatpush1.msra.mxu0 0.0
    %7893 = vmatprep.subr.mxu0 0.0
    %7894 = vmatpush1.msra.mxu0 0.0
    %7895 = vmatprep.mubr.f32.mxu0 0.0
    %7896 = vmatmul.mubr.f32.gmra.mrb[0].mxu0 %v7758
    %v7897 = vpop.f32.mrb[0].mxu0
    %v7898 = vadd.f32 0.0, %v7897
    %v7899 = vpop.f32.mrb[0].mxu0
    %v7900 = vadd.f32 0.0, %v7899
    %7901 = vdwg.mxu0
    %v7903 = vsel %vm7756, %v7739, 0
    %7905 = vmatprep.subr.mxu0 %v7741
    %7906 = vmatpush1.msra.mxu0 %v7740
    %7907 = vmatprep.subr.mxu0 %v7745
    %7908 = vmatpush1.msra.mxu0 %v7744
    %7909 = vmatprep.subr.mxu0 %v7749
    %7910 = vmatpush1.msra.mxu0 %v7748
    %7911 = vmatprep.subr.mxu0 %v7753
    %7912 = vmatpush1.msra.mxu0 %v7752
    %7913 = vmatprep.subr.mxu0 0.0
    %7914 = vmatpush1.msra.mxu0 0.0
    %7915 = vmatprep.subr.mxu0 0.0
    %7916 = vmatpush1.msra.mxu0 0.0
    %7917 = vmatprep.subr.mxu0 0.0
    %7918 = vmatpush1.msra.mxu0 0.0
    %7919 = vmatprep.subr.mxu0 0.0
    %7920 = vmatpush1.msra.mxu0 0.0
    %7921 = vmatprep.subr.mxu0 0.0
    %7922 = vmatpush1.msra.mxu0 0.0
    %7923 = vmatprep.subr.mxu0 0.0
    %7924 = vmatpush1.msra.mxu0 0.0
    %7925 = vmatprep.subr.mxu0 0.0
    %7926 = vmatpush1.msra.mxu0 0.0
    %7927 = vmatprep.subr.mxu0 0.0
    %7928 = vmatpush1.msra.mxu0 0.0
    %7929 = vmatprep.subr.mxu0 0.0
    %7930 = vmatpush1.msra.mxu0 0.0
    %7931 = vmatprep.subr.mxu0 0.0
    %7932 = vmatpush1.msra.mxu0 0.0
    %7933 = vmatprep.subr.mxu0 0.0
    %7934 = vmatpush1.msra.mxu0 0.0
    %7935 = vmatprep.subr.mxu0 0.0
    %7936 = vmatpush1.msra.mxu0 0.0
    %7937 = vmatprep.subr.mxu0 0.0
    %7938 = vmatpush1.msra.mxu0 0.0
    %7939 = vmatprep.subr.mxu0 0.0
    %7940 = vmatpush1.msra.mxu0 0.0
    %7941 = vmatprep.subr.mxu0 0.0
    %7942 = vmatpush1.msra.mxu0 0.0
    %7943 = vmatprep.subr.mxu0 0.0
    %7944 = vmatpush1.msra.mxu0 0.0
    %7945 = vmatprep.subr.mxu0 0.0
    %7946 = vmatpush1.msra.mxu0 0.0
    %7947 = vmatprep.subr.mxu0 0.0
    %7948 = vmatpush1.msra.mxu0 0.0
    %7949 = vmatprep.subr.mxu0 0.0
    %7950 = vmatpush1.msra.mxu0 0.0
    %7951 = vmatprep.subr.mxu0 0.0
    %7952 = vmatpush1.msra.mxu0 0.0
    %7953 = vmatprep.subr.mxu0 0.0
    %7954 = vmatpush1.msra.mxu0 0.0
    %7955 = vmatprep.subr.mxu0 0.0
    %7956 = vmatpush1.msra.mxu0 0.0
    %7957 = vmatprep.subr.mxu0 0.0
    %7958 = vmatpush1.msra.mxu0 0.0
    %7959 = vmatprep.subr.mxu0 0.0
    %7960 = vmatpush1.msra.mxu0 0.0
    %7961 = vmatprep.subr.mxu0 0.0
    %7962 = vmatpush1.msra.mxu0 0.0
    %7963 = vmatprep.subr.mxu0 0.0
    %7964 = vmatpush1.msra.mxu0 0.0
    %7965 = vmatprep.subr.mxu0 0.0
    %7966 = vmatpush1.msra.mxu0 0.0
    %7967 = vmatprep.subr.mxu0 0.0
    %7968 = vmatpush1.msra.mxu0 0.0
    %7969 = vmatprep.mubr.f32.mxu0 0.0
    %7970 = vmatmul.mubr.f32.gmra.mrb[0].mxu0 %v7903
    %v7971 = vpop.f32.mrb[0].mxu0
    %v7972 = vadd.f32 0.0, %v7971
    %v7973 = vpop.f32.mrb[0].mxu0
    %v7974 = vadd.f32 0.0, %v7973
    %7975 = vdwg.mxu0
    %7976 = vmatprep.subr.mxu0 %v7743
    %7977 = vmatpush1.msra.mxu0 %v7742
    %7978 = vmatprep.subr.mxu0 %v7747
    %7979 = vmatpush1.msra.mxu0 %v7746
    %7980 = vmatprep.subr.mxu0 %v7751
    %7981 = vmatpush1.msra.mxu0 %v7750
    %7982 = vmatprep.subr.mxu0 %v7755
    %7983 = vmatpush1.msra.mxu0 %v7754
    %7984 = vmatprep.subr.mxu0 0.0
    %7985 = vmatpush1.msra.mxu0 0.0
    %7986 = vmatprep.subr.mxu0 0.0
    %7987 = vmatpush1.msra.mxu0 0.0
    %7988 = vmatprep.subr.mxu0 0.0
    %7989 = vmatpush1.msra.mxu0 0.0
    %7990 = vmatprep.subr.mxu0 0.0
    %7991 = vmatpush1.msra.mxu0 0.0
    %7992 = vmatprep.subr.mxu0 0.0
    %7993 = vmatpush1.msra.mxu0 0.0
    %7994 = vmatprep.subr.mxu0 0.0
    %7995 = vmatpush1.msra.mxu0 0.0
    %7996 = vmatprep.subr.mxu0 0.0
    %7997 = vmatpush1.msra.mxu0 0.0
    %7998 = vmatprep.subr.mxu0 0.0
    %7999 = vmatpush1.msra.mxu0 0.0
    %8000 = vmatprep.subr.mxu0 0.0
    %8001 = vmatpush1.msra.mxu0 0.0
    %8002 = vmatprep.subr.mxu0 0.0
    %8003 = vmatpush1.msra.mxu0 0.0
    %8004 = vmatprep.subr.mxu0 0.0
    %8005 = vmatpush1.msra.mxu0 0.0
    %8006 = vmatprep.subr.mxu0 0.0
    %8007 = vmatpush1.msra.mxu0 0.0
    %8008 = vmatprep.subr.mxu0 0.0
    %8009 = vmatpush1.msra.mxu0 0.0
    %8010 = vmatprep.subr.mxu0 0.0
    %8011 = vmatpush1.msra.mxu0 0.0
    %8012 = vmatprep.subr.mxu0 0.0
    %8013 = vmatpush1.msra.mxu0 0.0
    %8014 = vmatprep.subr.mxu0 0.0
    %8015 = vmatpush1.msra.mxu0 0.0
    %8016 = vmatprep.subr.mxu0 0.0
    %8017 = vmatpush1.msra.mxu0 0.0
    %8018 = vmatprep.subr.mxu0 0.0
    %8019 = vmatpush1.msra.mxu0 0.0
    %8020 = vmatprep.subr.mxu0 0.0
    %8021 = vmatpush1.msra.mxu0 0.0
    %8022 = vmatprep.subr.mxu0 0.0
    %8023 = vmatpush1.msra.mxu0 0.0
    %8024 = vmatprep.subr.mxu0 0.0
    %8025 = vmatpush1.msra.mxu0 0.0
    %8026 = vmatprep.subr.mxu0 0.0
    %8027 = vmatpush1.msra.mxu0 0.0
    %8028 = vmatprep.subr.mxu0 0.0
    %8029 = vmatpush1.msra.mxu0 0.0
    %8030 = vmatprep.subr.mxu0 0.0
    %8031 = vmatpush1.msra.mxu0 0.0
    %8032 = vmatprep.subr.mxu0 0.0
    %8033 = vmatpush1.msra.mxu0 0.0
    %8034 = vmatprep.subr.mxu0 0.0
    %8035 = vmatpush1.msra.mxu0 0.0
    %8036 = vmatprep.subr.mxu0 0.0
    %8037 = vmatpush1.msra.mxu0 0.0
    %8038 = vmatprep.subr.mxu0 0.0
    %8039 = vmatpush1.msra.mxu0 0.0
    %8040 = vmatprep.mubr.f32.mxu0 0.0
    %8041 = vmatmul.mubr.f32.gmra.mrb[0].mxu0 %v7903
    %v8042 = vpop.f32.mrb[0].mxu0
    %v8043 = vadd.f32 0.0, %v8042
    %v8044 = vpop.f32.mrb[0].mxu0
    %v8045 = vadd.f32 0.0, %v8044
    %8046 = vdwg.mxu0
    %v8047 = vlaneseq
    %v8048 = vshrl.u32 %v8047, 7
    %v8049 = vsub.s32 0, %v8048
    %v8050 = vrot.slane %v7827, %v8049
    %v8051 = vlaneseq
    %v8052 = vshrl.u32 %v8051, 7
    %v8053 = vsub.s32 0, %v8052
    %v8054 = vrot.slane %v7829, %v8053
    %v8055 = vlaneseq
    %v8056 = vshrl.u32 %v8055, 7
    %v8057 = vsub.s32 0, %v8056
    %v8058 = vrot.slane %v7898, %v8057
    %v8059 = vlaneseq
    %v8060 = vshrl.u32 %v8059, 7
    %v8061 = vsub.s32 0, %v8060
    %v8062 = vrot.slane %v7900, %v8061
    %v8063 = vmul.f32 %v7154, %v8050
    %v8064 = vmul.f32 %v7156, %v8054
    %v8065 = vmul.f32 %v7318, %v8058
    %v8066 = vmul.f32 %v7320, %v8062
    %v8067 = vlaneseq
    %v8068 = vshrl.u32 %v8067, 7
    %v8069 = vsub.s32 0, %v8068
    %v8070 = vrot.slane %v7972, %v8069
    %v8071 = vlaneseq
    %v8072 = vshrl.u32 %v8071, 7
    %v8073 = vsub.s32 0, %v8072
    %v8074 = vrot.slane %v7974, %v8073
    %v8075 = vlaneseq
    %v8076 = vshrl.u32 %v8075, 7
    %v8077 = vsub.s32 0, %v8076
    %v8078 = vrot.slane %v8043, %v8077
    %v8079 = vlaneseq
    %v8080 = vshrl.u32 %v8079, 7
    %v8081 = vsub.s32 0, %v8080
    %v8082 = vrot.slane %v8045, %v8081
    %v8083 = vadd.f32 %v8063, %v8070
    %v8084 = vadd.f32 %v8064, %v8074
    %v8085 = vadd.f32 %v8065, %v8078
    %v8086 = vadd.f32 %v8066, %v8082
    %v8087 = vmax.f32 %v8083, 0.0
    %v8088 = vmax.f32 %v8084, 0.0
    %v8089 = vmax.f32 %v8085, 0.0
    %v8090 = vmax.f32 %v8086, 0.0
    %v8091 = vpack.c.bf16 %v8087, %v8087
    %v8092 = vpack.c.bf16 %v8088, %v8088
    %v8093 = vpack.c.bf16 %v8089, %v8089
    %v8094 = vpack.c.bf16 %v8090, %v8090
    %v8095 = vld [vmem:[%s11] sm:$0xf]
    %v8096 = vld [vmem:[%s11 + $0x4] sm:$0xf]
    %v8097 = vld [vmem:[%s11 + $0x8] sm:$0xf]
    %v8098 = vld [vmem:[%s11 + $0xc] sm:$0xf]
    %v8099 = vld [vmem:[%s11 + $0x10] sm:$0xf]
    %v8100 = vld [vmem:[%s11 + $0x14] sm:$0xf]
    %v8101 = vld [vmem:[%s11 + $0x18] sm:$0xf]
    %v8102 = vld [vmem:[%s11 + $0x1c] sm:$0xf]
    %v8103 = vld [vmem:[%s11 + $0x20] sm:$0xf]
    %v8104 = vld [vmem:[%s11 + $0x24] sm:$0xf]
    %v8105 = vld [vmem:[%s11 + $0x28] sm:$0xf]
    %v8106 = vld [vmem:[%s11 + $0x2c] sm:$0xf]
    %v8107 = vld [vmem:[%s11 + $0x30] sm:$0xf]
    %v8108 = vld [vmem:[%s11 + $0x34] sm:$0xf]
    %v8109 = vld [vmem:[%s11 + $0x38] sm:$0xf]
    %v8110 = vld [vmem:[%s11 + $0x3c] sm:$0xf]
    %v8111 = vld [vmem:[%s11 + $0x40] sm:$0xf]
    %v8112 = vld [vmem:[%s11 + $0x44] sm:$0xf]
    %v8113 = vld [vmem:[%s11 + $0x48] sm:$0xf]
    %v8114 = vld [vmem:[%s11 + $0x4c] sm:$0xf]
    %v8115 = vld [vmem:[%s11 + $0x50] sm:$0xf]
    %v8116 = vld [vmem:[%s11 + $0x54] sm:$0xf]
    %v8117 = vld [vmem:[%s11 + $0x58] sm:$0xf]
    %v8118 = vld [vmem:[%s11 + $0x5c] sm:$0xf]
    %v8119 = vld [vmem:[%s11 + $0x60] sm:$0xf]
    %v8120 = vld [vmem:[%s11 + $0x64] sm:$0xf]
    %v8121 = vld [vmem:[%s11 + $0x68] sm:$0xf]
    %v8122 = vld [vmem:[%s11 + $0x6c] sm:$0xf]
    %v8123 = vld [vmem:[%s11 + $0x70] sm:$0xf]
    %v8124 = vld [vmem:[%s11 + $0x74] sm:$0xf]
    %v8125 = vld [vmem:[%s11 + $0x78] sm:$0xf]
    %v8126 = vld [vmem:[%s11 + $0x7c] sm:$0xf]
    %v8127 = vld [vmem:[%s11 + $0x80] sm:$0xf]
    %v8128 = vld [vmem:[%s11 + $0x84] sm:$0xf]
    %v8129 = vld [vmem:[%s11 + $0x88] sm:$0xf]
    %v8130 = vld [vmem:[%s11 + $0x8c] sm:$0xf]
    %v8131 = vld [vmem:[%s11 + $0x90] sm:$0xf]
    %v8132 = vld [vmem:[%s11 + $0x94] sm:$0xf]
    %v8133 = vld [vmem:[%s11 + $0x98] sm:$0xf]
    %v8134 = vld [vmem:[%s11 + $0x9c] sm:$0xf]
    %v8135 = vld [vmem:[%s11 + $0xa0] sm:$0xf]
    %v8136 = vld [vmem:[%s11 + $0xa4] sm:$0xf]
    %v8137 = vld [vmem:[%s11 + $0xa8] sm:$0xf]
    %v8138 = vld [vmem:[%s11 + $0xac] sm:$0xf]
    %v8139 = vld [vmem:[%s11 + $0xb0] sm:$0xf]
    %v8140 = vld [vmem:[%s11 + $0xb4] sm:$0xf]
    %v8141 = vld [vmem:[%s11 + $0xb8] sm:$0xf]
    %v8142 = vld [vmem:[%s11 + $0xbc] sm:$0xf]
    %v8143 = vld [vmem:[%s11 + $0xc0] sm:$0xf]
    %v8144 = vld [vmem:[%s11 + $0xc4] sm:$0xf]
    %v8145 = vld [vmem:[%s11 + $0xc8] sm:$0xf]
    %v8146 = vld [vmem:[%s11 + $0xcc] sm:$0xf]
    %v8147 = vld [vmem:[%s11 + $0xd0] sm:$0xf]
    %v8148 = vld [vmem:[%s11 + $0xd4] sm:$0xf]
    %v8149 = vld [vmem:[%s11 + $0xd8] sm:$0xf]
    %v8150 = vld [vmem:[%s11 + $0xdc] sm:$0xf]
    %v8151 = vld [vmem:[%s11 + $0xe0] sm:$0xf]
    %v8152 = vld [vmem:[%s11 + $0xe4] sm:$0xf]
    %v8153 = vld [vmem:[%s11 + $0xe8] sm:$0xf]
    %v8154 = vld [vmem:[%s11 + $0xec] sm:$0xf]
    %v8155 = vld [vmem:[%s11 + $0xf0] sm:$0xf]
    %v8156 = vld [vmem:[%s11 + $0xf4] sm:$0xf]
    %v8157 = vld [vmem:[%s11 + $0xf8] sm:$0xf]
    %v8158 = vld [vmem:[%s11 + $0xfc] sm:$0xf]
    %v8159 = vld [vmem:[#allocation17] sm:$0x1]
    %v8161 = vlaneseq
    %v8162 = vshrl.u32 %v8161, 7
    %v8163 = vsub.s32 0, %v8162
    %v8164 = vrot.slane %v8159, %v8163
    %v8230 = vunpack.c.l.b16 %v8095
    %v8231 = vunpack.c.l.b16 %v8096
    %v8232 = vunpack.c.l.b16 %v8097
    %v8233 = vunpack.c.l.b16 %v8098
    %v8234 = vunpack.c.l.b16 %v8099
    %v8235 = vunpack.c.l.b16 %v8100
    %v8236 = vunpack.c.l.b16 %v8101
    %v8237 = vunpack.c.l.b16 %v8102
    %v8238 = vunpack.c.l.b16 %v8103
    %v8239 = vunpack.c.l.b16 %v8104
    %v8240 = vunpack.c.l.b16 %v8105
    %v8241 = vunpack.c.l.b16 %v8106
    %v8242 = vunpack.c.l.b16 %v8107
    %v8243 = vunpack.c.l.b16 %v8108
    %v8244 = vunpack.c.l.b16 %v8109
    %v8245 = vunpack.c.l.b16 %v8110
    %v8246 = vunpack.c.l.b16 %v8111
    %v8247 = vunpack.c.l.b16 %v8112
    %v8248 = vunpack.c.l.b16 %v8113
    %v8249 = vunpack.c.l.b16 %v8114
    %v8250 = vunpack.c.l.b16 %v8115
    %v8251 = vunpack.c.l.b16 %v8116
    %v8252 = vunpack.c.l.b16 %v8117
    %v8253 = vunpack.c.l.b16 %v8118
    %v8254 = vunpack.c.l.b16 %v8119
    %v8255 = vunpack.c.l.b16 %v8120
    %v8256 = vunpack.c.l.b16 %v8121
    %v8257 = vunpack.c.l.b16 %v8122
    %v8258 = vunpack.c.l.b16 %v8123
    %v8259 = vunpack.c.l.b16 %v8124
    %v8260 = vunpack.c.l.b16 %v8125
    %v8261 = vunpack.c.l.b16 %v8126
    %v8262 = vunpack.c.l.b16 %v8127
    %v8263 = vunpack.c.l.b16 %v8128
    %v8264 = vunpack.c.l.b16 %v8129
    %v8265 = vunpack.c.l.b16 %v8130
    %v8266 = vunpack.c.l.b16 %v8131
    %v8267 = vunpack.c.l.b16 %v8132
    %v8268 = vunpack.c.l.b16 %v8133
    %v8269 = vunpack.c.l.b16 %v8134
    %v8270 = vunpack.c.l.b16 %v8135
    %v8271 = vunpack.c.l.b16 %v8136
    %v8272 = vunpack.c.l.b16 %v8137
    %v8273 = vunpack.c.l.b16 %v8138
    %v8274 = vunpack.c.l.b16 %v8139
    %v8275 = vunpack.c.l.b16 %v8140
    %v8276 = vunpack.c.l.b16 %v8141
    %v8277 = vunpack.c.l.b16 %v8142
    %v8278 = vunpack.c.l.b16 %v8143
    %v8279 = vunpack.c.l.b16 %v8144
    %v8280 = vunpack.c.l.b16 %v8145
    %v8281 = vunpack.c.l.b16 %v8146
    %v8282 = vunpack.c.l.b16 %v8147
    %v8283 = vunpack.c.l.b16 %v8148
    %v8284 = vunpack.c.l.b16 %v8149
    %v8285 = vunpack.c.l.b16 %v8150
    %v8286 = vunpack.c.l.b16 %v8151
    %v8287 = vunpack.c.l.b16 %v8152
    %v8288 = vunpack.c.l.b16 %v8153
    %v8289 = vunpack.c.l.b16 %v8154
    %v8290 = vunpack.c.l.b16 %v8155
    %v8291 = vunpack.c.l.b16 %v8156
    %v8292 = vunpack.c.l.b16 %v8157
    %v8293 = vunpack.c.l.b16 %v8158
    %v8294 = vpack.c.b16 %v8231, %v8230
    %v8295 = vpack.c.b16 %v8233, %v8232
    %v8296 = vpack.c.b16 %v8235, %v8234
    %v8297 = vpack.c.b16 %v8237, %v8236
    %v8298 = vpack.c.b16 %v8239, %v8238
    %v8299 = vpack.c.b16 %v8241, %v8240
    %v8300 = vpack.c.b16 %v8243, %v8242
    %v8301 = vpack.c.b16 %v8245, %v8244
    %v8302 = vpack.c.b16 %v8247, %v8246
    %v8303 = vpack.c.b16 %v8249, %v8248
    %v8304 = vpack.c.b16 %v8251, %v8250
    %v8305 = vpack.c.b16 %v8253, %v8252
    %v8306 = vpack.c.b16 %v8255, %v8254
    %v8307 = vpack.c.b16 %v8257, %v8256
    %v8308 = vpack.c.b16 %v8259, %v8258
    %v8309 = vpack.c.b16 %v8261, %v8260
    %v8310 = vpack.c.b16 %v8263, %v8262
    %v8311 = vpack.c.b16 %v8265, %v8264
    %v8312 = vpack.c.b16 %v8267, %v8266
    %v8313 = vpack.c.b16 %v8269, %v8268
    %v8314 = vpack.c.b16 %v8271, %v8270
    %v8315 = vpack.c.b16 %v8273, %v8272
    %v8316 = vpack.c.b16 %v8275, %v8274
    %v8317 = vpack.c.b16 %v8277, %v8276
    %v8318 = vpack.c.b16 %v8279, %v8278
    %v8319 = vpack.c.b16 %v8281, %v8280
    %v8320 = vpack.c.b16 %v8283, %v8282
    %v8321 = vpack.c.b16 %v8285, %v8284
    %v8322 = vpack.c.b16 %v8287, %v8286
    %v8323 = vpack.c.b16 %v8289, %v8288
    %v8324 = vpack.c.b16 %v8291, %v8290
    %v8325 = vpack.c.b16 %v8293, %v8292
    %8358 = vmatprep.subr.bf16.mxu0 0
    %8359 = vmatpush1.bf16.msra.mxu0 %v8294
    %8360 = vmatprep.subr.bf16.mxu0 0
    %8361 = vmatpush1.bf16.msra.mxu0 %v8295
    %8362 = vmatprep.subr.bf16.mxu0 0
    %8363 = vmatpush1.bf16.msra.mxu0 %v8296
    %8364 = vmatprep.subr.bf16.mxu0 0
    %8365 = vmatpush1.bf16.msra.mxu0 %v8297
    %8366 = vmatprep.subr.bf16.mxu0 0
    %8367 = vmatpush1.bf16.msra.mxu0 %v8298
    %8368 = vmatprep.subr.bf16.mxu0 0
    %8369 = vmatpush1.bf16.msra.mxu0 %v8299
    %8370 = vmatprep.subr.bf16.mxu0 0
    %8371 = vmatpush1.bf16.msra.mxu0 %v8300
    %8372 = vmatprep.subr.bf16.mxu0 0
    %8373 = vmatpush1.bf16.msra.mxu0 %v8301
    %8374 = vmatprep.subr.bf16.mxu0 0
    %8375 = vmatpush1.bf16.msra.mxu0 %v8302
    %8376 = vmatprep.subr.bf16.mxu0 0
    %8377 = vmatpush1.bf16.msra.mxu0 %v8303
    %8378 = vmatprep.subr.bf16.mxu0 0
    %8379 = vmatpush1.bf16.msra.mxu0 %v8304
    %8380 = vmatprep.subr.bf16.mxu0 0
    %8381 = vmatpush1.bf16.msra.mxu0 %v8305
    %8382 = vmatprep.subr.bf16.mxu0 0
    %8383 = vmatpush1.bf16.msra.mxu0 %v8306
    %8384 = vmatprep.subr.bf16.mxu0 0
    %8385 = vmatpush1.bf16.msra.mxu0 %v8307
    %8386 = vmatprep.subr.bf16.mxu0 0
    %8387 = vmatpush1.bf16.msra.mxu0 %v8308
    %8388 = vmatprep.subr.bf16.mxu0 0
    %8389 = vmatpush1.bf16.msra.mxu0 %v8309
    %8390 = vmatprep.mubr.bf16.mxu0 %v8092
    %8391 = vmatmul.mubr.bf16.gmra.mrb[0].mxu0 %v8091
    %v8392 = vpop.f32.mrb[0].mxu0
    %v8393 = vadd.f32 %v8164, %v8392
    %v8394 = vpop.f32.mrb[0].mxu0
    %v8395 = vpop.f32.mrb[0].mxu0
    %v8396 = vpop.f32.mrb[0].mxu0
    %8397 = vdwg.mxu0
    %8398 = vmatprep.subr.bf16.mxu0 0
    %8399 = vmatpush1.bf16.msra.mxu0 %v8310
    %8400 = vmatprep.subr.bf16.mxu0 0
    %8401 = vmatpush1.bf16.msra.mxu0 %v8311
    %8402 = vmatprep.subr.bf16.mxu0 0
    %8403 = vmatpush1.bf16.msra.mxu0 %v8312
    %8404 = vmatprep.subr.bf16.mxu0 0
    %8405 = vmatpush1.bf16.msra.mxu0 %v8313
    %8406 = vmatprep.subr.bf16.mxu0 0
    %8407 = vmatpush1.bf16.msra.mxu0 %v8314
    %8408 = vmatprep.subr.bf16.mxu0 0
    %8409 = vmatpush1.bf16.msra.mxu0 %v8315
    %8410 = vmatprep.subr.bf16.mxu0 0
    %8411 = vmatpush1.bf16.msra.mxu0 %v8316
    %8412 = vmatprep.subr.bf16.mxu0 0
    %8413 = vmatpush1.bf16.msra.mxu0 %v8317
    %8414 = vmatprep.subr.bf16.mxu0 0
    %8415 = vmatpush1.bf16.msra.mxu0 %v8318
    %8416 = vmatprep.subr.bf16.mxu0 0
    %8417 = vmatpush1.bf16.msra.mxu0 %v8319
    %8418 = vmatprep.subr.bf16.mxu0 0
    %8419 = vmatpush1.bf16.msra.mxu0 %v8320
    %8420 = vmatprep.subr.bf16.mxu0 0
    %8421 = vmatpush1.bf16.msra.mxu0 %v8321
    %8422 = vmatprep.subr.bf16.mxu0 0
    %8423 = vmatpush1.bf16.msra.mxu0 %v8322
    %8424 = vmatprep.subr.bf16.mxu0 0
    %8425 = vmatpush1.bf16.msra.mxu0 %v8323
    %8426 = vmatprep.subr.bf16.mxu0 0
    %8427 = vmatpush1.bf16.msra.mxu0 %v8324
    %8428 = vmatprep.subr.bf16.mxu0 0
    %8429 = vmatpush1.bf16.msra.mxu0 %v8325
    %8430 = vmatprep.mubr.bf16.mxu0 %v8094
    %8431 = vmatmul.mubr.bf16.gmra.mrb[0].mxu0 %v8093
    %v8432 = vpop.f32.mrb[0].mxu0
    %v8433 = vadd.f32 %v8393, %v8432
    %v8434 = vpop.f32.mrb[0].mxu0
    %v8435 = vpop.f32.mrb[0].mxu0
    %v8436 = vpop.f32.mrb[0].mxu0
    %8437 = vdwg.mxu0
    %v8438 = vmax.f32 %v8433, 0.0
    %vm8439 = vcmask 254976
    %8440 = vst.msk [vmem:[#allocation19] sm:$0x3] %vm8439, %v8438
    // Predicated region
    $region94: #{tpu_custom_call.1} parent=1 // pred_check
      _
    $region95: #{tpu_custom_call.1} parent=1 // pred_check_branch
      %8442 = sbr.rel (0) target = $region97
    $region96: #{tpu_custom_call.1} parent=1 // pred_region
      %s8444 = ssub.s32 32, 32
      %8445 = vsyncadd [#allocation4], %s8444
      %s8447 = sshll.u32 [#allocation19], 4
      %s8448 = int_to_ptr.vmem [resolvable:$true] %s8447
      %8450 = dma.vmem_to_hbm [thread:$0]  %s8448, 32, %s13, [#allocation4]
    $region97: #{tpu_custom_call.1} parent=1 // pred_fallthru
      _
    // Predicated region
    $region98: #{tpu_custom_call.1} parent=1 // pred_check
      _
    $region99: #{tpu_custom_call.1} parent=1 // pred_check_branch
      %8452 = sbr.rel (0) target = $region101
    $region100: #{tpu_custom_call.1} parent=1 // pred_region
      %8453 = dma.done [#allocation4], 32
    $region101: #{tpu_custom_call.1} parent=1 // pred_fallthru
      _
    %8454 = vsyncpa [#allocation3], 1
    %8455 = vsyncpa [#allocation6], 1
    %8456 = vsyncpa [#allocation9], 1
    %8457 = vsyncpa [#allocation12], 1
    %8458 = vsyncpa [#allocation15], 1
    %8459 = vsyncpa [#allocation18], 1
    %8460 = vsyncpa [#allocation4], 1

</llo_original>
